<compile_context>
chip_gen: v7x
topology: tpu7x:2x2x1
jax: 0.10.0
libtpu: 0.0.40
codegen_flags: <defaults>
</compile_context>

<pallas_src>
import math

import jax
import jax.numpy as jnp
from jax import lax
from jax.experimental import pallas as pl
from jax.experimental.pallas import tpu as pltpu

BN_EPS = 1e-5


def _bilinear_upsample_matrix(size_in: int) -> jnp.ndarray:
    """1-D 2x bilinear interpolation matrix, PyTorch align_corners=False."""
    size_out = 2 * size_in
    rows = []
    for j in range(size_out):
        src = max(0.5 * j - 0.25, 0.0)
        i0 = min(int(math.floor(src)), size_in - 1)
        i1 = min(i0 + 1, size_in - 1)
        w1 = src - i0
        row = [0.0] * size_in
        row[i0] += 1.0 - w1
        row[i1] += w1
        rows.append(row)
    return jnp.asarray(rows, dtype=jnp.float32)


def _conv1x1_wupsample(x_ref, w_ref, awt_ref, zw_ref):
    """Per-image: 1x1 conv at input resolution + width upsample -> VMEM scratch.

    The channel contraction is tiny (C_in ~ 4), so it runs as VPU FMAs with
    SMEM scalar weights while the MXU handles the upsample matmuls.
    """
    c_out, c_in = w_ref.shape
    awt = awt_ref[...]                                    # (W_in, W_out)
    for o in range(c_out):
        z = w_ref[o, 0] * x_ref[0, 0]
        for c in range(1, c_in):
            z = z + w_ref[o, c] * x_ref[0, c]             # (H_in, W_in)
        zw_ref[o] = jnp.dot(z, awt, preferred_element_type=jnp.float32)


def _stats_kernel(x_ref, w_ref, awt_ref, ah_ref, psums_ref, zw_ref):
    """Pass 1: single-pass per-channel sum(y) / sum(y^2) of the BN input y."""
    n_idx = pl.program_id(0)
    t_idx = pl.program_id(1)
    c_out = w_ref.shape[0]

    @pl.when((n_idx == 0) & (t_idx == 0))
    def _init():
        psums_ref[...] = jnp.zeros_like(psums_ref)        # resident accumulator

    @pl.when(t_idx == 0)                                  # new image -> refresh scratch
    def _per_image():
        _conv1x1_wupsample(x_ref, w_ref, awt_ref, zw_ref)

    ah_t = ah_ref[...]                                    # (TH, H_in) rows of A_h
    for o in range(c_out):
        y = jnp.dot(ah_t, zw_ref[o], preferred_element_type=jnp.float32)  # (TH, W_out)
        psums_ref[o:o + 1, :] += jnp.sum(y, axis=0, keepdims=True)
        psums_ref[c_out + o:c_out + o + 1, :] += jnp.sum(y * y, axis=0, keepdims=True)


def _apply_kernel(x_ref, w_ref, awt_ref, ah_ref, scale_ref, shift_ref, out_ref, zw_ref):
    """Pass 2: recompute y per row tile, apply folded BN affine + ReLU, store."""
    t_idx = pl.program_id(1)
    c_out = w_ref.shape[0]

    @pl.when(t_idx == 0)
    def _per_image():
        _conv1x1_wupsample(x_ref, w_ref, awt_ref, zw_ref)

    ah_t = ah_ref[...]
    for o in range(c_out):
        y = jnp.dot(ah_t, zw_ref[o], preferred_element_type=jnp.float32)  # (TH, W_out)
        out_ref[0, o] = jnp.maximum(y * scale_ref[o] + shift_ref[o], 0.0)


def _upsample_conv_bn_relu(x, w, b, gamma, beta, *, h_tile=16):
    """One (Upsample2x bilinear -> Conv1x1 -> BatchNorm(train) -> ReLU) block."""
    del b  # conv bias cancels exactly under training-mode BatchNorm.
    n, c_in, h_in, w_in = x.shape
    c_out = w.shape[0]
    h_out, w_out = 2 * h_in, 2 * w_in

    ah = _bilinear_upsample_matrix(h_in)                  # (H_out, H_in)
    awt = _bilinear_upsample_matrix(w_in).T               # (W_in, W_out)

    # Output-row tile size (second-to-last block dim must stay 8-aligned).
    th = min(h_tile, h_out)
    while h_out % th:
        th //= 2
    if th % 8 != 0 and th != h_out:
        th = h_out
    n_t = h_out // th

    x = x.astype(jnp.float32)
    w = w.astype(jnp.float32)
    gamma = gamma.astype(jnp.float32)
    beta = beta.astype(jnp.float32)

    smem = pl.BlockSpec(memory_space=pltpu.MemorySpace.SMEM)
    x_spec = pl.BlockSpec((1, c_in, h_in, w_in), lambda nb, t: (nb, 0, 0, 0))
    awt_spec = pl.BlockSpec((w_in, w_out), lambda nb, t: (0, 0))
    ah_spec = pl.BlockSpec((th, h_in), lambda nb, t: (t, 0))
    zw_scratch = pltpu.VMEM((c_out, h_in, w_out), jnp.float32)

    flops = 2 * n * (h_in * w_in * c_in * c_out           # 1x1 conv
                     + c_out * h_in * w_in * w_out        # width upsample
                     + c_out * h_out * w_out * h_in)      # height upsample
    in_bytes = x.size * 4 + (w.size + ah.size + awt.size) * 4
    out_bytes = n * c_out * h_out * w_out * 4

    # ---- pass 1: global batch statistics (single-pass sums) ----------------
    psums = pl.pallas_call(
        _stats_kernel,
        out_shape=jax.ShapeDtypeStruct((2 * c_out, w_out), jnp.float32),
        grid_spec=pltpu.PrefetchScalarGridSpec(
            num_scalar_prefetch=0,
            grid=(n, n_t),
            in_specs=[x_spec, smem, awt_spec, ah_spec],
            out_specs=pl.BlockSpec((2 * c_out, w_out), lambda nb, t: (0, 0)),
            scratch_shapes=[zw_scratch],
        ),
        compiler_params=pltpu.CompilerParams(
            dimension_semantics=("arbitrary", "arbitrary"),  # carries accumulator
            vmem_limit_bytes=32 * 1024 * 1024,
        ),
        cost_estimate=pl.CostEstimate(
            flops=flops, transcendentals=0,
            bytes_accessed=in_bytes + 2 * c_out * w_out * 4),
    )(x, w, awt, ah)

    m_cnt = float(n * h_out * w_out)
    s1 = jnp.sum(psums[:c_out], axis=1)                   # per-channel sum(y)
    s2 = jnp.sum(psums[c_out:], axis=1)                   # per-channel sum(y^2)
    mean = s1 / m_cnt
    var = s2 / m_cnt - mean * mean                        # biased (training-mode BN)
    scale = gamma * lax.rsqrt(var + BN_EPS)
    shift = beta - mean * scale                           # folded BN affine

    # ---- pass 2: normalize + ReLU, pipelined output row tiles --------------
    out = pl.pallas_call(
        _apply_kernel,
        out_shape=jax.ShapeDtypeStruct((n, c_out, h_out, w_out), jnp.float32),
        grid_spec=pltpu.PrefetchScalarGridSpec(
            num_scalar_prefetch=0,
            grid=(n, n_t),
            in_specs=[x_spec, smem, awt_spec, ah_spec, smem, smem],
            out_specs=pl.BlockSpec((1, c_out, th, w_out), lambda nb, t: (nb, 0, t, 0)),
            scratch_shapes=[zw_scratch],
        ),
        compiler_params=pltpu.CompilerParams(
            dimension_semantics=("parallel", "arbitrary"),  # megacore over batch
            vmem_limit_bytes=32 * 1024 * 1024,
        ),
        cost_estimate=pl.CostEstimate(
            flops=flops, transcendentals=0,
            bytes_accessed=in_bytes + out_bytes),
    )(x, w, awt, ah, scale, shift)
    return out


def double_factorized_increase(x, w1, b1, g1, be1, w2, b2, g2, be2):
    """Forward of DoubleFactorizedIncrease: two (up2x -> conv1x1 -> BN -> ReLU)."""
    assert w1.shape[0] == w1.shape[1] == w2.shape[0] == w2.shape[1], \
        "PyTorch module only runs when in_channel == out_channel"
    y = _upsample_conv_bn_relu(x, w1, b1, g1, be1)
    return _upsample_conv_bn_relu(y, w2, b2, g2, be2)


def _reference(x, w1, b1, g1, be1, w2, b2, g2, be2):
    """Plain-JAX reference of the same math (bias kept; BN in training mode)."""
    def block(xb, w, b, g, be):
        n, c, h, wd = xb.shape
        up = jax.image.resize(xb, (n, c, 2 * h, 2 * wd), method="bilinear")
        y = jnp.einsum("oc,nchw->nohw", w, up,
                       precision=lax.Precision.HIGHEST) + b[None, :, None, None]
        mean = jnp.mean(y, axis=(0, 2, 3), keepdims=True)
        var = jnp.mean(jnp.square(y - mean), axis=(0, 2, 3), keepdims=True)
        yh = (y - mean) * lax.rsqrt(var + BN_EPS)
        return jnp.maximum(yh * g[None, :, None, None] + be[None, :, None, None], 0.0)

    return block(block(x, w1, b1, g1, be1), w2, b2, g2, be2)


if __name__ == "__main__":
    key = jax.random.PRNGKey(0)
    kx, kw1, kw2, kb1, kb2 = jax.random.split(key, 5)

    N, C, H, W = 2, 4, 16, 16          # in_channel == out_channel (module requires it)

    # kaiming_normal_(mode='fan_out', nonlinearity='relu') for a 1x1 conv:
    std = (2.0 / C) ** 0.5
    w1 = (std * jax.random.normal(kw1, (C, C))).astype(jnp.float32)
    w2 = (std * jax.random.normal(kw2, (C, C))).astype(jnp.float32)
    # Conv bias keeps its default init U(-1/sqrt(fan_in), 1/sqrt(fan_in)).
    bound = 1.0 / (C ** 0.5)
    b1 = jax.random.uniform(kb1, (C,), jnp.float32, -bound, bound)
    b2 = jax.random.uniform(kb2, (C,), jnp.float32, -bound, bound)
    g1 = jnp.ones((C,), jnp.float32)   # BN weight init -> 1
    be1 = jnp.zeros((C,), jnp.float32)  # BN bias init   -> 0
    g2 = jnp.ones((C,), jnp.float32)
    be2 = jnp.zeros((C,), jnp.float32)

    x = jax.random.normal(kx, (N, C, H, W), jnp.float32)

    fwd = jax.jit(double_factorized_increase)
    out = jax.block_until_ready(fwd(x, w1, b1, g1, be1, w2, b2, g2, be2))

    ref = _reference(x, w1, b1, g1, be1, w2, b2, g2, be2)
    assert out.shape == (N, C, 4 * H, 4 * W), out.shape
    max_err = float(jnp.max(jnp.abs(out - ref)))
    assert jnp.allclose(out, ref, atol=2e-3, rtol=2e-3), max_err

    print("KERNEL_OK")
</pallas_src>

<mosaic_0001>
module attributes {stable_mosaic.version = 11 : i64} {
  func.func @_apply_kernel(%arg0: i32, %arg1: i32, %arg2: memref<1x4x16x16xf32, #tpu.memory_space<vmem>>, %arg3: memref<4x4xf32, #tpu.memory_space<smem>>, %arg4: memref<16x32xf32, #tpu.memory_space<vmem>>, %arg5: memref<16x16xf32, #tpu.memory_space<vmem>>, %arg6: memref<4xf32, #tpu.memory_space<smem>>, %arg7: memref<4xf32, #tpu.memory_space<smem>>, %arg8: memref<1x4x16x32xf32, #tpu.memory_space<vmem>>, %arg9: memref<4x16x32xf32, #tpu.memory_space<vmem>>) attributes {dimension_semantics = [#tpu.dimension_semantics<parallel>, #tpu.dimension_semantics<arbitrary>], iteration_bounds = array<i64: 2, 2>, scalar_prefetch = 0 : i64, scratch_operands = 1 : i64, tpu.core_type = #tpu.core_type<tc>, window_params = [{transform_indices = @transform_0, window_bounds = array<i64: 1, 4, 16, 16>}, {transform_indices = @transform_1, window_bounds = array<i64: 4, 4>}, {pipeline_mode = #tpu.pipeline_mode<synchronous>, transform_indices = @transform_2, window_bounds = array<i64: 16, 32>}, {transform_indices = @transform_3, window_bounds = array<i64: 16, 16>}, {transform_indices = @transform_4, window_bounds = array<i64: 4>}, {transform_indices = @transform_5, window_bounds = array<i64: 4>}, {transform_indices = @transform_6, window_bounds = array<i64: 1, 4, 16, 32>}]} {
    %c0_i32 = arith.constant 0 : i32
    %0 = arith.cmpi eq, %arg1, %c0_i32 : i32
    %1 = arith.extui %0 : i1 to i32
    %c0_i32_0 = arith.constant 0 : i32
    %2 = arith.cmpi ne, %1, %c0_i32_0 : i32
    scf.if %2 {
      %c0_42 = arith.constant 0 : index
      %c0_43 = arith.constant 0 : index
      %60 = vector.load %arg4[%c0_42, %c0_43] : memref<16x32xf32, #tpu.memory_space<vmem>>, vector<16x32xf32>
      %c0_44 = arith.constant 0 : index
      %c0_45 = arith.constant 0 : index
      %61 = memref.load %arg3[%c0_44, %c0_45] : memref<4x4xf32, #tpu.memory_space<smem>>
      %c0_46 = arith.constant 0 : index
      %c0_47 = arith.constant 0 : index
      %c0_48 = arith.constant 0 : index
      %c0_49 = arith.constant 0 : index
      %62 = vector.load %arg2[%c0_46, %c0_47, %c0_48, %c0_49] : memref<1x4x16x16xf32, #tpu.memory_space<vmem>>, vector<1x1x16x16xf32>
      %63 = vector.shape_cast %62 : vector<1x1x16x16xf32> to vector<16x16xf32>
      %64 = vector.broadcast %61 : f32 to vector<16x16xf32>
      %65 = arith.mulf %64, %63 : vector<16x16xf32>
      %c0_50 = arith.constant 0 : index
      %c1_51 = arith.constant 1 : index
      %66 = memref.load %arg3[%c0_50, %c1_51] : memref<4x4xf32, #tpu.memory_space<smem>>
      %c0_52 = arith.constant 0 : index
      %c1_53 = arith.constant 1 : index
      %c0_54 = arith.constant 0 : index
      %c0_55 = arith.constant 0 : index
      %67 = vector.load %arg2[%c0_52, %c1_53, %c0_54, %c0_55] : memref<1x4x16x16xf32, #tpu.memory_space<vmem>>, vector<1x1x16x16xf32>
      %68 = vector.shape_cast %67 : vector<1x1x16x16xf32> to vector<16x16xf32>
      %69 = vector.broadcast %66 : f32 to vector<16x16xf32>
      %70 = arith.mulf %69, %68 : vector<16x16xf32>
      %71 = arith.addf %65, %70 : vector<16x16xf32>
      %c0_56 = arith.constant 0 : index
      %c2_57 = arith.constant 2 : index
      %72 = memref.load %arg3[%c0_56, %c2_57] : memref<4x4xf32, #tpu.memory_space<smem>>
      %c0_58 = arith.constant 0 : index
      %c2_59 = arith.constant 2 : index
      %c0_60 = arith.constant 0 : index
      %c0_61 = arith.constant 0 : index
      %73 = vector.load %arg2[%c0_58, %c2_59, %c0_60, %c0_61] : memref<1x4x16x16xf32, #tpu.memory_space<vmem>>, vector<1x1x16x16xf32>
      %74 = vector.shape_cast %73 : vector<1x1x16x16xf32> to vector<16x16xf32>
      %75 = vector.broadcast %72 : f32 to vector<16x16xf32>
      %76 = arith.mulf %75, %74 : vector<16x16xf32>
      %77 = arith.addf %71, %76 : vector<16x16xf32>
      %c0_62 = arith.constant 0 : index
      %c3_63 = arith.constant 3 : index
      %78 = memref.load %arg3[%c0_62, %c3_63] : memref<4x4xf32, #tpu.memory_space<smem>>
      %c0_64 = arith.constant 0 : index
      %c3_65 = arith.constant 3 : index
      %c0_66 = arith.constant 0 : index
      %c0_67 = arith.constant 0 : index
      %79 = vector.load %arg2[%c0_64, %c3_65, %c0_66, %c0_67] : memref<1x4x16x16xf32, #tpu.memory_space<vmem>>, vector<1x1x16x16xf32>
      %80 = vector.shape_cast %79 : vector<1x1x16x16xf32> to vector<16x16xf32>
      %81 = vector.broadcast %78 : f32 to vector<16x16xf32>
      %82 = arith.mulf %81, %80 : vector<16x16xf32>
      %83 = arith.addf %77, %82 : vector<16x16xf32>
      %cst_68 = arith.constant dense<0.000000e+00> : vector<16x32xf32>
      %84 = tpu.matmul %83, %60, %cst_68 {dimension_numbers = #tpu.dot_dimension_numbers<[1], [0], [0], [1], [0, 0, 1, 1], [], []>} : vector<16x16xf32>, vector<16x32xf32>, vector<16x32xf32> -> vector<16x32xf32>
      %c0_69 = arith.constant 0 : index
      %c0_70 = arith.constant 0 : index
      %c0_71 = arith.constant 0 : index
      %85 = vector.load %arg9[%c0_69, %c0_70, %c0_71] : memref<4x16x32xf32, #tpu.memory_space<vmem>>, vector<1x16x32xf32>
      %86 = vector.shape_cast %85 : vector<1x16x32xf32> to vector<16x32xf32>
      %87 = vector.shape_cast %84 : vector<16x32xf32> to vector<1x16x32xf32>
      tpu.vector_store %arg9[%c0_69, %c0_70, %c0_71], %87 {strides = array<i32>} : memref<4x16x32xf32, #tpu.memory_space<vmem>>, vector<1x16x32xf32>,
      %c1_72 = arith.constant 1 : index
      %c0_73 = arith.constant 0 : index
      %88 = memref.load %arg3[%c1_72, %c0_73] : memref<4x4xf32, #tpu.memory_space<smem>>
      %c0_74 = arith.constant 0 : index
      %c0_75 = arith.constant 0 : index
      %c0_76 = arith.constant 0 : index
      %c0_77 = arith.constant 0 : index
      %89 = vector.load %arg2[%c0_74, %c0_75, %c0_76, %c0_77] : memref<1x4x16x16xf32, #tpu.memory_space<vmem>>, vector<1x1x16x16xf32>
      %90 = vector.shape_cast %89 : vector<1x1x16x16xf32> to vector<16x16xf32>
      %91 = vector.broadcast %88 : f32 to vector<16x16xf32>
      %92 = arith.mulf %91, %90 : vector<16x16xf32>
      %c1_78 = arith.constant 1 : index
      %c1_79 = arith.constant 1 : index
      %93 = memref.load %arg3[%c1_78, %c1_79] : memref<4x4xf32, #tpu.memory_space<smem>>
      %c0_80 = arith.constant 0 : index
      %c1_81 = arith.constant 1 : index
      %c0_82 = arith.constant 0 : index
      %c0_83 = arith.constant 0 : index
      %94 = vector.load %arg2[%c0_80, %c1_81, %c0_82, %c0_83] : memref<1x4x16x16xf32, #tpu.memory_space<vmem>>, vector<1x1x16x16xf32>
      %95 = vector.shape_cast %94 : vector<1x1x16x16xf32> to vector<16x16xf32>
      %96 = vector.broadcast %93 : f32 to vector<16x16xf32>
      %97 = arith.mulf %96, %95 : vector<16x16xf32>
      %98 = arith.addf %92, %97 : vector<16x16xf32>
      %c1_84 = arith.constant 1 : index
      %c2_85 = arith.constant 2 : index
      %99 = memref.load %arg3[%c1_84, %c2_85] : memref<4x4xf32, #tpu.memory_space<smem>>
      %c0_86 = arith.constant 0 : index
      %c2_87 = arith.constant 2 : index
      %c0_88 = arith.constant 0 : index
      %c0_89 = arith.constant 0 : index
      %100 = vector.load %arg2[%c0_86, %c2_87, %c0_88, %c0_89] : memref<1x4x16x16xf32, #tpu.memory_space<vmem>>, vector<1x1x16x16xf32>
      %101 = vector.shape_cast %100 : vector<1x1x16x16xf32> to vector<16x16xf32>
      %102 = vector.broadcast %99 : f32 to vector<16x16xf32>
      %103 = arith.mulf %102, %101 : vector<16x16xf32>
      %104 = arith.addf %98, %103 : vector<16x16xf32>
      %c1_90 = arith.constant 1 : index
      %c3_91 = arith.constant 3 : index
      %105 = memref.load %arg3[%c1_90, %c3_91] : memref<4x4xf32, #tpu.memory_space<smem>>
      %c0_92 = arith.constant 0 : index
      %c3_93 = arith.constant 3 : index
      %c0_94 = arith.constant 0 : index
      %c0_95 = arith.constant 0 : index
      %106 = vector.load %arg2[%c0_92, %c3_93, %c0_94, %c0_95] : memref<1x4x16x16xf32, #tpu.memory_space<vmem>>, vector<1x1x16x16xf32>
      %107 = vector.shape_cast %106 : vector<1x1x16x16xf32> to vector<16x16xf32>
      %108 = vector.broadcast %105 : f32 to vector<16x16xf32>
      %109 = arith.mulf %108, %107 : vector<16x16xf32>
      %110 = arith.addf %104, %109 : vector<16x16xf32>
      %cst_96 = arith.constant dense<0.000000e+00> : vector<16x32xf32>
      %111 = tpu.matmul %110, %60, %cst_96 {dimension_numbers = #tpu.dot_dimension_numbers<[1], [0], [0], [1], [0, 0, 1, 1], [], []>} : vector<16x16xf32>, vector<16x32xf32>, vector<16x32xf32> -> vector<16x32xf32>
      %c1_97 = arith.constant 1 : index
      %c0_98 = arith.constant 0 : index
      %c0_99 = arith.constant 0 : index
      %112 = vector.load %arg9[%c1_97, %c0_98, %c0_99] : memref<4x16x32xf32, #tpu.memory_space<vmem>>, vector<1x16x32xf32>
      %113 = vector.shape_cast %112 : vector<1x16x32xf32> to vector<16x32xf32>
      %114 = vector.shape_cast %111 : vector<16x32xf32> to vector<1x16x32xf32>
      tpu.vector_store %arg9[%c1_97, %c0_98, %c0_99], %114 {strides = array<i32>} : memref<4x16x32xf32, #tpu.memory_space<vmem>>, vector<1x16x32xf32>,
      %c2_100 = arith.constant 2 : index
      %c0_101 = arith.constant 0 : index
      %115 = memref.load %arg3[%c2_100, %c0_101] : memref<4x4xf32, #tpu.memory_space<smem>>
      %c0_102 = arith.constant 0 : index
      %c0_103 = arith.constant 0 : index
      %c0_104 = arith.constant 0 : index
      %c0_105 = arith.constant 0 : index
      %116 = vector.load %arg2[%c0_102, %c0_103, %c0_104, %c0_105] : memref<1x4x16x16xf32, #tpu.memory_space<vmem>>, vector<1x1x16x16xf32>
      %117 = vector.shape_cast %116 : vector<1x1x16x16xf32> to vector<16x16xf32>
      %118 = vector.broadcast %115 : f32 to vector<16x16xf32>
      %119 = arith.mulf %118, %117 : vector<16x16xf32>
      %c2_106 = arith.constant 2 : index
      %c1_107 = arith.constant 1 : index
      %120 = memref.load %arg3[%c2_106, %c1_107] : memref<4x4xf32, #tpu.memory_space<smem>>
      %c0_108 = arith.constant 0 : index
      %c1_109 = arith.constant 1 : index
      %c0_110 = arith.constant 0 : index
      %c0_111 = arith.constant 0 : index
      %121 = vector.load %arg2[%c0_108, %c1_109, %c0_110, %c0_111] : memref<1x4x16x16xf32, #tpu.memory_space<vmem>>, vector<1x1x16x16xf32>
      %122 = vector.shape_cast %121 : vector<1x1x16x16xf32> to vector<16x16xf32>
      %123 = vector.broadcast %120 : f32 to vector<16x16xf32>
      %124 = arith.mulf %123, %122 : vector<16x16xf32>
      %125 = arith.addf %119, %124 : vector<16x16xf32>
      %c2_112 = arith.constant 2 : index
      %c2_113 = arith.constant 2 : index
      %126 = memref.load %arg3[%c2_112, %c2_113] : memref<4x4xf32, #tpu.memory_space<smem>>
      %c0_114 = arith.constant 0 : index
      %c2_115 = arith.constant 2 : index
      %c0_116 = arith.constant 0 : index
      %c0_117 = arith.constant 0 : index
      %127 = vector.load %arg2[%c0_114, %c2_115, %c0_116, %c0_117] : memref<1x4x16x16xf32, #tpu.memory_space<vmem>>, vector<1x1x16x16xf32>
      %128 = vector.shape_cast %127 : vector<1x1x16x16xf32> to vector<16x16xf32>
      %129 = vector.broadcast %126 : f32 to vector<16x16xf32>
      %130 = arith.mulf %129, %128 : vector<16x16xf32>
      %131 = arith.addf %125, %130 : vector<16x16xf32>
      %c2_118 = arith.constant 2 : index
      %c3_119 = arith.constant 3 : index
      %132 = memref.load %arg3[%c2_118, %c3_119] : memref<4x4xf32, #tpu.memory_space<smem>>
      %c0_120 = arith.constant 0 : index
      %c3_121 = arith.constant 3 : index
      %c0_122 = arith.constant 0 : index
      %c0_123 = arith.constant 0 : index
      %133 = vector.load %arg2[%c0_120, %c3_121, %c0_122, %c0_123] : memref<1x4x16x16xf32, #tpu.memory_space<vmem>>, vector<1x1x16x16xf32>
      %134 = vector.shape_cast %133 : vector<1x1x16x16xf32> to vector<16x16xf32>
      %135 = vector.broadcast %132 : f32 to vector<16x16xf32>
      %136 = arith.mulf %135, %134 : vector<16x16xf32>
      %137 = arith.addf %131, %136 : vector<16x16xf32>
      %cst_124 = arith.constant dense<0.000000e+00> : vector<16x32xf32>
      %138 = tpu.matmul %137, %60, %cst_124 {dimension_numbers = #tpu.dot_dimension_numbers<[1], [0], [0], [1], [0, 0, 1, 1], [], []>} : vector<16x16xf32>, vector<16x32xf32>, vector<16x32xf32> -> vector<16x32xf32>
      %c2_125 = arith.constant 2 : index
      %c0_126 = arith.constant 0 : index
      %c0_127 = arith.constant 0 : index
      %139 = vector.load %arg9[%c2_125, %c0_126, %c0_127] : memref<4x16x32xf32, #tpu.memory_space<vmem>>, vector<1x16x32xf32>
      %140 = vector.shape_cast %139 : vector<1x16x32xf32> to vector<16x32xf32>
      %141 = vector.shape_cast %138 : vector<16x32xf32> to vector<1x16x32xf32>
      tpu.vector_store %arg9[%c2_125, %c0_126, %c0_127], %141 {strides = array<i32>} : memref<4x16x32xf32, #tpu.memory_space<vmem>>, vector<1x16x32xf32>,
      %c3_128 = arith.constant 3 : index
      %c0_129 = arith.constant 0 : index
      %142 = memref.load %arg3[%c3_128, %c0_129] : memref<4x4xf32, #tpu.memory_space<smem>>
      %c0_130 = arith.constant 0 : index
      %c0_131 = arith.constant 0 : index
      %c0_132 = arith.constant 0 : index
      %c0_133 = arith.constant 0 : index
      %143 = vector.load %arg2[%c0_130, %c0_131, %c0_132, %c0_133] : memref<1x4x16x16xf32, #tpu.memory_space<vmem>>, vector<1x1x16x16xf32>
      %144 = vector.shape_cast %143 : vector<1x1x16x16xf32> to vector<16x16xf32>
      %145 = vector.broadcast %142 : f32 to vector<16x16xf32>
      %146 = arith.mulf %145, %144 : vector<16x16xf32>
      %c3_134 = arith.constant 3 : index
      %c1_135 = arith.constant 1 : index
      %147 = memref.load %arg3[%c3_134, %c1_135] : memref<4x4xf32, #tpu.memory_space<smem>>
      %c0_136 = arith.constant 0 : index
      %c1_137 = arith.constant 1 : index
      %c0_138 = arith.constant 0 : index
      %c0_139 = arith.constant 0 : index
      %148 = vector.load %arg2[%c0_136, %c1_137, %c0_138, %c0_139] : memref<1x4x16x16xf32, #tpu.memory_space<vmem>>, vector<1x1x16x16xf32>
      %149 = vector.shape_cast %148 : vector<1x1x16x16xf32> to vector<16x16xf32>
      %150 = vector.broadcast %147 : f32 to vector<16x16xf32>
      %151 = arith.mulf %150, %149 : vector<16x16xf32>
      %152 = arith.addf %146, %151 : vector<16x16xf32>
      %c3_140 = arith.constant 3 : index
      %c2_141 = arith.constant 2 : index
      %153 = memref.load %arg3[%c3_140, %c2_141] : memref<4x4xf32, #tpu.memory_space<smem>>
      %c0_142 = arith.constant 0 : index
      %c2_143 = arith.constant 2 : index
      %c0_144 = arith.constant 0 : index
      %c0_145 = arith.constant 0 : index
      %154 = vector.load %arg2[%c0_142, %c2_143, %c0_144, %c0_145] : memref<1x4x16x16xf32, #tpu.memory_space<vmem>>, vector<1x1x16x16xf32>
      %155 = vector.shape_cast %154 : vector<1x1x16x16xf32> to vector<16x16xf32>
      %156 = vector.broadcast %153 : f32 to vector<16x16xf32>
      %157 = arith.mulf %156, %155 : vector<16x16xf32>
      %158 = arith.addf %152, %157 : vector<16x16xf32>
      %c3_146 = arith.constant 3 : index
      %c3_147 = arith.constant 3 : index
      %159 = memref.load %arg3[%c3_146, %c3_147] : memref<4x4xf32, #tpu.memory_space<smem>>
      %c0_148 = arith.constant 0 : index
      %c3_149 = arith.constant 3 : index
      %c0_150 = arith.constant 0 : index
      %c0_151 = arith.constant 0 : index
      %160 = vector.load %arg2[%c0_148, %c3_149, %c0_150, %c0_151] : memref<1x4x16x16xf32, #tpu.memory_space<vmem>>, vector<1x1x16x16xf32>
      %161 = vector.shape_cast %160 : vector<1x1x16x16xf32> to vector<16x16xf32>
      %162 = vector.broadcast %159 : f32 to vector<16x16xf32>
      %163 = arith.mulf %162, %161 : vector<16x16xf32>
      %164 = arith.addf %158, %163 : vector<16x16xf32>
      %cst_152 = arith.constant dense<0.000000e+00> : vector<16x32xf32>
      %165 = tpu.matmul %164, %60, %cst_152 {dimension_numbers = #tpu.dot_dimension_numbers<[1], [0], [0], [1], [0, 0, 1, 1], [], []>} : vector<16x16xf32>, vector<16x32xf32>, vector<16x32xf32> -> vector<16x32xf32>
      %c3_153 = arith.constant 3 : index
      %c0_154 = arith.constant 0 : index
      %c0_155 = arith.constant 0 : index
      %166 = vector.load %arg9[%c3_153, %c0_154, %c0_155] : memref<4x16x32xf32, #tpu.memory_space<vmem>>, vector<1x16x32xf32>
      %167 = vector.shape_cast %166 : vector<1x16x32xf32> to vector<16x32xf32>
      %168 = vector.shape_cast %165 : vector<16x32xf32> to vector<1x16x32xf32>
      tpu.vector_store %arg9[%c3_153, %c0_154, %c0_155], %168 {strides = array<i32>} : memref<4x16x32xf32, #tpu.memory_space<vmem>>, vector<1x16x32xf32>,
    } else {
    }
    %c0 = arith.constant 0 : index
    %c0_1 = arith.constant 0 : index
    %3 = vector.load %arg5[%c0, %c0_1] : memref<16x16xf32, #tpu.memory_space<vmem>>, vector<16x16xf32>
    %c0_2 = arith.constant 0 : index
    %c0_3 = arith.constant 0 : index
    %c0_4 = arith.constant 0 : index
    %4 = vector.load %arg9[%c0_2, %c0_3, %c0_4] : memref<4x16x32xf32, #tpu.memory_space<vmem>>, vector<1x16x32xf32>
    %5 = vector.shape_cast %4 : vector<1x16x32xf32> to vector<16x32xf32>
    %cst = arith.constant dense<0.000000e+00> : vector<16x32xf32>
    %6 = tpu.matmul %3, %5, %cst {dimension_numbers = #tpu.dot_dimension_numbers<[1], [0], [0], [1], [0, 0, 1, 1], [], []>} : vector<16x16xf32>, vector<16x32xf32>, vector<16x32xf32> -> vector<16x32xf32>
    %c0_5 = arith.constant 0 : index
    %7 = memref.load %arg6[%c0_5] : memref<4xf32, #tpu.memory_space<smem>>
    %8 = vector.broadcast %7 : f32 to vector<16x32xf32>
    %9 = arith.mulf %6, %8 : vector<16x32xf32>
    %c0_6 = arith.constant 0 : index
    %10 = memref.load %arg7[%c0_6] : memref<4xf32, #tpu.memory_space<smem>>
    %11 = vector.broadcast %10 : f32 to vector<16x32xf32>
    %12 = arith.addf %9, %11 : vector<16x32xf32>
    %cst_7 = arith.constant 0.000000e+00 : f32
    %13 = vector.broadcast %cst_7 : f32 to vector<16x32xf32>
    %14 = arith.maximumf %12, %13 : vector<16x32xf32>
    %c0_8 = arith.constant 0 : index
    %c0_9 = arith.constant 0 : index
    %c0_10 = arith.constant 0 : index
    %c0_11 = arith.constant 0 : index
    %15 = vector.load %arg8[%c0_8, %c0_9, %c0_10, %c0_11] : memref<1x4x16x32xf32, #tpu.memory_space<vmem>>, vector<1x1x16x32xf32>
    %16 = vector.shape_cast %15 : vector<1x1x16x32xf32> to vector<16x32xf32>
    %17 = vector.shape_cast %14 : vector<16x32xf32> to vector<1x1x16x32xf32>
    tpu.vector_store %arg8[%c0_8, %c0_9, %c0_10, %c0_11], %17 {strides = array<i32>} : memref<1x4x16x32xf32, #tpu.memory_space<vmem>>, vector<1x1x16x32xf32>,
    %c1 = arith.constant 1 : index
    %c0_12 = arith.constant 0 : index
    %c0_13 = arith.constant 0 : index
    %18 = vector.load %arg9[%c1, %c0_12, %c0_13] : memref<4x16x32xf32, #tpu.memory_space<vmem>>, vector<1x16x32xf32>
    %19 = vector.shape_cast %18 : vector<1x16x32xf32> to vector<16x32xf32>
    %cst_14 = arith.constant dense<0.000000e+00> : vector<16x32xf32>
    %20 = tpu.matmul %3, %19, %cst_14 {dimension_numbers = #tpu.dot_dimension_numbers<[1], [0], [0], [1], [0, 0, 1, 1], [], []>} : vector<16x16xf32>, vector<16x32xf32>, vector<16x32xf32> -> vector<16x32xf32>
    %c1_15 = arith.constant 1 : index
    %21 = memref.load %arg6[%c1_15] : memref<4xf32, #tpu.memory_space<smem>>
    %22 = vector.broadcast %21 : f32 to vector<16x32xf32>
    %23 = arith.mulf %20, %22 : vector<16x32xf32>
    %c1_16 = arith.constant 1 : index
    %24 = memref.load %arg7[%c1_16] : memref<4xf32, #tpu.memory_space<smem>>
    %25 = vector.broadcast %24 : f32 to vector<16x32xf32>
    %26 = arith.addf %23, %25 : vector<16x32xf32>
    %cst_17 = arith.constant 0.000000e+00 : f32
    %27 = vector.broadcast %cst_17 : f32 to vector<16x32xf32>
    %28 = arith.maximumf %26, %27 : vector<16x32xf32>
    %c0_18 = arith.constant 0 : index
    %c1_19 = arith.constant 1 : index
    %c0_20 = arith.constant 0 : index
    %c0_21 = arith.constant 0 : index
    %29 = vector.load %arg8[%c0_18, %c1_19, %c0_20, %c0_21] : memref<1x4x16x32xf32, #tpu.memory_space<vmem>>, vector<1x1x16x32xf32>
    %30 = vector.shape_cast %29 : vector<1x1x16x32xf32> to vector<16x32xf32>
    %31 = vector.shape_cast %28 : vector<16x32xf32> to vector<1x1x16x32xf32>
    tpu.vector_store %arg8[%c0_18, %c1_19, %c0_20, %c0_21], %31 {strides = array<i32>} : memref<1x4x16x32xf32, #tpu.memory_space<vmem>>, vector<1x1x16x32xf32>,
    %c2 = arith.constant 2 : index
    %c0_22 = arith.constant 0 : index
    %c0_23 = arith.constant 0 : index
    %32 = vector.load %arg9[%c2, %c0_22, %c0_23] : memref<4x16x32xf32, #tpu.memory_space<vmem>>, vector<1x16x32xf32>
    %33 = vector.shape_cast %32 : vector<1x16x32xf32> to vector<16x32xf32>
    %cst_24 = arith.constant dense<0.000000e+00> : vector<16x32xf32>
    %34 = tpu.matmul %3, %33, %cst_24 {dimension_numbers = #tpu.dot_dimension_numbers<[1], [0], [0], [1], [0, 0, 1, 1], [], []>} : vector<16x16xf32>, vector<16x32xf32>, vector<16x32xf32> -> vector<16x32xf32>
    %c2_25 = arith.constant 2 : index
    %35 = memref.load %arg6[%c2_25] : memref<4xf32, #tpu.memory_space<smem>>
    %36 = vector.broadcast %35 : f32 to vector<16x32xf32>
    %37 = arith.mulf %34, %36 : vector<16x32xf32>
    %c2_26 = arith.constant 2 : index
    %38 = memref.load %arg7[%c2_26] : memref<4xf32, #tpu.memory_space<smem>>
    %39 = vector.broadcast %38 : f32 to vector<16x32xf32>
    %40 = arith.addf %37, %39 : vector<16x32xf32>
    %cst_27 = arith.constant 0.000000e+00 : f32
    %41 = vector.broadcast %cst_27 : f32 to vector<16x32xf32>
    %42 = arith.maximumf %40, %41 : vector<16x32xf32>
    %c0_28 = arith.constant 0 : index
    %c2_29 = arith.constant 2 : index
    %c0_30 = arith.constant 0 : index
    %c0_31 = arith.constant 0 : index
    %43 = vector.load %arg8[%c0_28, %c2_29, %c0_30, %c0_31] : memref<1x4x16x32xf32, #tpu.memory_space<vmem>>, vector<1x1x16x32xf32>
    %44 = vector.shape_cast %43 : vector<1x1x16x32xf32> to vector<16x32xf32>
    %45 = vector.shape_cast %42 : vector<16x32xf32> to vector<1x1x16x32xf32>
    tpu.vector_store %arg8[%c0_28, %c2_29, %c0_30, %c0_31], %45 {strides = array<i32>} : memref<1x4x16x32xf32, #tpu.memory_space<vmem>>, vector<1x1x16x32xf32>,
    %c3 = arith.constant 3 : index
    %c0_32 = arith.constant 0 : index
    %c0_33 = arith.constant 0 : index
    %46 = vector.load %arg9[%c3, %c0_32, %c0_33] : memref<4x16x32xf32, #tpu.memory_space<vmem>>, vector<1x16x32xf32>
    %47 = vector.shape_cast %46 : vector<1x16x32xf32> to vector<16x32xf32>
    %cst_34 = arith.constant dense<0.000000e+00> : vector<16x32xf32>
    %48 = tpu.matmul %3, %47, %cst_34 {dimension_numbers = #tpu.dot_dimension_numbers<[1], [0], [0], [1], [0, 0, 1, 1], [], []>} : vector<16x16xf32>, vector<16x32xf32>, vector<16x32xf32> -> vector<16x32xf32>
    %c3_35 = arith.constant 3 : index
    %49 = memref.load %arg6[%c3_35] : memref<4xf32, #tpu.memory_space<smem>>
    %50 = vector.broadcast %49 : f32 to vector<16x32xf32>
    %51 = arith.mulf %48, %50 : vector<16x32xf32>
    %c3_36 = arith.constant 3 : index
    %52 = memref.load %arg7[%c3_36] : memref<4xf32, #tpu.memory_space<smem>>
    %53 = vector.broadcast %52 : f32 to vector<16x32xf32>
    %54 = arith.addf %51, %53 : vector<16x32xf32>
    %cst_37 = arith.constant 0.000000e+00 : f32
    %55 = vector.broadcast %cst_37 : f32 to vector<16x32xf32>
    %56 = arith.maximumf %54, %55 : vector<16x32xf32>
    %c0_38 = arith.constant 0 : index
    %c3_39 = arith.constant 3 : index
    %c0_40 = arith.constant 0 : index
    %c0_41 = arith.constant 0 : index
    %57 = vector.load %arg8[%c0_38, %c3_39, %c0_40, %c0_41] : memref<1x4x16x32xf32, #tpu.memory_space<vmem>>, vector<1x1x16x32xf32>
    %58 = vector.shape_cast %57 : vector<1x1x16x32xf32> to vector<16x32xf32>
    %59 = vector.shape_cast %56 : vector<16x32xf32> to vector<1x1x16x32xf32>
    tpu.vector_store %arg8[%c0_38, %c3_39, %c0_40, %c0_41], %59 {strides = array<i32>} : memref<1x4x16x32xf32, #tpu.memory_space<vmem>>, vector<1x1x16x32xf32>,
    return
  }
  func.func @transform_0(%arg0: i32, %arg1: i32) -> (i32, i32, i32, i32) {
    %c0_i32 = arith.constant 0 : i32
    %c0_i32_0 = arith.constant 0 : i32
    %c0_i32_1 = arith.constant 0 : i32
    %c0_i32_2 = arith.constant 0 : i32
    return %arg0, %c0_i32, %c0_i32_0, %c0_i32_1 : i32, i32, i32, i32
  }
  func.func @transform_1(%arg0: i32, %arg1: i32) -> (i32, i32) {
    %c0_i32 = arith.constant 0 : i32
    %c0_i32_0 = arith.constant 0 : i32
    %c0_i32_1 = arith.constant 0 : i32
    return %c0_i32, %c0_i32_0 : i32, i32
  }
  func.func @transform_2(%arg0: i32, %arg1: i32) -> (i32, i32) {
    %c0_i32 = arith.constant 0 : i32
    %c0_i32_0 = arith.constant 0 : i32
    %c0_i32_1 = arith.constant 0 : i32
    return %c0_i32, %c0_i32_0 : i32, i32
  }
  func.func @transform_3(%arg0: i32, %arg1: i32) -> (i32, i32) {
    %c0_i32 = arith.constant 0 : i32
    %c0_i32_0 = arith.constant 0 : i32
    return %arg1, %c0_i32 : i32, i32
  }
  func.func @transform_4(%arg0: i32, %arg1: i32) -> i32 {
    %c0_i32 = arith.constant 0 : i32
    %c0_i32_0 = arith.constant 0 : i32
    return %c0_i32 : i32
  }
  func.func @transform_5(%arg0: i32, %arg1: i32) -> i32 {
    %c0_i32 = arith.constant 0 : i32
    %c0_i32_0 = arith.constant 0 : i32
    return %c0_i32 : i32
  }
  func.func @transform_6(%arg0: i32, %arg1: i32) -> (i32, i32, i32, i32) {
    %c0_i32 = arith.constant 0 : i32
    %c0_i32_0 = arith.constant 0 : i32
    %c0_i32_1 = arith.constant 0 : i32
    return %arg0, %c0_i32, %arg1, %c0_i32_0 : i32, i32, i32, i32
  }
}

module attributes {stable_mosaic.version = 11 : i64} {
  func.func @_stats_kernel(%arg0: i32, %arg1: i32, %arg2: memref<1x4x16x16xf32, #tpu.memory_space<vmem>>, %arg3: memref<4x4xf32, #tpu.memory_space<smem>>, %arg4: memref<16x32xf32, #tpu.memory_space<vmem>>, %arg5: memref<16x16xf32, #tpu.memory_space<vmem>>, %arg6: memref<8x32xf32, #tpu.memory_space<vmem>>, %arg7: memref<4x16x32xf32, #tpu.memory_space<vmem>>) attributes {dimension_semantics = [#tpu.dimension_semantics<arbitrary>, #tpu.dimension_semantics<arbitrary>], iteration_bounds = array<i64: 2, 2>, scalar_prefetch = 0 : i64, scratch_operands = 1 : i64, tpu.core_type = #tpu.core_type<tc>, window_params = [{transform_indices = @transform_0, window_bounds = array<i64: 1, 4, 16, 16>}, {transform_indices = @transform_1, window_bounds = array<i64: 4, 4>}, {pipeline_mode = #tpu.pipeline_mode<synchronous>, transform_indices = @transform_2, window_bounds = array<i64: 16, 32>}, {transform_indices = @transform_3, window_bounds = array<i64: 16, 16>}, {pipeline_mode = #tpu.pipeline_mode<synchronous>, transform_indices = @transform_4, window_bounds = array<i64: 8, 32>}]} {
    %c0_i32 = arith.constant 0 : i32
    %0 = arith.cmpi eq, %arg0, %c0_i32 : i32
    %c0_i32_0 = arith.constant 0 : i32
    %1 = arith.cmpi eq, %arg1, %c0_i32_0 : i32
    %2 = arith.andi %0, %1 : i1
    %3 = arith.extui %2 : i1 to i32
    %c0_i32_1 = arith.constant 0 : i32
    %4 = arith.cmpi ne, %3, %c0_i32_1 : i32
    scf.if %4 {
      %cst_53 = arith.constant 0.000000e+00 : f32
      %65 = vector.broadcast %cst_53 : f32 to vector<8x32xf32>
      %c0_54 = arith.constant 0 : index
      %c0_55 = arith.constant 0 : index
      %66 = vector.load %arg6[%c0_54, %c0_55] : memref<8x32xf32, #tpu.memory_space<vmem>>, vector<8x32xf32>
      tpu.vector_store %arg6[%c0_54, %c0_55], %65 {strides = array<i32>} : memref<8x32xf32, #tpu.memory_space<vmem>>, vector<8x32xf32>,
    } else {
    }
    %c0_i32_2 = arith.constant 0 : i32
    %5 = arith.cmpi eq, %arg1, %c0_i32_2 : i32
    %6 = arith.extui %5 : i1 to i32
    %c0_i32_3 = arith.constant 0 : i32
    %7 = arith.cmpi ne, %6, %c0_i32_3 : i32
    scf.if %7 {
      %c0_53 = arith.constant 0 : index
      %c0_54 = arith.constant 0 : index
      %65 = vector.load %arg4[%c0_53, %c0_54] : memref<16x32xf32, #tpu.memory_space<vmem>>, vector<16x32xf32>
      %c0_55 = arith.constant 0 : index
      %c0_56 = arith.constant 0 : index
      %66 = memref.load %arg3[%c0_55, %c0_56] : memref<4x4xf32, #tpu.memory_space<smem>>
      %c0_57 = arith.constant 0 : index
      %c0_58 = arith.constant 0 : index
      %c0_59 = arith.constant 0 : index
      %c0_60 = arith.constant 0 : index
      %67 = vector.load %arg2[%c0_57, %c0_58, %c0_59, %c0_60] : memref<1x4x16x16xf32, #tpu.memory_space<vmem>>, vector<1x1x16x16xf32>
      %68 = vector.shape_cast %67 : vector<1x1x16x16xf32> to vector<16x16xf32>
      %69 = vector.broadcast %66 : f32 to vector<16x16xf32>
      %70 = arith.mulf %69, %68 : vector<16x16xf32>
      %c0_61 = arith.constant 0 : index
      %c1_62 = arith.constant 1 : index
      %71 = memref.load %arg3[%c0_61, %c1_62] : memref<4x4xf32, #tpu.memory_space<smem>>
      %c0_63 = arith.constant 0 : index
      %c1_64 = arith.constant 1 : index
      %c0_65 = arith.constant 0 : index
      %c0_66 = arith.constant 0 : index
      %72 = vector.load %arg2[%c0_63, %c1_64, %c0_65, %c0_66] : memref<1x4x16x16xf32, #tpu.memory_space<vmem>>, vector<1x1x16x16xf32>
      %73 = vector.shape_cast %72 : vector<1x1x16x16xf32> to vector<16x16xf32>
      %74 = vector.broadcast %71 : f32 to vector<16x16xf32>
      %75 = arith.mulf %74, %73 : vector<16x16xf32>
      %76 = arith.addf %70, %75 : vector<16x16xf32>
      %c0_67 = arith.constant 0 : index
      %c2_68 = arith.constant 2 : index
      %77 = memref.load %arg3[%c0_67, %c2_68] : memref<4x4xf32, #tpu.memory_space<smem>>
      %c0_69 = arith.constant 0 : index
      %c2_70 = arith.constant 2 : index
      %c0_71 = arith.constant 0 : index
      %c0_72 = arith.constant 0 : index
      %78 = vector.load %arg2[%c0_69, %c2_70, %c0_71, %c0_72] : memref<1x4x16x16xf32, #tpu.memory_space<vmem>>, vector<1x1x16x16xf32>
      %79 = vector.shape_cast %78 : vector<1x1x16x16xf32> to vector<16x16xf32>
      %80 = vector.broadcast %77 : f32 to vector<16x16xf32>
      %81 = arith.mulf %80, %79 : vector<16x16xf32>
      %82 = arith.addf %76, %81 : vector<16x16xf32>
      %c0_73 = arith.constant 0 : index
      %c3_74 = arith.constant 3 : index
      %83 = memref.load %arg3[%c0_73, %c3_74] : memref<4x4xf32, #tpu.memory_space<smem>>
      %c0_75 = arith.constant 0 : index
      %c3_76 = arith.constant 3 : index
      %c0_77 = arith.constant 0 : index
      %c0_78 = arith.constant 0 : index
      %84 = vector.load %arg2[%c0_75, %c3_76, %c0_77, %c0_78] : memref<1x4x16x16xf32, #tpu.memory_space<vmem>>, vector<1x1x16x16xf32>
      %85 = vector.shape_cast %84 : vector<1x1x16x16xf32> to vector<16x16xf32>
      %86 = vector.broadcast %83 : f32 to vector<16x16xf32>
      %87 = arith.mulf %86, %85 : vector<16x16xf32>
      %88 = arith.addf %82, %87 : vector<16x16xf32>
      %cst_79 = arith.constant dense<0.000000e+00> : vector<16x32xf32>
      %89 = tpu.matmul %88, %65, %cst_79 {dimension_numbers = #tpu.dot_dimension_numbers<[1], [0], [0], [1], [0, 0, 1, 1], [], []>} : vector<16x16xf32>, vector<16x32xf32>, vector<16x32xf32> -> vector<16x32xf32>
      %c0_80 = arith.constant 0 : index
      %c0_81 = arith.constant 0 : index
      %c0_82 = arith.constant 0 : index
      %90 = vector.load %arg7[%c0_80, %c0_81, %c0_82] : memref<4x16x32xf32, #tpu.memory_space<vmem>>, vector<1x16x32xf32>
      %91 = vector.shape_cast %90 : vector<1x16x32xf32> to vector<16x32xf32>
      %92 = vector.shape_cast %89 : vector<16x32xf32> to vector<1x16x32xf32>
      tpu.vector_store %arg7[%c0_80, %c0_81, %c0_82], %92 {strides = array<i32>} : memref<4x16x32xf32, #tpu.memory_space<vmem>>, vector<1x16x32xf32>,
      %c1_83 = arith.constant 1 : index
      %c0_84 = arith.constant 0 : index
      %93 = memref.load %arg3[%c1_83, %c0_84] : memref<4x4xf32, #tpu.memory_space<smem>>
      %c0_85 = arith.constant 0 : index
      %c0_86 = arith.constant 0 : index
      %c0_87 = arith.constant 0 : index
      %c0_88 = arith.constant 0 : index
      %94 = vector.load %arg2[%c0_85, %c0_86, %c0_87, %c0_88] : memref<1x4x16x16xf32, #tpu.memory_space<vmem>>, vector<1x1x16x16xf32>
      %95 = vector.shape_cast %94 : vector<1x1x16x16xf32> to vector<16x16xf32>
      %96 = vector.broadcast %93 : f32 to vector<16x16xf32>
      %97 = arith.mulf %96, %95 : vector<16x16xf32>
      %c1_89 = arith.constant 1 : index
      %c1_90 = arith.constant 1 : index
      %98 = memref.load %arg3[%c1_89, %c1_90] : memref<4x4xf32, #tpu.memory_space<smem>>
      %c0_91 = arith.constant 0 : index
      %c1_92 = arith.constant 1 : index
      %c0_93 = arith.constant 0 : index
      %c0_94 = arith.constant 0 : index
      %99 = vector.load %arg2[%c0_91, %c1_92, %c0_93, %c0_94] : memref<1x4x16x16xf32, #tpu.memory_space<vmem>>, vector<1x1x16x16xf32>
      %100 = vector.shape_cast %99 : vector<1x1x16x16xf32> to vector<16x16xf32>
      %101 = vector.broadcast %98 : f32 to vector<16x16xf32>
      %102 = arith.mulf %101, %100 : vector<16x16xf32>
      %103 = arith.addf %97, %102 : vector<16x16xf32>
      %c1_95 = arith.constant 1 : index
      %c2_96 = arith.constant 2 : index
      %104 = memref.load %arg3[%c1_95, %c2_96] : memref<4x4xf32, #tpu.memory_space<smem>>
      %c0_97 = arith.constant 0 : index
      %c2_98 = arith.constant 2 : index
      %c0_99 = arith.constant 0 : index
      %c0_100 = arith.constant 0 : index
      %105 = vector.load %arg2[%c0_97, %c2_98, %c0_99, %c0_100] : memref<1x4x16x16xf32, #tpu.memory_space<vmem>>, vector<1x1x16x16xf32>
      %106 = vector.shape_cast %105 : vector<1x1x16x16xf32> to vector<16x16xf32>
      %107 = vector.broadcast %104 : f32 to vector<16x16xf32>
      %108 = arith.mulf %107, %106 : vector<16x16xf32>
      %109 = arith.addf %103, %108 : vector<16x16xf32>
      %c1_101 = arith.constant 1 : index
      %c3_102 = arith.constant 3 : index
      %110 = memref.load %arg3[%c1_101, %c3_102] : memref<4x4xf32, #tpu.memory_space<smem>>
      %c0_103 = arith.constant 0 : index
      %c3_104 = arith.constant 3 : index
      %c0_105 = arith.constant 0 : index
      %c0_106 = arith.constant 0 : index
      %111 = vector.load %arg2[%c0_103, %c3_104, %c0_105, %c0_106] : memref<1x4x16x16xf32, #tpu.memory_space<vmem>>, vector<1x1x16x16xf32>
      %112 = vector.shape_cast %111 : vector<1x1x16x16xf32> to vector<16x16xf32>
      %113 = vector.broadcast %110 : f32 to vector<16x16xf32>
      %114 = arith.mulf %113, %112 : vector<16x16xf32>
      %115 = arith.addf %109, %114 : vector<16x16xf32>
      %cst_107 = arith.constant dense<0.000000e+00> : vector<16x32xf32>
      %116 = tpu.matmul %115, %65, %cst_107 {dimension_numbers = #tpu.dot_dimension_numbers<[1], [0], [0], [1], [0, 0, 1, 1], [], []>} : vector<16x16xf32>, vector<16x32xf32>, vector<16x32xf32> -> vector<16x32xf32>
      %c1_108 = arith.constant 1 : index
      %c0_109 = arith.constant 0 : index
      %c0_110 = arith.constant 0 : index
      %117 = vector.load %arg7[%c1_108, %c0_109, %c0_110] : memref<4x16x32xf32, #tpu.memory_space<vmem>>, vector<1x16x32xf32>
      %118 = vector.shape_cast %117 : vector<1x16x32xf32> to vector<16x32xf32>
      %119 = vector.shape_cast %116 : vector<16x32xf32> to vector<1x16x32xf32>
      tpu.vector_store %arg7[%c1_108, %c0_109, %c0_110], %119 {strides = array<i32>} : memref<4x16x32xf32, #tpu.memory_space<vmem>>, vector<1x16x32xf32>,
      %c2_111 = arith.constant 2 : index
      %c0_112 = arith.constant 0 : index
      %120 = memref.load %arg3[%c2_111, %c0_112] : memref<4x4xf32, #tpu.memory_space<smem>>
      %c0_113 = arith.constant 0 : index
      %c0_114 = arith.constant 0 : index
      %c0_115 = arith.constant 0 : index
      %c0_116 = arith.constant 0 : index
      %121 = vector.load %arg2[%c0_113, %c0_114, %c0_115, %c0_116] : memref<1x4x16x16xf32, #tpu.memory_space<vmem>>, vector<1x1x16x16xf32>
      %122 = vector.shape_cast %121 : vector<1x1x16x16xf32> to vector<16x16xf32>
      %123 = vector.broadcast %120 : f32 to vector<16x16xf32>
      %124 = arith.mulf %123, %122 : vector<16x16xf32>
      %c2_117 = arith.constant 2 : index
      %c1_118 = arith.constant 1 : index
      %125 = memref.load %arg3[%c2_117, %c1_118] : memref<4x4xf32, #tpu.memory_space<smem>>
      %c0_119 = arith.constant 0 : index
      %c1_120 = arith.constant 1 : index
      %c0_121 = arith.constant 0 : index
      %c0_122 = arith.constant 0 : index
      %126 = vector.load %arg2[%c0_119, %c1_120, %c0_121, %c0_122] : memref<1x4x16x16xf32, #tpu.memory_space<vmem>>, vector<1x1x16x16xf32>
      %127 = vector.shape_cast %126 : vector<1x1x16x16xf32> to vector<16x16xf32>
      %128 = vector.broadcast %125 : f32 to vector<16x16xf32>
      %129 = arith.mulf %128, %127 : vector<16x16xf32>
      %130 = arith.addf %124, %129 : vector<16x16xf32>
      %c2_123 = arith.constant 2 : index
      %c2_124 = arith.constant 2 : index
      %131 = memref.load %arg3[%c2_123, %c2_124] : memref<4x4xf32, #tpu.memory_space<smem>>
      %c0_125 = arith.constant 0 : index
      %c2_126 = arith.constant 2 : index
      %c0_127 = arith.constant 0 : index
      %c0_128 = arith.constant 0 : index
      %132 = vector.load %arg2[%c0_125, %c2_126, %c0_127, %c0_128] : memref<1x4x16x16xf32, #tpu.memory_space<vmem>>, vector<1x1x16x16xf32>
      %133 = vector.shape_cast %132 : vector<1x1x16x16xf32> to vector<16x16xf32>
      %134 = vector.broadcast %131 : f32 to vector<16x16xf32>
      %135 = arith.mulf %134, %133 : vector<16x16xf32>
      %136 = arith.addf %130, %135 : vector<16x16xf32>
      %c2_129 = arith.constant 2 : index
      %c3_130 = arith.constant 3 : index
      %137 = memref.load %arg3[%c2_129, %c3_130] : memref<4x4xf32, #tpu.memory_space<smem>>
      %c0_131 = arith.constant 0 : index
      %c3_132 = arith.constant 3 : index
      %c0_133 = arith.constant 0 : index
      %c0_134 = arith.constant 0 : index
      %138 = vector.load %arg2[%c0_131, %c3_132, %c0_133, %c0_134] : memref<1x4x16x16xf32, #tpu.memory_space<vmem>>, vector<1x1x16x16xf32>
      %139 = vector.shape_cast %138 : vector<1x1x16x16xf32> to vector<16x16xf32>
      %140 = vector.broadcast %137 : f32 to vector<16x16xf32>
      %141 = arith.mulf %140, %139 : vector<16x16xf32>
      %142 = arith.addf %136, %141 : vector<16x16xf32>
      %cst_135 = arith.constant dense<0.000000e+00> : vector<16x32xf32>
      %143 = tpu.matmul %142, %65, %cst_135 {dimension_numbers = #tpu.dot_dimension_numbers<[1], [0], [0], [1], [0, 0, 1, 1], [], []>} : vector<16x16xf32>, vector<16x32xf32>, vector<16x32xf32> -> vector<16x32xf32>
      %c2_136 = arith.constant 2 : index
      %c0_137 = arith.constant 0 : index
      %c0_138 = arith.constant 0 : index
      %144 = vector.load %arg7[%c2_136, %c0_137, %c0_138] : memref<4x16x32xf32, #tpu.memory_space<vmem>>, vector<1x16x32xf32>
      %145 = vector.shape_cast %144 : vector<1x16x32xf32> to vector<16x32xf32>
      %146 = vector.shape_cast %143 : vector<16x32xf32> to vector<1x16x32xf32>
      tpu.vector_store %arg7[%c2_136, %c0_137, %c0_138], %146 {strides = array<i32>} : memref<4x16x32xf32, #tpu.memory_space<vmem>>, vector<1x16x32xf32>,
      %c3_139 = arith.constant 3 : index
      %c0_140 = arith.constant 0 : index
      %147 = memref.load %arg3[%c3_139, %c0_140] : memref<4x4xf32, #tpu.memory_space<smem>>
      %c0_141 = arith.constant 0 : index
      %c0_142 = arith.constant 0 : index
      %c0_143 = arith.constant 0 : index
      %c0_144 = arith.constant 0 : index
      %148 = vector.load %arg2[%c0_141, %c0_142, %c0_143, %c0_144] : memref<1x4x16x16xf32, #tpu.memory_space<vmem>>, vector<1x1x16x16xf32>
      %149 = vector.shape_cast %148 : vector<1x1x16x16xf32> to vector<16x16xf32>
      %150 = vector.broadcast %147 : f32 to vector<16x16xf32>
      %151 = arith.mulf %150, %149 : vector<16x16xf32>
      %c3_145 = arith.constant 3 : index
      %c1_146 = arith.constant 1 : index
      %152 = memref.load %arg3[%c3_145, %c1_146] : memref<4x4xf32, #tpu.memory_space<smem>>
      %c0_147 = arith.constant 0 : index
      %c1_148 = arith.constant 1 : index
      %c0_149 = arith.constant 0 : index
      %c0_150 = arith.constant 0 : index
      %153 = vector.load %arg2[%c0_147, %c1_148, %c0_149, %c0_150] : memref<1x4x16x16xf32, #tpu.memory_space<vmem>>, vector<1x1x16x16xf32>
      %154 = vector.shape_cast %153 : vector<1x1x16x16xf32> to vector<16x16xf32>
      %155 = vector.broadcast %152 : f32 to vector<16x16xf32>
      %156 = arith.mulf %155, %154 : vector<16x16xf32>
      %157 = arith.addf %151, %156 : vector<16x16xf32>
      %c3_151 = arith.constant 3 : index
      %c2_152 = arith.constant 2 : index
      %158 = memref.load %arg3[%c3_151, %c2_152] : memref<4x4xf32, #tpu.memory_space<smem>>
      %c0_153 = arith.constant 0 : index
      %c2_154 = arith.constant 2 : index
      %c0_155 = arith.constant 0 : index
      %c0_156 = arith.constant 0 : index
      %159 = vector.load %arg2[%c0_153, %c2_154, %c0_155, %c0_156] : memref<1x4x16x16xf32, #tpu.memory_space<vmem>>, vector<1x1x16x16xf32>
      %160 = vector.shape_cast %159 : vector<1x1x16x16xf32> to vector<16x16xf32>
      %161 = vector.broadcast %158 : f32 to vector<16x16xf32>
      %162 = arith.mulf %161, %160 : vector<16x16xf32>
      %163 = arith.addf %157, %162 : vector<16x16xf32>
      %c3_157 = arith.constant 3 : index
      %c3_158 = arith.constant 3 : index
      %164 = memref.load %arg3[%c3_157, %c3_158] : memref<4x4xf32, #tpu.memory_space<smem>>
      %c0_159 = arith.constant 0 : index
      %c3_160 = arith.constant 3 : index
      %c0_161 = arith.constant 0 : index
      %c0_162 = arith.constant 0 : index
      %165 = vector.load %arg2[%c0_159, %c3_160, %c0_161, %c0_162] : memref<1x4x16x16xf32, #tpu.memory_space<vmem>>, vector<1x1x16x16xf32>
      %166 = vector.shape_cast %165 : vector<1x1x16x16xf32> to vector<16x16xf32>
      %167 = vector.broadcast %164 : f32 to vector<16x16xf32>
      %168 = arith.mulf %167, %166 : vector<16x16xf32>
      %169 = arith.addf %163, %168 : vector<16x16xf32>
      %cst_163 = arith.constant dense<0.000000e+00> : vector<16x32xf32>
      %170 = tpu.matmul %169, %65, %cst_163 {dimension_numbers = #tpu.dot_dimension_numbers<[1], [0], [0], [1], [0, 0, 1, 1], [], []>} : vector<16x16xf32>, vector<16x32xf32>, vector<16x32xf32> -> vector<16x32xf32>
      %c3_164 = arith.constant 3 : index
      %c0_165 = arith.constant 0 : index
      %c0_166 = arith.constant 0 : index
      %171 = vector.load %arg7[%c3_164, %c0_165, %c0_166] : memref<4x16x32xf32, #tpu.memory_space<vmem>>, vector<1x16x32xf32>
      %172 = vector.shape_cast %171 : vector<1x16x32xf32> to vector<16x32xf32>
      %173 = vector.shape_cast %170 : vector<16x32xf32> to vector<1x16x32xf32>
      tpu.vector_store %arg7[%c3_164, %c0_165, %c0_166], %173 {strides = array<i32>} : memref<4x16x32xf32, #tpu.memory_space<vmem>>, vector<1x16x32xf32>,
    } else {
    }
    %c0 = arith.constant 0 : index
    %c0_4 = arith.constant 0 : index
    %8 = vector.load %arg5[%c0, %c0_4] : memref<16x16xf32, #tpu.memory_space<vmem>>, vector<16x16xf32>
    %c0_5 = arith.constant 0 : index
    %c0_6 = arith.constant 0 : index
    %c0_7 = arith.constant 0 : index
    %9 = vector.load %arg7[%c0_5, %c0_6, %c0_7] : memref<4x16x32xf32, #tpu.memory_space<vmem>>, vector<1x16x32xf32>
    %10 = vector.shape_cast %9 : vector<1x16x32xf32> to vector<16x32xf32>
    %cst = arith.constant dense<0.000000e+00> : vector<16x32xf32>
    %11 = tpu.matmul %8, %10, %cst {dimension_numbers = #tpu.dot_dimension_numbers<[1], [0], [0], [1], [0, 0, 1, 1], [], []>} : vector<16x16xf32>, vector<16x32xf32>, vector<16x32xf32> -> vector<16x32xf32>
    %c0_8 = arith.constant 0 : index
    %c0_9 = arith.constant 0 : index
    %12 = vector.load %arg6[%c0_8, %c0_9] : memref<8x32xf32, #tpu.memory_space<vmem>>, vector<1x32xf32>
    %cst_10 = arith.constant dense<0.000000e+00> : vector<32xf32>
    %13 = vector.multi_reduction <add>, %11, %cst_10 [0] : vector<16x32xf32> to vector<32xf32>
    %14 = vector.shape_cast %13 : vector<32xf32> to vector<1x32xf32>
    %15 = arith.addf %12, %14 : vector<1x32xf32>
    %c0_11 = arith.constant 0 : index
    %c0_12 = arith.constant 0 : index
    %16 = vector.load %arg6[%c0_11, %c0_12] : memref<8x32xf32, #tpu.memory_space<vmem>>, vector<1x32xf32>
    tpu.vector_store %arg6[%c0_11, %c0_12], %15 {strides = array<i32>} : memref<8x32xf32, #tpu.memory_space<vmem>>, vector<1x32xf32>,
    %c4 = arith.constant 4 : index
    %c0_13 = arith.constant 0 : index
    %17 = vector.load %arg6[%c4, %c0_13] : memref<8x32xf32, #tpu.memory_space<vmem>>, vector<1x32xf32>
    %18 = arith.mulf %11, %11 : vector<16x32xf32>
    %cst_14 = arith.constant dense<0.000000e+00> : vector<32xf32>
    %19 = vector.multi_reduction <add>, %18, %cst_14 [0] : vector<16x32xf32> to vector<32xf32>
    %20 = vector.shape_cast %19 : vector<32xf32> to vector<1x32xf32>
    %21 = arith.addf %17, %20 : vector<1x32xf32>
    %c4_15 = arith.constant 4 : index
    %c0_16 = arith.constant 0 : index
    %22 = vector.load %arg6[%c4_15, %c0_16] : memref<8x32xf32, #tpu.memory_space<vmem>>, vector<1x32xf32>
    tpu.vector_store %arg6[%c4_15, %c0_16], %21 {strides = array<i32>} : memref<8x32xf32, #tpu.memory_space<vmem>>, vector<1x32xf32>,
    %c1 = arith.constant 1 : index
    %c0_17 = arith.constant 0 : index
    %c0_18 = arith.constant 0 : index
    %23 = vector.load %arg7[%c1, %c0_17, %c0_18] : memref<4x16x32xf32, #tpu.memory_space<vmem>>, vector<1x16x32xf32>
    %24 = vector.shape_cast %23 : vector<1x16x32xf32> to vector<16x32xf32>
    %cst_19 = arith.constant dense<0.000000e+00> : vector<16x32xf32>
    %25 = tpu.matmul %8, %24, %cst_19 {dimension_numbers = #tpu.dot_dimension_numbers<[1], [0], [0], [1], [0, 0, 1, 1], [], []>} : vector<16x16xf32>, vector<16x32xf32>, vector<16x32xf32> -> vector<16x32xf32>
    %c1_20 = arith.constant 1 : index
    %c0_21 = arith.constant 0 : index
    %26 = vector.load %arg6[%c1_20, %c0_21] : memref<8x32xf32, #tpu.memory_space<vmem>>, vector<1x32xf32>
    %cst_22 = arith.constant dense<0.000000e+00> : vector<32xf32>
    %27 = vector.multi_reduction <add>, %25, %cst_22 [0] : vector<16x32xf32> to vector<32xf32>
    %28 = vector.shape_cast %27 : vector<32xf32> to vector<1x32xf32>
    %29 = arith.addf %26, %28 : vector<1x32xf32>
    %c1_23 = arith.constant 1 : index
    %c0_24 = arith.constant 0 : index
    %30 = vector.load %arg6[%c1_23, %c0_24] : memref<8x32xf32, #tpu.memory_space<vmem>>, vector<1x32xf32>
    tpu.vector_store %arg6[%c1_23, %c0_24], %29 {strides = array<i32>} : memref<8x32xf32, #tpu.memory_space<vmem>>, vector<1x32xf32>,
    %c5 = arith.constant 5 : index
    %c0_25 = arith.constant 0 : index
    %31 = vector.load %arg6[%c5, %c0_25] : memref<8x32xf32, #tpu.memory_space<vmem>>, vector<1x32xf32>
    %32 = arith.mulf %25, %25 : vector<16x32xf32>
    %cst_26 = arith.constant dense<0.000000e+00> : vector<32xf32>
    %33 = vector.multi_reduction <add>, %32, %cst_26 [0] : vector<16x32xf32> to vector<32xf32>
    %34 = vector.shape_cast %33 : vector<32xf32> to vector<1x32xf32>
    %35 = arith.addf %31, %34 : vector<1x32xf32>
    %c5_27 = arith.constant 5 : index
    %c0_28 = arith.constant 0 : index
    %36 = vector.load %arg6[%c5_27, %c0_28] : memref<8x32xf32, #tpu.memory_space<vmem>>, vector<1x32xf32>
    tpu.vector_store %arg6[%c5_27, %c0_28], %35 {strides = array<i32>} : memref<8x32xf32, #tpu.memory_space<vmem>>, vector<1x32xf32>,
    %c2 = arith.constant 2 : index
    %c0_29 = arith.constant 0 : index
    %c0_30 = arith.constant 0 : index
    %37 = vector.load %arg7[%c2, %c0_29, %c0_30] : memref<4x16x32xf32, #tpu.memory_space<vmem>>, vector<1x16x32xf32>
    %38 = vector.shape_cast %37 : vector<1x16x32xf32> to vector<16x32xf32>
    %cst_31 = arith.constant dense<0.000000e+00> : vector<16x32xf32>
    %39 = tpu.matmul %8, %38, %cst_31 {dimension_numbers = #tpu.dot_dimension_numbers<[1], [0], [0], [1], [0, 0, 1, 1], [], []>} : vector<16x16xf32>, vector<16x32xf32>, vector<16x32xf32> -> vector<16x32xf32>
    %c2_32 = arith.constant 2 : index
    %c0_33 = arith.constant 0 : index
    %40 = vector.load %arg6[%c2_32, %c0_33] : memref<8x32xf32, #tpu.memory_space<vmem>>, vector<1x32xf32>
    %cst_34 = arith.constant dense<0.000000e+00> : vector<32xf32>
    %41 = vector.multi_reduction <add>, %39, %cst_34 [0] : vector<16x32xf32> to vector<32xf32>
    %42 = vector.shape_cast %41 : vector<32xf32> to vector<1x32xf32>
    %43 = arith.addf %40, %42 : vector<1x32xf32>
    %c2_35 = arith.constant 2 : index
    %c0_36 = arith.constant 0 : index
    %44 = vector.load %arg6[%c2_35, %c0_36] : memref<8x32xf32, #tpu.memory_space<vmem>>, vector<1x32xf32>
    tpu.vector_store %arg6[%c2_35, %c0_36], %43 {strides = array<i32>} : memref<8x32xf32, #tpu.memory_space<vmem>>, vector<1x32xf32>,
    %c6 = arith.constant 6 : index
    %c0_37 = arith.constant 0 : index
    %45 = vector.load %arg6[%c6, %c0_37] : memref<8x32xf32, #tpu.memory_space<vmem>>, vector<1x32xf32>
    %46 = arith.mulf %39, %39 : vector<16x32xf32>
    %cst_38 = arith.constant dense<0.000000e+00> : vector<32xf32>
    %47 = vector.multi_reduction <add>, %46, %cst_38 [0] : vector<16x32xf32> to vector<32xf32>
    %48 = vector.shape_cast %47 : vector<32xf32> to vector<1x32xf32>
    %49 = arith.addf %45, %48 : vector<1x32xf32>
    %c6_39 = arith.constant 6 : index
    %c0_40 = arith.constant 0 : index
    %50 = vector.load %arg6[%c6_39, %c0_40] : memref<8x32xf32, #tpu.memory_space<vmem>>, vector<1x32xf32>
    tpu.vector_store %arg6[%c6_39, %c0_40], %49 {strides = array<i32>} : memref<8x32xf32, #tpu.memory_space<vmem>>, vector<1x32xf32>,
    %c3 = arith.constant 3 : index
    %c0_41 = arith.constant 0 : index
    %c0_42 = arith.constant 0 : index
    %51 = vector.load %arg7[%c3, %c0_41, %c0_42] : memref<4x16x32xf32, #tpu.memory_space<vmem>>, vector<1x16x32xf32>
    %52 = vector.shape_cast %51 : vector<1x16x32xf32> to vector<16x32xf32>
    %cst_43 = arith.constant dense<0.000000e+00> : vector<16x32xf32>
    %53 = tpu.matmul %8, %52, %cst_43 {dimension_numbers = #tpu.dot_dimension_numbers<[1], [0], [0], [1], [0, 0, 1, 1], [], []>} : vector<16x16xf32>, vector<16x32xf32>, vector<16x32xf32> -> vector<16x32xf32>
    %c3_44 = arith.constant 3 : index
    %c0_45 = arith.constant 0 : index
    %54 = vector.load %arg6[%c3_44, %c0_45] : memref<8x32xf32, #tpu.memory_space<vmem>>, vector<1x32xf32>
    %cst_46 = arith.constant dense<0.000000e+00> : vector<32xf32>
    %55 = vector.multi_reduction <add>, %53, %cst_46 [0] : vector<16x32xf32> to vector<32xf32>
    %56 = vector.shape_cast %55 : vector<32xf32> to vector<1x32xf32>
    %57 = arith.addf %54, %56 : vector<1x32xf32>
    %c3_47 = arith.constant 3 : index
    %c0_48 = arith.constant 0 : index
    %58 = vector.load %arg6[%c3_47, %c0_48] : memref<8x32xf32, #tpu.memory_space<vmem>>, vector<1x32xf32>
    tpu.vector_store %arg6[%c3_47, %c0_48], %57 {strides = array<i32>} : memref<8x32xf32, #tpu.memory_space<vmem>>, vector<1x32xf32>,
    %c7 = arith.constant 7 : index
    %c0_49 = arith.constant 0 : index
    %59 = vector.load %arg6[%c7, %c0_49] : memref<8x32xf32, #tpu.memory_space<vmem>>, vector<1x32xf32>
    %60 = arith.mulf %53, %53 : vector<16x32xf32>
    %cst_50 = arith.constant dense<0.000000e+00> : vector<32xf32>
    %61 = vector.multi_reduction <add>, %60, %cst_50 [0] : vector<16x32xf32> to vector<32xf32>
    %62 = vector.shape_cast %61 : vector<32xf32> to vector<1x32xf32>
    %63 = arith.addf %59, %62 : vector<1x32xf32>
    %c7_51 = arith.constant 7 : index
    %c0_52 = arith.constant 0 : index
    %64 = vector.load %arg6[%c7_51, %c0_52] : memref<8x32xf32, #tpu.memory_space<vmem>>, vector<1x32xf32>
    tpu.vector_store %arg6[%c7_51, %c0_52], %63 {strides = array<i32>} : memref<8x32xf32, #tpu.memory_space<vmem>>, vector<1x32xf32>,
    return
  }
  func.func @transform_0(%arg0: i32, %arg1: i32) -> (i32, i32, i32, i32) {
    %c0_i32 = arith.constant 0 : i32
    %c0_i32_0 = arith.constant 0 : i32
    %c0_i32_1 = arith.constant 0 : i32
    %c0_i32_2 = arith.constant 0 : i32
    return %arg0, %c0_i32, %c0_i32_0, %c0_i32_1 : i32, i32, i32, i32
  }
  func.func @transform_1(%arg0: i32, %arg1: i32) -> (i32, i32) {
    %c0_i32 = arith.constant 0 : i32
    %c0_i32_0 = arith.constant 0 : i32
    %c0_i32_1 = arith.constant 0 : i32
    return %c0_i32, %c0_i32_0 : i32, i32
  }
  func.func @transform_2(%arg0: i32, %arg1: i32) -> (i32, i32) {
    %c0_i32 = arith.constant 0 : i32
    %c0_i32_0 = arith.constant 0 : i32
    %c0_i32_1 = arith.constant 0 : i32
    return %c0_i32, %c0_i32_0 : i32, i32
  }
  func.func @transform_3(%arg0: i32, %arg1: i32) -> (i32, i32) {
    %c0_i32 = arith.constant 0 : i32
    %c0_i32_0 = arith.constant 0 : i32
    return %arg1, %c0_i32 : i32, i32
  }
  func.func @transform_4(%arg0: i32, %arg1: i32) -> (i32, i32) {
    %c0_i32 = arith.constant 0 : i32
    %c0_i32_0 = arith.constant 0 : i32
    %c0_i32_1 = arith.constant 0 : i32
    return %c0_i32, %c0_i32_0 : i32, i32
  }
}

module attributes {stable_mosaic.version = 11 : i64} {
  func.func @_stats_kernel(%arg0: i32, %arg1: i32, %arg2: memref<1x4x32x32xf32, #tpu.memory_space<vmem>>, %arg3: memref<4x4xf32, #tpu.memory_space<smem>>, %arg4: memref<32x64xf32, #tpu.memory_space<vmem>>, %arg5: memref<16x32xf32, #tpu.memory_space<vmem>>, %arg6: memref<8x64xf32, #tpu.memory_space<vmem>>, %arg7: memref<4x32x64xf32, #tpu.memory_space<vmem>>) attributes {dimension_semantics = [#tpu.dimension_semantics<arbitrary>, #tpu.dimension_semantics<arbitrary>], iteration_bounds = array<i64: 2, 4>, scalar_prefetch = 0 : i64, scratch_operands = 1 : i64, tpu.core_type = #tpu.core_type<tc>, window_params = [{transform_indices = @transform_0, window_bounds = array<i64: 1, 4, 32, 32>}, {transform_indices = @transform_1, window_bounds = array<i64: 4, 4>}, {pipeline_mode = #tpu.pipeline_mode<synchronous>, transform_indices = @transform_2, window_bounds = array<i64: 32, 64>}, {transform_indices = @transform_3, window_bounds = array<i64: 16, 32>}, {pipeline_mode = #tpu.pipeline_mode<synchronous>, transform_indices = @transform_4, window_bounds = array<i64: 8, 64>}]} {
    %c0_i32 = arith.constant 0 : i32
    %0 = arith.cmpi eq, %arg0, %c0_i32 : i32
    %c0_i32_0 = arith.constant 0 : i32
    %1 = arith.cmpi eq, %arg1, %c0_i32_0 : i32
    %2 = arith.andi %0, %1 : i1
    %3 = arith.extui %2 : i1 to i32
    %c0_i32_1 = arith.constant 0 : i32
    %4 = arith.cmpi ne, %3, %c0_i32_1 : i32
    scf.if %4 {
      %cst_53 = arith.constant 0.000000e+00 : f32
      %65 = vector.broadcast %cst_53 : f32 to vector<8x64xf32>
      %c0_54 = arith.constant 0 : index
      %c0_55 = arith.constant 0 : index
      %66 = vector.load %arg6[%c0_54, %c0_55] : memref<8x64xf32, #tpu.memory_space<vmem>>, vector<8x64xf32>
      tpu.vector_store %arg6[%c0_54, %c0_55], %65 {strides = array<i32>} : memref<8x64xf32, #tpu.memory_space<vmem>>, vector<8x64xf32>,
    } else {
    }
    %c0_i32_2 = arith.constant 0 : i32
    %5 = arith.cmpi eq, %arg1, %c0_i32_2 : i32
    %6 = arith.extui %5 : i1 to i32
    %c0_i32_3 = arith.constant 0 : i32
    %7 = arith.cmpi ne, %6, %c0_i32_3 : i32
    scf.if %7 {
      %c0_53 = arith.constant 0 : index
      %c0_54 = arith.constant 0 : index
      %65 = vector.load %arg4[%c0_53, %c0_54] : memref<32x64xf32, #tpu.memory_space<vmem>>, vector<32x64xf32>
      %c0_55 = arith.constant 0 : index
      %c0_56 = arith.constant 0 : index
      %66 = memref.load %arg3[%c0_55, %c0_56] : memref<4x4xf32, #tpu.memory_space<smem>>
      %c0_57 = arith.constant 0 : index
      %c0_58 = arith.constant 0 : index
      %c0_59 = arith.constant 0 : index
      %c0_60 = arith.constant 0 : index
      %67 = vector.load %arg2[%c0_57, %c0_58, %c0_59, %c0_60] : memref<1x4x32x32xf32, #tpu.memory_space<vmem>>, vector<1x1x32x32xf32>
      %68 = vector.shape_cast %67 : vector<1x1x32x32xf32> to vector<32x32xf32>
      %69 = vector.broadcast %66 : f32 to vector<32x32xf32>
      %70 = arith.mulf %69, %68 : vector<32x32xf32>
      %c0_61 = arith.constant 0 : index
      %c1_62 = arith.constant 1 : index
      %71 = memref.load %arg3[%c0_61, %c1_62] : memref<4x4xf32, #tpu.memory_space<smem>>
      %c0_63 = arith.constant 0 : index
      %c1_64 = arith.constant 1 : index
      %c0_65 = arith.constant 0 : index
      %c0_66 = arith.constant 0 : index
      %72 = vector.load %arg2[%c0_63, %c1_64, %c0_65, %c0_66] : memref<1x4x32x32xf32, #tpu.memory_space<vmem>>, vector<1x1x32x32xf32>
      %73 = vector.shape_cast %72 : vector<1x1x32x32xf32> to vector<32x32xf32>
      %74 = vector.broadcast %71 : f32 to vector<32x32xf32>
      %75 = arith.mulf %74, %73 : vector<32x32xf32>
      %76 = arith.addf %70, %75 : vector<32x32xf32>
      %c0_67 = arith.constant 0 : index
      %c2_68 = arith.constant 2 : index
      %77 = memref.load %arg3[%c0_67, %c2_68] : memref<4x4xf32, #tpu.memory_space<smem>>
      %c0_69 = arith.constant 0 : index
      %c2_70 = arith.constant 2 : index
      %c0_71 = arith.constant 0 : index
      %c0_72 = arith.constant 0 : index
      %78 = vector.load %arg2[%c0_69, %c2_70, %c0_71, %c0_72] : memref<1x4x32x32xf32, #tpu.memory_space<vmem>>, vector<1x1x32x32xf32>
      %79 = vector.shape_cast %78 : vector<1x1x32x32xf32> to vector<32x32xf32>
      %80 = vector.broadcast %77 : f32 to vector<32x32xf32>
      %81 = arith.mulf %80, %79 : vector<32x32xf32>
      %82 = arith.addf %76, %81 : vector<32x32xf32>
      %c0_73 = arith.constant 0 : index
      %c3_74 = arith.constant 3 : index
      %83 = memref.load %arg3[%c0_73, %c3_74] : memref<4x4xf32, #tpu.memory_space<smem>>
      %c0_75 = arith.constant 0 : index
      %c3_76 = arith.constant 3 : index
      %c0_77 = arith.constant 0 : index
      %c0_78 = arith.constant 0 : index
      %84 = vector.load %arg2[%c0_75, %c3_76, %c0_77, %c0_78] : memref<1x4x32x32xf32, #tpu.memory_space<vmem>>, vector<1x1x32x32xf32>
      %85 = vector.shape_cast %84 : vector<1x1x32x32xf32> to vector<32x32xf32>
      %86 = vector.broadcast %83 : f32 to vector<32x32xf32>
      %87 = arith.mulf %86, %85 : vector<32x32xf32>
      %88 = arith.addf %82, %87 : vector<32x32xf32>
      %cst_79 = arith.constant dense<0.000000e+00> : vector<32x64xf32>
      %89 = tpu.matmul %88, %65, %cst_79 {dimension_numbers = #tpu.dot_dimension_numbers<[1], [0], [0], [1], [0, 0, 1, 1], [], []>} : vector<32x32xf32>, vector<32x64xf32>, vector<32x64xf32> -> vector<32x64xf32>
      %c0_80 = arith.constant 0 : index
      %c0_81 = arith.constant 0 : index
      %c0_82 = arith.constant 0 : index
      %90 = vector.load %arg7[%c0_80, %c0_81, %c0_82] : memref<4x32x64xf32, #tpu.memory_space<vmem>>, vector<1x32x64xf32>
      %91 = vector.shape_cast %90 : vector<1x32x64xf32> to vector<32x64xf32>
      %92 = vector.shape_cast %89 : vector<32x64xf32> to vector<1x32x64xf32>
      tpu.vector_store %arg7[%c0_80, %c0_81, %c0_82], %92 {strides = array<i32>} : memref<4x32x64xf32, #tpu.memory_space<vmem>>, vector<1x32x64xf32>,
      %c1_83 = arith.constant 1 : index
      %c0_84 = arith.constant 0 : index
      %93 = memref.load %arg3[%c1_83, %c0_84] : memref<4x4xf32, #tpu.memory_space<smem>>
      %c0_85 = arith.constant 0 : index
      %c0_86 = arith.constant 0 : index
      %c0_87 = arith.constant 0 : index
      %c0_88 = arith.constant 0 : index
      %94 = vector.load %arg2[%c0_85, %c0_86, %c0_87, %c0_88] : memref<1x4x32x32xf32, #tpu.memory_space<vmem>>, vector<1x1x32x32xf32>
      %95 = vector.shape_cast %94 : vector<1x1x32x32xf32> to vector<32x32xf32>
      %96 = vector.broadcast %93 : f32 to vector<32x32xf32>
      %97 = arith.mulf %96, %95 : vector<32x32xf32>
      %c1_89 = arith.constant 1 : index
      %c1_90 = arith.constant 1 : index
      %98 = memref.load %arg3[%c1_89, %c1_90] : memref<4x4xf32, #tpu.memory_space<smem>>
      %c0_91 = arith.constant 0 : index
      %c1_92 = arith.constant 1 : index
      %c0_93 = arith.constant 0 : index
      %c0_94 = arith.constant 0 : index
      %99 = vector.load %arg2[%c0_91, %c1_92, %c0_93, %c0_94] : memref<1x4x32x32xf32, #tpu.memory_space<vmem>>, vector<1x1x32x32xf32>
      %100 = vector.shape_cast %99 : vector<1x1x32x32xf32> to vector<32x32xf32>
      %101 = vector.broadcast %98 : f32 to vector<32x32xf32>
      %102 = arith.mulf %101, %100 : vector<32x32xf32>
      %103 = arith.addf %97, %102 : vector<32x32xf32>
      %c1_95 = arith.constant 1 : index
      %c2_96 = arith.constant 2 : index
      %104 = memref.load %arg3[%c1_95, %c2_96] : memref<4x4xf32, #tpu.memory_space<smem>>
      %c0_97 = arith.constant 0 : index
      %c2_98 = arith.constant 2 : index
      %c0_99 = arith.constant 0 : index
      %c0_100 = arith.constant 0 : index
      %105 = vector.load %arg2[%c0_97, %c2_98, %c0_99, %c0_100] : memref<1x4x32x32xf32, #tpu.memory_space<vmem>>, vector<1x1x32x32xf32>
      %106 = vector.shape_cast %105 : vector<1x1x32x32xf32> to vector<32x32xf32>
      %107 = vector.broadcast %104 : f32 to vector<32x32xf32>
      %108 = arith.mulf %107, %106 : vector<32x32xf32>
      %109 = arith.addf %103, %108 : vector<32x32xf32>
      %c1_101 = arith.constant 1 : index
      %c3_102 = arith.constant 3 : index
      %110 = memref.load %arg3[%c1_101, %c3_102] : memref<4x4xf32, #tpu.memory_space<smem>>
      %c0_103 = arith.constant 0 : index
      %c3_104 = arith.constant 3 : index
      %c0_105 = arith.constant 0 : index
      %c0_106 = arith.constant 0 : index
      %111 = vector.load %arg2[%c0_103, %c3_104, %c0_105, %c0_106] : memref<1x4x32x32xf32, #tpu.memory_space<vmem>>, vector<1x1x32x32xf32>
      %112 = vector.shape_cast %111 : vector<1x1x32x32xf32> to vector<32x32xf32>
      %113 = vector.broadcast %110 : f32 to vector<32x32xf32>
      %114 = arith.mulf %113, %112 : vector<32x32xf32>
      %115 = arith.addf %109, %114 : vector<32x32xf32>
      %cst_107 = arith.constant dense<0.000000e+00> : vector<32x64xf32>
      %116 = tpu.matmul %115, %65, %cst_107 {dimension_numbers = #tpu.dot_dimension_numbers<[1], [0], [0], [1], [0, 0, 1, 1], [], []>} : vector<32x32xf32>, vector<32x64xf32>, vector<32x64xf32> -> vector<32x64xf32>
      %c1_108 = arith.constant 1 : index
      %c0_109 = arith.constant 0 : index
      %c0_110 = arith.constant 0 : index
      %117 = vector.load %arg7[%c1_108, %c0_109, %c0_110] : memref<4x32x64xf32, #tpu.memory_space<vmem>>, vector<1x32x64xf32>
      %118 = vector.shape_cast %117 : vector<1x32x64xf32> to vector<32x64xf32>
      %119 = vector.shape_cast %116 : vector<32x64xf32> to vector<1x32x64xf32>
      tpu.vector_store %arg7[%c1_108, %c0_109, %c0_110], %119 {strides = array<i32>} : memref<4x32x64xf32, #tpu.memory_space<vmem>>, vector<1x32x64xf32>,
      %c2_111 = arith.constant 2 : index
      %c0_112 = arith.constant 0 : index
      %120 = memref.load %arg3[%c2_111, %c0_112] : memref<4x4xf32, #tpu.memory_space<smem>>
      %c0_113 = arith.constant 0 : index
      %c0_114 = arith.constant 0 : index
      %c0_115 = arith.constant 0 : index
      %c0_116 = arith.constant 0 : index
      %121 = vector.load %arg2[%c0_113, %c0_114, %c0_115, %c0_116] : memref<1x4x32x32xf32, #tpu.memory_space<vmem>>, vector<1x1x32x32xf32>
      %122 = vector.shape_cast %121 : vector<1x1x32x32xf32> to vector<32x32xf32>
      %123 = vector.broadcast %120 : f32 to vector<32x32xf32>
      %124 = arith.mulf %123, %122 : vector<32x32xf32>
      %c2_117 = arith.constant 2 : index
      %c1_118 = arith.constant 1 : index
      %125 = memref.load %arg3[%c2_117, %c1_118] : memref<4x4xf32, #tpu.memory_space<smem>>
      %c0_119 = arith.constant 0 : index
      %c1_120 = arith.constant 1 : index
      %c0_121 = arith.constant 0 : index
      %c0_122 = arith.constant 0 : index
      %126 = vector.load %arg2[%c0_119, %c1_120, %c0_121, %c0_122] : memref<1x4x32x32xf32, #tpu.memory_space<vmem>>, vector<1x1x32x32xf32>
      %127 = vector.shape_cast %126 : vector<1x1x32x32xf32> to vector<32x32xf32>
      %128 = vector.broadcast %125 : f32 to vector<32x32xf32>
      %129 = arith.mulf %128, %127 : vector<32x32xf32>
      %130 = arith.addf %124, %129 : vector<32x32xf32>
      %c2_123 = arith.constant 2 : index
      %c2_124 = arith.constant 2 : index
      %131 = memref.load %arg3[%c2_123, %c2_124] : memref<4x4xf32, #tpu.memory_space<smem>>
      %c0_125 = arith.constant 0 : index
      %c2_126 = arith.constant 2 : index
      %c0_127 = arith.constant 0 : index
      %c0_128 = arith.constant 0 : index
      %132 = vector.load %arg2[%c0_125, %c2_126, %c0_127, %c0_128] : memref<1x4x32x32xf32, #tpu.memory_space<vmem>>, vector<1x1x32x32xf32>
      %133 = vector.shape_cast %132 : vector<1x1x32x32xf32> to vector<32x32xf32>
      %134 = vector.broadcast %131 : f32 to vector<32x32xf32>
      %135 = arith.mulf %134, %133 : vector<32x32xf32>
      %136 = arith.addf %130, %135 : vector<32x32xf32>
      %c2_129 = arith.constant 2 : index
      %c3_130 = arith.constant 3 : index
      %137 = memref.load %arg3[%c2_129, %c3_130] : memref<4x4xf32, #tpu.memory_space<smem>>
      %c0_131 = arith.constant 0 : index
      %c3_132 = arith.constant 3 : index
      %c0_133 = arith.constant 0 : index
      %c0_134 = arith.constant 0 : index
      %138 = vector.load %arg2[%c0_131, %c3_132, %c0_133, %c0_134] : memref<1x4x32x32xf32, #tpu.memory_space<vmem>>, vector<1x1x32x32xf32>
      %139 = vector.shape_cast %138 : vector<1x1x32x32xf32> to vector<32x32xf32>
      %140 = vector.broadcast %137 : f32 to vector<32x32xf32>
      %141 = arith.mulf %140, %139 : vector<32x32xf32>
      %142 = arith.addf %136, %141 : vector<32x32xf32>
      %cst_135 = arith.constant dense<0.000000e+00> : vector<32x64xf32>
      %143 = tpu.matmul %142, %65, %cst_135 {dimension_numbers = #tpu.dot_dimension_numbers<[1], [0], [0], [1], [0, 0, 1, 1], [], []>} : vector<32x32xf32>, vector<32x64xf32>, vector<32x64xf32> -> vector<32x64xf32>
      %c2_136 = arith.constant 2 : index
      %c0_137 = arith.constant 0 : index
      %c0_138 = arith.constant 0 : index
      %144 = vector.load %arg7[%c2_136, %c0_137, %c0_138] : memref<4x32x64xf32, #tpu.memory_space<vmem>>, vector<1x32x64xf32>
      %145 = vector.shape_cast %144 : vector<1x32x64xf32> to vector<32x64xf32>
      %146 = vector.shape_cast %143 : vector<32x64xf32> to vector<1x32x64xf32>
      tpu.vector_store %arg7[%c2_136, %c0_137, %c0_138], %146 {strides = array<i32>} : memref<4x32x64xf32, #tpu.memory_space<vmem>>, vector<1x32x64xf32>,
      %c3_139 = arith.constant 3 : index
      %c0_140 = arith.constant 0 : index
      %147 = memref.load %arg3[%c3_139, %c0_140] : memref<4x4xf32, #tpu.memory_space<smem>>
      %c0_141 = arith.constant 0 : index
      %c0_142 = arith.constant 0 : index
      %c0_143 = arith.constant 0 : index
      %c0_144 = arith.constant 0 : index
      %148 = vector.load %arg2[%c0_141, %c0_142, %c0_143, %c0_144] : memref<1x4x32x32xf32, #tpu.memory_space<vmem>>, vector<1x1x32x32xf32>
      %149 = vector.shape_cast %148 : vector<1x1x32x32xf32> to vector<32x32xf32>
      %150 = vector.broadcast %147 : f32 to vector<32x32xf32>
      %151 = arith.mulf %150, %149 : vector<32x32xf32>
      %c3_145 = arith.constant 3 : index
      %c1_146 = arith.constant 1 : index
      %152 = memref.load %arg3[%c3_145, %c1_146] : memref<4x4xf32, #tpu.memory_space<smem>>
      %c0_147 = arith.constant 0 : index
      %c1_148 = arith.constant 1 : index
      %c0_149 = arith.constant 0 : index
      %c0_150 = arith.constant 0 : index
      %153 = vector.load %arg2[%c0_147, %c1_148, %c0_149, %c0_150] : memref<1x4x32x32xf32, #tpu.memory_space<vmem>>, vector<1x1x32x32xf32>
      %154 = vector.shape_cast %153 : vector<1x1x32x32xf32> to vector<32x32xf32>
      %155 = vector.broadcast %152 : f32 to vector<32x32xf32>
      %156 = arith.mulf %155, %154 : vector<32x32xf32>
      %157 = arith.addf %151, %156 : vector<32x32xf32>
      %c3_151 = arith.constant 3 : index
      %c2_152 = arith.constant 2 : index
      %158 = memref.load %arg3[%c3_151, %c2_152] : memref<4x4xf32, #tpu.memory_space<smem>>
      %c0_153 = arith.constant 0 : index
      %c2_154 = arith.constant 2 : index
      %c0_155 = arith.constant 0 : index
      %c0_156 = arith.constant 0 : index
      %159 = vector.load %arg2[%c0_153, %c2_154, %c0_155, %c0_156] : memref<1x4x32x32xf32, #tpu.memory_space<vmem>>, vector<1x1x32x32xf32>
      %160 = vector.shape_cast %159 : vector<1x1x32x32xf32> to vector<32x32xf32>
      %161 = vector.broadcast %158 : f32 to vector<32x32xf32>
      %162 = arith.mulf %161, %160 : vector<32x32xf32>
      %163 = arith.addf %157, %162 : vector<32x32xf32>
      %c3_157 = arith.constant 3 : index
      %c3_158 = arith.constant 3 : index
      %164 = memref.load %arg3[%c3_157, %c3_158] : memref<4x4xf32, #tpu.memory_space<smem>>
      %c0_159 = arith.constant 0 : index
      %c3_160 = arith.constant 3 : index
      %c0_161 = arith.constant 0 : index
      %c0_162 = arith.constant 0 : index
      %165 = vector.load %arg2[%c0_159, %c3_160, %c0_161, %c0_162] : memref<1x4x32x32xf32, #tpu.memory_space<vmem>>, vector<1x1x32x32xf32>
      %166 = vector.shape_cast %165 : vector<1x1x32x32xf32> to vector<32x32xf32>
      %167 = vector.broadcast %164 : f32 to vector<32x32xf32>
      %168 = arith.mulf %167, %166 : vector<32x32xf32>
      %169 = arith.addf %163, %168 : vector<32x32xf32>
      %cst_163 = arith.constant dense<0.000000e+00> : vector<32x64xf32>
      %170 = tpu.matmul %169, %65, %cst_163 {dimension_numbers = #tpu.dot_dimension_numbers<[1], [0], [0], [1], [0, 0, 1, 1], [], []>} : vector<32x32xf32>, vector<32x64xf32>, vector<32x64xf32> -> vector<32x64xf32>
      %c3_164 = arith.constant 3 : index
      %c0_165 = arith.constant 0 : index
      %c0_166 = arith.constant 0 : index
      %171 = vector.load %arg7[%c3_164, %c0_165, %c0_166] : memref<4x32x64xf32, #tpu.memory_space<vmem>>, vector<1x32x64xf32>
      %172 = vector.shape_cast %171 : vector<1x32x64xf32> to vector<32x64xf32>
      %173 = vector.shape_cast %170 : vector<32x64xf32> to vector<1x32x64xf32>
      tpu.vector_store %arg7[%c3_164, %c0_165, %c0_166], %173 {strides = array<i32>} : memref<4x32x64xf32, #tpu.memory_space<vmem>>, vector<1x32x64xf32>,
    } else {
    }
    %c0 = arith.constant 0 : index
    %c0_4 = arith.constant 0 : index
    %8 = vector.load %arg5[%c0, %c0_4] : memref<16x32xf32, #tpu.memory_space<vmem>>, vector<16x32xf32>
    %c0_5 = arith.constant 0 : index
    %c0_6 = arith.constant 0 : index
    %c0_7 = arith.constant 0 : index
    %9 = vector.load %arg7[%c0_5, %c0_6, %c0_7] : memref<4x32x64xf32, #tpu.memory_space<vmem>>, vector<1x32x64xf32>
    %10 = vector.shape_cast %9 : vector<1x32x64xf32> to vector<32x64xf32>
    %cst = arith.constant dense<0.000000e+00> : vector<16x64xf32>
    %11 = tpu.matmul %8, %10, %cst {dimension_numbers = #tpu.dot_dimension_numbers<[1], [0], [0], [1], [0, 0, 1, 1], [], []>} : vector<16x32xf32>, vector<32x64xf32>, vector<16x64xf32> -> vector<16x64xf32>
    %c0_8 = arith.constant 0 : index
    %c0_9 = arith.constant 0 : index
    %12 = vector.load %arg6[%c0_8, %c0_9] : memref<8x64xf32, #tpu.memory_space<vmem>>, vector<1x64xf32>
    %cst_10 = arith.constant dense<0.000000e+00> : vector<64xf32>
    %13 = vector.multi_reduction <add>, %11, %cst_10 [0] : vector<16x64xf32> to vector<64xf32>
    %14 = vector.shape_cast %13 : vector<64xf32> to vector<1x64xf32>
    %15 = arith.addf %12, %14 : vector<1x64xf32>
    %c0_11 = arith.constant 0 : index
    %c0_12 = arith.constant 0 : index
    %16 = vector.load %arg6[%c0_11, %c0_12] : memref<8x64xf32, #tpu.memory_space<vmem>>, vector<1x64xf32>
    tpu.vector_store %arg6[%c0_11, %c0_12], %15 {strides = array<i32>} : memref<8x64xf32, #tpu.memory_space<vmem>>, vector<1x64xf32>,
    %c4 = arith.constant 4 : index
    %c0_13 = arith.constant 0 : index
    %17 = vector.load %arg6[%c4, %c0_13] : memref<8x64xf32, #tpu.memory_space<vmem>>, vector<1x64xf32>
    %18 = arith.mulf %11, %11 : vector<16x64xf32>
    %cst_14 = arith.constant dense<0.000000e+00> : vector<64xf32>
    %19 = vector.multi_reduction <add>, %18, %cst_14 [0] : vector<16x64xf32> to vector<64xf32>
    %20 = vector.shape_cast %19 : vector<64xf32> to vector<1x64xf32>
    %21 = arith.addf %17, %20 : vector<1x64xf32>
    %c4_15 = arith.constant 4 : index
    %c0_16 = arith.constant 0 : index
    %22 = vector.load %arg6[%c4_15, %c0_16] : memref<8x64xf32, #tpu.memory_space<vmem>>, vector<1x64xf32>
    tpu.vector_store %arg6[%c4_15, %c0_16], %21 {strides = array<i32>} : memref<8x64xf32, #tpu.memory_space<vmem>>, vector<1x64xf32>,
    %c1 = arith.constant 1 : index
    %c0_17 = arith.constant 0 : index
    %c0_18 = arith.constant 0 : index
    %23 = vector.load %arg7[%c1, %c0_17, %c0_18] : memref<4x32x64xf32, #tpu.memory_space<vmem>>, vector<1x32x64xf32>
    %24 = vector.shape_cast %23 : vector<1x32x64xf32> to vector<32x64xf32>
    %cst_19 = arith.constant dense<0.000000e+00> : vector<16x64xf32>
    %25 = tpu.matmul %8, %24, %cst_19 {dimension_numbers = #tpu.dot_dimension_numbers<[1], [0], [0], [1], [0, 0, 1, 1], [], []>} : vector<16x32xf32>, vector<32x64xf32>, vector<16x64xf32> -> vector<16x64xf32>
    %c1_20 = arith.constant 1 : index
    %c0_21 = arith.constant 0 : index
    %26 = vector.load %arg6[%c1_20, %c0_21] : memref<8x64xf32, #tpu.memory_space<vmem>>, vector<1x64xf32>
    %cst_22 = arith.constant dense<0.000000e+00> : vector<64xf32>
    %27 = vector.multi_reduction <add>, %25, %cst_22 [0] : vector<16x64xf32> to vector<64xf32>
    %28 = vector.shape_cast %27 : vector<64xf32> to vector<1x64xf32>
    %29 = arith.addf %26, %28 : vector<1x64xf32>
    %c1_23 = arith.constant 1 : index
    %c0_24 = arith.constant 0 : index
    %30 = vector.load %arg6[%c1_23, %c0_24] : memref<8x64xf32, #tpu.memory_space<vmem>>, vector<1x64xf32>
    tpu.vector_store %arg6[%c1_23, %c0_24], %29 {strides = array<i32>} : memref<8x64xf32, #tpu.memory_space<vmem>>, vector<1x64xf32>,
    %c5 = arith.constant 5 : index
    %c0_25 = arith.constant 0 : index
    %31 = vector.load %arg6[%c5, %c0_25] : memref<8x64xf32, #tpu.memory_space<vmem>>, vector<1x64xf32>
    %32 = arith.mulf %25, %25 : vector<16x64xf32>
    %cst_26 = arith.constant dense<0.000000e+00> : vector<64xf32>
    %33 = vector.multi_reduction <add>, %32, %cst_26 [0] : vector<16x64xf32> to vector<64xf32>
    %34 = vector.shape_cast %33 : vector<64xf32> to vector<1x64xf32>
    %35 = arith.addf %31, %34 : vector<1x64xf32>
    %c5_27 = arith.constant 5 : index
    %c0_28 = arith.constant 0 : index
    %36 = vector.load %arg6[%c5_27, %c0_28] : memref<8x64xf32, #tpu.memory_space<vmem>>, vector<1x64xf32>
    tpu.vector_store %arg6[%c5_27, %c0_28], %35 {strides = array<i32>} : memref<8x64xf32, #tpu.memory_space<vmem>>, vector<1x64xf32>,
    %c2 = arith.constant 2 : index
    %c0_29 = arith.constant 0 : index
    %c0_30 = arith.constant 0 : index
    %37 = vector.load %arg7[%c2, %c0_29, %c0_30] : memref<4x32x64xf32, #tpu.memory_space<vmem>>, vector<1x32x64xf32>
    %38 = vector.shape_cast %37 : vector<1x32x64xf32> to vector<32x64xf32>
    %cst_31 = arith.constant dense<0.000000e+00> : vector<16x64xf32>
    %39 = tpu.matmul %8, %38, %cst_31 {dimension_numbers = #tpu.dot_dimension_numbers<[1], [0], [0], [1], [0, 0, 1, 1], [], []>} : vector<16x32xf32>, vector<32x64xf32>, vector<16x64xf32> -> vector<16x64xf32>
    %c2_32 = arith.constant 2 : index
    %c0_33 = arith.constant 0 : index
    %40 = vector.load %arg6[%c2_32, %c0_33] : memref<8x64xf32, #tpu.memory_space<vmem>>, vector<1x64xf32>
    %cst_34 = arith.constant dense<0.000000e+00> : vector<64xf32>
    %41 = vector.multi_reduction <add>, %39, %cst_34 [0] : vector<16x64xf32> to vector<64xf32>
    %42 = vector.shape_cast %41 : vector<64xf32> to vector<1x64xf32>
    %43 = arith.addf %40, %42 : vector<1x64xf32>
    %c2_35 = arith.constant 2 : index
    %c0_36 = arith.constant 0 : index
    %44 = vector.load %arg6[%c2_35, %c0_36] : memref<8x64xf32, #tpu.memory_space<vmem>>, vector<1x64xf32>
    tpu.vector_store %arg6[%c2_35, %c0_36], %43 {strides = array<i32>} : memref<8x64xf32, #tpu.memory_space<vmem>>, vector<1x64xf32>,
    %c6 = arith.constant 6 : index
    %c0_37 = arith.constant 0 : index
    %45 = vector.load %arg6[%c6, %c0_37] : memref<8x64xf32, #tpu.memory_space<vmem>>, vector<1x64xf32>
    %46 = arith.mulf %39, %39 : vector<16x64xf32>
    %cst_38 = arith.constant dense<0.000000e+00> : vector<64xf32>
    %47 = vector.multi_reduction <add>, %46, %cst_38 [0] : vector<16x64xf32> to vector<64xf32>
    %48 = vector.shape_cast %47 : vector<64xf32> to vector<1x64xf32>
    %49 = arith.addf %45, %48 : vector<1x64xf32>
    %c6_39 = arith.constant 6 : index
    %c0_40 = arith.constant 0 : index
    %50 = vector.load %arg6[%c6_39, %c0_40] : memref<8x64xf32, #tpu.memory_space<vmem>>, vector<1x64xf32>
    tpu.vector_store %arg6[%c6_39, %c0_40], %49 {strides = array<i32>} : memref<8x64xf32, #tpu.memory_space<vmem>>, vector<1x64xf32>,
    %c3 = arith.constant 3 : index
    %c0_41 = arith.constant 0 : index
    %c0_42 = arith.constant 0 : index
    %51 = vector.load %arg7[%c3, %c0_41, %c0_42] : memref<4x32x64xf32, #tpu.memory_space<vmem>>, vector<1x32x64xf32>
    %52 = vector.shape_cast %51 : vector<1x32x64xf32> to vector<32x64xf32>
    %cst_43 = arith.constant dense<0.000000e+00> : vector<16x64xf32>
    %53 = tpu.matmul %8, %52, %cst_43 {dimension_numbers = #tpu.dot_dimension_numbers<[1], [0], [0], [1], [0, 0, 1, 1], [], []>} : vector<16x32xf32>, vector<32x64xf32>, vector<16x64xf32> -> vector<16x64xf32>
    %c3_44 = arith.constant 3 : index
    %c0_45 = arith.constant 0 : index
    %54 = vector.load %arg6[%c3_44, %c0_45] : memref<8x64xf32, #tpu.memory_space<vmem>>, vector<1x64xf32>
    %cst_46 = arith.constant dense<0.000000e+00> : vector<64xf32>
    %55 = vector.multi_reduction <add>, %53, %cst_46 [0] : vector<16x64xf32> to vector<64xf32>
    %56 = vector.shape_cast %55 : vector<64xf32> to vector<1x64xf32>
    %57 = arith.addf %54, %56 : vector<1x64xf32>
    %c3_47 = arith.constant 3 : index
    %c0_48 = arith.constant 0 : index
    %58 = vector.load %arg6[%c3_47, %c0_48] : memref<8x64xf32, #tpu.memory_space<vmem>>, vector<1x64xf32>
    tpu.vector_store %arg6[%c3_47, %c0_48], %57 {strides = array<i32>} : memref<8x64xf32, #tpu.memory_space<vmem>>, vector<1x64xf32>,
    %c7 = arith.constant 7 : index
    %c0_49 = arith.constant 0 : index
    %59 = vector.load %arg6[%c7, %c0_49] : memref<8x64xf32, #tpu.memory_space<vmem>>, vector<1x64xf32>
    %60 = arith.mulf %53, %53 : vector<16x64xf32>
    %cst_50 = arith.constant dense<0.000000e+00> : vector<64xf32>
    %61 = vector.multi_reduction <add>, %60, %cst_50 [0] : vector<16x64xf32> to vector<64xf32>
    %62 = vector.shape_cast %61 : vector<64xf32> to vector<1x64xf32>
    %63 = arith.addf %59, %62 : vector<1x64xf32>
    %c7_51 = arith.constant 7 : index
    %c0_52 = arith.constant 0 : index
    %64 = vector.load %arg6[%c7_51, %c0_52] : memref<8x64xf32, #tpu.memory_space<vmem>>, vector<1x64xf32>
    tpu.vector_store %arg6[%c7_51, %c0_52], %63 {strides = array<i32>} : memref<8x64xf32, #tpu.memory_space<vmem>>, vector<1x64xf32>,
    return
  }
  func.func @transform_0(%arg0: i32, %arg1: i32) -> (i32, i32, i32, i32) {
    %c0_i32 = arith.constant 0 : i32
    %c0_i32_0 = arith.constant 0 : i32
    %c0_i32_1 = arith.constant 0 : i32
    %c0_i32_2 = arith.constant 0 : i32
    return %arg0, %c0_i32, %c0_i32_0, %c0_i32_1 : i32, i32, i32, i32
  }
  func.func @transform_1(%arg0: i32, %arg1: i32) -> (i32, i32) {
    %c0_i32 = arith.constant 0 : i32
    %c0_i32_0 = arith.constant 0 : i32
    %c0_i32_1 = arith.constant 0 : i32
    return %c0_i32, %c0_i32_0 : i32, i32
  }
  func.func @transform_2(%arg0: i32, %arg1: i32) -> (i32, i32) {
    %c0_i32 = arith.constant 0 : i32
    %c0_i32_0 = arith.constant 0 : i32
    %c0_i32_1 = arith.constant 0 : i32
    return %c0_i32, %c0_i32_0 : i32, i32
  }
  func.func @transform_3(%arg0: i32, %arg1: i32) -> (i32, i32) {
    %c0_i32 = arith.constant 0 : i32
    %c0_i32_0 = arith.constant 0 : i32
    return %arg1, %c0_i32 : i32, i32
  }
  func.func @transform_4(%arg0: i32, %arg1: i32) -> (i32, i32) {
    %c0_i32 = arith.constant 0 : i32
    %c0_i32_0 = arith.constant 0 : i32
    %c0_i32_1 = arith.constant 0 : i32
    return %c0_i32, %c0_i32_0 : i32, i32
  }
}

module attributes {stable_mosaic.version = 11 : i64} {
  func.func @_apply_kernel(%arg0: i32, %arg1: i32, %arg2: memref<1x4x32x32xf32, #tpu.memory_space<vmem>>, %arg3: memref<4x4xf32, #tpu.memory_space<smem>>, %arg4: memref<32x64xf32, #tpu.memory_space<vmem>>, %arg5: memref<16x32xf32, #tpu.memory_space<vmem>>, %arg6: memref<4xf32, #tpu.memory_space<smem>>, %arg7: memref<4xf32, #tpu.memory_space<smem>>, %arg8: memref<1x4x16x64xf32, #tpu.memory_space<vmem>>, %arg9: memref<4x32x64xf32, #tpu.memory_space<vmem>>) attributes {dimension_semantics = [#tpu.dimension_semantics<parallel>, #tpu.dimension_semantics<arbitrary>], iteration_bounds = array<i64: 2, 4>, scalar_prefetch = 0 : i64, scratch_operands = 1 : i64, tpu.core_type = #tpu.core_type<tc>, window_params = [{transform_indices = @transform_0, window_bounds = array<i64: 1, 4, 32, 32>}, {transform_indices = @transform_1, window_bounds = array<i64: 4, 4>}, {pipeline_mode = #tpu.pipeline_mode<synchronous>, transform_indices = @transform_2, window_bounds = array<i64: 32, 64>}, {transform_indices = @transform_3, window_bounds = array<i64: 16, 32>}, {transform_indices = @transform_4, window_bounds = array<i64: 4>}, {transform_indices = @transform_5, window_bounds = array<i64: 4>}, {transform_indices = @transform_6, window_bounds = array<i64: 1, 4, 16, 64>}]} {
    %c0_i32 = arith.constant 0 : i32
    %0 = arith.cmpi eq, %arg1, %c0_i32 : i32
    %1 = arith.extui %0 : i1 to i32
    %c0_i32_0 = arith.constant 0 : i32
    %2 = arith.cmpi ne, %1, %c0_i32_0 : i32
    scf.if %2 {
      %c0_42 = arith.constant 0 : index
      %c0_43 = arith.constant 0 : index
      %60 = vector.load %arg4[%c0_42, %c0_43] : memref<32x64xf32, #tpu.memory_space<vmem>>, vector<32x64xf32>
      %c0_44 = arith.constant 0 : index
      %c0_45 = arith.constant 0 : index
      %61 = memref.load %arg3[%c0_44, %c0_45] : memref<4x4xf32, #tpu.memory_space<smem>>
      %c0_46 = arith.constant 0 : index
      %c0_47 = arith.constant 0 : index
      %c0_48 = arith.constant 0 : index
      %c0_49 = arith.constant 0 : index
      %62 = vector.load %arg2[%c0_46, %c0_47, %c0_48, %c0_49] : memref<1x4x32x32xf32, #tpu.memory_space<vmem>>, vector<1x1x32x32xf32>
      %63 = vector.shape_cast %62 : vector<1x1x32x32xf32> to vector<32x32xf32>
      %64 = vector.broadcast %61 : f32 to vector<32x32xf32>
      %65 = arith.mulf %64, %63 : vector<32x32xf32>
      %c0_50 = arith.constant 0 : index
      %c1_51 = arith.constant 1 : index
      %66 = memref.load %arg3[%c0_50, %c1_51] : memref<4x4xf32, #tpu.memory_space<smem>>
      %c0_52 = arith.constant 0 : index
      %c1_53 = arith.constant 1 : index
      %c0_54 = arith.constant 0 : index
      %c0_55 = arith.constant 0 : index
      %67 = vector.load %arg2[%c0_52, %c1_53, %c0_54, %c0_55] : memref<1x4x32x32xf32, #tpu.memory_space<vmem>>, vector<1x1x32x32xf32>
      %68 = vector.shape_cast %67 : vector<1x1x32x32xf32> to vector<32x32xf32>
      %69 = vector.broadcast %66 : f32 to vector<32x32xf32>
      %70 = arith.mulf %69, %68 : vector<32x32xf32>
      %71 = arith.addf %65, %70 : vector<32x32xf32>
      %c0_56 = arith.constant 0 : index
      %c2_57 = arith.constant 2 : index
      %72 = memref.load %arg3[%c0_56, %c2_57] : memref<4x4xf32, #tpu.memory_space<smem>>
      %c0_58 = arith.constant 0 : index
      %c2_59 = arith.constant 2 : index
      %c0_60 = arith.constant 0 : index
      %c0_61 = arith.constant 0 : index
      %73 = vector.load %arg2[%c0_58, %c2_59, %c0_60, %c0_61] : memref<1x4x32x32xf32, #tpu.memory_space<vmem>>, vector<1x1x32x32xf32>
      %74 = vector.shape_cast %73 : vector<1x1x32x32xf32> to vector<32x32xf32>
      %75 = vector.broadcast %72 : f32 to vector<32x32xf32>
      %76 = arith.mulf %75, %74 : vector<32x32xf32>
      %77 = arith.addf %71, %76 : vector<32x32xf32>
      %c0_62 = arith.constant 0 : index
      %c3_63 = arith.constant 3 : index
      %78 = memref.load %arg3[%c0_62, %c3_63] : memref<4x4xf32, #tpu.memory_space<smem>>
      %c0_64 = arith.constant 0 : index
      %c3_65 = arith.constant 3 : index
      %c0_66 = arith.constant 0 : index
      %c0_67 = arith.constant 0 : index
      %79 = vector.load %arg2[%c0_64, %c3_65, %c0_66, %c0_67] : memref<1x4x32x32xf32, #tpu.memory_space<vmem>>, vector<1x1x32x32xf32>
      %80 = vector.shape_cast %79 : vector<1x1x32x32xf32> to vector<32x32xf32>
      %81 = vector.broadcast %78 : f32 to vector<32x32xf32>
      %82 = arith.mulf %81, %80 : vector<32x32xf32>
      %83 = arith.addf %77, %82 : vector<32x32xf32>
      %cst_68 = arith.constant dense<0.000000e+00> : vector<32x64xf32>
      %84 = tpu.matmul %83, %60, %cst_68 {dimension_numbers = #tpu.dot_dimension_numbers<[1], [0], [0], [1], [0, 0, 1, 1], [], []>} : vector<32x32xf32>, vector<32x64xf32>, vector<32x64xf32> -> vector<32x64xf32>
      %c0_69 = arith.constant 0 : index
      %c0_70 = arith.constant 0 : index
      %c0_71 = arith.constant 0 : index
      %85 = vector.load %arg9[%c0_69, %c0_70, %c0_71] : memref<4x32x64xf32, #tpu.memory_space<vmem>>, vector<1x32x64xf32>
      %86 = vector.shape_cast %85 : vector<1x32x64xf32> to vector<32x64xf32>
      %87 = vector.shape_cast %84 : vector<32x64xf32> to vector<1x32x64xf32>
      tpu.vector_store %arg9[%c0_69, %c0_70, %c0_71], %87 {strides = array<i32>} : memref<4x32x64xf32, #tpu.memory_space<vmem>>, vector<1x32x64xf32>,
      %c1_72 = arith.constant 1 : index
      %c0_73 = arith.constant 0 : index
      %88 = memref.load %arg3[%c1_72, %c0_73] : memref<4x4xf32, #tpu.memory_space<smem>>
      %c0_74 = arith.constant 0 : index
      %c0_75 = arith.constant 0 : index
      %c0_76 = arith.constant 0 : index
      %c0_77 = arith.constant 0 : index
      %89 = vector.load %arg2[%c0_74, %c0_75, %c0_76, %c0_77] : memref<1x4x32x32xf32, #tpu.memory_space<vmem>>, vector<1x1x32x32xf32>
      %90 = vector.shape_cast %89 : vector<1x1x32x32xf32> to vector<32x32xf32>
      %91 = vector.broadcast %88 : f32 to vector<32x32xf32>
      %92 = arith.mulf %91, %90 : vector<32x32xf32>
      %c1_78 = arith.constant 1 : index
      %c1_79 = arith.constant 1 : index
      %93 = memref.load %arg3[%c1_78, %c1_79] : memref<4x4xf32, #tpu.memory_space<smem>>
      %c0_80 = arith.constant 0 : index
      %c1_81 = arith.constant 1 : index
      %c0_82 = arith.constant 0 : index
      %c0_83 = arith.constant 0 : index
      %94 = vector.load %arg2[%c0_80, %c1_81, %c0_82, %c0_83] : memref<1x4x32x32xf32, #tpu.memory_space<vmem>>, vector<1x1x32x32xf32>
      %95 = vector.shape_cast %94 : vector<1x1x32x32xf32> to vector<32x32xf32>
      %96 = vector.broadcast %93 : f32 to vector<32x32xf32>
      %97 = arith.mulf %96, %95 : vector<32x32xf32>
      %98 = arith.addf %92, %97 : vector<32x32xf32>
      %c1_84 = arith.constant 1 : index
      %c2_85 = arith.constant 2 : index
      %99 = memref.load %arg3[%c1_84, %c2_85] : memref<4x4xf32, #tpu.memory_space<smem>>
      %c0_86 = arith.constant 0 : index
      %c2_87 = arith.constant 2 : index
      %c0_88 = arith.constant 0 : index
      %c0_89 = arith.constant 0 : index
      %100 = vector.load %arg2[%c0_86, %c2_87, %c0_88, %c0_89] : memref<1x4x32x32xf32, #tpu.memory_space<vmem>>, vector<1x1x32x32xf32>
      %101 = vector.shape_cast %100 : vector<1x1x32x32xf32> to vector<32x32xf32>
      %102 = vector.broadcast %99 : f32 to vector<32x32xf32>
      %103 = arith.mulf %102, %101 : vector<32x32xf32>
      %104 = arith.addf %98, %103 : vector<32x32xf32>
      %c1_90 = arith.constant 1 : index
      %c3_91 = arith.constant 3 : index
      %105 = memref.load %arg3[%c1_90, %c3_91] : memref<4x4xf32, #tpu.memory_space<smem>>
      %c0_92 = arith.constant 0 : index
      %c3_93 = arith.constant 3 : index
      %c0_94 = arith.constant 0 : index
      %c0_95 = arith.constant 0 : index
      %106 = vector.load %arg2[%c0_92, %c3_93, %c0_94, %c0_95] : memref<1x4x32x32xf32, #tpu.memory_space<vmem>>, vector<1x1x32x32xf32>
      %107 = vector.shape_cast %106 : vector<1x1x32x32xf32> to vector<32x32xf32>
      %108 = vector.broadcast %105 : f32 to vector<32x32xf32>
      %109 = arith.mulf %108, %107 : vector<32x32xf32>
      %110 = arith.addf %104, %109 : vector<32x32xf32>
      %cst_96 = arith.constant dense<0.000000e+00> : vector<32x64xf32>
      %111 = tpu.matmul %110, %60, %cst_96 {dimension_numbers = #tpu.dot_dimension_numbers<[1], [0], [0], [1], [0, 0, 1, 1], [], []>} : vector<32x32xf32>, vector<32x64xf32>, vector<32x64xf32> -> vector<32x64xf32>
      %c1_97 = arith.constant 1 : index
      %c0_98 = arith.constant 0 : index
      %c0_99 = arith.constant 0 : index
      %112 = vector.load %arg9[%c1_97, %c0_98, %c0_99] : memref<4x32x64xf32, #tpu.memory_space<vmem>>, vector<1x32x64xf32>
      %113 = vector.shape_cast %112 : vector<1x32x64xf32> to vector<32x64xf32>
      %114 = vector.shape_cast %111 : vector<32x64xf32> to vector<1x32x64xf32>
      tpu.vector_store %arg9[%c1_97, %c0_98, %c0_99], %114 {strides = array<i32>} : memref<4x32x64xf32, #tpu.memory_space<vmem>>, vector<1x32x64xf32>,
      %c2_100 = arith.constant 2 : index
      %c0_101 = arith.constant 0 : index
      %115 = memref.load %arg3[%c2_100, %c0_101] : memref<4x4xf32, #tpu.memory_space<smem>>
      %c0_102 = arith.constant 0 : index
      %c0_103 = arith.constant 0 : index
      %c0_104 = arith.constant 0 : index
      %c0_105 = arith.constant 0 : index
      %116 = vector.load %arg2[%c0_102, %c0_103, %c0_104, %c0_105] : memref<1x4x32x32xf32, #tpu.memory_space<vmem>>, vector<1x1x32x32xf32>
      %117 = vector.shape_cast %116 : vector<1x1x32x32xf32> to vector<32x32xf32>
      %118 = vector.broadcast %115 : f32 to vector<32x32xf32>
      %119 = arith.mulf %118, %117 : vector<32x32xf32>
      %c2_106 = arith.constant 2 : index
      %c1_107 = arith.constant 1 : index
      %120 = memref.load %arg3[%c2_106, %c1_107] : memref<4x4xf32, #tpu.memory_space<smem>>
      %c0_108 = arith.constant 0 : index
      %c1_109 = arith.constant 1 : index
      %c0_110 = arith.constant 0 : index
      %c0_111 = arith.constant 0 : index
      %121 = vector.load %arg2[%c0_108, %c1_109, %c0_110, %c0_111] : memref<1x4x32x32xf32, #tpu.memory_space<vmem>>, vector<1x1x32x32xf32>
      %122 = vector.shape_cast %121 : vector<1x1x32x32xf32> to vector<32x32xf32>
      %123 = vector.broadcast %120 : f32 to vector<32x32xf32>
      %124 = arith.mulf %123, %122 : vector<32x32xf32>
      %125 = arith.addf %119, %124 : vector<32x32xf32>
      %c2_112 = arith.constant 2 : index
      %c2_113 = arith.constant 2 : index
      %126 = memref.load %arg3[%c2_112, %c2_113] : memref<4x4xf32, #tpu.memory_space<smem>>
      %c0_114 = arith.constant 0 : index
      %c2_115 = arith.constant 2 : index
      %c0_116 = arith.constant 0 : index
      %c0_117 = arith.constant 0 : index
      %127 = vector.load %arg2[%c0_114, %c2_115, %c0_116, %c0_117] : memref<1x4x32x32xf32, #tpu.memory_space<vmem>>, vector<1x1x32x32xf32>
      %128 = vector.shape_cast %127 : vector<1x1x32x32xf32> to vector<32x32xf32>
      %129 = vector.broadcast %126 : f32 to vector<32x32xf32>
      %130 = arith.mulf %129, %128 : vector<32x32xf32>
      %131 = arith.addf %125, %130 : vector<32x32xf32>
      %c2_118 = arith.constant 2 : index
      %c3_119 = arith.constant 3 : index
      %132 = memref.load %arg3[%c2_118, %c3_119] : memref<4x4xf32, #tpu.memory_space<smem>>
      %c0_120 = arith.constant 0 : index
      %c3_121 = arith.constant 3 : index
      %c0_122 = arith.constant 0 : index
      %c0_123 = arith.constant 0 : index
      %133 = vector.load %arg2[%c0_120, %c3_121, %c0_122, %c0_123] : memref<1x4x32x32xf32, #tpu.memory_space<vmem>>, vector<1x1x32x32xf32>
      %134 = vector.shape_cast %133 : vector<1x1x32x32xf32> to vector<32x32xf32>
      %135 = vector.broadcast %132 : f32 to vector<32x32xf32>
      %136 = arith.mulf %135, %134 : vector<32x32xf32>
      %137 = arith.addf %131, %136 : vector<32x32xf32>
      %cst_124 = arith.constant dense<0.000000e+00> : vector<32x64xf32>
      %138 = tpu.matmul %137, %60, %cst_124 {dimension_numbers = #tpu.dot_dimension_numbers<[1], [0], [0], [1], [0, 0, 1, 1], [], []>} : vector<32x32xf32>, vector<32x64xf32>, vector<32x64xf32> -> vector<32x64xf32>
      %c2_125 = arith.constant 2 : index
      %c0_126 = arith.constant 0 : index
      %c0_127 = arith.constant 0 : index
      %139 = vector.load %arg9[%c2_125, %c0_126, %c0_127] : memref<4x32x64xf32, #tpu.memory_space<vmem>>, vector<1x32x64xf32>
      %140 = vector.shape_cast %139 : vector<1x32x64xf32> to vector<32x64xf32>
      %141 = vector.shape_cast %138 : vector<32x64xf32> to vector<1x32x64xf32>
      tpu.vector_store %arg9[%c2_125, %c0_126, %c0_127], %141 {strides = array<i32>} : memref<4x32x64xf32, #tpu.memory_space<vmem>>, vector<1x32x64xf32>,
      %c3_128 = arith.constant 3 : index
      %c0_129 = arith.constant 0 : index
      %142 = memref.load %arg3[%c3_128, %c0_129] : memref<4x4xf32, #tpu.memory_space<smem>>
      %c0_130 = arith.constant 0 : index
      %c0_131 = arith.constant 0 : index
      %c0_132 = arith.constant 0 : index
      %c0_133 = arith.constant 0 : index
      %143 = vector.load %arg2[%c0_130, %c0_131, %c0_132, %c0_133] : memref<1x4x32x32xf32, #tpu.memory_space<vmem>>, vector<1x1x32x32xf32>
      %144 = vector.shape_cast %143 : vector<1x1x32x32xf32> to vector<32x32xf32>
      %145 = vector.broadcast %142 : f32 to vector<32x32xf32>
      %146 = arith.mulf %145, %144 : vector<32x32xf32>
      %c3_134 = arith.constant 3 : index
      %c1_135 = arith.constant 1 : index
      %147 = memref.load %arg3[%c3_134, %c1_135] : memref<4x4xf32, #tpu.memory_space<smem>>
      %c0_136 = arith.constant 0 : index
      %c1_137 = arith.constant 1 : index
      %c0_138 = arith.constant 0 : index
      %c0_139 = arith.constant 0 : index
      %148 = vector.load %arg2[%c0_136, %c1_137, %c0_138, %c0_139] : memref<1x4x32x32xf32, #tpu.memory_space<vmem>>, vector<1x1x32x32xf32>
      %149 = vector.shape_cast %148 : vector<1x1x32x32xf32> to vector<32x32xf32>
      %150 = vector.broadcast %147 : f32 to vector<32x32xf32>
      %151 = arith.mulf %150, %149 : vector<32x32xf32>
      %152 = arith.addf %146, %151 : vector<32x32xf32>
      %c3_140 = arith.constant 3 : index
      %c2_141 = arith.constant 2 : index
      %153 = memref.load %arg3[%c3_140, %c2_141] : memref<4x4xf32, #tpu.memory_space<smem>>
      %c0_142 = arith.constant 0 : index
      %c2_143 = arith.constant 2 : index
      %c0_144 = arith.constant 0 : index
      %c0_145 = arith.constant 0 : index
      %154 = vector.load %arg2[%c0_142, %c2_143, %c0_144, %c0_145] : memref<1x4x32x32xf32, #tpu.memory_space<vmem>>, vector<1x1x32x32xf32>
      %155 = vector.shape_cast %154 : vector<1x1x32x32xf32> to vector<32x32xf32>
      %156 = vector.broadcast %153 : f32 to vector<32x32xf32>
      %157 = arith.mulf %156, %155 : vector<32x32xf32>
      %158 = arith.addf %152, %157 : vector<32x32xf32>
      %c3_146 = arith.constant 3 : index
      %c3_147 = arith.constant 3 : index
      %159 = memref.load %arg3[%c3_146, %c3_147] : memref<4x4xf32, #tpu.memory_space<smem>>
      %c0_148 = arith.constant 0 : index
      %c3_149 = arith.constant 3 : index
      %c0_150 = arith.constant 0 : index
      %c0_151 = arith.constant 0 : index
      %160 = vector.load %arg2[%c0_148, %c3_149, %c0_150, %c0_151] : memref<1x4x32x32xf32, #tpu.memory_space<vmem>>, vector<1x1x32x32xf32>
      %161 = vector.shape_cast %160 : vector<1x1x32x32xf32> to vector<32x32xf32>
      %162 = vector.broadcast %159 : f32 to vector<32x32xf32>
      %163 = arith.mulf %162, %161 : vector<32x32xf32>
      %164 = arith.addf %158, %163 : vector<32x32xf32>
      %cst_152 = arith.constant dense<0.000000e+00> : vector<32x64xf32>
      %165 = tpu.matmul %164, %60, %cst_152 {dimension_numbers = #tpu.dot_dimension_numbers<[1], [0], [0], [1], [0, 0, 1, 1], [], []>} : vector<32x32xf32>, vector<32x64xf32>, vector<32x64xf32> -> vector<32x64xf32>
      %c3_153 = arith.constant 3 : index
      %c0_154 = arith.constant 0 : index
      %c0_155 = arith.constant 0 : index
      %166 = vector.load %arg9[%c3_153, %c0_154, %c0_155] : memref<4x32x64xf32, #tpu.memory_space<vmem>>, vector<1x32x64xf32>
      %167 = vector.shape_cast %166 : vector<1x32x64xf32> to vector<32x64xf32>
      %168 = vector.shape_cast %165 : vector<32x64xf32> to vector<1x32x64xf32>
      tpu.vector_store %arg9[%c3_153, %c0_154, %c0_155], %168 {strides = array<i32>} : memref<4x32x64xf32, #tpu.memory_space<vmem>>, vector<1x32x64xf32>,
    } else {
    }
    %c0 = arith.constant 0 : index
    %c0_1 = arith.constant 0 : index
    %3 = vector.load %arg5[%c0, %c0_1] : memref<16x32xf32, #tpu.memory_space<vmem>>, vector<16x32xf32>
    %c0_2 = arith.constant 0 : index
    %c0_3 = arith.constant 0 : index
    %c0_4 = arith.constant 0 : index
    %4 = vector.load %arg9[%c0_2, %c0_3, %c0_4] : memref<4x32x64xf32, #tpu.memory_space<vmem>>, vector<1x32x64xf32>
    %5 = vector.shape_cast %4 : vector<1x32x64xf32> to vector<32x64xf32>
    %cst = arith.constant dense<0.000000e+00> : vector<16x64xf32>
    %6 = tpu.matmul %3, %5, %cst {dimension_numbers = #tpu.dot_dimension_numbers<[1], [0], [0], [1], [0, 0, 1, 1], [], []>} : vector<16x32xf32>, vector<32x64xf32>, vector<16x64xf32> -> vector<16x64xf32>
    %c0_5 = arith.constant 0 : index
    %7 = memref.load %arg6[%c0_5] : memref<4xf32, #tpu.memory_space<smem>>
    %8 = vector.broadcast %7 : f32 to vector<16x64xf32>
    %9 = arith.mulf %6, %8 : vector<16x64xf32>
    %c0_6 = arith.constant 0 : index
    %10 = memref.load %arg7[%c0_6] : memref<4xf32, #tpu.memory_space<smem>>
    %11 = vector.broadcast %10 : f32 to vector<16x64xf32>
    %12 = arith.addf %9, %11 : vector<16x64xf32>
    %cst_7 = arith.constant 0.000000e+00 : f32
    %13 = vector.broadcast %cst_7 : f32 to vector<16x64xf32>
    %14 = arith.maximumf %12, %13 : vector<16x64xf32>
    %c0_8 = arith.constant 0 : index
    %c0_9 = arith.constant 0 : index
    %c0_10 = arith.constant 0 : index
    %c0_11 = arith.constant 0 : index
    %15 = vector.load %arg8[%c0_8, %c0_9, %c0_10, %c0_11] : memref<1x4x16x64xf32, #tpu.memory_space<vmem>>, vector<1x1x16x64xf32>
    %16 = vector.shape_cast %15 : vector<1x1x16x64xf32> to vector<16x64xf32>
    %17 = vector.shape_cast %14 : vector<16x64xf32> to vector<1x1x16x64xf32>
    tpu.vector_store %arg8[%c0_8, %c0_9, %c0_10, %c0_11], %17 {strides = array<i32>} : memref<1x4x16x64xf32, #tpu.memory_space<vmem>>, vector<1x1x16x64xf32>,
    %c1 = arith.constant 1 : index
    %c0_12 = arith.constant 0 : index
    %c0_13 = arith.constant 0 : index
    %18 = vector.load %arg9[%c1, %c0_12, %c0_13] : memref<4x32x64xf32, #tpu.memory_space<vmem>>, vector<1x32x64xf32>
    %19 = vector.shape_cast %18 : vector<1x32x64xf32> to vector<32x64xf32>
    %cst_14 = arith.constant dense<0.000000e+00> : vector<16x64xf32>
    %20 = tpu.matmul %3, %19, %cst_14 {dimension_numbers = #tpu.dot_dimension_numbers<[1], [0], [0], [1], [0, 0, 1, 1], [], []>} : vector<16x32xf32>, vector<32x64xf32>, vector<16x64xf32> -> vector<16x64xf32>
    %c1_15 = arith.constant 1 : index
    %21 = memref.load %arg6[%c1_15] : memref<4xf32, #tpu.memory_space<smem>>
    %22 = vector.broadcast %21 : f32 to vector<16x64xf32>
    %23 = arith.mulf %20, %22 : vector<16x64xf32>
    %c1_16 = arith.constant 1 : index
    %24 = memref.load %arg7[%c1_16] : memref<4xf32, #tpu.memory_space<smem>>
    %25 = vector.broadcast %24 : f32 to vector<16x64xf32>
    %26 = arith.addf %23, %25 : vector<16x64xf32>
    %cst_17 = arith.constant 0.000000e+00 : f32
    %27 = vector.broadcast %cst_17 : f32 to vector<16x64xf32>
    %28 = arith.maximumf %26, %27 : vector<16x64xf32>
    %c0_18 = arith.constant 0 : index
    %c1_19 = arith.constant 1 : index
    %c0_20 = arith.constant 0 : index
    %c0_21 = arith.constant 0 : index
    %29 = vector.load %arg8[%c0_18, %c1_19, %c0_20, %c0_21] : memref<1x4x16x64xf32, #tpu.memory_space<vmem>>, vector<1x1x16x64xf32>
    %30 = vector.shape_cast %29 : vector<1x1x16x64xf32> to vector<16x64xf32>
    %31 = vector.shape_cast %28 : vector<16x64xf32> to vector<1x1x16x64xf32>
    tpu.vector_store %arg8[%c0_18, %c1_19, %c0_20, %c0_21], %31 {strides = array<i32>} : memref<1x4x16x64xf32, #tpu.memory_space<vmem>>, vector<1x1x16x64xf32>,
    %c2 = arith.constant 2 : index
    %c0_22 = arith.constant 0 : index
    %c0_23 = arith.constant 0 : index
    %32 = vector.load %arg9[%c2, %c0_22, %c0_23] : memref<4x32x64xf32, #tpu.memory_space<vmem>>, vector<1x32x64xf32>
    %33 = vector.shape_cast %32 : vector<1x32x64xf32> to vector<32x64xf32>
    %cst_24 = arith.constant dense<0.000000e+00> : vector<16x64xf32>
    %34 = tpu.matmul %3, %33, %cst_24 {dimension_numbers = #tpu.dot_dimension_numbers<[1], [0], [0], [1], [0, 0, 1, 1], [], []>} : vector<16x32xf32>, vector<32x64xf32>, vector<16x64xf32> -> vector<16x64xf32>
    %c2_25 = arith.constant 2 : index
    %35 = memref.load %arg6[%c2_25] : memref<4xf32, #tpu.memory_space<smem>>
    %36 = vector.broadcast %35 : f32 to vector<16x64xf32>
    %37 = arith.mulf %34, %36 : vector<16x64xf32>
    %c2_26 = arith.constant 2 : index
    %38 = memref.load %arg7[%c2_26] : memref<4xf32, #tpu.memory_space<smem>>
    %39 = vector.broadcast %38 : f32 to vector<16x64xf32>
    %40 = arith.addf %37, %39 : vector<16x64xf32>
    %cst_27 = arith.constant 0.000000e+00 : f32
    %41 = vector.broadcast %cst_27 : f32 to vector<16x64xf32>
    %42 = arith.maximumf %40, %41 : vector<16x64xf32>
    %c0_28 = arith.constant 0 : index
    %c2_29 = arith.constant 2 : index
    %c0_30 = arith.constant 0 : index
    %c0_31 = arith.constant 0 : index
    %43 = vector.load %arg8[%c0_28, %c2_29, %c0_30, %c0_31] : memref<1x4x16x64xf32, #tpu.memory_space<vmem>>, vector<1x1x16x64xf32>
    %44 = vector.shape_cast %43 : vector<1x1x16x64xf32> to vector<16x64xf32>
    %45 = vector.shape_cast %42 : vector<16x64xf32> to vector<1x1x16x64xf32>
    tpu.vector_store %arg8[%c0_28, %c2_29, %c0_30, %c0_31], %45 {strides = array<i32>} : memref<1x4x16x64xf32, #tpu.memory_space<vmem>>, vector<1x1x16x64xf32>,
    %c3 = arith.constant 3 : index
    %c0_32 = arith.constant 0 : index
    %c0_33 = arith.constant 0 : index
    %46 = vector.load %arg9[%c3, %c0_32, %c0_33] : memref<4x32x64xf32, #tpu.memory_space<vmem>>, vector<1x32x64xf32>
    %47 = vector.shape_cast %46 : vector<1x32x64xf32> to vector<32x64xf32>
    %cst_34 = arith.constant dense<0.000000e+00> : vector<16x64xf32>
    %48 = tpu.matmul %3, %47, %cst_34 {dimension_numbers = #tpu.dot_dimension_numbers<[1], [0], [0], [1], [0, 0, 1, 1], [], []>} : vector<16x32xf32>, vector<32x64xf32>, vector<16x64xf32> -> vector<16x64xf32>
    %c3_35 = arith.constant 3 : index
    %49 = memref.load %arg6[%c3_35] : memref<4xf32, #tpu.memory_space<smem>>
    %50 = vector.broadcast %49 : f32 to vector<16x64xf32>
    %51 = arith.mulf %48, %50 : vector<16x64xf32>
    %c3_36 = arith.constant 3 : index
    %52 = memref.load %arg7[%c3_36] : memref<4xf32, #tpu.memory_space<smem>>
    %53 = vector.broadcast %52 : f32 to vector<16x64xf32>
    %54 = arith.addf %51, %53 : vector<16x64xf32>
    %cst_37 = arith.constant 0.000000e+00 : f32
    %55 = vector.broadcast %cst_37 : f32 to vector<16x64xf32>
    %56 = arith.maximumf %54, %55 : vector<16x64xf32>
    %c0_38 = arith.constant 0 : index
    %c3_39 = arith.constant 3 : index
    %c0_40 = arith.constant 0 : index
    %c0_41 = arith.constant 0 : index
    %57 = vector.load %arg8[%c0_38, %c3_39, %c0_40, %c0_41] : memref<1x4x16x64xf32, #tpu.memory_space<vmem>>, vector<1x1x16x64xf32>
    %58 = vector.shape_cast %57 : vector<1x1x16x64xf32> to vector<16x64xf32>
    %59 = vector.shape_cast %56 : vector<16x64xf32> to vector<1x1x16x64xf32>
    tpu.vector_store %arg8[%c0_38, %c3_39, %c0_40, %c0_41], %59 {strides = array<i32>} : memref<1x4x16x64xf32, #tpu.memory_space<vmem>>, vector<1x1x16x64xf32>,
    return
  }
  func.func @transform_0(%arg0: i32, %arg1: i32) -> (i32, i32, i32, i32) {
    %c0_i32 = arith.constant 0 : i32
    %c0_i32_0 = arith.constant 0 : i32
    %c0_i32_1 = arith.constant 0 : i32
    %c0_i32_2 = arith.constant 0 : i32
    return %arg0, %c0_i32, %c0_i32_0, %c0_i32_1 : i32, i32, i32, i32
  }
  func.func @transform_1(%arg0: i32, %arg1: i32) -> (i32, i32) {
    %c0_i32 = arith.constant 0 : i32
    %c0_i32_0 = arith.constant 0 : i32
    %c0_i32_1 = arith.constant 0 : i32
    return %c0_i32, %c0_i32_0 : i32, i32
  }
  func.func @transform_2(%arg0: i32, %arg1: i32) -> (i32, i32) {
    %c0_i32 = arith.constant 0 : i32
    %c0_i32_0 = arith.constant 0 : i32
    %c0_i32_1 = arith.constant 0 : i32
    return %c0_i32, %c0_i32_0 : i32, i32
  }
  func.func @transform_3(%arg0: i32, %arg1: i32) -> (i32, i32) {
    %c0_i32 = arith.constant 0 : i32
    %c0_i32_0 = arith.constant 0 : i32
    return %arg1, %c0_i32 : i32, i32
  }
  func.func @transform_4(%arg0: i32, %arg1: i32) -> i32 {
    %c0_i32 = arith.constant 0 : i32
    %c0_i32_0 = arith.constant 0 : i32
    return %c0_i32 : i32
  }
  func.func @transform_5(%arg0: i32, %arg1: i32) -> i32 {
    %c0_i32 = arith.constant 0 : i32
    %c0_i32_0 = arith.constant 0 : i32
    return %c0_i32 : i32
  }
  func.func @transform_6(%arg0: i32, %arg1: i32) -> (i32, i32, i32, i32) {
    %c0_i32 = arith.constant 0 : i32
    %c0_i32_0 = arith.constant 0 : i32
    %c0_i32_1 = arith.constant 0 : i32
    return %arg0, %c0_i32, %arg1, %c0_i32_0 : i32, i32, i32, i32
  }
}

</mosaic_0001>

<llo_original>
// kernel: double_factorized_increase.5
$region0: #{double_factorized_increase.5}
  #allocation0 [shape = 'u32[]', space=smem, size = 0x4, offset = 0x4, fixed_abs, tag = 'smem constant byte address 0x4 - core index']
  #allocation1 [shape = 'u32[144,128]{1,0:T(1,128)}', space=vmem, size = 0x12000, scoped, tag = 'internal scratch']
  #allocation2 [shape = 'f32[4,16,32]{2,1,0:T(8,128)}', space=vmem, size = 0x8000, scoped, tag = 'scratch operand']
  %s0 = inlined_call_operand.vmem [shape: f32[2,4,16,16], index: 0, kind: input, shape index: {}]
  %s1 = inlined_call_operand.vmem [shape: f32[4,4], index: 1, kind: input, shape index: {}]
  %s2 = inlined_call_operand.vmem [shape: f32[16,32], index: 2, kind: input, shape index: {}]
  %s3 = inlined_call_operand.vmem [shape: f32[32,16], index: 3, kind: input, shape index: {}]
  %s4 = inlined_call_operand.vmem [shape: f32[4], index: 4, kind: input, shape index: {}]
  %s5 = inlined_call_operand.vmem [shape: f32[4], index: 5, kind: input, shape index: {}]
  %s6 = inlined_call_operand.vmem [shape: f32[2,4,32,32], index: 6, kind: output, shape index: {}]
  %s7 = sld [smem:[#allocation0]]
  $region107: #{double_factorized_increase.5} parent=0
    _
  %s9 = ssub.s32 1, %s7
  %s10 = scalar_select 0, %s9, %s7
  $region1: #{double_factorized_increase.5} parent=0
    #allocation3 [shape = 'u8[2048]{0}', space=smem, size = 0x800, scoped, tag = 'input window, operand 1, single buffered']
    #allocation4 [shape = 's32[2]{0}', space=sflag, size = 0x8, scoped, tag = 'scoped memory for double_factorized_increase.5']
    #allocation5 [shape = 'u8[512]{0}', space=smem, size = 0x200, scoped, tag = 'input window, operand 4, single buffered']
    #allocation6 [shape = 's32[1]{0}', space=sflag, size = 0x4, scoped, tag = 'scoped memory for double_factorized_increase.5']
    #allocation7 [shape = 'u8[512]{0}', space=smem, size = 0x200, scoped, tag = 'input window, operand 5, single buffered']
    #allocation8 [shape = 'u8[65536]{0}', space=vmem, size = 0x10000, scoped, tag = 'output window, operand 0']
    %11 = vsyncpa [#allocation4], 0
    %12 = vsyncpa [#allocation6], 0
    loop: start=0, step=1, limit=6
    $region2: #{double_factorized_increase.5} parent=1 // loop_pre_header
      _
    $region3: #{double_factorized_increase.5} parent=1 // loop_header
      %s14 = sphi 0, %s18
      %p15 = scmp.ge.s32.totalorder %s14, 6
      %s21 = sphi 0, %s33
      %s22 = sphi 0, %s29
      %s23 = sphi 0, %s21
      %s24 = sphi 0, %s22
      %s25 = sphi 0, %s23
      %s26 = sphi 0, %s24
      %s36 = sphi 0, %s38
      %s39 = sphi 0, %s36
      %s40 = sphi 0, %s39
      %s56 = sphi 0, %s40
      %s60 = sphi 0, %s60
      %s62 = sphi 0, %s60
      %s63 = sphi 0, %s62
      %s77 = sphi 0, %s63
      %s81 = sphi 0, %s81
      %s83 = sphi 0, %s81
      %s84 = sphi 0, %s83
      %s98 = sphi 0, %s84
      %s104 = sphi 0, %s106
      %s107 = sphi 0, %s104
      %s108 = sphi 0, %s107
      %s124 = sphi 0, %s108
      %s128 = sphi 0, %s128
      %s130 = sphi 0, %s128
      %s131 = sphi 0, %s130
      %s145 = sphi 0, %s131
      %s149 = sphi 0, %s149
      %s151 = sphi 0, %s149
      %s152 = sphi 0, %s151
      %s166 = sphi 0, %s152
      %s174 = sphi 0, %s176
      %s177 = sphi 0, %s174
      %s178 = sphi 0, %s177
      %s194 = sphi 0, %s178
    $region4: #{double_factorized_increase.5} parent=1 // loop_header_branch
      %17 = sbr.rel (%p15) target = $region8
    $region5: #{double_factorized_increase.5} parent=1 // loop_body
      %s19 = ssub.s32 %s14, 1
      %s20 = ssub.s32 %s14, 2
      %s27 = sadd.s32 1, %s22
      %p28 = scmp.ge.s32.totalorder %s27, 2
      %s29 = scalar_select %p28, 0, %s27
      %s30 = sadd.s32 1, %s21
      %s31 = scalar_select %p28, %s30, %s21
      %p32 = scmp.ge.s32.totalorder %s31, 2
      %s33 = scalar_select %p32, 0, %s31
      %s34 = ssub.s32 %s21, %s33
      %p35 = scmp.eq.s32.totalorder %s34, 0
      %s37 = sadd.s32 %s36, 1
      %s38 = scalar_select %p35, %s36, %s37
      %p41 = pneg %p35
      %p42 = scmp.eq.s32.totalorder %s14, 3
      %p43 = por %p41, %p42
      %p44 = scmp.ne.s32.totalorder %s36, %s39
      %p45 = scmp.eq.s32.totalorder %s14, 0
      %p46 = por %p44, %p45
      %p47 = scmp.ne.s32.totalorder %s36, %s39
      %p48 = scmp.eq.s32.totalorder %s19, 3
      %p49 = por %p47, %p48
      %p50 = scmp.ne.s32.totalorder %s39, %s40
      %p51 = scmp.eq.s32.totalorder %s19, 0
      %p52 = por %p50, %p51
      %p53 = scmp.ne.s32.totalorder %s39, %s40
      %p54 = scmp.eq.s32.totalorder %s20, 3
      %p55 = por %p53, %p54
      %p57 = scmp.ne.s32.totalorder %s40, %s56
      %p58 = scmp.eq.s32.totalorder %s20, 0
      %p59 = por %p57, %p58
      %s61 = sadd.s32 %s60, 1
      %p64 = scmp.eq.s32.totalorder %s14, 3
      %p65 = scmp.ne.s32.totalorder %s60, %s62
      %p66 = scmp.eq.s32.totalorder %s14, 0
      %p67 = por %p65, %p66
      %p68 = scmp.ne.s32.totalorder %s60, %s62
      %p69 = scmp.eq.s32.totalorder %s19, 3
      %p70 = por %p68, %p69
      %p71 = scmp.ne.s32.totalorder %s62, %s63
      %p72 = scmp.eq.s32.totalorder %s19, 0
      %p73 = por %p71, %p72
      %p74 = scmp.ne.s32.totalorder %s62, %s63
      %p75 = scmp.eq.s32.totalorder %s20, 3
      %p76 = por %p74, %p75
      %p78 = scmp.ne.s32.totalorder %s63, %s77
      %p79 = scmp.eq.s32.totalorder %s20, 0
      %p80 = por %p78, %p79
      %s82 = sadd.s32 %s81, 1
      %p85 = scmp.eq.s32.totalorder %s14, 3
      %p86 = scmp.ne.s32.totalorder %s81, %s83
      %p87 = scmp.eq.s32.totalorder %s14, 0
      %p88 = por %p86, %p87
      %p89 = scmp.ne.s32.totalorder %s81, %s83
      %p90 = scmp.eq.s32.totalorder %s19, 3
      %p91 = por %p89, %p90
      %p92 = scmp.ne.s32.totalorder %s83, %s84
      %p93 = scmp.eq.s32.totalorder %s19, 0
      %p94 = por %p92, %p93
      %p95 = scmp.ne.s32.totalorder %s83, %s84
      %p96 = scmp.eq.s32.totalorder %s20, 3
      %p97 = por %p95, %p96
      %p99 = scmp.ne.s32.totalorder %s84, %s98
      %p100 = scmp.eq.s32.totalorder %s20, 0
      %p101 = por %p99, %p100
      %s102 = ssub.s32 %s22, %s29
      %p103 = scmp.eq.s32.totalorder %s102, 0
      %s105 = sadd.s32 %s104, 1
      %s106 = scalar_select %p103, %s104, %s105
      %p109 = pneg %p103
      %p110 = scmp.eq.s32.totalorder %s14, 3
      %p111 = por %p109, %p110
      %p112 = scmp.ne.s32.totalorder %s104, %s107
      %p113 = scmp.eq.s32.totalorder %s14, 0
      %p114 = por %p112, %p113
      %p115 = scmp.ne.s32.totalorder %s104, %s107
      %p116 = scmp.eq.s32.totalorder %s19, 3
      %p117 = por %p115, %p116
      %p118 = scmp.ne.s32.totalorder %s107, %s108
      %p119 = scmp.eq.s32.totalorder %s19, 0
      %p120 = por %p118, %p119
      %p121 = scmp.ne.s32.totalorder %s107, %s108
      %p122 = scmp.eq.s32.totalorder %s20, 3
      %p123 = por %p121, %p122
      %p125 = scmp.ne.s32.totalorder %s108, %s124
      %p126 = scmp.eq.s32.totalorder %s20, 0
      %p127 = por %p125, %p126
      %s129 = sadd.s32 %s128, 1
      %p132 = scmp.eq.s32.totalorder %s14, 3
      %p133 = scmp.ne.s32.totalorder %s128, %s130
      %p134 = scmp.eq.s32.totalorder %s14, 0
      %p135 = por %p133, %p134
      %p136 = scmp.ne.s32.totalorder %s128, %s130
      %p137 = scmp.eq.s32.totalorder %s19, 3
      %p138 = por %p136, %p137
      %p139 = scmp.ne.s32.totalorder %s130, %s131
      %p140 = scmp.eq.s32.totalorder %s19, 0
      %p141 = por %p139, %p140
      %p142 = scmp.ne.s32.totalorder %s130, %s131
      %p143 = scmp.eq.s32.totalorder %s20, 3
      %p144 = por %p142, %p143
      %p146 = scmp.ne.s32.totalorder %s131, %s145
      %p147 = scmp.eq.s32.totalorder %s20, 0
      %p148 = por %p146, %p147
      %s150 = sadd.s32 %s149, 1
      %p153 = scmp.eq.s32.totalorder %s14, 3
      %p154 = scmp.ne.s32.totalorder %s149, %s151
      %p155 = scmp.eq.s32.totalorder %s14, 0
      %p156 = por %p154, %p155
      %p157 = scmp.ne.s32.totalorder %s149, %s151
      %p158 = scmp.eq.s32.totalorder %s19, 3
      %p159 = por %p157, %p158
      %p160 = scmp.ne.s32.totalorder %s151, %s152
      %p161 = scmp.eq.s32.totalorder %s19, 0
      %p162 = por %p160, %p161
      %p163 = scmp.ne.s32.totalorder %s151, %s152
      %p164 = scmp.eq.s32.totalorder %s20, 3
      %p165 = por %p163, %p164
      %p167 = scmp.ne.s32.totalorder %s152, %s166
      %p168 = scmp.eq.s32.totalorder %s20, 0
      %p169 = por %p167, %p168
      %s170 = ssub.s32 %s21, %s33
      %s171 = ssub.s32 %s22, %s29
      %s172 = sor.u32 %s170, %s171
      %p173 = scmp.eq.s32.totalorder %s172, 0
      %s175 = sadd.s32 %s174, 1
      %s176 = scalar_select %p173, %s174, %s175
      %p179 = pneg %p173
      %p180 = scmp.eq.s32.totalorder %s14, 3
      %p181 = por %p179, %p180
      %p182 = scmp.ne.s32.totalorder %s174, %s177
      %p183 = scmp.eq.s32.totalorder %s14, 0
      %p184 = por %p182, %p183
      %p185 = scmp.ne.s32.totalorder %s174, %s177
      %p186 = scmp.eq.s32.totalorder %s19, 3
      %p187 = por %p185, %p186
      %p188 = scmp.ne.s32.totalorder %s177, %s178
      %p189 = scmp.eq.s32.totalorder %s19, 0
      %p190 = por %p188, %p189
      %p191 = scmp.ne.s32.totalorder %s177, %s178
      %p192 = scmp.eq.s32.totalorder %s20, 3
      %p193 = por %p191, %p192
      %p195 = scmp.ne.s32.totalorder %s178, %s194
      %p196 = scmp.eq.s32.totalorder %s20, 0
      %p197 = por %p195, %p196
      %p198 = scmp.le.s32.totalorder 1, %s14
      %p199 = scmp.lt.s32.totalorder %s14, 5
      %p200 = pnand %p198, %p199
      %p201 = pneg %p200
      // Predicated region
      $region9: #{double_factorized_increase.5} parent=5 // pred_check
        _
      $region10: #{double_factorized_increase.5} parent=5 // pred_check_branch
        %203 = sbr.rel (%p200) target = $region12
      $region11: #{double_factorized_increase.5} parent=5 // pred_region
        %s204 = ssub.s32 %s14, 1
        // Predicated region
        $region13: #{double_factorized_increase.5} parent=11 // pred_check
          %p205 = pneg %p73
        $region14: #{double_factorized_increase.5} parent=11 // pred_check_branch
          %207 = sbr.rel (%p205) target = $region16
        $region15: #{double_factorized_increase.5} parent=11 // pred_region
          %s209 = ssub.s32 64, 64
          %210 = vsyncadd [#allocation4], %s209
          %s212 = sshll.u32 %s1, 4
          %s213 = int_to_ptr.vmem [resolvable:$true] %s212
          %215 = dma.vmem_to_smem %s213, 64, [#allocation3], [#allocation4]
        $region16: #{double_factorized_increase.5} parent=11 // pred_fallthru
          _
        // Predicated region
        $region17: #{double_factorized_increase.5} parent=11 // pred_check
          %p216 = pneg %p94
        $region18: #{double_factorized_increase.5} parent=11 // pred_check_branch
          %218 = sbr.rel (%p216) target = $region20
        $region19: #{double_factorized_increase.5} parent=11 // pred_region
          _
        $region20: #{double_factorized_increase.5} parent=11 // pred_fallthru
          _
        // Predicated region
        $region21: #{double_factorized_increase.5} parent=11 // pred_check
          %p219 = pneg %p141
        $region22: #{double_factorized_increase.5} parent=11 // pred_check_branch
          %221 = sbr.rel (%p219) target = $region24
        $region23: #{double_factorized_increase.5} parent=11 // pred_region
          %s223 = ssub.s32 16, 16
          %224 = vsyncadd [#allocation6], %s223
          %s226 = sshll.u32 %s4, 4
          %s227 = int_to_ptr.vmem [resolvable:$true] %s226
          %229 = dma.vmem_to_smem %s227, 16, [#allocation5], [#allocation6]
        $region24: #{double_factorized_increase.5} parent=11 // pred_fallthru
          _
        // Predicated region
        $region25: #{double_factorized_increase.5} parent=11 // pred_check
          %p230 = pneg %p162
        $region26: #{double_factorized_increase.5} parent=11 // pred_check_branch
          %232 = sbr.rel (%p230) target = $region28
        $region27: #{double_factorized_increase.5} parent=11 // pred_region
          %s234 = ssub.s32 16, 16
          %235 = vsyncadd [#allocation6], %s234
          %s237 = sshll.u32 %s5, 4
          %s238 = int_to_ptr.vmem [resolvable:$true] %s237
          %240 = dma.vmem_to_smem %s238, 16, [#allocation7], [#allocation6]
        $region28: #{double_factorized_increase.5} parent=11 // pred_fallthru
          _
      $region12: #{double_factorized_increase.5} parent=5 // pred_fallthru
        _
      %p241 = scmp.lt.s32.totalorder %s14, 4
      // Predicated region
      $region29: #{double_factorized_increase.5} parent=5 // pred_check
        %p242 = pneg %p241
      $region30: #{double_factorized_increase.5} parent=5 // pred_check_branch
        %244 = sbr.rel (%p242) target = $region32
      $region31: #{double_factorized_increase.5} parent=5 // pred_region
        // Predicated region
        $region33: #{double_factorized_increase.5} parent=31 // pred_check
          %p245 = pneg %p46
        $region34: #{double_factorized_increase.5} parent=31 // pred_check_branch
          %247 = sbr.rel (%p245) target = $region36
        $region35: #{double_factorized_increase.5} parent=31 // pred_region
          %p248 = scmp.lt.s32.totalorder %s21, 1
          %s249 = scalar_select %p248, %s21, 1
          %s250 = smul.addr %s249, 8
          %s251 = smul.addr %s250, 8
          %s252 = scalar_lea.vmem %s0, %s251
        $region36: #{double_factorized_increase.5} parent=31 // pred_fallthru
          _
        // Predicated region
        $region37: #{double_factorized_increase.5} parent=31 // pred_check
          %p253 = pneg %p114
        $region38: #{double_factorized_increase.5} parent=31 // pred_check_branch
          %255 = sbr.rel (%p253) target = $region40
        $region39: #{double_factorized_increase.5} parent=31 // pred_region
          %s256 = smul.u32 2, %s22
          %p257 = scmp.lt.s32.totalorder %s256, 3
          %s258 = scalar_select %p257, %s256, 3
          %s259 = smul.addr %s258, 8
          %s260 = scalar_lea.vmem %s3, %s259
          %s261 = smul.u32 2, %s22
        $region40: #{double_factorized_increase.5} parent=31 // pred_fallthru
          _
      $region32: #{double_factorized_increase.5} parent=5 // pred_fallthru
        _
      %p262 = scmp.le.s32.totalorder 1, %s14
      %p263 = scmp.lt.s32.totalorder %s14, 5
      %p264 = pnand %p262, %p263
      %p265 = pneg %p264
      // Predicated region
      $region41: #{double_factorized_increase.5} parent=5 // pred_check
        _
      $region42: #{double_factorized_increase.5} parent=5 // pred_check_branch
        %267 = sbr.rel (%p264) target = $region44
      $region43: #{double_factorized_increase.5} parent=5 // pred_region
        %s268 = ssub.s32 %s14, 1
        // Predicated region
        $region45: #{double_factorized_increase.5} parent=43 // pred_check
          %p269 = pneg %p73
        $region46: #{double_factorized_increase.5} parent=43 // pred_check_branch
          %271 = sbr.rel (%p269) target = $region48
        $region47: #{double_factorized_increase.5} parent=43 // pred_region
          %272 = dma.done [#allocation4], 64
        $region48: #{double_factorized_increase.5} parent=43 // pred_fallthru
          _
        // Predicated region
        $region49: #{double_factorized_increase.5} parent=43 // pred_check
          %p273 = pneg %p141
        $region50: #{double_factorized_increase.5} parent=43 // pred_check_branch
          %275 = sbr.rel (%p273) target = $region52
        $region51: #{double_factorized_increase.5} parent=43 // pred_region
          %276 = dma.done [#allocation6], 16
        $region52: #{double_factorized_increase.5} parent=43 // pred_fallthru
          _
        // Predicated region
        $region53: #{double_factorized_increase.5} parent=43 // pred_check
          %p277 = pneg %p162
        $region54: #{double_factorized_increase.5} parent=43 // pred_check_branch
          %279 = sbr.rel (%p277) target = $region56
        $region55: #{double_factorized_increase.5} parent=43 // pred_region
          %280 = dma.done [#allocation6], 16
        $region56: #{double_factorized_increase.5} parent=43 // pred_fallthru
          _
        %281 = sfence
        %p282 = scmp.lt.s32.totalorder %s23, 1
        %s283 = scalar_select %p282, %s23, 1
        %s284 = smul.addr %s283, 8
        %s285 = smul.addr %s284, 8
        %s286 = scalar_lea.vmem %s0, %s285
        %p287 = pneg %p52
        %p288 = pneg %p49
        %p289 = pneg %p73
        %p290 = pneg %p70
        %p291 = pneg %p94
        %p292 = pneg %p91
        %s293 = smul.u32 2, %s24
        %p294 = scmp.lt.s32.totalorder %s293, 3
        %s295 = scalar_select %p294, %s293, 3
        %s296 = smul.addr %s295, 8
        %s297 = scalar_lea.vmem %s3, %s296
        %p298 = pneg %p120
        %p299 = pneg %p117
        %p300 = pneg %p141
        %p301 = pneg %p138
        %p302 = pneg %p162
        %p303 = pneg %p159
        %p304 = pneg %p190
        %p305 = pneg %p187
        %s306 = sand.u32 %s177, 1
        %s307 = sand.u32 %s177, 1
        %s308 = smul.addr %s307, 64
        %s309 = scalar_lea.vmem [#allocation8], %s308
        %p310 = scmp.lt.s32.totalorder %s23, 1
        %s311 = scalar_select %p310, %s23, 1
        %s312 = smul.addr %s311, 8
        %s313 = smul.addr %s312, 8
        %s314 = scalar_lea.vmem %s0, %s313
        %s315 = smul.u32 2, %s24
        %p316 = scmp.lt.s32.totalorder %s315, 3
        %s317 = scalar_select %p316, %s315, 3
        %s318 = smul.addr %s317, 8
        %s319 = scalar_lea.vmem %s3, %s318
        %s320 = smul.u32 2, %s24
        %s321 = smul.u32 2, %s24
        %p322 = scmp.eq.s32.totalorder %s24, 0
        // Predicated region
        $region57: #{double_factorized_increase.5} parent=43 // pred_check
          %p323 = pneg %p322
        $region58: #{double_factorized_increase.5} parent=43 // pred_check_branch
          %325 = sbr.rel (%p323) target = $region60
        $region59: #{double_factorized_increase.5} parent=43 // pred_region
          %v326 = vld [vmem:[%s2] sm:$0xff]
          %v327 = vld [vmem:[%s2 + $0x8] sm:$0xff]
          %s328 = sld [smem:[#allocation3]]
          %v329 = vld [vmem:[%s314] sm:$0xff]
          %v330 = vld [vmem:[%s314 + $0x8] sm:$0xff]
          %v331 = vstv %s328
          %v332 = vmul.f32 %v331, %v329
          %v333 = vmul.f32 %v331, %v330
          %s334 = sld [smem:[#allocation3 + $0x1]]
          %s335 = scalar_lea.vmem %s314, 16
          %v336 = vld [vmem:[%s335] sm:$0xff]
          %v337 = vld [vmem:[%s335 + $0x8] sm:$0xff]
          %v338 = vstv %s334
          %v339 = vmul.f32 %v338, %v336
          %v340 = vmul.f32 %v338, %v337
          %v341 = vadd.f32 %v332, %v339
          %v342 = vadd.f32 %v333, %v340
          %s343 = sld [smem:[#allocation3 + $0x2]]
          %s344 = scalar_lea.vmem %s314, 32
          %v345 = vld [vmem:[%s344] sm:$0xff]
          %v346 = vld [vmem:[%s344 + $0x8] sm:$0xff]
          %v347 = vstv %s343
          %v348 = vmul.f32 %v347, %v345
          %v349 = vmul.f32 %v347, %v346
          %v350 = vadd.f32 %v341, %v348
          %v351 = vadd.f32 %v342, %v349
          %s352 = sld [smem:[#allocation3 + $0x3]]
          %s353 = scalar_lea.vmem %s314, 48
          %v354 = vld [vmem:[%s353] sm:$0xff]
          %v355 = vld [vmem:[%s353 + $0x8] sm:$0xff]
          %v356 = vstv %s352
          %v357 = vmul.f32 %v356, %v354
          %v358 = vmul.f32 %v356, %v355
          %v359 = vadd.f32 %v350, %v357
          %v360 = vadd.f32 %v351, %v358
          %vm361 = vcmask 130048
          %v363 = vsel %vm361, %v359, 0
          %v366 = vsel %vm361, %v360, 0
          %368 = vmatprep.subr.mxu0 0.0
          %369 = vmatpush1.msra.mxu0 %v326
          %370 = vmatprep.subr.mxu0 0.0
          %371 = vmatpush1.msra.mxu0 %v327
          %372 = vmatprep.subr.mxu0 0.0
          %373 = vmatpush1.msra.mxu0 0.0
          %374 = vmatprep.subr.mxu0 0.0
          %375 = vmatpush1.msra.mxu0 0.0
          %376 = vmatprep.subr.mxu0 0.0
          %377 = vmatpush1.msra.mxu0 0.0
          %378 = vmatprep.subr.mxu0 0.0
          %379 = vmatpush1.msra.mxu0 0.0
          %380 = vmatprep.subr.mxu0 0.0
          %381 = vmatpush1.msra.mxu0 0.0
          %382 = vmatprep.subr.mxu0 0.0
          %383 = vmatpush1.msra.mxu0 0.0
          %384 = vmatprep.subr.mxu0 0.0
          %385 = vmatpush1.msra.mxu0 0.0
          %386 = vmatprep.subr.mxu0 0.0
          %387 = vmatpush1.msra.mxu0 0.0
          %388 = vmatprep.subr.mxu0 0.0
          %389 = vmatpush1.msra.mxu0 0.0
          %390 = vmatprep.subr.mxu0 0.0
          %391 = vmatpush1.msra.mxu0 0.0
          %392 = vmatprep.subr.mxu0 0.0
          %393 = vmatpush1.msra.mxu0 0.0
          %394 = vmatprep.subr.mxu0 0.0
          %395 = vmatpush1.msra.mxu0 0.0
          %396 = vmatprep.subr.mxu0 0.0
          %397 = vmatpush1.msra.mxu0 0.0
          %398 = vmatprep.subr.mxu0 0.0
          %399 = vmatpush1.msra.mxu0 0.0
          %400 = vmatprep.subr.mxu0 0.0
          %401 = vmatpush1.msra.mxu0 0.0
          %402 = vmatprep.subr.mxu0 0.0
          %403 = vmatpush1.msra.mxu0 0.0
          %404 = vmatprep.subr.mxu0 0.0
          %405 = vmatpush1.msra.mxu0 0.0
          %406 = vmatprep.subr.mxu0 0.0
          %407 = vmatpush1.msra.mxu0 0.0
          %408 = vmatprep.subr.mxu0 0.0
          %409 = vmatpush1.msra.mxu0 0.0
          %410 = vmatprep.subr.mxu0 0.0
          %411 = vmatpush1.msra.mxu0 0.0
          %412 = vmatprep.subr.mxu0 0.0
          %413 = vmatpush1.msra.mxu0 0.0
          %414 = vmatprep.subr.mxu0 0.0
          %415 = vmatpush1.msra.mxu0 0.0
          %416 = vmatprep.subr.mxu0 0.0
          %417 = vmatpush1.msra.mxu0 0.0
          %418 = vmatprep.subr.mxu0 0.0
          %419 = vmatpush1.msra.mxu0 0.0
          %420 = vmatprep.subr.mxu0 0.0
          %421 = vmatpush1.msra.mxu0 0.0
          %422 = vmatprep.subr.mxu0 0.0
          %423 = vmatpush1.msra.mxu0 0.0
          %424 = vmatprep.subr.mxu0 0.0
          %425 = vmatpush1.msra.mxu0 0.0
          %426 = vmatprep.subr.mxu0 0.0
          %427 = vmatpush1.msra.mxu0 0.0
          %428 = vmatprep.subr.mxu0 0.0
          %429 = vmatpush1.msra.mxu0 0.0
          %430 = vmatprep.subr.mxu0 0.0
          %431 = vmatpush1.msra.mxu0 0.0
          %432 = vmatprep.mubr.f32.mxu0 0.0
          %433 = vmatmul.mubr.f32.gmra.mrb[0].mxu0 %v363
          %v434 = vpop.f32.mrb[0].mxu0
          %v435 = vadd.f32 0.0, %v434
          %v436 = vpop.f32.mrb[0].mxu0
          %437 = vmatprep.mubr.f32.mxu0 0.0
          %438 = vmatmul.mubr.f32.gmra.mrb[0].mxu0 %v366
          %v439 = vpop.f32.mrb[0].mxu0
          %v440 = vadd.f32 0.0, %v439
          %v441 = vpop.f32.mrb[0].mxu0
          %442 = vdwg.mxu0
          %vm443 = vcmask 261120
          %444 = vst.msk [vmem:[#allocation2] sm:$0xff] %vm443, %v435
          %445 = vst.msk [vmem:[#allocation2 + $0x8] sm:$0xff] %vm443, %v440
          %s446 = sld [smem:[#allocation3 + $0x80]]
          %v447 = vld [vmem:[%s314] sm:$0xff]
          %v448 = vld [vmem:[%s314 + $0x8] sm:$0xff]
          %v449 = vstv %s446
          %v450 = vmul.f32 %v449, %v447
          %v451 = vmul.f32 %v449, %v448
          %s452 = sld [smem:[#allocation3 + $0x81]]
          %v453 = vld [vmem:[%s335] sm:$0xff]
          %v454 = vld [vmem:[%s335 + $0x8] sm:$0xff]
          %v455 = vstv %s452
          %v456 = vmul.f32 %v455, %v453
          %v457 = vmul.f32 %v455, %v454
          %v458 = vadd.f32 %v450, %v456
          %v459 = vadd.f32 %v451, %v457
          %s460 = sld [smem:[#allocation3 + $0x82]]
          %v461 = vld [vmem:[%s344] sm:$0xff]
          %v462 = vld [vmem:[%s344 + $0x8] sm:$0xff]
          %v463 = vstv %s460
          %v464 = vmul.f32 %v463, %v461
          %v465 = vmul.f32 %v463, %v462
          %v466 = vadd.f32 %v458, %v464
          %v467 = vadd.f32 %v459, %v465
          %s468 = sld [smem:[#allocation3 + $0x83]]
          %v469 = vld [vmem:[%s353] sm:$0xff]
          %v470 = vld [vmem:[%s353 + $0x8] sm:$0xff]
          %v471 = vstv %s468
          %v472 = vmul.f32 %v471, %v469
          %v473 = vmul.f32 %v471, %v470
          %v474 = vadd.f32 %v466, %v472
          %v475 = vadd.f32 %v467, %v473
          %v477 = vsel %vm361, %v474, 0
          %v480 = vsel %vm361, %v475, 0
          %482 = vmatprep.subr.mxu0 0.0
          %483 = vmatpush1.msra.mxu0 %v326
          %484 = vmatprep.subr.mxu0 0.0
          %485 = vmatpush1.msra.mxu0 %v327
          %486 = vmatprep.subr.mxu0 0.0
          %487 = vmatpush1.msra.mxu0 0.0
          %488 = vmatprep.subr.mxu0 0.0
          %489 = vmatpush1.msra.mxu0 0.0
          %490 = vmatprep.subr.mxu0 0.0
          %491 = vmatpush1.msra.mxu0 0.0
          %492 = vmatprep.subr.mxu0 0.0
          %493 = vmatpush1.msra.mxu0 0.0
          %494 = vmatprep.subr.mxu0 0.0
          %495 = vmatpush1.msra.mxu0 0.0
          %496 = vmatprep.subr.mxu0 0.0
          %497 = vmatpush1.msra.mxu0 0.0
          %498 = vmatprep.subr.mxu0 0.0
          %499 = vmatpush1.msra.mxu0 0.0
          %500 = vmatprep.subr.mxu0 0.0
          %501 = vmatpush1.msra.mxu0 0.0
          %502 = vmatprep.subr.mxu0 0.0
          %503 = vmatpush1.msra.mxu0 0.0
          %504 = vmatprep.subr.mxu0 0.0
          %505 = vmatpush1.msra.mxu0 0.0
          %506 = vmatprep.subr.mxu0 0.0
          %507 = vmatpush1.msra.mxu0 0.0
          %508 = vmatprep.subr.mxu0 0.0
          %509 = vmatpush1.msra.mxu0 0.0
          %510 = vmatprep.subr.mxu0 0.0
          %511 = vmatpush1.msra.mxu0 0.0
          %512 = vmatprep.subr.mxu0 0.0
          %513 = vmatpush1.msra.mxu0 0.0
          %514 = vmatprep.subr.mxu0 0.0
          %515 = vmatpush1.msra.mxu0 0.0
          %516 = vmatprep.subr.mxu0 0.0
          %517 = vmatpush1.msra.mxu0 0.0
          %518 = vmatprep.subr.mxu0 0.0
          %519 = vmatpush1.msra.mxu0 0.0
          %520 = vmatprep.subr.mxu0 0.0
          %521 = vmatpush1.msra.mxu0 0.0
          %522 = vmatprep.subr.mxu0 0.0
          %523 = vmatpush1.msra.mxu0 0.0
          %524 = vmatprep.subr.mxu0 0.0
          %525 = vmatpush1.msra.mxu0 0.0
          %526 = vmatprep.subr.mxu0 0.0
          %527 = vmatpush1.msra.mxu0 0.0
          %528 = vmatprep.subr.mxu0 0.0
          %529 = vmatpush1.msra.mxu0 0.0
          %530 = vmatprep.subr.mxu0 0.0
          %531 = vmatpush1.msra.mxu0 0.0
          %532 = vmatprep.subr.mxu0 0.0
          %533 = vmatpush1.msra.mxu0 0.0
          %534 = vmatprep.subr.mxu0 0.0
          %535 = vmatpush1.msra.mxu0 0.0
          %536 = vmatprep.subr.mxu0 0.0
          %537 = vmatpush1.msra.mxu0 0.0
          %538 = vmatprep.subr.mxu0 0.0
          %539 = vmatpush1.msra.mxu0 0.0
          %540 = vmatprep.subr.mxu0 0.0
          %541 = vmatpush1.msra.mxu0 0.0
          %542 = vmatprep.subr.mxu0 0.0
          %543 = vmatpush1.msra.mxu0 0.0
          %544 = vmatprep.subr.mxu0 0.0
          %545 = vmatpush1.msra.mxu0 0.0
          %546 = vmatprep.mubr.f32.mxu0 0.0
          %547 = vmatmul.mubr.f32.gmra.mrb[0].mxu0 %v477
          %v548 = vpop.f32.mrb[0].mxu0
          %v549 = vadd.f32 0.0, %v548
          %v550 = vpop.f32.mrb[0].mxu0
          %551 = vmatprep.mubr.f32.mxu0 0.0
          %552 = vmatmul.mubr.f32.gmra.mrb[0].mxu0 %v480
          %v553 = vpop.f32.mrb[0].mxu0
          %v554 = vadd.f32 0.0, %v553
          %v555 = vpop.f32.mrb[0].mxu0
          %556 = vdwg.mxu0
          %s557 = scalar_lea.vmem [#allocation2], 16
          %558 = vst.msk [vmem:[%s557] sm:$0xff] %vm443, %v549
          %559 = vst.msk [vmem:[%s557 + $0x8] sm:$0xff] %vm443, %v554
          %s560 = sld [smem:[#allocation3 + $0x100]]
          %v561 = vld [vmem:[%s314] sm:$0xff]
          %v562 = vld [vmem:[%s314 + $0x8] sm:$0xff]
          %v563 = vstv %s560
          %v564 = vmul.f32 %v563, %v561
          %v565 = vmul.f32 %v563, %v562
          %s566 = sld [smem:[#allocation3 + $0x101]]
          %v567 = vld [vmem:[%s335] sm:$0xff]
          %v568 = vld [vmem:[%s335 + $0x8] sm:$0xff]
          %v569 = vstv %s566
          %v570 = vmul.f32 %v569, %v567
          %v571 = vmul.f32 %v569, %v568
          %v572 = vadd.f32 %v564, %v570
          %v573 = vadd.f32 %v565, %v571
          %s574 = sld [smem:[#allocation3 + $0x102]]
          %v575 = vld [vmem:[%s344] sm:$0xff]
          %v576 = vld [vmem:[%s344 + $0x8] sm:$0xff]
          %v577 = vstv %s574
          %v578 = vmul.f32 %v577, %v575
          %v579 = vmul.f32 %v577, %v576
          %v580 = vadd.f32 %v572, %v578
          %v581 = vadd.f32 %v573, %v579
          %s582 = sld [smem:[#allocation3 + $0x103]]
          %v583 = vld [vmem:[%s353] sm:$0xff]
          %v584 = vld [vmem:[%s353 + $0x8] sm:$0xff]
          %v585 = vstv %s582
          %v586 = vmul.f32 %v585, %v583
          %v587 = vmul.f32 %v585, %v584
          %v588 = vadd.f32 %v580, %v586
          %v589 = vadd.f32 %v581, %v587
          %v591 = vsel %vm361, %v588, 0
          %v594 = vsel %vm361, %v589, 0
          %596 = vmatprep.subr.mxu0 0.0
          %597 = vmatpush1.msra.mxu0 %v326
          %598 = vmatprep.subr.mxu0 0.0
          %599 = vmatpush1.msra.mxu0 %v327
          %600 = vmatprep.subr.mxu0 0.0
          %601 = vmatpush1.msra.mxu0 0.0
          %602 = vmatprep.subr.mxu0 0.0
          %603 = vmatpush1.msra.mxu0 0.0
          %604 = vmatprep.subr.mxu0 0.0
          %605 = vmatpush1.msra.mxu0 0.0
          %606 = vmatprep.subr.mxu0 0.0
          %607 = vmatpush1.msra.mxu0 0.0
          %608 = vmatprep.subr.mxu0 0.0
          %609 = vmatpush1.msra.mxu0 0.0
          %610 = vmatprep.subr.mxu0 0.0
          %611 = vmatpush1.msra.mxu0 0.0
          %612 = vmatprep.subr.mxu0 0.0
          %613 = vmatpush1.msra.mxu0 0.0
          %614 = vmatprep.subr.mxu0 0.0
          %615 = vmatpush1.msra.mxu0 0.0
          %616 = vmatprep.subr.mxu0 0.0
          %617 = vmatpush1.msra.mxu0 0.0
          %618 = vmatprep.subr.mxu0 0.0
          %619 = vmatpush1.msra.mxu0 0.0
          %620 = vmatprep.subr.mxu0 0.0
          %621 = vmatpush1.msra.mxu0 0.0
          %622 = vmatprep.subr.mxu0 0.0
          %623 = vmatpush1.msra.mxu0 0.0
          %624 = vmatprep.subr.mxu0 0.0
          %625 = vmatpush1.msra.mxu0 0.0
          %626 = vmatprep.subr.mxu0 0.0
          %627 = vmatpush1.msra.mxu0 0.0
          %628 = vmatprep.subr.mxu0 0.0
          %629 = vmatpush1.msra.mxu0 0.0
          %630 = vmatprep.subr.mxu0 0.0
          %631 = vmatpush1.msra.mxu0 0.0
          %632 = vmatprep.subr.mxu0 0.0
          %633 = vmatpush1.msra.mxu0 0.0
          %634 = vmatprep.subr.mxu0 0.0
          %635 = vmatpush1.msra.mxu0 0.0
          %636 = vmatprep.subr.mxu0 0.0
          %637 = vmatpush1.msra.mxu0 0.0
          %638 = vmatprep.subr.mxu0 0.0
          %639 = vmatpush1.msra.mxu0 0.0
          %640 = vmatprep.subr.mxu0 0.0
          %641 = vmatpush1.msra.mxu0 0.0
          %642 = vmatprep.subr.mxu0 0.0
          %643 = vmatpush1.msra.mxu0 0.0
          %644 = vmatprep.subr.mxu0 0.0
          %645 = vmatpush1.msra.mxu0 0.0
          %646 = vmatprep.subr.mxu0 0.0
          %647 = vmatpush1.msra.mxu0 0.0
          %648 = vmatprep.subr.mxu0 0.0
          %649 = vmatpush1.msra.mxu0 0.0
          %650 = vmatprep.subr.mxu0 0.0
          %651 = vmatpush1.msra.mxu0 0.0
          %652 = vmatprep.subr.mxu0 0.0
          %653 = vmatpush1.msra.mxu0 0.0
          %654 = vmatprep.subr.mxu0 0.0
          %655 = vmatpush1.msra.mxu0 0.0
          %656 = vmatprep.subr.mxu0 0.0
          %657 = vmatpush1.msra.mxu0 0.0
          %658 = vmatprep.subr.mxu0 0.0
          %659 = vmatpush1.msra.mxu0 0.0
          %660 = vmatprep.mubr.f32.mxu0 0.0
          %661 = vmatmul.mubr.f32.gmra.mrb[0].mxu0 %v591
          %v662 = vpop.f32.mrb[0].mxu0
          %v663 = vadd.f32 0.0, %v662
          %v664 = vpop.f32.mrb[0].mxu0
          %665 = vmatprep.mubr.f32.mxu0 0.0
          %666 = vmatmul.mubr.f32.gmra.mrb[0].mxu0 %v594
          %v667 = vpop.f32.mrb[0].mxu0
          %v668 = vadd.f32 0.0, %v667
          %v669 = vpop.f32.mrb[0].mxu0
          %670 = vdwg.mxu0
          %s671 = scalar_lea.vmem [#allocation2], 32
          %672 = vst.msk [vmem:[%s671] sm:$0xff] %vm443, %v663
          %673 = vst.msk [vmem:[%s671 + $0x8] sm:$0xff] %vm443, %v668
          %s674 = sld [smem:[#allocation3 + $0x180]]
          %v675 = vld [vmem:[%s314] sm:$0xff]
          %v676 = vld [vmem:[%s314 + $0x8] sm:$0xff]
          %v677 = vstv %s674
          %v678 = vmul.f32 %v677, %v675
          %v679 = vmul.f32 %v677, %v676
          %s680 = sld [smem:[#allocation3 + $0x181]]
          %v681 = vld [vmem:[%s335] sm:$0xff]
          %v682 = vld [vmem:[%s335 + $0x8] sm:$0xff]
          %v683 = vstv %s680
          %v684 = vmul.f32 %v683, %v681
          %v685 = vmul.f32 %v683, %v682
          %v686 = vadd.f32 %v678, %v684
          %v687 = vadd.f32 %v679, %v685
          %s688 = sld [smem:[#allocation3 + $0x182]]
          %v689 = vld [vmem:[%s344] sm:$0xff]
          %v690 = vld [vmem:[%s344 + $0x8] sm:$0xff]
          %v691 = vstv %s688
          %v692 = vmul.f32 %v691, %v689
          %v693 = vmul.f32 %v691, %v690
          %v694 = vadd.f32 %v686, %v692
          %v695 = vadd.f32 %v687, %v693
          %s696 = sld [smem:[#allocation3 + $0x183]]
          %v697 = vld [vmem:[%s353] sm:$0xff]
          %v698 = vld [vmem:[%s353 + $0x8] sm:$0xff]
          %v699 = vstv %s696
          %v700 = vmul.f32 %v699, %v697
          %v701 = vmul.f32 %v699, %v698
          %v702 = vadd.f32 %v694, %v700
          %v703 = vadd.f32 %v695, %v701
          %v705 = vsel %vm361, %v702, 0
          %v708 = vsel %vm361, %v703, 0
          %710 = vmatprep.subr.mxu0 0.0
          %711 = vmatpush1.msra.mxu0 %v326
          %712 = vmatprep.subr.mxu0 0.0
          %713 = vmatpush1.msra.mxu0 %v327
          %714 = vmatprep.subr.mxu0 0.0
          %715 = vmatpush1.msra.mxu0 0.0
          %716 = vmatprep.subr.mxu0 0.0
          %717 = vmatpush1.msra.mxu0 0.0
          %718 = vmatprep.subr.mxu0 0.0
          %719 = vmatpush1.msra.mxu0 0.0
          %720 = vmatprep.subr.mxu0 0.0
          %721 = vmatpush1.msra.mxu0 0.0
          %722 = vmatprep.subr.mxu0 0.0
          %723 = vmatpush1.msra.mxu0 0.0
          %724 = vmatprep.subr.mxu0 0.0
          %725 = vmatpush1.msra.mxu0 0.0
          %726 = vmatprep.subr.mxu0 0.0
          %727 = vmatpush1.msra.mxu0 0.0
          %728 = vmatprep.subr.mxu0 0.0
          %729 = vmatpush1.msra.mxu0 0.0
          %730 = vmatprep.subr.mxu0 0.0
          %731 = vmatpush1.msra.mxu0 0.0
          %732 = vmatprep.subr.mxu0 0.0
          %733 = vmatpush1.msra.mxu0 0.0
          %734 = vmatprep.subr.mxu0 0.0
          %735 = vmatpush1.msra.mxu0 0.0
          %736 = vmatprep.subr.mxu0 0.0
          %737 = vmatpush1.msra.mxu0 0.0
          %738 = vmatprep.subr.mxu0 0.0
          %739 = vmatpush1.msra.mxu0 0.0
          %740 = vmatprep.subr.mxu0 0.0
          %741 = vmatpush1.msra.mxu0 0.0
          %742 = vmatprep.subr.mxu0 0.0
          %743 = vmatpush1.msra.mxu0 0.0
          %744 = vmatprep.subr.mxu0 0.0
          %745 = vmatpush1.msra.mxu0 0.0
          %746 = vmatprep.subr.mxu0 0.0
          %747 = vmatpush1.msra.mxu0 0.0
          %748 = vmatprep.subr.mxu0 0.0
          %749 = vmatpush1.msra.mxu0 0.0
          %750 = vmatprep.subr.mxu0 0.0
          %751 = vmatpush1.msra.mxu0 0.0
          %752 = vmatprep.subr.mxu0 0.0
          %753 = vmatpush1.msra.mxu0 0.0
          %754 = vmatprep.subr.mxu0 0.0
          %755 = vmatpush1.msra.mxu0 0.0
          %756 = vmatprep.subr.mxu0 0.0
          %757 = vmatpush1.msra.mxu0 0.0
          %758 = vmatprep.subr.mxu0 0.0
          %759 = vmatpush1.msra.mxu0 0.0
          %760 = vmatprep.subr.mxu0 0.0
          %761 = vmatpush1.msra.mxu0 0.0
          %762 = vmatprep.subr.mxu0 0.0
          %763 = vmatpush1.msra.mxu0 0.0
          %764 = vmatprep.subr.mxu0 0.0
          %765 = vmatpush1.msra.mxu0 0.0
          %766 = vmatprep.subr.mxu0 0.0
          %767 = vmatpush1.msra.mxu0 0.0
          %768 = vmatprep.subr.mxu0 0.0
          %769 = vmatpush1.msra.mxu0 0.0
          %770 = vmatprep.subr.mxu0 0.0
          %771 = vmatpush1.msra.mxu0 0.0
          %772 = vmatprep.subr.mxu0 0.0
          %773 = vmatpush1.msra.mxu0 0.0
          %774 = vmatprep.mubr.f32.mxu0 0.0
          %775 = vmatmul.mubr.f32.gmra.mrb[0].mxu0 %v705
          %v776 = vpop.f32.mrb[0].mxu0
          %v777 = vadd.f32 0.0, %v776
          %v778 = vpop.f32.mrb[0].mxu0
          %779 = vmatprep.mubr.f32.mxu0 0.0
          %780 = vmatmul.mubr.f32.gmra.mrb[0].mxu0 %v708
          %v781 = vpop.f32.mrb[0].mxu0
          %v782 = vadd.f32 0.0, %v781
          %v783 = vpop.f32.mrb[0].mxu0
          %784 = vdwg.mxu0
          %s785 = scalar_lea.vmem [#allocation2], 48
          %786 = vst.msk [vmem:[%s785] sm:$0xff] %vm443, %v777
          %787 = vst.msk [vmem:[%s785 + $0x8] sm:$0xff] %vm443, %v782
        $region60: #{double_factorized_increase.5} parent=43 // pred_fallthru
          _
        %v788 = vld [vmem:[%s319] sm:$0xff]
        %v789 = vld [vmem:[%s319 + $0x8] sm:$0xff]
        %v790 = vld [vmem:[#allocation2] sm:$0xff]
        %v791 = vld [vmem:[#allocation2 + $0x8] sm:$0xff]
        %vm792 = vcmask 130048
        %v794 = vsel %vm792, %v788, 0
        %v797 = vsel %vm792, %v789, 0
        %799 = vmatprep.subr.mxu0 0.0
        %800 = vmatpush1.msra.mxu0 %v790
        %801 = vmatprep.subr.mxu0 0.0
        %802 = vmatpush1.msra.mxu0 %v791
        %803 = vmatprep.subr.mxu0 0.0
        %804 = vmatpush1.msra.mxu0 0.0
        %805 = vmatprep.subr.mxu0 0.0
        %806 = vmatpush1.msra.mxu0 0.0
        %807 = vmatprep.subr.mxu0 0.0
        %808 = vmatpush1.msra.mxu0 0.0
        %809 = vmatprep.subr.mxu0 0.0
        %810 = vmatpush1.msra.mxu0 0.0
        %811 = vmatprep.subr.mxu0 0.0
        %812 = vmatpush1.msra.mxu0 0.0
        %813 = vmatprep.subr.mxu0 0.0
        %814 = vmatpush1.msra.mxu0 0.0
        %815 = vmatprep.subr.mxu0 0.0
        %816 = vmatpush1.msra.mxu0 0.0
        %817 = vmatprep.subr.mxu0 0.0
        %818 = vmatpush1.msra.mxu0 0.0
        %819 = vmatprep.subr.mxu0 0.0
        %820 = vmatpush1.msra.mxu0 0.0
        %821 = vmatprep.subr.mxu0 0.0
        %822 = vmatpush1.msra.mxu0 0.0
        %823 = vmatprep.subr.mxu0 0.0
        %824 = vmatpush1.msra.mxu0 0.0
        %825 = vmatprep.subr.mxu0 0.0
        %826 = vmatpush1.msra.mxu0 0.0
        %827 = vmatprep.subr.mxu0 0.0
        %828 = vmatpush1.msra.mxu0 0.0
        %829 = vmatprep.subr.mxu0 0.0
        %830 = vmatpush1.msra.mxu0 0.0
        %831 = vmatprep.subr.mxu0 0.0
        %832 = vmatpush1.msra.mxu0 0.0
        %833 = vmatprep.subr.mxu0 0.0
        %834 = vmatpush1.msra.mxu0 0.0
        %835 = vmatprep.subr.mxu0 0.0
        %836 = vmatpush1.msra.mxu0 0.0
        %837 = vmatprep.subr.mxu0 0.0
        %838 = vmatpush1.msra.mxu0 0.0
        %839 = vmatprep.subr.mxu0 0.0
        %840 = vmatpush1.msra.mxu0 0.0
        %841 = vmatprep.subr.mxu0 0.0
        %842 = vmatpush1.msra.mxu0 0.0
        %843 = vmatprep.subr.mxu0 0.0
        %844 = vmatpush1.msra.mxu0 0.0
        %845 = vmatprep.subr.mxu0 0.0
        %846 = vmatpush1.msra.mxu0 0.0
        %847 = vmatprep.subr.mxu0 0.0
        %848 = vmatpush1.msra.mxu0 0.0
        %849 = vmatprep.subr.mxu0 0.0
        %850 = vmatpush1.msra.mxu0 0.0
        %851 = vmatprep.subr.mxu0 0.0
        %852 = vmatpush1.msra.mxu0 0.0
        %853 = vmatprep.subr.mxu0 0.0
        %854 = vmatpush1.msra.mxu0 0.0
        %855 = vmatprep.subr.mxu0 0.0
        %856 = vmatpush1.msra.mxu0 0.0
        %857 = vmatprep.subr.mxu0 0.0
        %858 = vmatpush1.msra.mxu0 0.0
        %859 = vmatprep.subr.mxu0 0.0
        %860 = vmatpush1.msra.mxu0 0.0
        %861 = vmatprep.subr.mxu0 0.0
        %862 = vmatpush1.msra.mxu0 0.0
        %863 = vmatprep.mubr.f32.mxu0 0.0
        %864 = vmatmul.mubr.f32.gmra.mrb[0].mxu0 %v794
        %v865 = vpop.f32.mrb[0].mxu0
        %v866 = vadd.f32 0.0, %v865
        %v867 = vpop.f32.mrb[0].mxu0
        %868 = vmatprep.mubr.f32.mxu0 0.0
        %869 = vmatmul.mubr.f32.gmra.mrb[0].mxu0 %v797
        %v870 = vpop.f32.mrb[0].mxu0
        %v871 = vadd.f32 0.0, %v870
        %v872 = vpop.f32.mrb[0].mxu0
        %873 = vdwg.mxu0
        %s874 = sld [smem:[#allocation5]]
        %v875 = vstv %s874
        %v876 = vmul.f32 %v866, %v875
        %v877 = vmul.f32 %v871, %v875
        %s878 = sld [smem:[#allocation7]]
        %v879 = vstv %s878
        %v880 = vadd.f32 %v876, %v879
        %v881 = vadd.f32 %v877, %v879
        %v882 = vmax.f32 %v880, 0.0
        %v883 = vmax.f32 %v881, 0.0
        %vm884 = vcmask 261120
        %885 = vst.msk [vmem:[%s309] sm:$0xff] %vm884, %v882
        %886 = vst.msk [vmem:[%s309 + $0x8] sm:$0xff] %vm884, %v883
        %s887 = scalar_lea.vmem [#allocation2], 16
        %v888 = vld [vmem:[%s887] sm:$0xff]
        %v889 = vld [vmem:[%s887 + $0x8] sm:$0xff]
        %890 = vmatprep.subr.mxu0 0.0
        %891 = vmatpush1.msra.mxu0 %v888
        %892 = vmatprep.subr.mxu0 0.0
        %893 = vmatpush1.msra.mxu0 %v889
        %894 = vmatprep.subr.mxu0 0.0
        %895 = vmatpush1.msra.mxu0 0.0
        %896 = vmatprep.subr.mxu0 0.0
        %897 = vmatpush1.msra.mxu0 0.0
        %898 = vmatprep.subr.mxu0 0.0
        %899 = vmatpush1.msra.mxu0 0.0
        %900 = vmatprep.subr.mxu0 0.0
        %901 = vmatpush1.msra.mxu0 0.0
        %902 = vmatprep.subr.mxu0 0.0
        %903 = vmatpush1.msra.mxu0 0.0
        %904 = vmatprep.subr.mxu0 0.0
        %905 = vmatpush1.msra.mxu0 0.0
        %906 = vmatprep.subr.mxu0 0.0
        %907 = vmatpush1.msra.mxu0 0.0
        %908 = vmatprep.subr.mxu0 0.0
        %909 = vmatpush1.msra.mxu0 0.0
        %910 = vmatprep.subr.mxu0 0.0
        %911 = vmatpush1.msra.mxu0 0.0
        %912 = vmatprep.subr.mxu0 0.0
        %913 = vmatpush1.msra.mxu0 0.0
        %914 = vmatprep.subr.mxu0 0.0
        %915 = vmatpush1.msra.mxu0 0.0
        %916 = vmatprep.subr.mxu0 0.0
        %917 = vmatpush1.msra.mxu0 0.0
        %918 = vmatprep.subr.mxu0 0.0
        %919 = vmatpush1.msra.mxu0 0.0
        %920 = vmatprep.subr.mxu0 0.0
        %921 = vmatpush1.msra.mxu0 0.0
        %922 = vmatprep.subr.mxu0 0.0
        %923 = vmatpush1.msra.mxu0 0.0
        %924 = vmatprep.subr.mxu0 0.0
        %925 = vmatpush1.msra.mxu0 0.0
        %926 = vmatprep.subr.mxu0 0.0
        %927 = vmatpush1.msra.mxu0 0.0
        %928 = vmatprep.subr.mxu0 0.0
        %929 = vmatpush1.msra.mxu0 0.0
        %930 = vmatprep.subr.mxu0 0.0
        %931 = vmatpush1.msra.mxu0 0.0
        %932 = vmatprep.subr.mxu0 0.0
        %933 = vmatpush1.msra.mxu0 0.0
        %934 = vmatprep.subr.mxu0 0.0
        %935 = vmatpush1.msra.mxu0 0.0
        %936 = vmatprep.subr.mxu0 0.0
        %937 = vmatpush1.msra.mxu0 0.0
        %938 = vmatprep.subr.mxu0 0.0
        %939 = vmatpush1.msra.mxu0 0.0
        %940 = vmatprep.subr.mxu0 0.0
        %941 = vmatpush1.msra.mxu0 0.0
        %942 = vmatprep.subr.mxu0 0.0
        %943 = vmatpush1.msra.mxu0 0.0
        %944 = vmatprep.subr.mxu0 0.0
        %945 = vmatpush1.msra.mxu0 0.0
        %946 = vmatprep.subr.mxu0 0.0
        %947 = vmatpush1.msra.mxu0 0.0
        %948 = vmatprep.subr.mxu0 0.0
        %949 = vmatpush1.msra.mxu0 0.0
        %950 = vmatprep.subr.mxu0 0.0
        %951 = vmatpush1.msra.mxu0 0.0
        %952 = vmatprep.subr.mxu0 0.0
        %953 = vmatpush1.msra.mxu0 0.0
        %954 = vmatprep.mubr.f32.mxu0 0.0
        %955 = vmatmul.mubr.f32.gmra.mrb[0].mxu0 %v794
        %v956 = vpop.f32.mrb[0].mxu0
        %v957 = vadd.f32 0.0, %v956
        %v958 = vpop.f32.mrb[0].mxu0
        %959 = vmatprep.mubr.f32.mxu0 0.0
        %960 = vmatmul.mubr.f32.gmra.mrb[0].mxu0 %v797
        %v961 = vpop.f32.mrb[0].mxu0
        %v962 = vadd.f32 0.0, %v961
        %v963 = vpop.f32.mrb[0].mxu0
        %964 = vdwg.mxu0
        %s965 = sld [smem:[#allocation5 + $0x1]]
        %v966 = vstv %s965
        %v967 = vmul.f32 %v957, %v966
        %v968 = vmul.f32 %v962, %v966
        %s969 = sld [smem:[#allocation7 + $0x1]]
        %v970 = vstv %s969
        %v971 = vadd.f32 %v967, %v970
        %v972 = vadd.f32 %v968, %v970
        %v973 = vmax.f32 %v971, 0.0
        %v974 = vmax.f32 %v972, 0.0
        %s975 = scalar_lea.vmem %s309, 16 [#allocation8]
        %976 = vst.msk [vmem:[%s975] sm:$0xff] %vm884, %v973
        %977 = vst.msk [vmem:[%s975 + $0x8] sm:$0xff] %vm884, %v974
        %s978 = scalar_lea.vmem [#allocation2], 32
        %v979 = vld [vmem:[%s978] sm:$0xff]
        %v980 = vld [vmem:[%s978 + $0x8] sm:$0xff]
        %981 = vmatprep.subr.mxu0 0.0
        %982 = vmatpush1.msra.mxu0 %v979
        %983 = vmatprep.subr.mxu0 0.0
        %984 = vmatpush1.msra.mxu0 %v980
        %985 = vmatprep.subr.mxu0 0.0
        %986 = vmatpush1.msra.mxu0 0.0
        %987 = vmatprep.subr.mxu0 0.0
        %988 = vmatpush1.msra.mxu0 0.0
        %989 = vmatprep.subr.mxu0 0.0
        %990 = vmatpush1.msra.mxu0 0.0
        %991 = vmatprep.subr.mxu0 0.0
        %992 = vmatpush1.msra.mxu0 0.0
        %993 = vmatprep.subr.mxu0 0.0
        %994 = vmatpush1.msra.mxu0 0.0
        %995 = vmatprep.subr.mxu0 0.0
        %996 = vmatpush1.msra.mxu0 0.0
        %997 = vmatprep.subr.mxu0 0.0
        %998 = vmatpush1.msra.mxu0 0.0
        %999 = vmatprep.subr.mxu0 0.0
        %1000 = vmatpush1.msra.mxu0 0.0
        %1001 = vmatprep.subr.mxu0 0.0
        %1002 = vmatpush1.msra.mxu0 0.0
        %1003 = vmatprep.subr.mxu0 0.0
        %1004 = vmatpush1.msra.mxu0 0.0
        %1005 = vmatprep.subr.mxu0 0.0
        %1006 = vmatpush1.msra.mxu0 0.0
        %1007 = vmatprep.subr.mxu0 0.0
        %1008 = vmatpush1.msra.mxu0 0.0
        %1009 = vmatprep.subr.mxu0 0.0
        %1010 = vmatpush1.msra.mxu0 0.0
        %1011 = vmatprep.subr.mxu0 0.0
        %1012 = vmatpush1.msra.mxu0 0.0
        %1013 = vmatprep.subr.mxu0 0.0
        %1014 = vmatpush1.msra.mxu0 0.0
        %1015 = vmatprep.subr.mxu0 0.0
        %1016 = vmatpush1.msra.mxu0 0.0
        %1017 = vmatprep.subr.mxu0 0.0
        %1018 = vmatpush1.msra.mxu0 0.0
        %1019 = vmatprep.subr.mxu0 0.0
        %1020 = vmatpush1.msra.mxu0 0.0
        %1021 = vmatprep.subr.mxu0 0.0
        %1022 = vmatpush1.msra.mxu0 0.0
        %1023 = vmatprep.subr.mxu0 0.0
        %1024 = vmatpush1.msra.mxu0 0.0
        %1025 = vmatprep.subr.mxu0 0.0
        %1026 = vmatpush1.msra.mxu0 0.0
        %1027 = vmatprep.subr.mxu0 0.0
        %1028 = vmatpush1.msra.mxu0 0.0
        %1029 = vmatprep.subr.mxu0 0.0
        %1030 = vmatpush1.msra.mxu0 0.0
        %1031 = vmatprep.subr.mxu0 0.0
        %1032 = vmatpush1.msra.mxu0 0.0
        %1033 = vmatprep.subr.mxu0 0.0
        %1034 = vmatpush1.msra.mxu0 0.0
        %1035 = vmatprep.subr.mxu0 0.0
        %1036 = vmatpush1.msra.mxu0 0.0
        %1037 = vmatprep.subr.mxu0 0.0
        %1038 = vmatpush1.msra.mxu0 0.0
        %1039 = vmatprep.subr.mxu0 0.0
        %1040 = vmatpush1.msra.mxu0 0.0
        %1041 = vmatprep.subr.mxu0 0.0
        %1042 = vmatpush1.msra.mxu0 0.0
        %1043 = vmatprep.subr.mxu0 0.0
        %1044 = vmatpush1.msra.mxu0 0.0
        %1045 = vmatprep.mubr.f32.mxu0 0.0
        %1046 = vmatmul.mubr.f32.gmra.mrb[0].mxu0 %v794
        %v1047 = vpop.f32.mrb[0].mxu0
        %v1048 = vadd.f32 0.0, %v1047
        %v1049 = vpop.f32.mrb[0].mxu0
        %1050 = vmatprep.mubr.f32.mxu0 0.0
        %1051 = vmatmul.mubr.f32.gmra.mrb[0].mxu0 %v797
        %v1052 = vpop.f32.mrb[0].mxu0
        %v1053 = vadd.f32 0.0, %v1052
        %v1054 = vpop.f32.mrb[0].mxu0
        %1055 = vdwg.mxu0
        %s1056 = sld [smem:[#allocation5 + $0x2]]
        %v1057 = vstv %s1056
        %v1058 = vmul.f32 %v1048, %v1057
        %v1059 = vmul.f32 %v1053, %v1057
        %s1060 = sld [smem:[#allocation7 + $0x2]]
        %v1061 = vstv %s1060
        %v1062 = vadd.f32 %v1058, %v1061
        %v1063 = vadd.f32 %v1059, %v1061
        %v1064 = vmax.f32 %v1062, 0.0
        %v1065 = vmax.f32 %v1063, 0.0
        %s1066 = scalar_lea.vmem %s309, 32 [#allocation8]
        %1067 = vst.msk [vmem:[%s1066] sm:$0xff] %vm884, %v1064
        %1068 = vst.msk [vmem:[%s1066 + $0x8] sm:$0xff] %vm884, %v1065
        %s1069 = scalar_lea.vmem [#allocation2], 48
        %v1070 = vld [vmem:[%s1069] sm:$0xff]
        %v1071 = vld [vmem:[%s1069 + $0x8] sm:$0xff]
        %1072 = vmatprep.subr.mxu0 0.0
        %1073 = vmatpush1.msra.mxu0 %v1070
        %1074 = vmatprep.subr.mxu0 0.0
        %1075 = vmatpush1.msra.mxu0 %v1071
        %1076 = vmatprep.subr.mxu0 0.0
        %1077 = vmatpush1.msra.mxu0 0.0
        %1078 = vmatprep.subr.mxu0 0.0
        %1079 = vmatpush1.msra.mxu0 0.0
        %1080 = vmatprep.subr.mxu0 0.0
        %1081 = vmatpush1.msra.mxu0 0.0
        %1082 = vmatprep.subr.mxu0 0.0
        %1083 = vmatpush1.msra.mxu0 0.0
        %1084 = vmatprep.subr.mxu0 0.0
        %1085 = vmatpush1.msra.mxu0 0.0
        %1086 = vmatprep.subr.mxu0 0.0
        %1087 = vmatpush1.msra.mxu0 0.0
        %1088 = vmatprep.subr.mxu0 0.0
        %1089 = vmatpush1.msra.mxu0 0.0
        %1090 = vmatprep.subr.mxu0 0.0
        %1091 = vmatpush1.msra.mxu0 0.0
        %1092 = vmatprep.subr.mxu0 0.0
        %1093 = vmatpush1.msra.mxu0 0.0
        %1094 = vmatprep.subr.mxu0 0.0
        %1095 = vmatpush1.msra.mxu0 0.0
        %1096 = vmatprep.subr.mxu0 0.0
        %1097 = vmatpush1.msra.mxu0 0.0
        %1098 = vmatprep.subr.mxu0 0.0
        %1099 = vmatpush1.msra.mxu0 0.0
        %1100 = vmatprep.subr.mxu0 0.0
        %1101 = vmatpush1.msra.mxu0 0.0
        %1102 = vmatprep.subr.mxu0 0.0
        %1103 = vmatpush1.msra.mxu0 0.0
        %1104 = vmatprep.subr.mxu0 0.0
        %1105 = vmatpush1.msra.mxu0 0.0
        %1106 = vmatprep.subr.mxu0 0.0
        %1107 = vmatpush1.msra.mxu0 0.0
        %1108 = vmatprep.subr.mxu0 0.0
        %1109 = vmatpush1.msra.mxu0 0.0
        %1110 = vmatprep.subr.mxu0 0.0
        %1111 = vmatpush1.msra.mxu0 0.0
        %1112 = vmatprep.subr.mxu0 0.0
        %1113 = vmatpush1.msra.mxu0 0.0
        %1114 = vmatprep.subr.mxu0 0.0
        %1115 = vmatpush1.msra.mxu0 0.0
        %1116 = vmatprep.subr.mxu0 0.0
        %1117 = vmatpush1.msra.mxu0 0.0
        %1118 = vmatprep.subr.mxu0 0.0
        %1119 = vmatpush1.msra.mxu0 0.0
        %1120 = vmatprep.subr.mxu0 0.0
        %1121 = vmatpush1.msra.mxu0 0.0
        %1122 = vmatprep.subr.mxu0 0.0
        %1123 = vmatpush1.msra.mxu0 0.0
        %1124 = vmatprep.subr.mxu0 0.0
        %1125 = vmatpush1.msra.mxu0 0.0
        %1126 = vmatprep.subr.mxu0 0.0
        %1127 = vmatpush1.msra.mxu0 0.0
        %1128 = vmatprep.subr.mxu0 0.0
        %1129 = vmatpush1.msra.mxu0 0.0
        %1130 = vmatprep.subr.mxu0 0.0
        %1131 = vmatpush1.msra.mxu0 0.0
        %1132 = vmatprep.subr.mxu0 0.0
        %1133 = vmatpush1.msra.mxu0 0.0
        %1134 = vmatprep.subr.mxu0 0.0
        %1135 = vmatpush1.msra.mxu0 0.0
        %1136 = vmatprep.mubr.f32.mxu0 0.0
        %1137 = vmatmul.mubr.f32.gmra.mrb[0].mxu0 %v794
        %v1138 = vpop.f32.mrb[0].mxu0
        %v1139 = vadd.f32 0.0, %v1138
        %v1140 = vpop.f32.mrb[0].mxu0
        %1141 = vmatprep.mubr.f32.mxu0 0.0
        %1142 = vmatmul.mubr.f32.gmra.mrb[0].mxu0 %v797
        %v1143 = vpop.f32.mrb[0].mxu0
        %v1144 = vadd.f32 0.0, %v1143
        %v1145 = vpop.f32.mrb[0].mxu0
        %1146 = vdwg.mxu0
        %s1147 = sld [smem:[#allocation5 + $0x3]]
        %v1148 = vstv %s1147
        %v1149 = vmul.f32 %v1139, %v1148
        %v1150 = vmul.f32 %v1144, %v1148
        %s1151 = sld [smem:[#allocation7 + $0x3]]
        %v1152 = vstv %s1151
        %v1153 = vadd.f32 %v1149, %v1152
        %v1154 = vadd.f32 %v1150, %v1152
        %v1155 = vmax.f32 %v1153, 0.0
        %v1156 = vmax.f32 %v1154, 0.0
        %s1157 = scalar_lea.vmem %s309, 48 [#allocation8]
        %1158 = vst.msk [vmem:[%s1157] sm:$0xff] %vm884, %v1155
        %1159 = vst.msk [vmem:[%s1157 + $0x8] sm:$0xff] %vm884, %v1156
        %s1160 = sand.u32 %s177, 1
        %s1161 = sand.u32 %s177, 1
        %s1162 = smul.addr %s1161, 64
        %s1163 = scalar_lea.vmem [#allocation8], %s1162
        // Predicated region
        $region61: #{double_factorized_increase.5} parent=43 // pred_check
          %p1164 = pneg %p187
        $region62: #{double_factorized_increase.5} parent=43 // pred_check_branch
          %1166 = sbr.rel (%p1164) target = $region64
        $region63: #{double_factorized_increase.5} parent=43 // pred_region
          %s1167 = smul.u32 2, %s24
          %s1168 = smul.addr %s23, 16
          %s1169 = sadd.s32 %s1167, %s1168
          %s1170 = smul.addr %s1169, 8
          %s1171 = scalar_lea.vmem %s6, %s1170
          // Predicated region
          $region65: #{double_factorized_increase.5} parent=63 // pred_check
            _
          $region66: #{double_factorized_increase.5} parent=63 // pred_check_branch
            %1173 = sbr.rel (0) target = $region68
          $region67: #{double_factorized_increase.5} parent=63 // pred_region
            // Predicated region
            $region69: #{double_factorized_increase.5} parent=67 // pred_check
              _
            $region70: #{double_factorized_increase.5} parent=67 // pred_check_branch
              %1175 = sbr.rel (0) target = $region72
            $region71: #{double_factorized_increase.5} parent=67 // pred_region
              // Predicated region
              $region84: #{double_factorized_increase.5} parent=71 // pred_check
                _
              $region85: #{double_factorized_increase.5} parent=71 // pred_check_branch
                %1204 = sbr.rel (0) target = $region87
              $region86: #{double_factorized_increase.5} parent=71 // pred_region
                loop: start=0, step=1, limit=1
                $region88: #{double_factorized_increase.5} parent=86 // loop_pre_header
                  _
                $region89: #{double_factorized_increase.5} parent=86 // loop_header
                  %s1206 = sphi 0, %s1210
                  %p1207 = scmp.ge.s32.totalorder %s1206, 1
                  %s1211 = sphi %s1163, %s1163
                  %s1212 = sphi %s1171, %s1171
                $region90: #{double_factorized_increase.5} parent=86 // loop_header_branch
                  %1209 = sbr.rel (%p1207) target = $region94
                $region91: #{double_factorized_increase.5} parent=86 // loop_body
                  %v1213 = vld [vmem:[%s1211] sm:$0xff]
                  %1214 = vst [vmem:[%s1212] sm:$0xff] %v1213
                  %v1215 = vld [vmem:[%s1211 + $0x8] sm:$0xff]
                  %1216 = vst [vmem:[%s1212 + $0x8] sm:$0xff] %v1215
                  %v1217 = vld [vmem:[%s1211 + $0x10] sm:$0xff]
                  %1218 = vst [vmem:[%s1212 + $0x20] sm:$0xff] %v1217
                  %v1219 = vld [vmem:[%s1211 + $0x18] sm:$0xff]
                  %1220 = vst [vmem:[%s1212 + $0x28] sm:$0xff] %v1219
                  %v1221 = vld [vmem:[%s1211 + $0x20] sm:$0xff]
                  %1222 = vst [vmem:[%s1212 + $0x40] sm:$0xff] %v1221
                  %v1223 = vld [vmem:[%s1211 + $0x28] sm:$0xff]
                  %1224 = vst [vmem:[%s1212 + $0x48] sm:$0xff] %v1223
                  %v1225 = vld [vmem:[%s1211 + $0x30] sm:$0xff]
                  %1226 = vst [vmem:[%s1212 + $0x60] sm:$0xff] %v1225
                  %v1227 = vld [vmem:[%s1211 + $0x38] sm:$0xff]
                  %1228 = vst [vmem:[%s1212 + $0x68] sm:$0xff] %v1227
                $region92: #{double_factorized_increase.5} parent=86 // loop_footer
                  %s1210 = sadd.s32 1, %s1206
                $region93: #{double_factorized_increase.5} parent=86 // loop_footer_branch
                  %1205 = sbr.rel target = $region89
                $region94: #{double_factorized_increase.5} parent=86 // loop_exit
                  _
              $region87: #{double_factorized_increase.5} parent=71 // pred_fallthru
                _
              // Predicated region
              $region95: #{double_factorized_increase.5} parent=71 // pred_check
                _
              $region96: #{double_factorized_increase.5} parent=71 // pred_check_branch
                %1230 = sbr.rel target = $region98
              $region97: #{double_factorized_increase.5} parent=71 // pred_region
                _
              $region98: #{double_factorized_increase.5} parent=71 // pred_fallthru
                _
            $region72: #{double_factorized_increase.5} parent=67 // pred_fallthru
              _
            // Predicated region
            $region73: #{double_factorized_increase.5} parent=67 // pred_check
              _
            $region74: #{double_factorized_increase.5} parent=67 // pred_check_branch
              %1177 = sbr.rel target = $region76
            $region75: #{double_factorized_increase.5} parent=67 // pred_region
              loop: start=0, step=1, limit=1
              $region77: #{double_factorized_increase.5} parent=75 // loop_pre_header
                _
              $region78: #{double_factorized_increase.5} parent=75 // loop_header
                %s1180 = sphi 0, %s1184
                %p1181 = scmp.ge.s32.totalorder %s1180, 1
                %s1185 = sphi %s1163, %s1163
                %s1186 = sphi %s1171, %s1171
              $region79: #{double_factorized_increase.5} parent=75 // loop_header_branch
                %1183 = sbr.rel (%p1181) target = $region83
              $region80: #{double_factorized_increase.5} parent=75 // loop_body
                %v1187 = vld [vmem:[%s1185] sm:$0xff]
                %1188 = vst [vmem:[%s1186] sm:$0xff] %v1187
                %v1189 = vld [vmem:[%s1185 + $0x8] sm:$0xff]
                %1190 = vst [vmem:[%s1186 + $0x8] sm:$0xff] %v1189
                %v1191 = vld [vmem:[%s1185 + $0x10] sm:$0xff]
                %1192 = vst [vmem:[%s1186 + $0x20] sm:$0xff] %v1191
                %v1193 = vld [vmem:[%s1185 + $0x18] sm:$0xff]
                %1194 = vst [vmem:[%s1186 + $0x28] sm:$0xff] %v1193
                %v1195 = vld [vmem:[%s1185 + $0x20] sm:$0xff]
                %1196 = vst [vmem:[%s1186 + $0x40] sm:$0xff] %v1195
                %v1197 = vld [vmem:[%s1185 + $0x28] sm:$0xff]
                %1198 = vst [vmem:[%s1186 + $0x48] sm:$0xff] %v1197
                %v1199 = vld [vmem:[%s1185 + $0x30] sm:$0xff]
                %1200 = vst [vmem:[%s1186 + $0x60] sm:$0xff] %v1199
                %v1201 = vld [vmem:[%s1185 + $0x38] sm:$0xff]
                %1202 = vst [vmem:[%s1186 + $0x68] sm:$0xff] %v1201
              $region81: #{double_factorized_increase.5} parent=75 // loop_footer
                %s1184 = sadd.s32 1, %s1180
              $region82: #{double_factorized_increase.5} parent=75 // loop_footer_branch
                %1179 = sbr.rel target = $region78
              $region83: #{double_factorized_increase.5} parent=75 // loop_exit
                _
            $region76: #{double_factorized_increase.5} parent=67 // pred_fallthru
              _
          $region68: #{double_factorized_increase.5} parent=63 // pred_fallthru
            _
          %1231 = vnop
        $region64: #{double_factorized_increase.5} parent=43 // pred_fallthru
          _
      $region44: #{double_factorized_increase.5} parent=5 // pred_fallthru
        _
      %p1232 = scmp.le.s32.totalorder 2, %s14
      // Predicated region
      $region99: #{double_factorized_increase.5} parent=5 // pred_check
        %p1233 = pneg %p1232
      $region100: #{double_factorized_increase.5} parent=5 // pred_check_branch
        %1235 = sbr.rel (%p1233) target = $region102
      $region101: #{double_factorized_increase.5} parent=5 // pred_region
        %s1236 = ssub.s32 %s14, 2
        // Predicated region
        $region103: #{double_factorized_increase.5} parent=101 // pred_check
          %p1237 = pneg %p193
        $region104: #{double_factorized_increase.5} parent=101 // pred_check_branch
          %1239 = sbr.rel (%p1237) target = $region106
        $region105: #{double_factorized_increase.5} parent=101 // pred_region
          %s1240 = sand.u32 %s178, 1
          %s1241 = sand.u32 %s178, 1
          %s1242 = smul.addr %s1241, 64
          %s1243 = scalar_lea.vmem [#allocation8], %s1242
        $region106: #{double_factorized_increase.5} parent=101 // pred_fallthru
          _
      $region102: #{double_factorized_increase.5} parent=5 // pred_fallthru
        _
    $region6: #{double_factorized_increase.5} parent=1 // loop_footer
      %s18 = sadd.s32 1, %s14
    $region7: #{double_factorized_increase.5} parent=1 // loop_footer_branch
      %13 = sbr.rel target = $region3
    $region8: #{double_factorized_increase.5} parent=1 // loop_exit
      _
    %1244 = vsyncpa [#allocation4], 1
    %s1245 = scalar_lea.sflag [#allocation4], 1
    %1246 = vsyncpa %s1245, 1
    %1247 = vsyncpa [#allocation6], 1

// kernel: double_factorized_increase.4
$region0: #{double_factorized_increase.4}
  #allocation0 [shape = 'u32[]', space=smem, size = 0x4, offset = 0x4, fixed_abs, tag = 'smem constant byte address 0x4 - core index']
  #allocation1 [shape = 'u32[144,128]{1,0:T(1,128)}', space=vmem, size = 0x12000, scoped, tag = 'internal scratch']
  #allocation2 [shape = 'f32[4,16,32]{2,1,0:T(8,128)}', space=vmem, size = 0x8000, scoped, tag = 'scratch operand']
  %s0 = inlined_call_operand.hbm [shape: f32[2,4,16,16], index: 0, kind: input, shape index: {}]
  %s1 = inlined_call_operand.hbm [shape: f32[4,4], index: 1, kind: input, shape index: {}]
  %s2 = inlined_call_operand.hbm [shape: f32[16,32], index: 2, kind: input, shape index: {}]
  %s3 = inlined_call_operand.vmem [shape: f32[32,16], index: 3, kind: input, shape index: {}]
  %s4 = inlined_call_operand.vmem [shape: f32[8,32], index: 4, kind: output, shape index: {}]
  %s5 = sld [smem:[#allocation0]]
  $region69: #{double_factorized_increase.4} parent=0
    _
  %s7 = ssub.s32 1, %s5
  %s8 = scalar_select 0, %s7, %s5
  $region1: #{double_factorized_increase.4} parent=0
    #allocation3 [shape = 'u8[65536]{0}', space=vmem, size = 0x10000, scoped, tag = 'input window, operand 0']
    #allocation4 [shape = 's32[2]{0}', space=sflag, size = 0x8, scoped, tag = 'scoped memory for double_factorized_increase.4']
    #allocation5 [shape = 's32[2]{0}', space=sflag, size = 0x8, scoped, tag = 'scoped memory for double_factorized_increase.4']
    #allocation6 [shape = 'u8[2048]{0}', space=smem, size = 0x800, scoped, tag = 'input window, operand 1, single buffered']
    #allocation7 [shape = 'u8[8192]{0}', space=vmem, size = 0x2000, scoped, tag = 'input window, operand 2, single buffered']
    #allocation8 [shape = 's32[1]{0}', space=sflag, size = 0x4, scoped, tag = 'scoped memory for double_factorized_increase.4']
    %9 = vsyncpa [#allocation4], 0
    %s10 = scalar_lea.sflag [#allocation4], 1
    %11 = vsyncpa %s10, 0
    %12 = vsyncpa [#allocation5], 0
    %13 = vsyncpa [#allocation8], 0
    loop: start=0, step=1, limit=6
    $region2: #{double_factorized_increase.4} parent=1 // loop_pre_header
      _
    $region3: #{double_factorized_increase.4} parent=1 // loop_header
      %s15 = sphi 0, %s19
      %p16 = scmp.ge.s32.totalorder %s15, 6
      %s22 = sphi 0, %s34
      %s23 = sphi 0, %s30
      %s24 = sphi 0, %s22
      %s25 = sphi 0, %s23
      %s26 = sphi 0, %s24
      %s27 = sphi 0, %s25
      %s37 = sphi 0, %s39
      %s40 = sphi 0, %s37
      %s41 = sphi 0, %s40
      %s57 = sphi 0, %s41
      %s61 = sphi 0, %s61
      %s63 = sphi 0, %s61
      %s64 = sphi 0, %s63
      %s78 = sphi 0, %s64
      %s82 = sphi 0, %s82
      %s84 = sphi 0, %s82
      %s85 = sphi 0, %s84
      %s99 = sphi 0, %s85
      %s105 = sphi 0, %s107
      %s108 = sphi 0, %s105
      %s109 = sphi 0, %s108
      %s125 = sphi 0, %s109
      %s129 = sphi 0, %s129
      %s131 = sphi 0, %s129
      %s132 = sphi 0, %s131
      %s146 = sphi 0, %s132
    $region4: #{double_factorized_increase.4} parent=1 // loop_header_branch
      %18 = sbr.rel (%p16) target = $region8
    $region5: #{double_factorized_increase.4} parent=1 // loop_body
      %s20 = ssub.s32 %s15, 1
      %s21 = ssub.s32 %s15, 2
      %s28 = sadd.s32 1, %s23
      %p29 = scmp.ge.s32.totalorder %s28, 2
      %s30 = scalar_select %p29, 0, %s28
      %s31 = sadd.s32 1, %s22
      %s32 = scalar_select %p29, %s31, %s22
      %p33 = scmp.ge.s32.totalorder %s32, 2
      %s34 = scalar_select %p33, 0, %s32
      %s35 = ssub.s32 %s22, %s34
      %p36 = scmp.eq.s32.totalorder %s35, 0
      %s38 = sadd.s32 %s37, 1
      %s39 = scalar_select %p36, %s37, %s38
      %p42 = pneg %p36
      %p43 = scmp.eq.s32.totalorder %s15, 3
      %p44 = por %p42, %p43
      %p45 = scmp.ne.s32.totalorder %s37, %s40
      %p46 = scmp.eq.s32.totalorder %s15, 0
      %p47 = por %p45, %p46
      %p48 = scmp.ne.s32.totalorder %s37, %s40
      %p49 = scmp.eq.s32.totalorder %s20, 3
      %p50 = por %p48, %p49
      %p51 = scmp.ne.s32.totalorder %s40, %s41
      %p52 = scmp.eq.s32.totalorder %s20, 0
      %p53 = por %p51, %p52
      %p54 = scmp.ne.s32.totalorder %s40, %s41
      %p55 = scmp.eq.s32.totalorder %s21, 3
      %p56 = por %p54, %p55
      %p58 = scmp.ne.s32.totalorder %s41, %s57
      %p59 = scmp.eq.s32.totalorder %s21, 0
      %p60 = por %p58, %p59
      %s62 = sadd.s32 %s61, 1
      %p65 = scmp.eq.s32.totalorder %s15, 3
      %p66 = scmp.ne.s32.totalorder %s61, %s63
      %p67 = scmp.eq.s32.totalorder %s15, 0
      %p68 = por %p66, %p67
      %p69 = scmp.ne.s32.totalorder %s61, %s63
      %p70 = scmp.eq.s32.totalorder %s20, 3
      %p71 = por %p69, %p70
      %p72 = scmp.ne.s32.totalorder %s63, %s64
      %p73 = scmp.eq.s32.totalorder %s20, 0
      %p74 = por %p72, %p73
      %p75 = scmp.ne.s32.totalorder %s63, %s64
      %p76 = scmp.eq.s32.totalorder %s21, 3
      %p77 = por %p75, %p76
      %p79 = scmp.ne.s32.totalorder %s64, %s78
      %p80 = scmp.eq.s32.totalorder %s21, 0
      %p81 = por %p79, %p80
      %s83 = sadd.s32 %s82, 1
      %p86 = scmp.eq.s32.totalorder %s15, 3
      %p87 = scmp.ne.s32.totalorder %s82, %s84
      %p88 = scmp.eq.s32.totalorder %s15, 0
      %p89 = por %p87, %p88
      %p90 = scmp.ne.s32.totalorder %s82, %s84
      %p91 = scmp.eq.s32.totalorder %s20, 3
      %p92 = por %p90, %p91
      %p93 = scmp.ne.s32.totalorder %s84, %s85
      %p94 = scmp.eq.s32.totalorder %s20, 0
      %p95 = por %p93, %p94
      %p96 = scmp.ne.s32.totalorder %s84, %s85
      %p97 = scmp.eq.s32.totalorder %s21, 3
      %p98 = por %p96, %p97
      %p100 = scmp.ne.s32.totalorder %s85, %s99
      %p101 = scmp.eq.s32.totalorder %s21, 0
      %p102 = por %p100, %p101
      %s103 = ssub.s32 %s23, %s30
      %p104 = scmp.eq.s32.totalorder %s103, 0
      %s106 = sadd.s32 %s105, 1
      %s107 = scalar_select %p104, %s105, %s106
      %p110 = pneg %p104
      %p111 = scmp.eq.s32.totalorder %s15, 3
      %p112 = por %p110, %p111
      %p113 = scmp.ne.s32.totalorder %s105, %s108
      %p114 = scmp.eq.s32.totalorder %s15, 0
      %p115 = por %p113, %p114
      %p116 = scmp.ne.s32.totalorder %s105, %s108
      %p117 = scmp.eq.s32.totalorder %s20, 3
      %p118 = por %p116, %p117
      %p119 = scmp.ne.s32.totalorder %s108, %s109
      %p120 = scmp.eq.s32.totalorder %s20, 0
      %p121 = por %p119, %p120
      %p122 = scmp.ne.s32.totalorder %s108, %s109
      %p123 = scmp.eq.s32.totalorder %s21, 3
      %p124 = por %p122, %p123
      %p126 = scmp.ne.s32.totalorder %s109, %s125
      %p127 = scmp.eq.s32.totalorder %s21, 0
      %p128 = por %p126, %p127
      %s130 = sadd.s32 %s129, 1
      %p133 = scmp.eq.s32.totalorder %s15, 3
      %p134 = scmp.ne.s32.totalorder %s129, %s131
      %p135 = scmp.eq.s32.totalorder %s15, 0
      %p136 = por %p134, %p135
      %p137 = scmp.ne.s32.totalorder %s129, %s131
      %p138 = scmp.eq.s32.totalorder %s20, 3
      %p139 = por %p137, %p138
      %p140 = scmp.ne.s32.totalorder %s131, %s132
      %p141 = scmp.eq.s32.totalorder %s20, 0
      %p142 = por %p140, %p141
      %p143 = scmp.ne.s32.totalorder %s131, %s132
      %p144 = scmp.eq.s32.totalorder %s21, 3
      %p145 = por %p143, %p144
      %p147 = scmp.ne.s32.totalorder %s132, %s146
      %p148 = scmp.eq.s32.totalorder %s21, 0
      %p149 = por %p147, %p148
      %p150 = scmp.le.s32.totalorder 1, %s15
      %p151 = scmp.lt.s32.totalorder %s15, 5
      %p152 = pnand %p150, %p151
      %p153 = pneg %p152
      // Predicated region
      $region9: #{double_factorized_increase.4} parent=5 // pred_check
        _
      $region10: #{double_factorized_increase.4} parent=5 // pred_check_branch
        %155 = sbr.rel (%p152) target = $region12
      $region11: #{double_factorized_increase.4} parent=5 // pred_region
        %s156 = ssub.s32 %s15, 1
        // Predicated region
        $region13: #{double_factorized_increase.4} parent=11 // pred_check
          %p157 = pneg %p74
        $region14: #{double_factorized_increase.4} parent=11 // pred_check_branch
          %159 = sbr.rel (%p157) target = $region16
        $region15: #{double_factorized_increase.4} parent=11 // pred_region
          %s161 = ssub.s32 64, 64
          %162 = vsyncadd [#allocation5], %s161
          %165 = dma.hbm_to_smem %s1, 64, [#allocation6], [#allocation5]
        $region16: #{double_factorized_increase.4} parent=11 // pred_fallthru
          _
        // Predicated region
        $region17: #{double_factorized_increase.4} parent=11 // pred_check
          %p166 = pneg %p95
        $region18: #{double_factorized_increase.4} parent=11 // pred_check_branch
          %168 = sbr.rel (%p166) target = $region20
        $region19: #{double_factorized_increase.4} parent=11 // pred_region
          %s170 = ssub.s32 256, 256
          %171 = vsyncadd [#allocation8], %s170
          %s172 = sshll.u32 [#allocation7], 4
          %s173 = int_to_ptr.vmem [resolvable:$true] %s172
          %178 = dma.hbm_to_vmem [thread:$0]  %s2, 256, %s173, [#allocation8], 128, 128, 8
        $region20: #{double_factorized_increase.4} parent=11 // pred_fallthru
          _
      $region12: #{double_factorized_increase.4} parent=5 // pred_fallthru
        _
      %p179 = scmp.lt.s32.totalorder %s15, 4
      // Predicated region
      $region21: #{double_factorized_increase.4} parent=5 // pred_check
        %p180 = pneg %p179
      $region22: #{double_factorized_increase.4} parent=5 // pred_check_branch
        %182 = sbr.rel (%p180) target = $region24
      $region23: #{double_factorized_increase.4} parent=5 // pred_region
        // Predicated region
        $region25: #{double_factorized_increase.4} parent=23 // pred_check
          %p183 = pneg %p47
        $region26: #{double_factorized_increase.4} parent=23 // pred_check_branch
          %185 = sbr.rel (%p183) target = $region28
        $region27: #{double_factorized_increase.4} parent=23 // pred_region
          %s186 = sand.u32 %s37, 1
          %s187 = scalar_lea.sflag [#allocation4], %s186
          %s188 = sand.u32 %s37, 1
          %s189 = smul.addr %s188, 64
          %s190 = scalar_lea.vmem [#allocation3], %s189
          %s192 = ssub.s32 1024, 1024
          %193 = vsyncadd %s187, %s192
          %s194 = smul.addr %s22, 8
          %s195 = smul.addr %s194, 128
          %s196 = scalar_lea.hbm %s0, %s195
          %s197 = sshll.u32 %s190, 4
          %s198 = int_to_ptr.vmem [resolvable:$true] %s197
          %203 = dma.hbm_to_vmem [thread:$0]  %s196, 1024, %s198, %s187, 128, 128, 8
        $region28: #{double_factorized_increase.4} parent=23 // pred_fallthru
          _
        // Predicated region
        $region29: #{double_factorized_increase.4} parent=23 // pred_check
          %p204 = pneg %p115
        $region30: #{double_factorized_increase.4} parent=23 // pred_check_branch
          %206 = sbr.rel (%p204) target = $region32
        $region31: #{double_factorized_increase.4} parent=23 // pred_region
          %s207 = smul.u32 2, %s23
          %p208 = scmp.lt.s32.totalorder %s207, 3
          %s209 = scalar_select %p208, %s207, 3
          %s210 = smul.addr %s209, 8
          %s211 = scalar_lea.vmem %s3, %s210
          %s212 = smul.u32 2, %s23
        $region32: #{double_factorized_increase.4} parent=23 // pred_fallthru
          _
      $region24: #{double_factorized_increase.4} parent=5 // pred_fallthru
        _
      %p213 = scmp.le.s32.totalorder 1, %s15
      %p214 = scmp.lt.s32.totalorder %s15, 5
      %p215 = pnand %p213, %p214
      %p216 = pneg %p215
      // Predicated region
      $region33: #{double_factorized_increase.4} parent=5 // pred_check
        _
      $region34: #{double_factorized_increase.4} parent=5 // pred_check_branch
        %218 = sbr.rel (%p215) target = $region36
      $region35: #{double_factorized_increase.4} parent=5 // pred_region
        %s219 = ssub.s32 %s15, 1
        %s220 = sand.u32 %s40, 1
        %s221 = scalar_lea.sflag [#allocation4], %s220
        %s222 = sand.u32 %s40, 1
        %s223 = smul.addr %s222, 64
        %s224 = scalar_lea.vmem [#allocation3], %s223
        // Predicated region
        $region37: #{double_factorized_increase.4} parent=35 // pred_check
          %p225 = pneg %p53
        $region38: #{double_factorized_increase.4} parent=35 // pred_check_branch
          %227 = sbr.rel (%p225) target = $region40
        $region39: #{double_factorized_increase.4} parent=35 // pred_region
          %228 = dma.done %s221, 1024
        $region40: #{double_factorized_increase.4} parent=35 // pred_fallthru
          _
        // Predicated region
        $region41: #{double_factorized_increase.4} parent=35 // pred_check
          %p229 = pneg %p74
        $region42: #{double_factorized_increase.4} parent=35 // pred_check_branch
          %231 = sbr.rel (%p229) target = $region44
        $region43: #{double_factorized_increase.4} parent=35 // pred_region
          %232 = dma.done [#allocation5], 64
        $region44: #{double_factorized_increase.4} parent=35 // pred_fallthru
          _
        // Predicated region
        $region45: #{double_factorized_increase.4} parent=35 // pred_check
          %p233 = pneg %p95
        $region46: #{double_factorized_increase.4} parent=35 // pred_check_branch
          %235 = sbr.rel (%p233) target = $region48
        $region47: #{double_factorized_increase.4} parent=35 // pred_region
          %236 = dma.done [#allocation8], 256
        $region48: #{double_factorized_increase.4} parent=35 // pred_fallthru
          _
        %237 = sfence
        %s238 = sand.u32 %s40, 1
        %s239 = scalar_lea.sflag [#allocation4], %s238
        %s240 = sand.u32 %s40, 1
        %s241 = smul.addr %s240, 64
        %s242 = scalar_lea.vmem [#allocation3], %s241
        %p243 = pneg %p53
        %p244 = pneg %p50
        %p245 = pneg %p74
        %p246 = pneg %p71
        %p247 = pneg %p95
        %p248 = pneg %p92
        %s249 = smul.u32 2, %s25
        %p250 = scmp.lt.s32.totalorder %s249, 3
        %s251 = scalar_select %p250, %s249, 3
        %s252 = smul.addr %s251, 8
        %s253 = scalar_lea.vmem %s3, %s252
        %p254 = pneg %p121
        %p255 = pneg %p118
        %p256 = pneg %p142
        %p257 = pneg %p139
        %s258 = smul.u32 2, %s25
        %p259 = scmp.lt.s32.totalorder %s258, 3
        %s260 = scalar_select %p259, %s258, 3
        %s261 = smul.addr %s260, 8
        %s262 = scalar_lea.vmem %s3, %s261
        %s263 = smul.u32 2, %s25
        %p264 = scmp.eq.s32.totalorder %s24, 0
        %p265 = scmp.eq.s32.totalorder %s25, 0
        %p266 = pnand %p264, %p265
        %p267 = pneg %p266
        // Predicated region
        $region49: #{double_factorized_increase.4} parent=35 // pred_check
          _
        $region50: #{double_factorized_increase.4} parent=35 // pred_check_branch
          %269 = sbr.rel (%p266) target = $region52
        $region51: #{double_factorized_increase.4} parent=35 // pred_region
          %vm270 = vcmask 261120
          %271 = vst.msk [vmem:[%s4] sm:$0xff] %vm270, 0.0
        $region52: #{double_factorized_increase.4} parent=35 // pred_fallthru
          _
        // Predicated region
        $region53: #{double_factorized_increase.4} parent=35 // pred_check
          %p272 = pneg %p265
        $region54: #{double_factorized_increase.4} parent=35 // pred_check_branch
          %274 = sbr.rel (%p272) target = $region56
        $region55: #{double_factorized_increase.4} parent=35 // pred_region
          %v275 = vld [vmem:[#allocation7] sm:$0xff]
          %v276 = vld [vmem:[#allocation7 + $0x8] sm:$0xff]
          %s277 = sld [smem:[#allocation6]]
          %v278 = vld [vmem:[%s224] sm:$0xff]
          %v279 = vld [vmem:[%s224 + $0x8] sm:$0xff]
          %v280 = vstv %s277
          %v281 = vmul.f32 %v280, %v278
          %v282 = vmul.f32 %v280, %v279
          %s283 = sld [smem:[#allocation6 + $0x1]]
          %s284 = scalar_lea.vmem %s224, 16 [#allocation3]
          %v285 = vld [vmem:[%s284] sm:$0xff]
          %v286 = vld [vmem:[%s284 + $0x8] sm:$0xff]
          %v287 = vstv %s283
          %v288 = vmul.f32 %v287, %v285
          %v289 = vmul.f32 %v287, %v286
          %v290 = vadd.f32 %v281, %v288
          %v291 = vadd.f32 %v282, %v289
          %s292 = sld [smem:[#allocation6 + $0x2]]
          %s293 = scalar_lea.vmem %s224, 32 [#allocation3]
          %v294 = vld [vmem:[%s293] sm:$0xff]
          %v295 = vld [vmem:[%s293 + $0x8] sm:$0xff]
          %v296 = vstv %s292
          %v297 = vmul.f32 %v296, %v294
          %v298 = vmul.f32 %v296, %v295
          %v299 = vadd.f32 %v290, %v297
          %v300 = vadd.f32 %v291, %v298
          %s301 = sld [smem:[#allocation6 + $0x3]]
          %s302 = scalar_lea.vmem %s224, 48 [#allocation3]
          %v303 = vld [vmem:[%s302] sm:$0xff]
          %v304 = vld [vmem:[%s302 + $0x8] sm:$0xff]
          %v305 = vstv %s301
          %v306 = vmul.f32 %v305, %v303
          %v307 = vmul.f32 %v305, %v304
          %v308 = vadd.f32 %v299, %v306
          %v309 = vadd.f32 %v300, %v307
          %vm310 = vcmask 130048
          %v312 = vsel %vm310, %v308, 0
          %v315 = vsel %vm310, %v309, 0
          %317 = vmatprep.subr.mxu0 0.0
          %318 = vmatpush1.msra.mxu0 %v275
          %319 = vmatprep.subr.mxu0 0.0
          %320 = vmatpush1.msra.mxu0 %v276
          %321 = vmatprep.subr.mxu0 0.0
          %322 = vmatpush1.msra.mxu0 0.0
          %323 = vmatprep.subr.mxu0 0.0
          %324 = vmatpush1.msra.mxu0 0.0
          %325 = vmatprep.subr.mxu0 0.0
          %326 = vmatpush1.msra.mxu0 0.0
          %327 = vmatprep.subr.mxu0 0.0
          %328 = vmatpush1.msra.mxu0 0.0
          %329 = vmatprep.subr.mxu0 0.0
          %330 = vmatpush1.msra.mxu0 0.0
          %331 = vmatprep.subr.mxu0 0.0
          %332 = vmatpush1.msra.mxu0 0.0
          %333 = vmatprep.subr.mxu0 0.0
          %334 = vmatpush1.msra.mxu0 0.0
          %335 = vmatprep.subr.mxu0 0.0
          %336 = vmatpush1.msra.mxu0 0.0
          %337 = vmatprep.subr.mxu0 0.0
          %338 = vmatpush1.msra.mxu0 0.0
          %339 = vmatprep.subr.mxu0 0.0
          %340 = vmatpush1.msra.mxu0 0.0
          %341 = vmatprep.subr.mxu0 0.0
          %342 = vmatpush1.msra.mxu0 0.0
          %343 = vmatprep.subr.mxu0 0.0
          %344 = vmatpush1.msra.mxu0 0.0
          %345 = vmatprep.subr.mxu0 0.0
          %346 = vmatpush1.msra.mxu0 0.0
          %347 = vmatprep.subr.mxu0 0.0
          %348 = vmatpush1.msra.mxu0 0.0
          %349 = vmatprep.subr.mxu0 0.0
          %350 = vmatpush1.msra.mxu0 0.0
          %351 = vmatprep.subr.mxu0 0.0
          %352 = vmatpush1.msra.mxu0 0.0
          %353 = vmatprep.subr.mxu0 0.0
          %354 = vmatpush1.msra.mxu0 0.0
          %355 = vmatprep.subr.mxu0 0.0
          %356 = vmatpush1.msra.mxu0 0.0
          %357 = vmatprep.subr.mxu0 0.0
          %358 = vmatpush1.msra.mxu0 0.0
          %359 = vmatprep.subr.mxu0 0.0
          %360 = vmatpush1.msra.mxu0 0.0
          %361 = vmatprep.subr.mxu0 0.0
          %362 = vmatpush1.msra.mxu0 0.0
          %363 = vmatprep.subr.mxu0 0.0
          %364 = vmatpush1.msra.mxu0 0.0
          %365 = vmatprep.subr.mxu0 0.0
          %366 = vmatpush1.msra.mxu0 0.0
          %367 = vmatprep.subr.mxu0 0.0
          %368 = vmatpush1.msra.mxu0 0.0
          %369 = vmatprep.subr.mxu0 0.0
          %370 = vmatpush1.msra.mxu0 0.0
          %371 = vmatprep.subr.mxu0 0.0
          %372 = vmatpush1.msra.mxu0 0.0
          %373 = vmatprep.subr.mxu0 0.0
          %374 = vmatpush1.msra.mxu0 0.0
          %375 = vmatprep.subr.mxu0 0.0
          %376 = vmatpush1.msra.mxu0 0.0
          %377 = vmatprep.subr.mxu0 0.0
          %378 = vmatpush1.msra.mxu0 0.0
          %379 = vmatprep.subr.mxu0 0.0
          %380 = vmatpush1.msra.mxu0 0.0
          %381 = vmatprep.mubr.f32.mxu0 0.0
          %382 = vmatmul.mubr.f32.gmra.mrb[0].mxu0 %v312
          %v383 = vpop.f32.mrb[0].mxu0
          %v384 = vadd.f32 0.0, %v383
          %v385 = vpop.f32.mrb[0].mxu0
          %386 = vmatprep.mubr.f32.mxu0 0.0
          %387 = vmatmul.mubr.f32.gmra.mrb[0].mxu0 %v315
          %v388 = vpop.f32.mrb[0].mxu0
          %v389 = vadd.f32 0.0, %v388
          %v390 = vpop.f32.mrb[0].mxu0
          %391 = vdwg.mxu0
          %vm392 = vcmask 261120
          %393 = vst.msk [vmem:[#allocation2] sm:$0xff] %vm392, %v384
          %394 = vst.msk [vmem:[#allocation2 + $0x8] sm:$0xff] %vm392, %v389
          %s395 = sld [smem:[#allocation6 + $0x80]]
          %v396 = vld [vmem:[%s224] sm:$0xff]
          %v397 = vld [vmem:[%s224 + $0x8] sm:$0xff]
          %v398 = vstv %s395
          %v399 = vmul.f32 %v398, %v396
          %v400 = vmul.f32 %v398, %v397
          %s401 = sld [smem:[#allocation6 + $0x81]]
          %v402 = vld [vmem:[%s284] sm:$0xff]
          %v403 = vld [vmem:[%s284 + $0x8] sm:$0xff]
          %v404 = vstv %s401
          %v405 = vmul.f32 %v404, %v402
          %v406 = vmul.f32 %v404, %v403
          %v407 = vadd.f32 %v399, %v405
          %v408 = vadd.f32 %v400, %v406
          %s409 = sld [smem:[#allocation6 + $0x82]]
          %v410 = vld [vmem:[%s293] sm:$0xff]
          %v411 = vld [vmem:[%s293 + $0x8] sm:$0xff]
          %v412 = vstv %s409
          %v413 = vmul.f32 %v412, %v410
          %v414 = vmul.f32 %v412, %v411
          %v415 = vadd.f32 %v407, %v413
          %v416 = vadd.f32 %v408, %v414
          %s417 = sld [smem:[#allocation6 + $0x83]]
          %v418 = vld [vmem:[%s302] sm:$0xff]
          %v419 = vld [vmem:[%s302 + $0x8] sm:$0xff]
          %v420 = vstv %s417
          %v421 = vmul.f32 %v420, %v418
          %v422 = vmul.f32 %v420, %v419
          %v423 = vadd.f32 %v415, %v421
          %v424 = vadd.f32 %v416, %v422
          %v426 = vsel %vm310, %v423, 0
          %v429 = vsel %vm310, %v424, 0
          %431 = vmatprep.subr.mxu0 0.0
          %432 = vmatpush1.msra.mxu0 %v275
          %433 = vmatprep.subr.mxu0 0.0
          %434 = vmatpush1.msra.mxu0 %v276
          %435 = vmatprep.subr.mxu0 0.0
          %436 = vmatpush1.msra.mxu0 0.0
          %437 = vmatprep.subr.mxu0 0.0
          %438 = vmatpush1.msra.mxu0 0.0
          %439 = vmatprep.subr.mxu0 0.0
          %440 = vmatpush1.msra.mxu0 0.0
          %441 = vmatprep.subr.mxu0 0.0
          %442 = vmatpush1.msra.mxu0 0.0
          %443 = vmatprep.subr.mxu0 0.0
          %444 = vmatpush1.msra.mxu0 0.0
          %445 = vmatprep.subr.mxu0 0.0
          %446 = vmatpush1.msra.mxu0 0.0
          %447 = vmatprep.subr.mxu0 0.0
          %448 = vmatpush1.msra.mxu0 0.0
          %449 = vmatprep.subr.mxu0 0.0
          %450 = vmatpush1.msra.mxu0 0.0
          %451 = vmatprep.subr.mxu0 0.0
          %452 = vmatpush1.msra.mxu0 0.0
          %453 = vmatprep.subr.mxu0 0.0
          %454 = vmatpush1.msra.mxu0 0.0
          %455 = vmatprep.subr.mxu0 0.0
          %456 = vmatpush1.msra.mxu0 0.0
          %457 = vmatprep.subr.mxu0 0.0
          %458 = vmatpush1.msra.mxu0 0.0
          %459 = vmatprep.subr.mxu0 0.0
          %460 = vmatpush1.msra.mxu0 0.0
          %461 = vmatprep.subr.mxu0 0.0
          %462 = vmatpush1.msra.mxu0 0.0
          %463 = vmatprep.subr.mxu0 0.0
          %464 = vmatpush1.msra.mxu0 0.0
          %465 = vmatprep.subr.mxu0 0.0
          %466 = vmatpush1.msra.mxu0 0.0
          %467 = vmatprep.subr.mxu0 0.0
          %468 = vmatpush1.msra.mxu0 0.0
          %469 = vmatprep.subr.mxu0 0.0
          %470 = vmatpush1.msra.mxu0 0.0
          %471 = vmatprep.subr.mxu0 0.0
          %472 = vmatpush1.msra.mxu0 0.0
          %473 = vmatprep.subr.mxu0 0.0
          %474 = vmatpush1.msra.mxu0 0.0
          %475 = vmatprep.subr.mxu0 0.0
          %476 = vmatpush1.msra.mxu0 0.0
          %477 = vmatprep.subr.mxu0 0.0
          %478 = vmatpush1.msra.mxu0 0.0
          %479 = vmatprep.subr.mxu0 0.0
          %480 = vmatpush1.msra.mxu0 0.0
          %481 = vmatprep.subr.mxu0 0.0
          %482 = vmatpush1.msra.mxu0 0.0
          %483 = vmatprep.subr.mxu0 0.0
          %484 = vmatpush1.msra.mxu0 0.0
          %485 = vmatprep.subr.mxu0 0.0
          %486 = vmatpush1.msra.mxu0 0.0
          %487 = vmatprep.subr.mxu0 0.0
          %488 = vmatpush1.msra.mxu0 0.0
          %489 = vmatprep.subr.mxu0 0.0
          %490 = vmatpush1.msra.mxu0 0.0
          %491 = vmatprep.subr.mxu0 0.0
          %492 = vmatpush1.msra.mxu0 0.0
          %493 = vmatprep.subr.mxu0 0.0
          %494 = vmatpush1.msra.mxu0 0.0
          %495 = vmatprep.mubr.f32.mxu0 0.0
          %496 = vmatmul.mubr.f32.gmra.mrb[0].mxu0 %v426
          %v497 = vpop.f32.mrb[0].mxu0
          %v498 = vadd.f32 0.0, %v497
          %v499 = vpop.f32.mrb[0].mxu0
          %500 = vmatprep.mubr.f32.mxu0 0.0
          %501 = vmatmul.mubr.f32.gmra.mrb[0].mxu0 %v429
          %v502 = vpop.f32.mrb[0].mxu0
          %v503 = vadd.f32 0.0, %v502
          %v504 = vpop.f32.mrb[0].mxu0
          %505 = vdwg.mxu0
          %s506 = scalar_lea.vmem [#allocation2], 16
          %507 = vst.msk [vmem:[%s506] sm:$0xff] %vm392, %v498
          %508 = vst.msk [vmem:[%s506 + $0x8] sm:$0xff] %vm392, %v503
          %s509 = sld [smem:[#allocation6 + $0x100]]
          %v510 = vld [vmem:[%s224] sm:$0xff]
          %v511 = vld [vmem:[%s224 + $0x8] sm:$0xff]
          %v512 = vstv %s509
          %v513 = vmul.f32 %v512, %v510
          %v514 = vmul.f32 %v512, %v511
          %s515 = sld [smem:[#allocation6 + $0x101]]
          %v516 = vld [vmem:[%s284] sm:$0xff]
          %v517 = vld [vmem:[%s284 + $0x8] sm:$0xff]
          %v518 = vstv %s515
          %v519 = vmul.f32 %v518, %v516
          %v520 = vmul.f32 %v518, %v517
          %v521 = vadd.f32 %v513, %v519
          %v522 = vadd.f32 %v514, %v520
          %s523 = sld [smem:[#allocation6 + $0x102]]
          %v524 = vld [vmem:[%s293] sm:$0xff]
          %v525 = vld [vmem:[%s293 + $0x8] sm:$0xff]
          %v526 = vstv %s523
          %v527 = vmul.f32 %v526, %v524
          %v528 = vmul.f32 %v526, %v525
          %v529 = vadd.f32 %v521, %v527
          %v530 = vadd.f32 %v522, %v528
          %s531 = sld [smem:[#allocation6 + $0x103]]
          %v532 = vld [vmem:[%s302] sm:$0xff]
          %v533 = vld [vmem:[%s302 + $0x8] sm:$0xff]
          %v534 = vstv %s531
          %v535 = vmul.f32 %v534, %v532
          %v536 = vmul.f32 %v534, %v533
          %v537 = vadd.f32 %v529, %v535
          %v538 = vadd.f32 %v530, %v536
          %v540 = vsel %vm310, %v537, 0
          %v543 = vsel %vm310, %v538, 0
          %545 = vmatprep.subr.mxu0 0.0
          %546 = vmatpush1.msra.mxu0 %v275
          %547 = vmatprep.subr.mxu0 0.0
          %548 = vmatpush1.msra.mxu0 %v276
          %549 = vmatprep.subr.mxu0 0.0
          %550 = vmatpush1.msra.mxu0 0.0
          %551 = vmatprep.subr.mxu0 0.0
          %552 = vmatpush1.msra.mxu0 0.0
          %553 = vmatprep.subr.mxu0 0.0
          %554 = vmatpush1.msra.mxu0 0.0
          %555 = vmatprep.subr.mxu0 0.0
          %556 = vmatpush1.msra.mxu0 0.0
          %557 = vmatprep.subr.mxu0 0.0
          %558 = vmatpush1.msra.mxu0 0.0
          %559 = vmatprep.subr.mxu0 0.0
          %560 = vmatpush1.msra.mxu0 0.0
          %561 = vmatprep.subr.mxu0 0.0
          %562 = vmatpush1.msra.mxu0 0.0
          %563 = vmatprep.subr.mxu0 0.0
          %564 = vmatpush1.msra.mxu0 0.0
          %565 = vmatprep.subr.mxu0 0.0
          %566 = vmatpush1.msra.mxu0 0.0
          %567 = vmatprep.subr.mxu0 0.0
          %568 = vmatpush1.msra.mxu0 0.0
          %569 = vmatprep.subr.mxu0 0.0
          %570 = vmatpush1.msra.mxu0 0.0
          %571 = vmatprep.subr.mxu0 0.0
          %572 = vmatpush1.msra.mxu0 0.0
          %573 = vmatprep.subr.mxu0 0.0
          %574 = vmatpush1.msra.mxu0 0.0
          %575 = vmatprep.subr.mxu0 0.0
          %576 = vmatpush1.msra.mxu0 0.0
          %577 = vmatprep.subr.mxu0 0.0
          %578 = vmatpush1.msra.mxu0 0.0
          %579 = vmatprep.subr.mxu0 0.0
          %580 = vmatpush1.msra.mxu0 0.0
          %581 = vmatprep.subr.mxu0 0.0
          %582 = vmatpush1.msra.mxu0 0.0
          %583 = vmatprep.subr.mxu0 0.0
          %584 = vmatpush1.msra.mxu0 0.0
          %585 = vmatprep.subr.mxu0 0.0
          %586 = vmatpush1.msra.mxu0 0.0
          %587 = vmatprep.subr.mxu0 0.0
          %588 = vmatpush1.msra.mxu0 0.0
          %589 = vmatprep.subr.mxu0 0.0
          %590 = vmatpush1.msra.mxu0 0.0
          %591 = vmatprep.subr.mxu0 0.0
          %592 = vmatpush1.msra.mxu0 0.0
          %593 = vmatprep.subr.mxu0 0.0
          %594 = vmatpush1.msra.mxu0 0.0
          %595 = vmatprep.subr.mxu0 0.0
          %596 = vmatpush1.msra.mxu0 0.0
          %597 = vmatprep.subr.mxu0 0.0
          %598 = vmatpush1.msra.mxu0 0.0
          %599 = vmatprep.subr.mxu0 0.0
          %600 = vmatpush1.msra.mxu0 0.0
          %601 = vmatprep.subr.mxu0 0.0
          %602 = vmatpush1.msra.mxu0 0.0
          %603 = vmatprep.subr.mxu0 0.0
          %604 = vmatpush1.msra.mxu0 0.0
          %605 = vmatprep.subr.mxu0 0.0
          %606 = vmatpush1.msra.mxu0 0.0
          %607 = vmatprep.subr.mxu0 0.0
          %608 = vmatpush1.msra.mxu0 0.0
          %609 = vmatprep.mubr.f32.mxu0 0.0
          %610 = vmatmul.mubr.f32.gmra.mrb[0].mxu0 %v540
          %v611 = vpop.f32.mrb[0].mxu0
          %v612 = vadd.f32 0.0, %v611
          %v613 = vpop.f32.mrb[0].mxu0
          %614 = vmatprep.mubr.f32.mxu0 0.0
          %615 = vmatmul.mubr.f32.gmra.mrb[0].mxu0 %v543
          %v616 = vpop.f32.mrb[0].mxu0
          %v617 = vadd.f32 0.0, %v616
          %v618 = vpop.f32.mrb[0].mxu0
          %619 = vdwg.mxu0
          %s620 = scalar_lea.vmem [#allocation2], 32
          %621 = vst.msk [vmem:[%s620] sm:$0xff] %vm392, %v612
          %622 = vst.msk [vmem:[%s620 + $0x8] sm:$0xff] %vm392, %v617
          %s623 = sld [smem:[#allocation6 + $0x180]]
          %v624 = vld [vmem:[%s224] sm:$0xff]
          %v625 = vld [vmem:[%s224 + $0x8] sm:$0xff]
          %v626 = vstv %s623
          %v627 = vmul.f32 %v626, %v624
          %v628 = vmul.f32 %v626, %v625
          %s629 = sld [smem:[#allocation6 + $0x181]]
          %v630 = vld [vmem:[%s284] sm:$0xff]
          %v631 = vld [vmem:[%s284 + $0x8] sm:$0xff]
          %v632 = vstv %s629
          %v633 = vmul.f32 %v632, %v630
          %v634 = vmul.f32 %v632, %v631
          %v635 = vadd.f32 %v627, %v633
          %v636 = vadd.f32 %v628, %v634
          %s637 = sld [smem:[#allocation6 + $0x182]]
          %v638 = vld [vmem:[%s293] sm:$0xff]
          %v639 = vld [vmem:[%s293 + $0x8] sm:$0xff]
          %v640 = vstv %s637
          %v641 = vmul.f32 %v640, %v638
          %v642 = vmul.f32 %v640, %v639
          %v643 = vadd.f32 %v635, %v641
          %v644 = vadd.f32 %v636, %v642
          %s645 = sld [smem:[#allocation6 + $0x183]]
          %v646 = vld [vmem:[%s302] sm:$0xff]
          %v647 = vld [vmem:[%s302 + $0x8] sm:$0xff]
          %v648 = vstv %s645
          %v649 = vmul.f32 %v648, %v646
          %v650 = vmul.f32 %v648, %v647
          %v651 = vadd.f32 %v643, %v649
          %v652 = vadd.f32 %v644, %v650
          %v654 = vsel %vm310, %v651, 0
          %v657 = vsel %vm310, %v652, 0
          %659 = vmatprep.subr.mxu0 0.0
          %660 = vmatpush1.msra.mxu0 %v275
          %661 = vmatprep.subr.mxu0 0.0
          %662 = vmatpush1.msra.mxu0 %v276
          %663 = vmatprep.subr.mxu0 0.0
          %664 = vmatpush1.msra.mxu0 0.0
          %665 = vmatprep.subr.mxu0 0.0
          %666 = vmatpush1.msra.mxu0 0.0
          %667 = vmatprep.subr.mxu0 0.0
          %668 = vmatpush1.msra.mxu0 0.0
          %669 = vmatprep.subr.mxu0 0.0
          %670 = vmatpush1.msra.mxu0 0.0
          %671 = vmatprep.subr.mxu0 0.0
          %672 = vmatpush1.msra.mxu0 0.0
          %673 = vmatprep.subr.mxu0 0.0
          %674 = vmatpush1.msra.mxu0 0.0
          %675 = vmatprep.subr.mxu0 0.0
          %676 = vmatpush1.msra.mxu0 0.0
          %677 = vmatprep.subr.mxu0 0.0
          %678 = vmatpush1.msra.mxu0 0.0
          %679 = vmatprep.subr.mxu0 0.0
          %680 = vmatpush1.msra.mxu0 0.0
          %681 = vmatprep.subr.mxu0 0.0
          %682 = vmatpush1.msra.mxu0 0.0
          %683 = vmatprep.subr.mxu0 0.0
          %684 = vmatpush1.msra.mxu0 0.0
          %685 = vmatprep.subr.mxu0 0.0
          %686 = vmatpush1.msra.mxu0 0.0
          %687 = vmatprep.subr.mxu0 0.0
          %688 = vmatpush1.msra.mxu0 0.0
          %689 = vmatprep.subr.mxu0 0.0
          %690 = vmatpush1.msra.mxu0 0.0
          %691 = vmatprep.subr.mxu0 0.0
          %692 = vmatpush1.msra.mxu0 0.0
          %693 = vmatprep.subr.mxu0 0.0
          %694 = vmatpush1.msra.mxu0 0.0
          %695 = vmatprep.subr.mxu0 0.0
          %696 = vmatpush1.msra.mxu0 0.0
          %697 = vmatprep.subr.mxu0 0.0
          %698 = vmatpush1.msra.mxu0 0.0
          %699 = vmatprep.subr.mxu0 0.0
          %700 = vmatpush1.msra.mxu0 0.0
          %701 = vmatprep.subr.mxu0 0.0
          %702 = vmatpush1.msra.mxu0 0.0
          %703 = vmatprep.subr.mxu0 0.0
          %704 = vmatpush1.msra.mxu0 0.0
          %705 = vmatprep.subr.mxu0 0.0
          %706 = vmatpush1.msra.mxu0 0.0
          %707 = vmatprep.subr.mxu0 0.0
          %708 = vmatpush1.msra.mxu0 0.0
          %709 = vmatprep.subr.mxu0 0.0
          %710 = vmatpush1.msra.mxu0 0.0
          %711 = vmatprep.subr.mxu0 0.0
          %712 = vmatpush1.msra.mxu0 0.0
          %713 = vmatprep.subr.mxu0 0.0
          %714 = vmatpush1.msra.mxu0 0.0
          %715 = vmatprep.subr.mxu0 0.0
          %716 = vmatpush1.msra.mxu0 0.0
          %717 = vmatprep.subr.mxu0 0.0
          %718 = vmatpush1.msra.mxu0 0.0
          %719 = vmatprep.subr.mxu0 0.0
          %720 = vmatpush1.msra.mxu0 0.0
          %721 = vmatprep.subr.mxu0 0.0
          %722 = vmatpush1.msra.mxu0 0.0
          %723 = vmatprep.mubr.f32.mxu0 0.0
          %724 = vmatmul.mubr.f32.gmra.mrb[0].mxu0 %v654
          %v725 = vpop.f32.mrb[0].mxu0
          %v726 = vadd.f32 0.0, %v725
          %v727 = vpop.f32.mrb[0].mxu0
          %728 = vmatprep.mubr.f32.mxu0 0.0
          %729 = vmatmul.mubr.f32.gmra.mrb[0].mxu0 %v657
          %v730 = vpop.f32.mrb[0].mxu0
          %v731 = vadd.f32 0.0, %v730
          %v732 = vpop.f32.mrb[0].mxu0
          %733 = vdwg.mxu0
          %s734 = scalar_lea.vmem [#allocation2], 48
          %735 = vst.msk [vmem:[%s734] sm:$0xff] %vm392, %v726
          %736 = vst.msk [vmem:[%s734 + $0x8] sm:$0xff] %vm392, %v731
        $region56: #{double_factorized_increase.4} parent=35 // pred_fallthru
          _
        %v737 = vld [vmem:[%s262] sm:$0xff]
        %v738 = vld [vmem:[%s262 + $0x8] sm:$0xff]
        %v739 = vld [vmem:[#allocation2] sm:$0xff]
        %v740 = vld [vmem:[#allocation2 + $0x8] sm:$0xff]
        %vm741 = vcmask 130048
        %v743 = vsel %vm741, %v737, 0
        %v746 = vsel %vm741, %v738, 0
        %748 = vmatprep.subr.mxu0 0.0
        %749 = vmatpush1.msra.mxu0 %v739
        %750 = vmatprep.subr.mxu0 0.0
        %751 = vmatpush1.msra.mxu0 %v740
        %752 = vmatprep.subr.mxu0 0.0
        %753 = vmatpush1.msra.mxu0 0.0
        %754 = vmatprep.subr.mxu0 0.0
        %755 = vmatpush1.msra.mxu0 0.0
        %756 = vmatprep.subr.mxu0 0.0
        %757 = vmatpush1.msra.mxu0 0.0
        %758 = vmatprep.subr.mxu0 0.0
        %759 = vmatpush1.msra.mxu0 0.0
        %760 = vmatprep.subr.mxu0 0.0
        %761 = vmatpush1.msra.mxu0 0.0
        %762 = vmatprep.subr.mxu0 0.0
        %763 = vmatpush1.msra.mxu0 0.0
        %764 = vmatprep.subr.mxu0 0.0
        %765 = vmatpush1.msra.mxu0 0.0
        %766 = vmatprep.subr.mxu0 0.0
        %767 = vmatpush1.msra.mxu0 0.0
        %768 = vmatprep.subr.mxu0 0.0
        %769 = vmatpush1.msra.mxu0 0.0
        %770 = vmatprep.subr.mxu0 0.0
        %771 = vmatpush1.msra.mxu0 0.0
        %772 = vmatprep.subr.mxu0 0.0
        %773 = vmatpush1.msra.mxu0 0.0
        %774 = vmatprep.subr.mxu0 0.0
        %775 = vmatpush1.msra.mxu0 0.0
        %776 = vmatprep.subr.mxu0 0.0
        %777 = vmatpush1.msra.mxu0 0.0
        %778 = vmatprep.subr.mxu0 0.0
        %779 = vmatpush1.msra.mxu0 0.0
        %780 = vmatprep.subr.mxu0 0.0
        %781 = vmatpush1.msra.mxu0 0.0
        %782 = vmatprep.subr.mxu0 0.0
        %783 = vmatpush1.msra.mxu0 0.0
        %784 = vmatprep.subr.mxu0 0.0
        %785 = vmatpush1.msra.mxu0 0.0
        %786 = vmatprep.subr.mxu0 0.0
        %787 = vmatpush1.msra.mxu0 0.0
        %788 = vmatprep.subr.mxu0 0.0
        %789 = vmatpush1.msra.mxu0 0.0
        %790 = vmatprep.subr.mxu0 0.0
        %791 = vmatpush1.msra.mxu0 0.0
        %792 = vmatprep.subr.mxu0 0.0
        %793 = vmatpush1.msra.mxu0 0.0
        %794 = vmatprep.subr.mxu0 0.0
        %795 = vmatpush1.msra.mxu0 0.0
        %796 = vmatprep.subr.mxu0 0.0
        %797 = vmatpush1.msra.mxu0 0.0
        %798 = vmatprep.subr.mxu0 0.0
        %799 = vmatpush1.msra.mxu0 0.0
        %800 = vmatprep.subr.mxu0 0.0
        %801 = vmatpush1.msra.mxu0 0.0
        %802 = vmatprep.subr.mxu0 0.0
        %803 = vmatpush1.msra.mxu0 0.0
        %804 = vmatprep.subr.mxu0 0.0
        %805 = vmatpush1.msra.mxu0 0.0
        %806 = vmatprep.subr.mxu0 0.0
        %807 = vmatpush1.msra.mxu0 0.0
        %808 = vmatprep.subr.mxu0 0.0
        %809 = vmatpush1.msra.mxu0 0.0
        %810 = vmatprep.subr.mxu0 0.0
        %811 = vmatpush1.msra.mxu0 0.0
        %812 = vmatprep.mubr.f32.mxu0 0.0
        %813 = vmatmul.mubr.f32.gmra.mrb[0].mxu0 %v743
        %v814 = vpop.f32.mrb[0].mxu0
        %v815 = vadd.f32 0.0, %v814
        %v816 = vpop.f32.mrb[0].mxu0
        %817 = vmatprep.mubr.f32.mxu0 0.0
        %818 = vmatmul.mubr.f32.gmra.mrb[0].mxu0 %v746
        %v819 = vpop.f32.mrb[0].mxu0
        %v820 = vadd.f32 0.0, %v819
        %v821 = vpop.f32.mrb[0].mxu0
        %822 = vdwg.mxu0
        %v823 = vld [vmem:[%s4] sm:$0x1]
        %vm824 = vcmask 261120
        %v825 = vsel %vm824, %v815, 0.0
        %v826 = vsel %vm824, %v820, 0.0
        %v827 = vadd.f32 %v825, %v826
        %v828 = vrot.slane %v827, 4
        %v829 = vadd.f32 %v827, %v828
        %v830 = vrot.slane %v829, 2
        %v831 = vadd.f32 %v829, %v830
        %v832 = vrot.slane %v831, 1
        %v833 = vadd.f32 %v831, %v832
        %v834 = vadd.f32 %v823, %v833
        %vm835 = vcmask 253952
        %836 = vst.msk [vmem:[%s4] sm:$0x1] %vm835, %v834
        %v837 = vld [vmem:[%s4 + $0x4] sm:$0x1]
        %v838 = vmul.f32 %v815, %v815
        %v839 = vmul.f32 %v820, %v820
        %v840 = vsel %vm824, %v838, 0.0
        %v841 = vsel %vm824, %v839, 0.0
        %v842 = vadd.f32 %v840, %v841
        %v843 = vrot.slane %v842, 4
        %v844 = vadd.f32 %v842, %v843
        %v845 = vrot.slane %v844, 2
        %v846 = vadd.f32 %v844, %v845
        %v847 = vrot.slane %v846, 1
        %v848 = vadd.f32 %v846, %v847
        %v849 = vadd.f32 %v837, %v848
        %850 = vst.msk [vmem:[%s4 + $0x4] sm:$0x1] %vm835, %v849
        %s851 = scalar_lea.vmem [#allocation2], 16
        %v852 = vld [vmem:[%s851] sm:$0xff]
        %v853 = vld [vmem:[%s851 + $0x8] sm:$0xff]
        %854 = vmatprep.subr.mxu0 0.0
        %855 = vmatpush1.msra.mxu0 %v852
        %856 = vmatprep.subr.mxu0 0.0
        %857 = vmatpush1.msra.mxu0 %v853
        %858 = vmatprep.subr.mxu0 0.0
        %859 = vmatpush1.msra.mxu0 0.0
        %860 = vmatprep.subr.mxu0 0.0
        %861 = vmatpush1.msra.mxu0 0.0
        %862 = vmatprep.subr.mxu0 0.0
        %863 = vmatpush1.msra.mxu0 0.0
        %864 = vmatprep.subr.mxu0 0.0
        %865 = vmatpush1.msra.mxu0 0.0
        %866 = vmatprep.subr.mxu0 0.0
        %867 = vmatpush1.msra.mxu0 0.0
        %868 = vmatprep.subr.mxu0 0.0
        %869 = vmatpush1.msra.mxu0 0.0
        %870 = vmatprep.subr.mxu0 0.0
        %871 = vmatpush1.msra.mxu0 0.0
        %872 = vmatprep.subr.mxu0 0.0
        %873 = vmatpush1.msra.mxu0 0.0
        %874 = vmatprep.subr.mxu0 0.0
        %875 = vmatpush1.msra.mxu0 0.0
        %876 = vmatprep.subr.mxu0 0.0
        %877 = vmatpush1.msra.mxu0 0.0
        %878 = vmatprep.subr.mxu0 0.0
        %879 = vmatpush1.msra.mxu0 0.0
        %880 = vmatprep.subr.mxu0 0.0
        %881 = vmatpush1.msra.mxu0 0.0
        %882 = vmatprep.subr.mxu0 0.0
        %883 = vmatpush1.msra.mxu0 0.0
        %884 = vmatprep.subr.mxu0 0.0
        %885 = vmatpush1.msra.mxu0 0.0
        %886 = vmatprep.subr.mxu0 0.0
        %887 = vmatpush1.msra.mxu0 0.0
        %888 = vmatprep.subr.mxu0 0.0
        %889 = vmatpush1.msra.mxu0 0.0
        %890 = vmatprep.subr.mxu0 0.0
        %891 = vmatpush1.msra.mxu0 0.0
        %892 = vmatprep.subr.mxu0 0.0
        %893 = vmatpush1.msra.mxu0 0.0
        %894 = vmatprep.subr.mxu0 0.0
        %895 = vmatpush1.msra.mxu0 0.0
        %896 = vmatprep.subr.mxu0 0.0
        %897 = vmatpush1.msra.mxu0 0.0
        %898 = vmatprep.subr.mxu0 0.0
        %899 = vmatpush1.msra.mxu0 0.0
        %900 = vmatprep.subr.mxu0 0.0
        %901 = vmatpush1.msra.mxu0 0.0
        %902 = vmatprep.subr.mxu0 0.0
        %903 = vmatpush1.msra.mxu0 0.0
        %904 = vmatprep.subr.mxu0 0.0
        %905 = vmatpush1.msra.mxu0 0.0
        %906 = vmatprep.subr.mxu0 0.0
        %907 = vmatpush1.msra.mxu0 0.0
        %908 = vmatprep.subr.mxu0 0.0
        %909 = vmatpush1.msra.mxu0 0.0
        %910 = vmatprep.subr.mxu0 0.0
        %911 = vmatpush1.msra.mxu0 0.0
        %912 = vmatprep.subr.mxu0 0.0
        %913 = vmatpush1.msra.mxu0 0.0
        %914 = vmatprep.subr.mxu0 0.0
        %915 = vmatpush1.msra.mxu0 0.0
        %916 = vmatprep.subr.mxu0 0.0
        %917 = vmatpush1.msra.mxu0 0.0
        %918 = vmatprep.mubr.f32.mxu0 0.0
        %919 = vmatmul.mubr.f32.gmra.mrb[0].mxu0 %v743
        %v920 = vpop.f32.mrb[0].mxu0
        %v921 = vadd.f32 0.0, %v920
        %v922 = vpop.f32.mrb[0].mxu0
        %923 = vmatprep.mubr.f32.mxu0 0.0
        %924 = vmatmul.mubr.f32.gmra.mrb[0].mxu0 %v746
        %v925 = vpop.f32.mrb[0].mxu0
        %v926 = vadd.f32 0.0, %v925
        %v927 = vpop.f32.mrb[0].mxu0
        %928 = vdwg.mxu0
        %v929 = vld [vmem:[%s4 + $0x1] sm:$0x1]
        %v930 = vsel %vm824, %v921, 0.0
        %v931 = vsel %vm824, %v926, 0.0
        %v932 = vadd.f32 %v930, %v931
        %v933 = vrot.slane %v932, 4
        %v934 = vadd.f32 %v932, %v933
        %v935 = vrot.slane %v934, 2
        %v936 = vadd.f32 %v934, %v935
        %v937 = vrot.slane %v936, 1
        %v938 = vadd.f32 %v936, %v937
        %v939 = vadd.f32 %v929, %v938
        %940 = vst.msk [vmem:[%s4 + $0x1] sm:$0x1] %vm835, %v939
        %v941 = vld [vmem:[%s4 + $0x5] sm:$0x1]
        %v942 = vmul.f32 %v921, %v921
        %v943 = vmul.f32 %v926, %v926
        %v944 = vsel %vm824, %v942, 0.0
        %v945 = vsel %vm824, %v943, 0.0
        %v946 = vadd.f32 %v944, %v945
        %v947 = vrot.slane %v946, 4
        %v948 = vadd.f32 %v946, %v947
        %v949 = vrot.slane %v948, 2
        %v950 = vadd.f32 %v948, %v949
        %v951 = vrot.slane %v950, 1
        %v952 = vadd.f32 %v950, %v951
        %v953 = vadd.f32 %v941, %v952
        %954 = vst.msk [vmem:[%s4 + $0x5] sm:$0x1] %vm835, %v953
        %s955 = scalar_lea.vmem [#allocation2], 32
        %v956 = vld [vmem:[%s955] sm:$0xff]
        %v957 = vld [vmem:[%s955 + $0x8] sm:$0xff]
        %958 = vmatprep.subr.mxu0 0.0
        %959 = vmatpush1.msra.mxu0 %v956
        %960 = vmatprep.subr.mxu0 0.0
        %961 = vmatpush1.msra.mxu0 %v957
        %962 = vmatprep.subr.mxu0 0.0
        %963 = vmatpush1.msra.mxu0 0.0
        %964 = vmatprep.subr.mxu0 0.0
        %965 = vmatpush1.msra.mxu0 0.0
        %966 = vmatprep.subr.mxu0 0.0
        %967 = vmatpush1.msra.mxu0 0.0
        %968 = vmatprep.subr.mxu0 0.0
        %969 = vmatpush1.msra.mxu0 0.0
        %970 = vmatprep.subr.mxu0 0.0
        %971 = vmatpush1.msra.mxu0 0.0
        %972 = vmatprep.subr.mxu0 0.0
        %973 = vmatpush1.msra.mxu0 0.0
        %974 = vmatprep.subr.mxu0 0.0
        %975 = vmatpush1.msra.mxu0 0.0
        %976 = vmatprep.subr.mxu0 0.0
        %977 = vmatpush1.msra.mxu0 0.0
        %978 = vmatprep.subr.mxu0 0.0
        %979 = vmatpush1.msra.mxu0 0.0
        %980 = vmatprep.subr.mxu0 0.0
        %981 = vmatpush1.msra.mxu0 0.0
        %982 = vmatprep.subr.mxu0 0.0
        %983 = vmatpush1.msra.mxu0 0.0
        %984 = vmatprep.subr.mxu0 0.0
        %985 = vmatpush1.msra.mxu0 0.0
        %986 = vmatprep.subr.mxu0 0.0
        %987 = vmatpush1.msra.mxu0 0.0
        %988 = vmatprep.subr.mxu0 0.0
        %989 = vmatpush1.msra.mxu0 0.0
        %990 = vmatprep.subr.mxu0 0.0
        %991 = vmatpush1.msra.mxu0 0.0
        %992 = vmatprep.subr.mxu0 0.0
        %993 = vmatpush1.msra.mxu0 0.0
        %994 = vmatprep.subr.mxu0 0.0
        %995 = vmatpush1.msra.mxu0 0.0
        %996 = vmatprep.subr.mxu0 0.0
        %997 = vmatpush1.msra.mxu0 0.0
        %998 = vmatprep.subr.mxu0 0.0
        %999 = vmatpush1.msra.mxu0 0.0
        %1000 = vmatprep.subr.mxu0 0.0
        %1001 = vmatpush1.msra.mxu0 0.0
        %1002 = vmatprep.subr.mxu0 0.0
        %1003 = vmatpush1.msra.mxu0 0.0
        %1004 = vmatprep.subr.mxu0 0.0
        %1005 = vmatpush1.msra.mxu0 0.0
        %1006 = vmatprep.subr.mxu0 0.0
        %1007 = vmatpush1.msra.mxu0 0.0
        %1008 = vmatprep.subr.mxu0 0.0
        %1009 = vmatpush1.msra.mxu0 0.0
        %1010 = vmatprep.subr.mxu0 0.0
        %1011 = vmatpush1.msra.mxu0 0.0
        %1012 = vmatprep.subr.mxu0 0.0
        %1013 = vmatpush1.msra.mxu0 0.0
        %1014 = vmatprep.subr.mxu0 0.0
        %1015 = vmatpush1.msra.mxu0 0.0
        %1016 = vmatprep.subr.mxu0 0.0
        %1017 = vmatpush1.msra.mxu0 0.0
        %1018 = vmatprep.subr.mxu0 0.0
        %1019 = vmatpush1.msra.mxu0 0.0
        %1020 = vmatprep.subr.mxu0 0.0
        %1021 = vmatpush1.msra.mxu0 0.0
        %1022 = vmatprep.mubr.f32.mxu0 0.0
        %1023 = vmatmul.mubr.f32.gmra.mrb[0].mxu0 %v743
        %v1024 = vpop.f32.mrb[0].mxu0
        %v1025 = vadd.f32 0.0, %v1024
        %v1026 = vpop.f32.mrb[0].mxu0
        %1027 = vmatprep.mubr.f32.mxu0 0.0
        %1028 = vmatmul.mubr.f32.gmra.mrb[0].mxu0 %v746
        %v1029 = vpop.f32.mrb[0].mxu0
        %v1030 = vadd.f32 0.0, %v1029
        %v1031 = vpop.f32.mrb[0].mxu0
        %1032 = vdwg.mxu0
        %v1033 = vld [vmem:[%s4 + $0x2] sm:$0x1]
        %v1034 = vsel %vm824, %v1025, 0.0
        %v1035 = vsel %vm824, %v1030, 0.0
        %v1036 = vadd.f32 %v1034, %v1035
        %v1037 = vrot.slane %v1036, 4
        %v1038 = vadd.f32 %v1036, %v1037
        %v1039 = vrot.slane %v1038, 2
        %v1040 = vadd.f32 %v1038, %v1039
        %v1041 = vrot.slane %v1040, 1
        %v1042 = vadd.f32 %v1040, %v1041
        %v1043 = vadd.f32 %v1033, %v1042
        %1044 = vst.msk [vmem:[%s4 + $0x2] sm:$0x1] %vm835, %v1043
        %v1045 = vld [vmem:[%s4 + $0x6] sm:$0x1]
        %v1046 = vmul.f32 %v1025, %v1025
        %v1047 = vmul.f32 %v1030, %v1030
        %v1048 = vsel %vm824, %v1046, 0.0
        %v1049 = vsel %vm824, %v1047, 0.0
        %v1050 = vadd.f32 %v1048, %v1049
        %v1051 = vrot.slane %v1050, 4
        %v1052 = vadd.f32 %v1050, %v1051
        %v1053 = vrot.slane %v1052, 2
        %v1054 = vadd.f32 %v1052, %v1053
        %v1055 = vrot.slane %v1054, 1
        %v1056 = vadd.f32 %v1054, %v1055
        %v1057 = vadd.f32 %v1045, %v1056
        %1058 = vst.msk [vmem:[%s4 + $0x6] sm:$0x1] %vm835, %v1057
        %s1059 = scalar_lea.vmem [#allocation2], 48
        %v1060 = vld [vmem:[%s1059] sm:$0xff]
        %v1061 = vld [vmem:[%s1059 + $0x8] sm:$0xff]
        %1062 = vmatprep.subr.mxu0 0.0
        %1063 = vmatpush1.msra.mxu0 %v1060
        %1064 = vmatprep.subr.mxu0 0.0
        %1065 = vmatpush1.msra.mxu0 %v1061
        %1066 = vmatprep.subr.mxu0 0.0
        %1067 = vmatpush1.msra.mxu0 0.0
        %1068 = vmatprep.subr.mxu0 0.0
        %1069 = vmatpush1.msra.mxu0 0.0
        %1070 = vmatprep.subr.mxu0 0.0
        %1071 = vmatpush1.msra.mxu0 0.0
        %1072 = vmatprep.subr.mxu0 0.0
        %1073 = vmatpush1.msra.mxu0 0.0
        %1074 = vmatprep.subr.mxu0 0.0
        %1075 = vmatpush1.msra.mxu0 0.0
        %1076 = vmatprep.subr.mxu0 0.0
        %1077 = vmatpush1.msra.mxu0 0.0
        %1078 = vmatprep.subr.mxu0 0.0
        %1079 = vmatpush1.msra.mxu0 0.0
        %1080 = vmatprep.subr.mxu0 0.0
        %1081 = vmatpush1.msra.mxu0 0.0
        %1082 = vmatprep.subr.mxu0 0.0
        %1083 = vmatpush1.msra.mxu0 0.0
        %1084 = vmatprep.subr.mxu0 0.0
        %1085 = vmatpush1.msra.mxu0 0.0
        %1086 = vmatprep.subr.mxu0 0.0
        %1087 = vmatpush1.msra.mxu0 0.0
        %1088 = vmatprep.subr.mxu0 0.0
        %1089 = vmatpush1.msra.mxu0 0.0
        %1090 = vmatprep.subr.mxu0 0.0
        %1091 = vmatpush1.msra.mxu0 0.0
        %1092 = vmatprep.subr.mxu0 0.0
        %1093 = vmatpush1.msra.mxu0 0.0
        %1094 = vmatprep.subr.mxu0 0.0
        %1095 = vmatpush1.msra.mxu0 0.0
        %1096 = vmatprep.subr.mxu0 0.0
        %1097 = vmatpush1.msra.mxu0 0.0
        %1098 = vmatprep.subr.mxu0 0.0
        %1099 = vmatpush1.msra.mxu0 0.0
        %1100 = vmatprep.subr.mxu0 0.0
        %1101 = vmatpush1.msra.mxu0 0.0
        %1102 = vmatprep.subr.mxu0 0.0
        %1103 = vmatpush1.msra.mxu0 0.0
        %1104 = vmatprep.subr.mxu0 0.0
        %1105 = vmatpush1.msra.mxu0 0.0
        %1106 = vmatprep.subr.mxu0 0.0
        %1107 = vmatpush1.msra.mxu0 0.0
        %1108 = vmatprep.subr.mxu0 0.0
        %1109 = vmatpush1.msra.mxu0 0.0
        %1110 = vmatprep.subr.mxu0 0.0
        %1111 = vmatpush1.msra.mxu0 0.0
        %1112 = vmatprep.subr.mxu0 0.0
        %1113 = vmatpush1.msra.mxu0 0.0
        %1114 = vmatprep.subr.mxu0 0.0
        %1115 = vmatpush1.msra.mxu0 0.0
        %1116 = vmatprep.subr.mxu0 0.0
        %1117 = vmatpush1.msra.mxu0 0.0
        %1118 = vmatprep.subr.mxu0 0.0
        %1119 = vmatpush1.msra.mxu0 0.0
        %1120 = vmatprep.subr.mxu0 0.0
        %1121 = vmatpush1.msra.mxu0 0.0
        %1122 = vmatprep.subr.mxu0 0.0
        %1123 = vmatpush1.msra.mxu0 0.0
        %1124 = vmatprep.subr.mxu0 0.0
        %1125 = vmatpush1.msra.mxu0 0.0
        %1126 = vmatprep.mubr.f32.mxu0 0.0
        %1127 = vmatmul.mubr.f32.gmra.mrb[0].mxu0 %v743
        %v1128 = vpop.f32.mrb[0].mxu0
        %v1129 = vadd.f32 0.0, %v1128
        %v1130 = vpop.f32.mrb[0].mxu0
        %1131 = vmatprep.mubr.f32.mxu0 0.0
        %1132 = vmatmul.mubr.f32.gmra.mrb[0].mxu0 %v746
        %v1133 = vpop.f32.mrb[0].mxu0
        %v1134 = vadd.f32 0.0, %v1133
        %v1135 = vpop.f32.mrb[0].mxu0
        %1136 = vdwg.mxu0
        %v1137 = vld [vmem:[%s4 + $0x3] sm:$0x1]
        %v1138 = vsel %vm824, %v1129, 0.0
        %v1139 = vsel %vm824, %v1134, 0.0
        %v1140 = vadd.f32 %v1138, %v1139
        %v1141 = vrot.slane %v1140, 4
        %v1142 = vadd.f32 %v1140, %v1141
        %v1143 = vrot.slane %v1142, 2
        %v1144 = vadd.f32 %v1142, %v1143
        %v1145 = vrot.slane %v1144, 1
        %v1146 = vadd.f32 %v1144, %v1145
        %v1147 = vadd.f32 %v1137, %v1146
        %1148 = vst.msk [vmem:[%s4 + $0x3] sm:$0x1] %vm835, %v1147
        %v1149 = vld [vmem:[%s4 + $0x7] sm:$0x1]
        %v1150 = vmul.f32 %v1129, %v1129
        %v1151 = vmul.f32 %v1134, %v1134
        %v1152 = vsel %vm824, %v1150, 0.0
        %v1153 = vsel %vm824, %v1151, 0.0
        %v1154 = vadd.f32 %v1152, %v1153
        %v1155 = vrot.slane %v1154, 4
        %v1156 = vadd.f32 %v1154, %v1155
        %v1157 = vrot.slane %v1156, 2
        %v1158 = vadd.f32 %v1156, %v1157
        %v1159 = vrot.slane %v1158, 1
        %v1160 = vadd.f32 %v1158, %v1159
        %v1161 = vadd.f32 %v1149, %v1160
        %1162 = vst.msk [vmem:[%s4 + $0x7] sm:$0x1] %vm835, %v1161
        // Predicated region
        $region57: #{double_factorized_increase.4} parent=35 // pred_check
          %p1163 = pneg %p139
        $region58: #{double_factorized_increase.4} parent=35 // pred_check_branch
          %1165 = sbr.rel (%p1163) target = $region60
        $region59: #{double_factorized_increase.4} parent=35 // pred_region
          _
        $region60: #{double_factorized_increase.4} parent=35 // pred_fallthru
          _
        // Predicated region
        $region61: #{double_factorized_increase.4} parent=35 // pred_check
          %p1166 = pneg %p139
        $region62: #{double_factorized_increase.4} parent=35 // pred_check_branch
          %1168 = sbr.rel (%p1166) target = $region64
        $region63: #{double_factorized_increase.4} parent=35 // pred_region
          _
        $region64: #{double_factorized_increase.4} parent=35 // pred_fallthru
          _
      $region36: #{double_factorized_increase.4} parent=5 // pred_fallthru
        _
      %p1169 = scmp.le.s32.totalorder 2, %s15
      // Predicated region
      $region65: #{double_factorized_increase.4} parent=5 // pred_check
        %p1170 = pneg %p1169
      $region66: #{double_factorized_increase.4} parent=5 // pred_check_branch
        %1172 = sbr.rel (%p1170) target = $region68
      $region67: #{double_factorized_increase.4} parent=5 // pred_region
        %s1173 = ssub.s32 %s15, 2
      $region68: #{double_factorized_increase.4} parent=5 // pred_fallthru
        _
    $region6: #{double_factorized_increase.4} parent=1 // loop_footer
      %s19 = sadd.s32 1, %s15
    $region7: #{double_factorized_increase.4} parent=1 // loop_footer_branch
      %14 = sbr.rel target = $region3
    $region8: #{double_factorized_increase.4} parent=1 // loop_exit
      _
    %1174 = vsyncpa [#allocation4], 1
    %s1175 = scalar_lea.sflag [#allocation4], 1
    %1176 = vsyncpa %s1175, 1
    %1177 = vsyncpa [#allocation8], 1
    %1178 = vsyncpa [#allocation5], 1
    %s1179 = scalar_lea.sflag [#allocation5], 1
    %1180 = vsyncpa %s1179, 1

// kernel: double_factorized_increase.6
$region0: #{double_factorized_increase.6}
  #allocation0 [shape = 'u32[]', space=smem, size = 0x4, offset = 0x4, fixed_abs, tag = 'smem constant byte address 0x4 - core index']
  #allocation1 [shape = 'u32[144,128]{1,0:T(1,128)}', space=vmem, size = 0x12000, scoped, tag = 'internal scratch']
  #allocation2 [shape = 'f32[4,32,64]{2,1,0:T(8,128)}', space=vmem, size = 0x10000, scoped, tag = 'scratch operand']
  %s0 = inlined_call_operand.vmem [shape: f32[2,4,32,32], index: 0, kind: input, shape index: {}]
  %s1 = inlined_call_operand.vmem [shape: f32[4,4], index: 1, kind: input, shape index: {}]
  %s2 = inlined_call_operand.vmem [shape: f32[32,64], index: 2, kind: input, shape index: {}]
  %s3 = inlined_call_operand.vmem [shape: f32[64,32], index: 3, kind: input, shape index: {}]
  %s4 = inlined_call_operand.vmem [shape: f32[8,64], index: 4, kind: output, shape index: {}]
  %s5 = sld [smem:[#allocation0]]
  $region61: #{double_factorized_increase.6} parent=0
    _
  %s7 = ssub.s32 1, %s5
  %s8 = scalar_select 0, %s7, %s5
  $region1: #{double_factorized_increase.6} parent=0
    #allocation3 [shape = 'u8[2048]{0}', space=smem, size = 0x800, scoped, tag = 'input window, operand 1, single buffered']
    #allocation4 [shape = 's32[2]{0}', space=sflag, size = 0x8, scoped, tag = 'scoped memory for double_factorized_increase.6']
    %9 = vsyncpa [#allocation4], 0
    loop: start=0, step=1, limit=10
    $region2: #{double_factorized_increase.6} parent=1 // loop_pre_header
      _
    $region3: #{double_factorized_increase.6} parent=1 // loop_header
      %s11 = sphi 0, %s15
      %p12 = scmp.ge.s32.totalorder %s11, 10
      %s18 = sphi 0, %s30
      %s19 = sphi 0, %s26
      %s20 = sphi 0, %s18
      %s21 = sphi 0, %s19
      %s22 = sphi 0, %s20
      %s23 = sphi 0, %s21
      %s33 = sphi 0, %s35
      %s36 = sphi 0, %s33
      %s37 = sphi 0, %s36
      %s53 = sphi 0, %s37
      %s57 = sphi 0, %s57
      %s59 = sphi 0, %s57
      %s60 = sphi 0, %s59
      %s74 = sphi 0, %s60
      %s78 = sphi 0, %s78
      %s80 = sphi 0, %s78
      %s81 = sphi 0, %s80
      %s95 = sphi 0, %s81
      %s101 = sphi 0, %s103
      %s104 = sphi 0, %s101
      %s105 = sphi 0, %s104
      %s121 = sphi 0, %s105
      %s125 = sphi 0, %s125
      %s127 = sphi 0, %s125
      %s128 = sphi 0, %s127
      %s142 = sphi 0, %s128
    $region4: #{double_factorized_increase.6} parent=1 // loop_header_branch
      %14 = sbr.rel (%p12) target = $region8
    $region5: #{double_factorized_increase.6} parent=1 // loop_body
      %s16 = ssub.s32 %s11, 1
      %s17 = ssub.s32 %s11, 2
      %s24 = sadd.s32 1, %s19
      %p25 = scmp.ge.s32.totalorder %s24, 4
      %s26 = scalar_select %p25, 0, %s24
      %s27 = sadd.s32 1, %s18
      %s28 = scalar_select %p25, %s27, %s18
      %p29 = scmp.ge.s32.totalorder %s28, 2
      %s30 = scalar_select %p29, 0, %s28
      %s31 = ssub.s32 %s18, %s30
      %p32 = scmp.eq.s32.totalorder %s31, 0
      %s34 = sadd.s32 %s33, 1
      %s35 = scalar_select %p32, %s33, %s34
      %p38 = pneg %p32
      %p39 = scmp.eq.s32.totalorder %s11, 7
      %p40 = por %p38, %p39
      %p41 = scmp.ne.s32.totalorder %s33, %s36
      %p42 = scmp.eq.s32.totalorder %s11, 0
      %p43 = por %p41, %p42
      %p44 = scmp.ne.s32.totalorder %s33, %s36
      %p45 = scmp.eq.s32.totalorder %s16, 7
      %p46 = por %p44, %p45
      %p47 = scmp.ne.s32.totalorder %s36, %s37
      %p48 = scmp.eq.s32.totalorder %s16, 0
      %p49 = por %p47, %p48
      %p50 = scmp.ne.s32.totalorder %s36, %s37
      %p51 = scmp.eq.s32.totalorder %s17, 7
      %p52 = por %p50, %p51
      %p54 = scmp.ne.s32.totalorder %s37, %s53
      %p55 = scmp.eq.s32.totalorder %s17, 0
      %p56 = por %p54, %p55
      %s58 = sadd.s32 %s57, 1
      %p61 = scmp.eq.s32.totalorder %s11, 7
      %p62 = scmp.ne.s32.totalorder %s57, %s59
      %p63 = scmp.eq.s32.totalorder %s11, 0
      %p64 = por %p62, %p63
      %p65 = scmp.ne.s32.totalorder %s57, %s59
      %p66 = scmp.eq.s32.totalorder %s16, 7
      %p67 = por %p65, %p66
      %p68 = scmp.ne.s32.totalorder %s59, %s60
      %p69 = scmp.eq.s32.totalorder %s16, 0
      %p70 = por %p68, %p69
      %p71 = scmp.ne.s32.totalorder %s59, %s60
      %p72 = scmp.eq.s32.totalorder %s17, 7
      %p73 = por %p71, %p72
      %p75 = scmp.ne.s32.totalorder %s60, %s74
      %p76 = scmp.eq.s32.totalorder %s17, 0
      %p77 = por %p75, %p76
      %s79 = sadd.s32 %s78, 1
      %p82 = scmp.eq.s32.totalorder %s11, 7
      %p83 = scmp.ne.s32.totalorder %s78, %s80
      %p84 = scmp.eq.s32.totalorder %s11, 0
      %p85 = por %p83, %p84
      %p86 = scmp.ne.s32.totalorder %s78, %s80
      %p87 = scmp.eq.s32.totalorder %s16, 7
      %p88 = por %p86, %p87
      %p89 = scmp.ne.s32.totalorder %s80, %s81
      %p90 = scmp.eq.s32.totalorder %s16, 0
      %p91 = por %p89, %p90
      %p92 = scmp.ne.s32.totalorder %s80, %s81
      %p93 = scmp.eq.s32.totalorder %s17, 7
      %p94 = por %p92, %p93
      %p96 = scmp.ne.s32.totalorder %s81, %s95
      %p97 = scmp.eq.s32.totalorder %s17, 0
      %p98 = por %p96, %p97
      %s99 = ssub.s32 %s19, %s26
      %p100 = scmp.eq.s32.totalorder %s99, 0
      %s102 = sadd.s32 %s101, 1
      %s103 = scalar_select %p100, %s101, %s102
      %p106 = pneg %p100
      %p107 = scmp.eq.s32.totalorder %s11, 7
      %p108 = por %p106, %p107
      %p109 = scmp.ne.s32.totalorder %s101, %s104
      %p110 = scmp.eq.s32.totalorder %s11, 0
      %p111 = por %p109, %p110
      %p112 = scmp.ne.s32.totalorder %s101, %s104
      %p113 = scmp.eq.s32.totalorder %s16, 7
      %p114 = por %p112, %p113
      %p115 = scmp.ne.s32.totalorder %s104, %s105
      %p116 = scmp.eq.s32.totalorder %s16, 0
      %p117 = por %p115, %p116
      %p118 = scmp.ne.s32.totalorder %s104, %s105
      %p119 = scmp.eq.s32.totalorder %s17, 7
      %p120 = por %p118, %p119
      %p122 = scmp.ne.s32.totalorder %s105, %s121
      %p123 = scmp.eq.s32.totalorder %s17, 0
      %p124 = por %p122, %p123
      %s126 = sadd.s32 %s125, 1
      %p129 = scmp.eq.s32.totalorder %s11, 7
      %p130 = scmp.ne.s32.totalorder %s125, %s127
      %p131 = scmp.eq.s32.totalorder %s11, 0
      %p132 = por %p130, %p131
      %p133 = scmp.ne.s32.totalorder %s125, %s127
      %p134 = scmp.eq.s32.totalorder %s16, 7
      %p135 = por %p133, %p134
      %p136 = scmp.ne.s32.totalorder %s127, %s128
      %p137 = scmp.eq.s32.totalorder %s16, 0
      %p138 = por %p136, %p137
      %p139 = scmp.ne.s32.totalorder %s127, %s128
      %p140 = scmp.eq.s32.totalorder %s17, 7
      %p141 = por %p139, %p140
      %p143 = scmp.ne.s32.totalorder %s128, %s142
      %p144 = scmp.eq.s32.totalorder %s17, 0
      %p145 = por %p143, %p144
      %p146 = scmp.le.s32.totalorder 1, %s11
      %p147 = scmp.lt.s32.totalorder %s11, 9
      %p148 = pnand %p146, %p147
      %p149 = pneg %p148
      // Predicated region
      $region9: #{double_factorized_increase.6} parent=5 // pred_check
        _
      $region10: #{double_factorized_increase.6} parent=5 // pred_check_branch
        %151 = sbr.rel (%p148) target = $region12
      $region11: #{double_factorized_increase.6} parent=5 // pred_region
        %s152 = ssub.s32 %s11, 1
        // Predicated region
        $region13: #{double_factorized_increase.6} parent=11 // pred_check
          %p153 = pneg %p70
        $region14: #{double_factorized_increase.6} parent=11 // pred_check_branch
          %155 = sbr.rel (%p153) target = $region16
        $region15: #{double_factorized_increase.6} parent=11 // pred_region
          %s157 = ssub.s32 64, 64
          %158 = vsyncadd [#allocation4], %s157
          %s160 = sshll.u32 %s1, 4
          %s161 = int_to_ptr.vmem [resolvable:$true] %s160
          %163 = dma.vmem_to_smem %s161, 64, [#allocation3], [#allocation4]
        $region16: #{double_factorized_increase.6} parent=11 // pred_fallthru
          _
        // Predicated region
        $region17: #{double_factorized_increase.6} parent=11 // pred_check
          %p164 = pneg %p91
        $region18: #{double_factorized_increase.6} parent=11 // pred_check_branch
          %166 = sbr.rel (%p164) target = $region20
        $region19: #{double_factorized_increase.6} parent=11 // pred_region
          _
        $region20: #{double_factorized_increase.6} parent=11 // pred_fallthru
          _
      $region12: #{double_factorized_increase.6} parent=5 // pred_fallthru
        _
      %p167 = scmp.lt.s32.totalorder %s11, 8
      // Predicated region
      $region21: #{double_factorized_increase.6} parent=5 // pred_check
        %p168 = pneg %p167
      $region22: #{double_factorized_increase.6} parent=5 // pred_check_branch
        %170 = sbr.rel (%p168) target = $region24
      $region23: #{double_factorized_increase.6} parent=5 // pred_region
        // Predicated region
        $region25: #{double_factorized_increase.6} parent=23 // pred_check
          %p171 = pneg %p43
        $region26: #{double_factorized_increase.6} parent=23 // pred_check_branch
          %173 = sbr.rel (%p171) target = $region28
        $region27: #{double_factorized_increase.6} parent=23 // pred_region
          %p174 = scmp.lt.s32.totalorder %s18, 1
          %s175 = scalar_select %p174, %s18, 1
          %s176 = smul.addr %s175, 16
          %s177 = smul.addr %s176, 8
          %s178 = scalar_lea.vmem %s0, %s177
        $region28: #{double_factorized_increase.6} parent=23 // pred_fallthru
          _
        // Predicated region
        $region29: #{double_factorized_increase.6} parent=23 // pred_check
          %p179 = pneg %p111
        $region30: #{double_factorized_increase.6} parent=23 // pred_check_branch
          %181 = sbr.rel (%p179) target = $region32
        $region31: #{double_factorized_increase.6} parent=23 // pred_region
          %s182 = smul.u32 2, %s19
          %p183 = scmp.lt.s32.totalorder %s182, 7
          %s184 = scalar_select %p183, %s182, 7
          %s185 = smul.addr %s184, 8
          %s186 = scalar_lea.vmem %s3, %s185
          %s187 = smul.u32 2, %s19
        $region32: #{double_factorized_increase.6} parent=23 // pred_fallthru
          _
      $region24: #{double_factorized_increase.6} parent=5 // pred_fallthru
        _
      %p188 = scmp.le.s32.totalorder 1, %s11
      %p189 = scmp.lt.s32.totalorder %s11, 9
      %p190 = pnand %p188, %p189
      %p191 = pneg %p190
      // Predicated region
      $region33: #{double_factorized_increase.6} parent=5 // pred_check
        _
      $region34: #{double_factorized_increase.6} parent=5 // pred_check_branch
        %193 = sbr.rel (%p190) target = $region36
      $region35: #{double_factorized_increase.6} parent=5 // pred_region
        %s194 = ssub.s32 %s11, 1
        // Predicated region
        $region37: #{double_factorized_increase.6} parent=35 // pred_check
          %p195 = pneg %p70
        $region38: #{double_factorized_increase.6} parent=35 // pred_check_branch
          %197 = sbr.rel (%p195) target = $region40
        $region39: #{double_factorized_increase.6} parent=35 // pred_region
          %198 = dma.done [#allocation4], 64
        $region40: #{double_factorized_increase.6} parent=35 // pred_fallthru
          _
        %199 = sfence
        %p200 = scmp.lt.s32.totalorder %s20, 1
        %s201 = scalar_select %p200, %s20, 1
        %s202 = smul.addr %s201, 16
        %s203 = smul.addr %s202, 8
        %s204 = scalar_lea.vmem %s0, %s203
        %p205 = pneg %p49
        %p206 = pneg %p46
        %p207 = pneg %p70
        %p208 = pneg %p67
        %p209 = pneg %p91
        %p210 = pneg %p88
        %s211 = smul.u32 2, %s21
        %p212 = scmp.lt.s32.totalorder %s211, 7
        %s213 = scalar_select %p212, %s211, 7
        %s214 = smul.addr %s213, 8
        %s215 = scalar_lea.vmem %s3, %s214
        %p216 = pneg %p117
        %p217 = pneg %p114
        %p218 = pneg %p138
        %p219 = pneg %p135
        %p220 = scmp.lt.s32.totalorder %s20, 1
        %s221 = scalar_select %p220, %s20, 1
        %s222 = smul.addr %s221, 16
        %s223 = smul.addr %s222, 8
        %s224 = scalar_lea.vmem %s0, %s223
        %s225 = smul.u32 2, %s21
        %p226 = scmp.lt.s32.totalorder %s225, 7
        %s227 = scalar_select %p226, %s225, 7
        %s228 = smul.addr %s227, 8
        %s229 = scalar_lea.vmem %s3, %s228
        %s230 = smul.u32 2, %s21
        %p231 = scmp.eq.s32.totalorder %s20, 0
        %p232 = scmp.eq.s32.totalorder %s21, 0
        %p233 = pnand %p231, %p232
        %p234 = pneg %p233
        // Predicated region
        $region41: #{double_factorized_increase.6} parent=35 // pred_check
          _
        $region42: #{double_factorized_increase.6} parent=35 // pred_check_branch
          %236 = sbr.rel (%p233) target = $region44
        $region43: #{double_factorized_increase.6} parent=35 // pred_region
          %vm237 = vcmask 523264
          %238 = vst.msk [vmem:[%s4] sm:$0xff] %vm237, 0.0
        $region44: #{double_factorized_increase.6} parent=35 // pred_fallthru
          _
        // Predicated region
        $region45: #{double_factorized_increase.6} parent=35 // pred_check
          %p239 = pneg %p232
        $region46: #{double_factorized_increase.6} parent=35 // pred_check_branch
          %241 = sbr.rel (%p239) target = $region48
        $region47: #{double_factorized_increase.6} parent=35 // pred_region
          %v242 = vld [vmem:[%s2] sm:$0xff]
          %v243 = vld [vmem:[%s2 + $0x8] sm:$0xff]
          %v244 = vld [vmem:[%s2 + $0x10] sm:$0xff]
          %v245 = vld [vmem:[%s2 + $0x18] sm:$0xff]
          %s246 = sld [smem:[#allocation3]]
          %v247 = vld [vmem:[%s224] sm:$0xff]
          %v248 = vld [vmem:[%s224 + $0x8] sm:$0xff]
          %v249 = vld [vmem:[%s224 + $0x10] sm:$0xff]
          %v250 = vld [vmem:[%s224 + $0x18] sm:$0xff]
          %v251 = vstv %s246
          %v252 = vmul.f32 %v251, %v247
          %v253 = vmul.f32 %v251, %v248
          %v254 = vmul.f32 %v251, %v249
          %v255 = vmul.f32 %v251, %v250
          %s256 = sld [smem:[#allocation3 + $0x1]]
          %s257 = scalar_lea.vmem %s224, 32
          %v258 = vld [vmem:[%s257] sm:$0xff]
          %v259 = vld [vmem:[%s257 + $0x8] sm:$0xff]
          %v260 = vld [vmem:[%s257 + $0x10] sm:$0xff]
          %v261 = vld [vmem:[%s257 + $0x18] sm:$0xff]
          %v262 = vstv %s256
          %v263 = vmul.f32 %v262, %v258
          %v264 = vmul.f32 %v262, %v259
          %v265 = vmul.f32 %v262, %v260
          %v266 = vmul.f32 %v262, %v261
          %v267 = vadd.f32 %v252, %v263
          %v268 = vadd.f32 %v253, %v264
          %v269 = vadd.f32 %v254, %v265
          %v270 = vadd.f32 %v255, %v266
          %s271 = sld [smem:[#allocation3 + $0x2]]
          %s272 = scalar_lea.vmem %s224, 64
          %v273 = vld [vmem:[%s272] sm:$0xff]
          %v274 = vld [vmem:[%s272 + $0x8] sm:$0xff]
          %v275 = vld [vmem:[%s272 + $0x10] sm:$0xff]
          %v276 = vld [vmem:[%s272 + $0x18] sm:$0xff]
          %v277 = vstv %s271
          %v278 = vmul.f32 %v277, %v273
          %v279 = vmul.f32 %v277, %v274
          %v280 = vmul.f32 %v277, %v275
          %v281 = vmul.f32 %v277, %v276
          %v282 = vadd.f32 %v267, %v278
          %v283 = vadd.f32 %v268, %v279
          %v284 = vadd.f32 %v269, %v280
          %v285 = vadd.f32 %v270, %v281
          %s286 = sld [smem:[#allocation3 + $0x3]]
          %s287 = scalar_lea.vmem %s224, 96
          %v288 = vld [vmem:[%s287] sm:$0xff]
          %v289 = vld [vmem:[%s287 + $0x8] sm:$0xff]
          %v290 = vld [vmem:[%s287 + $0x10] sm:$0xff]
          %v291 = vld [vmem:[%s287 + $0x18] sm:$0xff]
          %v292 = vstv %s286
          %v293 = vmul.f32 %v292, %v288
          %v294 = vmul.f32 %v292, %v289
          %v295 = vmul.f32 %v292, %v290
          %v296 = vmul.f32 %v292, %v291
          %v297 = vadd.f32 %v282, %v293
          %v298 = vadd.f32 %v283, %v294
          %v299 = vadd.f32 %v284, %v295
          %v300 = vadd.f32 %v285, %v296
          %vm301 = vcmask 261120
          %v303 = vsel %vm301, %v297, 0
          %v306 = vsel %vm301, %v298, 0
          %v309 = vsel %vm301, %v299, 0
          %v312 = vsel %vm301, %v300, 0
          %314 = vmatprep.subr.mxu0 0.0
          %315 = vmatpush1.msra.mxu0 %v242
          %316 = vmatprep.subr.mxu0 0.0
          %317 = vmatpush1.msra.mxu0 %v243
          %318 = vmatprep.subr.mxu0 0.0
          %319 = vmatpush1.msra.mxu0 %v244
          %320 = vmatprep.subr.mxu0 0.0
          %321 = vmatpush1.msra.mxu0 %v245
          %322 = vmatprep.subr.mxu0 0.0
          %323 = vmatpush1.msra.mxu0 0.0
          %324 = vmatprep.subr.mxu0 0.0
          %325 = vmatpush1.msra.mxu0 0.0
          %326 = vmatprep.subr.mxu0 0.0
          %327 = vmatpush1.msra.mxu0 0.0
          %328 = vmatprep.subr.mxu0 0.0
          %329 = vmatpush1.msra.mxu0 0.0
          %330 = vmatprep.subr.mxu0 0.0
          %331 = vmatpush1.msra.mxu0 0.0
          %332 = vmatprep.subr.mxu0 0.0
          %333 = vmatpush1.msra.mxu0 0.0
          %334 = vmatprep.subr.mxu0 0.0
          %335 = vmatpush1.msra.mxu0 0.0
          %336 = vmatprep.subr.mxu0 0.0
          %337 = vmatpush1.msra.mxu0 0.0
          %338 = vmatprep.subr.mxu0 0.0
          %339 = vmatpush1.msra.mxu0 0.0
          %340 = vmatprep.subr.mxu0 0.0
          %341 = vmatpush1.msra.mxu0 0.0
          %342 = vmatprep.subr.mxu0 0.0
          %343 = vmatpush1.msra.mxu0 0.0
          %344 = vmatprep.subr.mxu0 0.0
          %345 = vmatpush1.msra.mxu0 0.0
          %346 = vmatprep.subr.mxu0 0.0
          %347 = vmatpush1.msra.mxu0 0.0
          %348 = vmatprep.subr.mxu0 0.0
          %349 = vmatpush1.msra.mxu0 0.0
          %350 = vmatprep.subr.mxu0 0.0
          %351 = vmatpush1.msra.mxu0 0.0
          %352 = vmatprep.subr.mxu0 0.0
          %353 = vmatpush1.msra.mxu0 0.0
          %354 = vmatprep.subr.mxu0 0.0
          %355 = vmatpush1.msra.mxu0 0.0
          %356 = vmatprep.subr.mxu0 0.0
          %357 = vmatpush1.msra.mxu0 0.0
          %358 = vmatprep.subr.mxu0 0.0
          %359 = vmatpush1.msra.mxu0 0.0
          %360 = vmatprep.subr.mxu0 0.0
          %361 = vmatpush1.msra.mxu0 0.0
          %362 = vmatprep.subr.mxu0 0.0
          %363 = vmatpush1.msra.mxu0 0.0
          %364 = vmatprep.subr.mxu0 0.0
          %365 = vmatpush1.msra.mxu0 0.0
          %366 = vmatprep.subr.mxu0 0.0
          %367 = vmatpush1.msra.mxu0 0.0
          %368 = vmatprep.subr.mxu0 0.0
          %369 = vmatpush1.msra.mxu0 0.0
          %370 = vmatprep.subr.mxu0 0.0
          %371 = vmatpush1.msra.mxu0 0.0
          %372 = vmatprep.subr.mxu0 0.0
          %373 = vmatpush1.msra.mxu0 0.0
          %374 = vmatprep.subr.mxu0 0.0
          %375 = vmatpush1.msra.mxu0 0.0
          %376 = vmatprep.subr.mxu0 0.0
          %377 = vmatpush1.msra.mxu0 0.0
          %378 = vmatprep.mubr.f32.mxu0 0.0
          %379 = vmatmul.mubr.f32.gmra.mrb[0].mxu0 %v303
          %v380 = vpop.f32.mrb[0].mxu0
          %v381 = vadd.f32 0.0, %v380
          %v382 = vpop.f32.mrb[0].mxu0
          %383 = vmatprep.mubr.f32.mxu0 0.0
          %384 = vmatmul.mubr.f32.gmra.mrb[0].mxu0 %v306
          %v385 = vpop.f32.mrb[0].mxu0
          %v386 = vadd.f32 0.0, %v385
          %v387 = vpop.f32.mrb[0].mxu0
          %388 = vmatprep.mubr.f32.mxu0 0.0
          %389 = vmatmul.mubr.f32.gmra.mrb[0].mxu0 %v309
          %v390 = vpop.f32.mrb[0].mxu0
          %v391 = vadd.f32 0.0, %v390
          %v392 = vpop.f32.mrb[0].mxu0
          %393 = vmatprep.mubr.f32.mxu0 0.0
          %394 = vmatmul.mubr.f32.gmra.mrb[0].mxu0 %v312
          %v395 = vpop.f32.mrb[0].mxu0
          %v396 = vadd.f32 0.0, %v395
          %v397 = vpop.f32.mrb[0].mxu0
          %398 = vdwg.mxu0
          %vm399 = vcmask 523264
          %400 = vst.msk [vmem:[#allocation2] sm:$0xff] %vm399, %v381
          %401 = vst.msk [vmem:[#allocation2 + $0x8] sm:$0xff] %vm399, %v386
          %402 = vst.msk [vmem:[#allocation2 + $0x10] sm:$0xff] %vm399, %v391
          %403 = vst.msk [vmem:[#allocation2 + $0x18] sm:$0xff] %vm399, %v396
          %s404 = sld [smem:[#allocation3 + $0x80]]
          %v405 = vld [vmem:[%s224] sm:$0xff]
          %v406 = vld [vmem:[%s224 + $0x8] sm:$0xff]
          %v407 = vld [vmem:[%s224 + $0x10] sm:$0xff]
          %v408 = vld [vmem:[%s224 + $0x18] sm:$0xff]
          %v409 = vstv %s404
          %v410 = vmul.f32 %v409, %v405
          %v411 = vmul.f32 %v409, %v406
          %v412 = vmul.f32 %v409, %v407
          %v413 = vmul.f32 %v409, %v408
          %s414 = sld [smem:[#allocation3 + $0x81]]
          %v415 = vld [vmem:[%s257] sm:$0xff]
          %v416 = vld [vmem:[%s257 + $0x8] sm:$0xff]
          %v417 = vld [vmem:[%s257 + $0x10] sm:$0xff]
          %v418 = vld [vmem:[%s257 + $0x18] sm:$0xff]
          %v419 = vstv %s414
          %v420 = vmul.f32 %v419, %v415
          %v421 = vmul.f32 %v419, %v416
          %v422 = vmul.f32 %v419, %v417
          %v423 = vmul.f32 %v419, %v418
          %v424 = vadd.f32 %v410, %v420
          %v425 = vadd.f32 %v411, %v421
          %v426 = vadd.f32 %v412, %v422
          %v427 = vadd.f32 %v413, %v423
          %s428 = sld [smem:[#allocation3 + $0x82]]
          %v429 = vld [vmem:[%s272] sm:$0xff]
          %v430 = vld [vmem:[%s272 + $0x8] sm:$0xff]
          %v431 = vld [vmem:[%s272 + $0x10] sm:$0xff]
          %v432 = vld [vmem:[%s272 + $0x18] sm:$0xff]
          %v433 = vstv %s428
          %v434 = vmul.f32 %v433, %v429
          %v435 = vmul.f32 %v433, %v430
          %v436 = vmul.f32 %v433, %v431
          %v437 = vmul.f32 %v433, %v432
          %v438 = vadd.f32 %v424, %v434
          %v439 = vadd.f32 %v425, %v435
          %v440 = vadd.f32 %v426, %v436
          %v441 = vadd.f32 %v427, %v437
          %s442 = sld [smem:[#allocation3 + $0x83]]
          %v443 = vld [vmem:[%s287] sm:$0xff]
          %v444 = vld [vmem:[%s287 + $0x8] sm:$0xff]
          %v445 = vld [vmem:[%s287 + $0x10] sm:$0xff]
          %v446 = vld [vmem:[%s287 + $0x18] sm:$0xff]
          %v447 = vstv %s442
          %v448 = vmul.f32 %v447, %v443
          %v449 = vmul.f32 %v447, %v444
          %v450 = vmul.f32 %v447, %v445
          %v451 = vmul.f32 %v447, %v446
          %v452 = vadd.f32 %v438, %v448
          %v453 = vadd.f32 %v439, %v449
          %v454 = vadd.f32 %v440, %v450
          %v455 = vadd.f32 %v441, %v451
          %v457 = vsel %vm301, %v452, 0
          %v460 = vsel %vm301, %v453, 0
          %v463 = vsel %vm301, %v454, 0
          %v466 = vsel %vm301, %v455, 0
          %468 = vmatprep.subr.mxu0 0.0
          %469 = vmatpush1.msra.mxu0 %v242
          %470 = vmatprep.subr.mxu0 0.0
          %471 = vmatpush1.msra.mxu0 %v243
          %472 = vmatprep.subr.mxu0 0.0
          %473 = vmatpush1.msra.mxu0 %v244
          %474 = vmatprep.subr.mxu0 0.0
          %475 = vmatpush1.msra.mxu0 %v245
          %476 = vmatprep.subr.mxu0 0.0
          %477 = vmatpush1.msra.mxu0 0.0
          %478 = vmatprep.subr.mxu0 0.0
          %479 = vmatpush1.msra.mxu0 0.0
          %480 = vmatprep.subr.mxu0 0.0
          %481 = vmatpush1.msra.mxu0 0.0
          %482 = vmatprep.subr.mxu0 0.0
          %483 = vmatpush1.msra.mxu0 0.0
          %484 = vmatprep.subr.mxu0 0.0
          %485 = vmatpush1.msra.mxu0 0.0
          %486 = vmatprep.subr.mxu0 0.0
          %487 = vmatpush1.msra.mxu0 0.0
          %488 = vmatprep.subr.mxu0 0.0
          %489 = vmatpush1.msra.mxu0 0.0
          %490 = vmatprep.subr.mxu0 0.0
          %491 = vmatpush1.msra.mxu0 0.0
          %492 = vmatprep.subr.mxu0 0.0
          %493 = vmatpush1.msra.mxu0 0.0
          %494 = vmatprep.subr.mxu0 0.0
          %495 = vmatpush1.msra.mxu0 0.0
          %496 = vmatprep.subr.mxu0 0.0
          %497 = vmatpush1.msra.mxu0 0.0
          %498 = vmatprep.subr.mxu0 0.0
          %499 = vmatpush1.msra.mxu0 0.0
          %500 = vmatprep.subr.mxu0 0.0
          %501 = vmatpush1.msra.mxu0 0.0
          %502 = vmatprep.subr.mxu0 0.0
          %503 = vmatpush1.msra.mxu0 0.0
          %504 = vmatprep.subr.mxu0 0.0
          %505 = vmatpush1.msra.mxu0 0.0
          %506 = vmatprep.subr.mxu0 0.0
          %507 = vmatpush1.msra.mxu0 0.0
          %508 = vmatprep.subr.mxu0 0.0
          %509 = vmatpush1.msra.mxu0 0.0
          %510 = vmatprep.subr.mxu0 0.0
          %511 = vmatpush1.msra.mxu0 0.0
          %512 = vmatprep.subr.mxu0 0.0
          %513 = vmatpush1.msra.mxu0 0.0
          %514 = vmatprep.subr.mxu0 0.0
          %515 = vmatpush1.msra.mxu0 0.0
          %516 = vmatprep.subr.mxu0 0.0
          %517 = vmatpush1.msra.mxu0 0.0
          %518 = vmatprep.subr.mxu0 0.0
          %519 = vmatpush1.msra.mxu0 0.0
          %520 = vmatprep.subr.mxu0 0.0
          %521 = vmatpush1.msra.mxu0 0.0
          %522 = vmatprep.subr.mxu0 0.0
          %523 = vmatpush1.msra.mxu0 0.0
          %524 = vmatprep.subr.mxu0 0.0
          %525 = vmatpush1.msra.mxu0 0.0
          %526 = vmatprep.subr.mxu0 0.0
          %527 = vmatpush1.msra.mxu0 0.0
          %528 = vmatprep.subr.mxu0 0.0
          %529 = vmatpush1.msra.mxu0 0.0
          %530 = vmatprep.subr.mxu0 0.0
          %531 = vmatpush1.msra.mxu0 0.0
          %532 = vmatprep.mubr.f32.mxu0 0.0
          %533 = vmatmul.mubr.f32.gmra.mrb[0].mxu0 %v457
          %v534 = vpop.f32.mrb[0].mxu0
          %v535 = vadd.f32 0.0, %v534
          %v536 = vpop.f32.mrb[0].mxu0
          %537 = vmatprep.mubr.f32.mxu0 0.0
          %538 = vmatmul.mubr.f32.gmra.mrb[0].mxu0 %v460
          %v539 = vpop.f32.mrb[0].mxu0
          %v540 = vadd.f32 0.0, %v539
          %v541 = vpop.f32.mrb[0].mxu0
          %542 = vmatprep.mubr.f32.mxu0 0.0
          %543 = vmatmul.mubr.f32.gmra.mrb[0].mxu0 %v463
          %v544 = vpop.f32.mrb[0].mxu0
          %v545 = vadd.f32 0.0, %v544
          %v546 = vpop.f32.mrb[0].mxu0
          %547 = vmatprep.mubr.f32.mxu0 0.0
          %548 = vmatmul.mubr.f32.gmra.mrb[0].mxu0 %v466
          %v549 = vpop.f32.mrb[0].mxu0
          %v550 = vadd.f32 0.0, %v549
          %v551 = vpop.f32.mrb[0].mxu0
          %552 = vdwg.mxu0
          %s553 = scalar_lea.vmem [#allocation2], 32
          %554 = vst.msk [vmem:[%s553] sm:$0xff] %vm399, %v535
          %555 = vst.msk [vmem:[%s553 + $0x8] sm:$0xff] %vm399, %v540
          %556 = vst.msk [vmem:[%s553 + $0x10] sm:$0xff] %vm399, %v545
          %557 = vst.msk [vmem:[%s553 + $0x18] sm:$0xff] %vm399, %v550
          %s558 = sld [smem:[#allocation3 + $0x100]]
          %v559 = vld [vmem:[%s224] sm:$0xff]
          %v560 = vld [vmem:[%s224 + $0x8] sm:$0xff]
          %v561 = vld [vmem:[%s224 + $0x10] sm:$0xff]
          %v562 = vld [vmem:[%s224 + $0x18] sm:$0xff]
          %v563 = vstv %s558
          %v564 = vmul.f32 %v563, %v559
          %v565 = vmul.f32 %v563, %v560
          %v566 = vmul.f32 %v563, %v561
          %v567 = vmul.f32 %v563, %v562
          %s568 = sld [smem:[#allocation3 + $0x101]]
          %v569 = vld [vmem:[%s257] sm:$0xff]
          %v570 = vld [vmem:[%s257 + $0x8] sm:$0xff]
          %v571 = vld [vmem:[%s257 + $0x10] sm:$0xff]
          %v572 = vld [vmem:[%s257 + $0x18] sm:$0xff]
          %v573 = vstv %s568
          %v574 = vmul.f32 %v573, %v569
          %v575 = vmul.f32 %v573, %v570
          %v576 = vmul.f32 %v573, %v571
          %v577 = vmul.f32 %v573, %v572
          %v578 = vadd.f32 %v564, %v574
          %v579 = vadd.f32 %v565, %v575
          %v580 = vadd.f32 %v566, %v576
          %v581 = vadd.f32 %v567, %v577
          %s582 = sld [smem:[#allocation3 + $0x102]]
          %v583 = vld [vmem:[%s272] sm:$0xff]
          %v584 = vld [vmem:[%s272 + $0x8] sm:$0xff]
          %v585 = vld [vmem:[%s272 + $0x10] sm:$0xff]
          %v586 = vld [vmem:[%s272 + $0x18] sm:$0xff]
          %v587 = vstv %s582
          %v588 = vmul.f32 %v587, %v583
          %v589 = vmul.f32 %v587, %v584
          %v590 = vmul.f32 %v587, %v585
          %v591 = vmul.f32 %v587, %v586
          %v592 = vadd.f32 %v578, %v588
          %v593 = vadd.f32 %v579, %v589
          %v594 = vadd.f32 %v580, %v590
          %v595 = vadd.f32 %v581, %v591
          %s596 = sld [smem:[#allocation3 + $0x103]]
          %v597 = vld [vmem:[%s287] sm:$0xff]
          %v598 = vld [vmem:[%s287 + $0x8] sm:$0xff]
          %v599 = vld [vmem:[%s287 + $0x10] sm:$0xff]
          %v600 = vld [vmem:[%s287 + $0x18] sm:$0xff]
          %v601 = vstv %s596
          %v602 = vmul.f32 %v601, %v597
          %v603 = vmul.f32 %v601, %v598
          %v604 = vmul.f32 %v601, %v599
          %v605 = vmul.f32 %v601, %v600
          %v606 = vadd.f32 %v592, %v602
          %v607 = vadd.f32 %v593, %v603
          %v608 = vadd.f32 %v594, %v604
          %v609 = vadd.f32 %v595, %v605
          %v611 = vsel %vm301, %v606, 0
          %v614 = vsel %vm301, %v607, 0
          %v617 = vsel %vm301, %v608, 0
          %v620 = vsel %vm301, %v609, 0
          %622 = vmatprep.subr.mxu0 0.0
          %623 = vmatpush1.msra.mxu0 %v242
          %624 = vmatprep.subr.mxu0 0.0
          %625 = vmatpush1.msra.mxu0 %v243
          %626 = vmatprep.subr.mxu0 0.0
          %627 = vmatpush1.msra.mxu0 %v244
          %628 = vmatprep.subr.mxu0 0.0
          %629 = vmatpush1.msra.mxu0 %v245
          %630 = vmatprep.subr.mxu0 0.0
          %631 = vmatpush1.msra.mxu0 0.0
          %632 = vmatprep.subr.mxu0 0.0
          %633 = vmatpush1.msra.mxu0 0.0
          %634 = vmatprep.subr.mxu0 0.0
          %635 = vmatpush1.msra.mxu0 0.0
          %636 = vmatprep.subr.mxu0 0.0
          %637 = vmatpush1.msra.mxu0 0.0
          %638 = vmatprep.subr.mxu0 0.0
          %639 = vmatpush1.msra.mxu0 0.0
          %640 = vmatprep.subr.mxu0 0.0
          %641 = vmatpush1.msra.mxu0 0.0
          %642 = vmatprep.subr.mxu0 0.0
          %643 = vmatpush1.msra.mxu0 0.0
          %644 = vmatprep.subr.mxu0 0.0
          %645 = vmatpush1.msra.mxu0 0.0
          %646 = vmatprep.subr.mxu0 0.0
          %647 = vmatpush1.msra.mxu0 0.0
          %648 = vmatprep.subr.mxu0 0.0
          %649 = vmatpush1.msra.mxu0 0.0
          %650 = vmatprep.subr.mxu0 0.0
          %651 = vmatpush1.msra.mxu0 0.0
          %652 = vmatprep.subr.mxu0 0.0
          %653 = vmatpush1.msra.mxu0 0.0
          %654 = vmatprep.subr.mxu0 0.0
          %655 = vmatpush1.msra.mxu0 0.0
          %656 = vmatprep.subr.mxu0 0.0
          %657 = vmatpush1.msra.mxu0 0.0
          %658 = vmatprep.subr.mxu0 0.0
          %659 = vmatpush1.msra.mxu0 0.0
          %660 = vmatprep.subr.mxu0 0.0
          %661 = vmatpush1.msra.mxu0 0.0
          %662 = vmatprep.subr.mxu0 0.0
          %663 = vmatpush1.msra.mxu0 0.0
          %664 = vmatprep.subr.mxu0 0.0
          %665 = vmatpush1.msra.mxu0 0.0
          %666 = vmatprep.subr.mxu0 0.0
          %667 = vmatpush1.msra.mxu0 0.0
          %668 = vmatprep.subr.mxu0 0.0
          %669 = vmatpush1.msra.mxu0 0.0
          %670 = vmatprep.subr.mxu0 0.0
          %671 = vmatpush1.msra.mxu0 0.0
          %672 = vmatprep.subr.mxu0 0.0
          %673 = vmatpush1.msra.mxu0 0.0
          %674 = vmatprep.subr.mxu0 0.0
          %675 = vmatpush1.msra.mxu0 0.0
          %676 = vmatprep.subr.mxu0 0.0
          %677 = vmatpush1.msra.mxu0 0.0
          %678 = vmatprep.subr.mxu0 0.0
          %679 = vmatpush1.msra.mxu0 0.0
          %680 = vmatprep.subr.mxu0 0.0
          %681 = vmatpush1.msra.mxu0 0.0
          %682 = vmatprep.subr.mxu0 0.0
          %683 = vmatpush1.msra.mxu0 0.0
          %684 = vmatprep.subr.mxu0 0.0
          %685 = vmatpush1.msra.mxu0 0.0
          %686 = vmatprep.mubr.f32.mxu0 0.0
          %687 = vmatmul.mubr.f32.gmra.mrb[0].mxu0 %v611
          %v688 = vpop.f32.mrb[0].mxu0
          %v689 = vadd.f32 0.0, %v688
          %v690 = vpop.f32.mrb[0].mxu0
          %691 = vmatprep.mubr.f32.mxu0 0.0
          %692 = vmatmul.mubr.f32.gmra.mrb[0].mxu0 %v614
          %v693 = vpop.f32.mrb[0].mxu0
          %v694 = vadd.f32 0.0, %v693
          %v695 = vpop.f32.mrb[0].mxu0
          %696 = vmatprep.mubr.f32.mxu0 0.0
          %697 = vmatmul.mubr.f32.gmra.mrb[0].mxu0 %v617
          %v698 = vpop.f32.mrb[0].mxu0
          %v699 = vadd.f32 0.0, %v698
          %v700 = vpop.f32.mrb[0].mxu0
          %701 = vmatprep.mubr.f32.mxu0 0.0
          %702 = vmatmul.mubr.f32.gmra.mrb[0].mxu0 %v620
          %v703 = vpop.f32.mrb[0].mxu0
          %v704 = vadd.f32 0.0, %v703
          %v705 = vpop.f32.mrb[0].mxu0
          %706 = vdwg.mxu0
          %s707 = scalar_lea.vmem [#allocation2], 64
          %708 = vst.msk [vmem:[%s707] sm:$0xff] %vm399, %v689
          %709 = vst.msk [vmem:[%s707 + $0x8] sm:$0xff] %vm399, %v694
          %710 = vst.msk [vmem:[%s707 + $0x10] sm:$0xff] %vm399, %v699
          %711 = vst.msk [vmem:[%s707 + $0x18] sm:$0xff] %vm399, %v704
          %s712 = sld [smem:[#allocation3 + $0x180]]
          %v713 = vld [vmem:[%s224] sm:$0xff]
          %v714 = vld [vmem:[%s224 + $0x8] sm:$0xff]
          %v715 = vld [vmem:[%s224 + $0x10] sm:$0xff]
          %v716 = vld [vmem:[%s224 + $0x18] sm:$0xff]
          %v717 = vstv %s712
          %v718 = vmul.f32 %v717, %v713
          %v719 = vmul.f32 %v717, %v714
          %v720 = vmul.f32 %v717, %v715
          %v721 = vmul.f32 %v717, %v716
          %s722 = sld [smem:[#allocation3 + $0x181]]
          %v723 = vld [vmem:[%s257] sm:$0xff]
          %v724 = vld [vmem:[%s257 + $0x8] sm:$0xff]
          %v725 = vld [vmem:[%s257 + $0x10] sm:$0xff]
          %v726 = vld [vmem:[%s257 + $0x18] sm:$0xff]
          %v727 = vstv %s722
          %v728 = vmul.f32 %v727, %v723
          %v729 = vmul.f32 %v727, %v724
          %v730 = vmul.f32 %v727, %v725
          %v731 = vmul.f32 %v727, %v726
          %v732 = vadd.f32 %v718, %v728
          %v733 = vadd.f32 %v719, %v729
          %v734 = vadd.f32 %v720, %v730
          %v735 = vadd.f32 %v721, %v731
          %s736 = sld [smem:[#allocation3 + $0x182]]
          %v737 = vld [vmem:[%s272] sm:$0xff]
          %v738 = vld [vmem:[%s272 + $0x8] sm:$0xff]
          %v739 = vld [vmem:[%s272 + $0x10] sm:$0xff]
          %v740 = vld [vmem:[%s272 + $0x18] sm:$0xff]
          %v741 = vstv %s736
          %v742 = vmul.f32 %v741, %v737
          %v743 = vmul.f32 %v741, %v738
          %v744 = vmul.f32 %v741, %v739
          %v745 = vmul.f32 %v741, %v740
          %v746 = vadd.f32 %v732, %v742
          %v747 = vadd.f32 %v733, %v743
          %v748 = vadd.f32 %v734, %v744
          %v749 = vadd.f32 %v735, %v745
          %s750 = sld [smem:[#allocation3 + $0x183]]
          %v751 = vld [vmem:[%s287] sm:$0xff]
          %v752 = vld [vmem:[%s287 + $0x8] sm:$0xff]
          %v753 = vld [vmem:[%s287 + $0x10] sm:$0xff]
          %v754 = vld [vmem:[%s287 + $0x18] sm:$0xff]
          %v755 = vstv %s750
          %v756 = vmul.f32 %v755, %v751
          %v757 = vmul.f32 %v755, %v752
          %v758 = vmul.f32 %v755, %v753
          %v759 = vmul.f32 %v755, %v754
          %v760 = vadd.f32 %v746, %v756
          %v761 = vadd.f32 %v747, %v757
          %v762 = vadd.f32 %v748, %v758
          %v763 = vadd.f32 %v749, %v759
          %v765 = vsel %vm301, %v760, 0
          %v768 = vsel %vm301, %v761, 0
          %v771 = vsel %vm301, %v762, 0
          %v774 = vsel %vm301, %v763, 0
          %776 = vmatprep.subr.mxu0 0.0
          %777 = vmatpush1.msra.mxu0 %v242
          %778 = vmatprep.subr.mxu0 0.0
          %779 = vmatpush1.msra.mxu0 %v243
          %780 = vmatprep.subr.mxu0 0.0
          %781 = vmatpush1.msra.mxu0 %v244
          %782 = vmatprep.subr.mxu0 0.0
          %783 = vmatpush1.msra.mxu0 %v245
          %784 = vmatprep.subr.mxu0 0.0
          %785 = vmatpush1.msra.mxu0 0.0
          %786 = vmatprep.subr.mxu0 0.0
          %787 = vmatpush1.msra.mxu0 0.0
          %788 = vmatprep.subr.mxu0 0.0
          %789 = vmatpush1.msra.mxu0 0.0
          %790 = vmatprep.subr.mxu0 0.0
          %791 = vmatpush1.msra.mxu0 0.0
          %792 = vmatprep.subr.mxu0 0.0
          %793 = vmatpush1.msra.mxu0 0.0
          %794 = vmatprep.subr.mxu0 0.0
          %795 = vmatpush1.msra.mxu0 0.0
          %796 = vmatprep.subr.mxu0 0.0
          %797 = vmatpush1.msra.mxu0 0.0
          %798 = vmatprep.subr.mxu0 0.0
          %799 = vmatpush1.msra.mxu0 0.0
          %800 = vmatprep.subr.mxu0 0.0
          %801 = vmatpush1.msra.mxu0 0.0
          %802 = vmatprep.subr.mxu0 0.0
          %803 = vmatpush1.msra.mxu0 0.0
          %804 = vmatprep.subr.mxu0 0.0
          %805 = vmatpush1.msra.mxu0 0.0
          %806 = vmatprep.subr.mxu0 0.0
          %807 = vmatpush1.msra.mxu0 0.0
          %808 = vmatprep.subr.mxu0 0.0
          %809 = vmatpush1.msra.mxu0 0.0
          %810 = vmatprep.subr.mxu0 0.0
          %811 = vmatpush1.msra.mxu0 0.0
          %812 = vmatprep.subr.mxu0 0.0
          %813 = vmatpush1.msra.mxu0 0.0
          %814 = vmatprep.subr.mxu0 0.0
          %815 = vmatpush1.msra.mxu0 0.0
          %816 = vmatprep.subr.mxu0 0.0
          %817 = vmatpush1.msra.mxu0 0.0
          %818 = vmatprep.subr.mxu0 0.0
          %819 = vmatpush1.msra.mxu0 0.0
          %820 = vmatprep.subr.mxu0 0.0
          %821 = vmatpush1.msra.mxu0 0.0
          %822 = vmatprep.subr.mxu0 0.0
          %823 = vmatpush1.msra.mxu0 0.0
          %824 = vmatprep.subr.mxu0 0.0
          %825 = vmatpush1.msra.mxu0 0.0
          %826 = vmatprep.subr.mxu0 0.0
          %827 = vmatpush1.msra.mxu0 0.0
          %828 = vmatprep.subr.mxu0 0.0
          %829 = vmatpush1.msra.mxu0 0.0
          %830 = vmatprep.subr.mxu0 0.0
          %831 = vmatpush1.msra.mxu0 0.0
          %832 = vmatprep.subr.mxu0 0.0
          %833 = vmatpush1.msra.mxu0 0.0
          %834 = vmatprep.subr.mxu0 0.0
          %835 = vmatpush1.msra.mxu0 0.0
          %836 = vmatprep.subr.mxu0 0.0
          %837 = vmatpush1.msra.mxu0 0.0
          %838 = vmatprep.subr.mxu0 0.0
          %839 = vmatpush1.msra.mxu0 0.0
          %840 = vmatprep.mubr.f32.mxu0 0.0
          %841 = vmatmul.mubr.f32.gmra.mrb[0].mxu0 %v765
          %v842 = vpop.f32.mrb[0].mxu0
          %v843 = vadd.f32 0.0, %v842
          %v844 = vpop.f32.mrb[0].mxu0
          %845 = vmatprep.mubr.f32.mxu0 0.0
          %846 = vmatmul.mubr.f32.gmra.mrb[0].mxu0 %v768
          %v847 = vpop.f32.mrb[0].mxu0
          %v848 = vadd.f32 0.0, %v847
          %v849 = vpop.f32.mrb[0].mxu0
          %850 = vmatprep.mubr.f32.mxu0 0.0
          %851 = vmatmul.mubr.f32.gmra.mrb[0].mxu0 %v771
          %v852 = vpop.f32.mrb[0].mxu0
          %v853 = vadd.f32 0.0, %v852
          %v854 = vpop.f32.mrb[0].mxu0
          %855 = vmatprep.mubr.f32.mxu0 0.0
          %856 = vmatmul.mubr.f32.gmra.mrb[0].mxu0 %v774
          %v857 = vpop.f32.mrb[0].mxu0
          %v858 = vadd.f32 0.0, %v857
          %v859 = vpop.f32.mrb[0].mxu0
          %860 = vdwg.mxu0
          %s861 = scalar_lea.vmem [#allocation2], 96
          %862 = vst.msk [vmem:[%s861] sm:$0xff] %vm399, %v843
          %863 = vst.msk [vmem:[%s861 + $0x8] sm:$0xff] %vm399, %v848
          %864 = vst.msk [vmem:[%s861 + $0x10] sm:$0xff] %vm399, %v853
          %865 = vst.msk [vmem:[%s861 + $0x18] sm:$0xff] %vm399, %v858
        $region48: #{double_factorized_increase.6} parent=35 // pred_fallthru
          _
        %v866 = vld [vmem:[%s229] sm:$0xff]
        %v867 = vld [vmem:[%s229 + $0x8] sm:$0xff]
        %v868 = vld [vmem:[#allocation2] sm:$0xff]
        %v869 = vld [vmem:[#allocation2 + $0x8] sm:$0xff]
        %v870 = vld [vmem:[#allocation2 + $0x10] sm:$0xff]
        %v871 = vld [vmem:[#allocation2 + $0x18] sm:$0xff]
        %vm872 = vcmask 261120
        %v874 = vsel %vm872, %v866, 0
        %v877 = vsel %vm872, %v867, 0
        %879 = vmatprep.subr.mxu0 0.0
        %880 = vmatpush1.msra.mxu0 %v868
        %881 = vmatprep.subr.mxu0 0.0
        %882 = vmatpush1.msra.mxu0 %v869
        %883 = vmatprep.subr.mxu0 0.0
        %884 = vmatpush1.msra.mxu0 %v870
        %885 = vmatprep.subr.mxu0 0.0
        %886 = vmatpush1.msra.mxu0 %v871
        %887 = vmatprep.subr.mxu0 0.0
        %888 = vmatpush1.msra.mxu0 0.0
        %889 = vmatprep.subr.mxu0 0.0
        %890 = vmatpush1.msra.mxu0 0.0
        %891 = vmatprep.subr.mxu0 0.0
        %892 = vmatpush1.msra.mxu0 0.0
        %893 = vmatprep.subr.mxu0 0.0
        %894 = vmatpush1.msra.mxu0 0.0
        %895 = vmatprep.subr.mxu0 0.0
        %896 = vmatpush1.msra.mxu0 0.0
        %897 = vmatprep.subr.mxu0 0.0
        %898 = vmatpush1.msra.mxu0 0.0
        %899 = vmatprep.subr.mxu0 0.0
        %900 = vmatpush1.msra.mxu0 0.0
        %901 = vmatprep.subr.mxu0 0.0
        %902 = vmatpush1.msra.mxu0 0.0
        %903 = vmatprep.subr.mxu0 0.0
        %904 = vmatpush1.msra.mxu0 0.0
        %905 = vmatprep.subr.mxu0 0.0
        %906 = vmatpush1.msra.mxu0 0.0
        %907 = vmatprep.subr.mxu0 0.0
        %908 = vmatpush1.msra.mxu0 0.0
        %909 = vmatprep.subr.mxu0 0.0
        %910 = vmatpush1.msra.mxu0 0.0
        %911 = vmatprep.subr.mxu0 0.0
        %912 = vmatpush1.msra.mxu0 0.0
        %913 = vmatprep.subr.mxu0 0.0
        %914 = vmatpush1.msra.mxu0 0.0
        %915 = vmatprep.subr.mxu0 0.0
        %916 = vmatpush1.msra.mxu0 0.0
        %917 = vmatprep.subr.mxu0 0.0
        %918 = vmatpush1.msra.mxu0 0.0
        %919 = vmatprep.subr.mxu0 0.0
        %920 = vmatpush1.msra.mxu0 0.0
        %921 = vmatprep.subr.mxu0 0.0
        %922 = vmatpush1.msra.mxu0 0.0
        %923 = vmatprep.subr.mxu0 0.0
        %924 = vmatpush1.msra.mxu0 0.0
        %925 = vmatprep.subr.mxu0 0.0
        %926 = vmatpush1.msra.mxu0 0.0
        %927 = vmatprep.subr.mxu0 0.0
        %928 = vmatpush1.msra.mxu0 0.0
        %929 = vmatprep.subr.mxu0 0.0
        %930 = vmatpush1.msra.mxu0 0.0
        %931 = vmatprep.subr.mxu0 0.0
        %932 = vmatpush1.msra.mxu0 0.0
        %933 = vmatprep.subr.mxu0 0.0
        %934 = vmatpush1.msra.mxu0 0.0
        %935 = vmatprep.subr.mxu0 0.0
        %936 = vmatpush1.msra.mxu0 0.0
        %937 = vmatprep.subr.mxu0 0.0
        %938 = vmatpush1.msra.mxu0 0.0
        %939 = vmatprep.subr.mxu0 0.0
        %940 = vmatpush1.msra.mxu0 0.0
        %941 = vmatprep.subr.mxu0 0.0
        %942 = vmatpush1.msra.mxu0 0.0
        %943 = vmatprep.mubr.f32.mxu0 0.0
        %944 = vmatmul.mubr.f32.gmra.mrb[0].mxu0 %v874
        %v945 = vpop.f32.mrb[0].mxu0
        %v946 = vadd.f32 0.0, %v945
        %v947 = vpop.f32.mrb[0].mxu0
        %948 = vmatprep.mubr.f32.mxu0 0.0
        %949 = vmatmul.mubr.f32.gmra.mrb[0].mxu0 %v877
        %v950 = vpop.f32.mrb[0].mxu0
        %v951 = vadd.f32 0.0, %v950
        %v952 = vpop.f32.mrb[0].mxu0
        %953 = vdwg.mxu0
        %v954 = vld [vmem:[%s4] sm:$0x1]
        %vm955 = vcmask 523264
        %v956 = vsel %vm955, %v946, 0.0
        %v957 = vsel %vm955, %v951, 0.0
        %v958 = vadd.f32 %v956, %v957
        %v959 = vrot.slane %v958, 4
        %v960 = vadd.f32 %v958, %v959
        %v961 = vrot.slane %v960, 2
        %v962 = vadd.f32 %v960, %v961
        %v963 = vrot.slane %v962, 1
        %v964 = vadd.f32 %v962, %v963
        %v965 = vadd.f32 %v954, %v964
        %vm966 = vcmask 516096
        %967 = vst.msk [vmem:[%s4] sm:$0x1] %vm966, %v965
        %v968 = vld [vmem:[%s4 + $0x4] sm:$0x1]
        %v969 = vmul.f32 %v946, %v946
        %v970 = vmul.f32 %v951, %v951
        %v971 = vsel %vm955, %v969, 0.0
        %v972 = vsel %vm955, %v970, 0.0
        %v973 = vadd.f32 %v971, %v972
        %v974 = vrot.slane %v973, 4
        %v975 = vadd.f32 %v973, %v974
        %v976 = vrot.slane %v975, 2
        %v977 = vadd.f32 %v975, %v976
        %v978 = vrot.slane %v977, 1
        %v979 = vadd.f32 %v977, %v978
        %v980 = vadd.f32 %v968, %v979
        %981 = vst.msk [vmem:[%s4 + $0x4] sm:$0x1] %vm966, %v980
        %s982 = scalar_lea.vmem [#allocation2], 32
        %v983 = vld [vmem:[%s982] sm:$0xff]
        %v984 = vld [vmem:[%s982 + $0x8] sm:$0xff]
        %v985 = vld [vmem:[%s982 + $0x10] sm:$0xff]
        %v986 = vld [vmem:[%s982 + $0x18] sm:$0xff]
        %987 = vmatprep.subr.mxu0 0.0
        %988 = vmatpush1.msra.mxu0 %v983
        %989 = vmatprep.subr.mxu0 0.0
        %990 = vmatpush1.msra.mxu0 %v984
        %991 = vmatprep.subr.mxu0 0.0
        %992 = vmatpush1.msra.mxu0 %v985
        %993 = vmatprep.subr.mxu0 0.0
        %994 = vmatpush1.msra.mxu0 %v986
        %995 = vmatprep.subr.mxu0 0.0
        %996 = vmatpush1.msra.mxu0 0.0
        %997 = vmatprep.subr.mxu0 0.0
        %998 = vmatpush1.msra.mxu0 0.0
        %999 = vmatprep.subr.mxu0 0.0
        %1000 = vmatpush1.msra.mxu0 0.0
        %1001 = vmatprep.subr.mxu0 0.0
        %1002 = vmatpush1.msra.mxu0 0.0
        %1003 = vmatprep.subr.mxu0 0.0
        %1004 = vmatpush1.msra.mxu0 0.0
        %1005 = vmatprep.subr.mxu0 0.0
        %1006 = vmatpush1.msra.mxu0 0.0
        %1007 = vmatprep.subr.mxu0 0.0
        %1008 = vmatpush1.msra.mxu0 0.0
        %1009 = vmatprep.subr.mxu0 0.0
        %1010 = vmatpush1.msra.mxu0 0.0
        %1011 = vmatprep.subr.mxu0 0.0
        %1012 = vmatpush1.msra.mxu0 0.0
        %1013 = vmatprep.subr.mxu0 0.0
        %1014 = vmatpush1.msra.mxu0 0.0
        %1015 = vmatprep.subr.mxu0 0.0
        %1016 = vmatpush1.msra.mxu0 0.0
        %1017 = vmatprep.subr.mxu0 0.0
        %1018 = vmatpush1.msra.mxu0 0.0
        %1019 = vmatprep.subr.mxu0 0.0
        %1020 = vmatpush1.msra.mxu0 0.0
        %1021 = vmatprep.subr.mxu0 0.0
        %1022 = vmatpush1.msra.mxu0 0.0
        %1023 = vmatprep.subr.mxu0 0.0
        %1024 = vmatpush1.msra.mxu0 0.0
        %1025 = vmatprep.subr.mxu0 0.0
        %1026 = vmatpush1.msra.mxu0 0.0
        %1027 = vmatprep.subr.mxu0 0.0
        %1028 = vmatpush1.msra.mxu0 0.0
        %1029 = vmatprep.subr.mxu0 0.0
        %1030 = vmatpush1.msra.mxu0 0.0
        %1031 = vmatprep.subr.mxu0 0.0
        %1032 = vmatpush1.msra.mxu0 0.0
        %1033 = vmatprep.subr.mxu0 0.0
        %1034 = vmatpush1.msra.mxu0 0.0
        %1035 = vmatprep.subr.mxu0 0.0
        %1036 = vmatpush1.msra.mxu0 0.0
        %1037 = vmatprep.subr.mxu0 0.0
        %1038 = vmatpush1.msra.mxu0 0.0
        %1039 = vmatprep.subr.mxu0 0.0
        %1040 = vmatpush1.msra.mxu0 0.0
        %1041 = vmatprep.subr.mxu0 0.0
        %1042 = vmatpush1.msra.mxu0 0.0
        %1043 = vmatprep.subr.mxu0 0.0
        %1044 = vmatpush1.msra.mxu0 0.0
        %1045 = vmatprep.subr.mxu0 0.0
        %1046 = vmatpush1.msra.mxu0 0.0
        %1047 = vmatprep.subr.mxu0 0.0
        %1048 = vmatpush1.msra.mxu0 0.0
        %1049 = vmatprep.subr.mxu0 0.0
        %1050 = vmatpush1.msra.mxu0 0.0
        %1051 = vmatprep.mubr.f32.mxu0 0.0
        %1052 = vmatmul.mubr.f32.gmra.mrb[0].mxu0 %v874
        %v1053 = vpop.f32.mrb[0].mxu0
        %v1054 = vadd.f32 0.0, %v1053
        %v1055 = vpop.f32.mrb[0].mxu0
        %1056 = vmatprep.mubr.f32.mxu0 0.0
        %1057 = vmatmul.mubr.f32.gmra.mrb[0].mxu0 %v877
        %v1058 = vpop.f32.mrb[0].mxu0
        %v1059 = vadd.f32 0.0, %v1058
        %v1060 = vpop.f32.mrb[0].mxu0
        %1061 = vdwg.mxu0
        %v1062 = vld [vmem:[%s4 + $0x1] sm:$0x1]
        %v1063 = vsel %vm955, %v1054, 0.0
        %v1064 = vsel %vm955, %v1059, 0.0
        %v1065 = vadd.f32 %v1063, %v1064
        %v1066 = vrot.slane %v1065, 4
        %v1067 = vadd.f32 %v1065, %v1066
        %v1068 = vrot.slane %v1067, 2
        %v1069 = vadd.f32 %v1067, %v1068
        %v1070 = vrot.slane %v1069, 1
        %v1071 = vadd.f32 %v1069, %v1070
        %v1072 = vadd.f32 %v1062, %v1071
        %1073 = vst.msk [vmem:[%s4 + $0x1] sm:$0x1] %vm966, %v1072
        %v1074 = vld [vmem:[%s4 + $0x5] sm:$0x1]
        %v1075 = vmul.f32 %v1054, %v1054
        %v1076 = vmul.f32 %v1059, %v1059
        %v1077 = vsel %vm955, %v1075, 0.0
        %v1078 = vsel %vm955, %v1076, 0.0
        %v1079 = vadd.f32 %v1077, %v1078
        %v1080 = vrot.slane %v1079, 4
        %v1081 = vadd.f32 %v1079, %v1080
        %v1082 = vrot.slane %v1081, 2
        %v1083 = vadd.f32 %v1081, %v1082
        %v1084 = vrot.slane %v1083, 1
        %v1085 = vadd.f32 %v1083, %v1084
        %v1086 = vadd.f32 %v1074, %v1085
        %1087 = vst.msk [vmem:[%s4 + $0x5] sm:$0x1] %vm966, %v1086
        %s1088 = scalar_lea.vmem [#allocation2], 64
        %v1089 = vld [vmem:[%s1088] sm:$0xff]
        %v1090 = vld [vmem:[%s1088 + $0x8] sm:$0xff]
        %v1091 = vld [vmem:[%s1088 + $0x10] sm:$0xff]
        %v1092 = vld [vmem:[%s1088 + $0x18] sm:$0xff]
        %1093 = vmatprep.subr.mxu0 0.0
        %1094 = vmatpush1.msra.mxu0 %v1089
        %1095 = vmatprep.subr.mxu0 0.0
        %1096 = vmatpush1.msra.mxu0 %v1090
        %1097 = vmatprep.subr.mxu0 0.0
        %1098 = vmatpush1.msra.mxu0 %v1091
        %1099 = vmatprep.subr.mxu0 0.0
        %1100 = vmatpush1.msra.mxu0 %v1092
        %1101 = vmatprep.subr.mxu0 0.0
        %1102 = vmatpush1.msra.mxu0 0.0
        %1103 = vmatprep.subr.mxu0 0.0
        %1104 = vmatpush1.msra.mxu0 0.0
        %1105 = vmatprep.subr.mxu0 0.0
        %1106 = vmatpush1.msra.mxu0 0.0
        %1107 = vmatprep.subr.mxu0 0.0
        %1108 = vmatpush1.msra.mxu0 0.0
        %1109 = vmatprep.subr.mxu0 0.0
        %1110 = vmatpush1.msra.mxu0 0.0
        %1111 = vmatprep.subr.mxu0 0.0
        %1112 = vmatpush1.msra.mxu0 0.0
        %1113 = vmatprep.subr.mxu0 0.0
        %1114 = vmatpush1.msra.mxu0 0.0
        %1115 = vmatprep.subr.mxu0 0.0
        %1116 = vmatpush1.msra.mxu0 0.0
        %1117 = vmatprep.subr.mxu0 0.0
        %1118 = vmatpush1.msra.mxu0 0.0
        %1119 = vmatprep.subr.mxu0 0.0
        %1120 = vmatpush1.msra.mxu0 0.0
        %1121 = vmatprep.subr.mxu0 0.0
        %1122 = vmatpush1.msra.mxu0 0.0
        %1123 = vmatprep.subr.mxu0 0.0
        %1124 = vmatpush1.msra.mxu0 0.0
        %1125 = vmatprep.subr.mxu0 0.0
        %1126 = vmatpush1.msra.mxu0 0.0
        %1127 = vmatprep.subr.mxu0 0.0
        %1128 = vmatpush1.msra.mxu0 0.0
        %1129 = vmatprep.subr.mxu0 0.0
        %1130 = vmatpush1.msra.mxu0 0.0
        %1131 = vmatprep.subr.mxu0 0.0
        %1132 = vmatpush1.msra.mxu0 0.0
        %1133 = vmatprep.subr.mxu0 0.0
        %1134 = vmatpush1.msra.mxu0 0.0
        %1135 = vmatprep.subr.mxu0 0.0
        %1136 = vmatpush1.msra.mxu0 0.0
        %1137 = vmatprep.subr.mxu0 0.0
        %1138 = vmatpush1.msra.mxu0 0.0
        %1139 = vmatprep.subr.mxu0 0.0
        %1140 = vmatpush1.msra.mxu0 0.0
        %1141 = vmatprep.subr.mxu0 0.0
        %1142 = vmatpush1.msra.mxu0 0.0
        %1143 = vmatprep.subr.mxu0 0.0
        %1144 = vmatpush1.msra.mxu0 0.0
        %1145 = vmatprep.subr.mxu0 0.0
        %1146 = vmatpush1.msra.mxu0 0.0
        %1147 = vmatprep.subr.mxu0 0.0
        %1148 = vmatpush1.msra.mxu0 0.0
        %1149 = vmatprep.subr.mxu0 0.0
        %1150 = vmatpush1.msra.mxu0 0.0
        %1151 = vmatprep.subr.mxu0 0.0
        %1152 = vmatpush1.msra.mxu0 0.0
        %1153 = vmatprep.subr.mxu0 0.0
        %1154 = vmatpush1.msra.mxu0 0.0
        %1155 = vmatprep.subr.mxu0 0.0
        %1156 = vmatpush1.msra.mxu0 0.0
        %1157 = vmatprep.mubr.f32.mxu0 0.0
        %1158 = vmatmul.mubr.f32.gmra.mrb[0].mxu0 %v874
        %v1159 = vpop.f32.mrb[0].mxu0
        %v1160 = vadd.f32 0.0, %v1159
        %v1161 = vpop.f32.mrb[0].mxu0
        %1162 = vmatprep.mubr.f32.mxu0 0.0
        %1163 = vmatmul.mubr.f32.gmra.mrb[0].mxu0 %v877
        %v1164 = vpop.f32.mrb[0].mxu0
        %v1165 = vadd.f32 0.0, %v1164
        %v1166 = vpop.f32.mrb[0].mxu0
        %1167 = vdwg.mxu0
        %v1168 = vld [vmem:[%s4 + $0x2] sm:$0x1]
        %v1169 = vsel %vm955, %v1160, 0.0
        %v1170 = vsel %vm955, %v1165, 0.0
        %v1171 = vadd.f32 %v1169, %v1170
        %v1172 = vrot.slane %v1171, 4
        %v1173 = vadd.f32 %v1171, %v1172
        %v1174 = vrot.slane %v1173, 2
        %v1175 = vadd.f32 %v1173, %v1174
        %v1176 = vrot.slane %v1175, 1
        %v1177 = vadd.f32 %v1175, %v1176
        %v1178 = vadd.f32 %v1168, %v1177
        %1179 = vst.msk [vmem:[%s4 + $0x2] sm:$0x1] %vm966, %v1178
        %v1180 = vld [vmem:[%s4 + $0x6] sm:$0x1]
        %v1181 = vmul.f32 %v1160, %v1160
        %v1182 = vmul.f32 %v1165, %v1165
        %v1183 = vsel %vm955, %v1181, 0.0
        %v1184 = vsel %vm955, %v1182, 0.0
        %v1185 = vadd.f32 %v1183, %v1184
        %v1186 = vrot.slane %v1185, 4
        %v1187 = vadd.f32 %v1185, %v1186
        %v1188 = vrot.slane %v1187, 2
        %v1189 = vadd.f32 %v1187, %v1188
        %v1190 = vrot.slane %v1189, 1
        %v1191 = vadd.f32 %v1189, %v1190
        %v1192 = vadd.f32 %v1180, %v1191
        %1193 = vst.msk [vmem:[%s4 + $0x6] sm:$0x1] %vm966, %v1192
        %s1194 = scalar_lea.vmem [#allocation2], 96
        %v1195 = vld [vmem:[%s1194] sm:$0xff]
        %v1196 = vld [vmem:[%s1194 + $0x8] sm:$0xff]
        %v1197 = vld [vmem:[%s1194 + $0x10] sm:$0xff]
        %v1198 = vld [vmem:[%s1194 + $0x18] sm:$0xff]
        %1199 = vmatprep.subr.mxu0 0.0
        %1200 = vmatpush1.msra.mxu0 %v1195
        %1201 = vmatprep.subr.mxu0 0.0
        %1202 = vmatpush1.msra.mxu0 %v1196
        %1203 = vmatprep.subr.mxu0 0.0
        %1204 = vmatpush1.msra.mxu0 %v1197
        %1205 = vmatprep.subr.mxu0 0.0
        %1206 = vmatpush1.msra.mxu0 %v1198
        %1207 = vmatprep.subr.mxu0 0.0
        %1208 = vmatpush1.msra.mxu0 0.0
        %1209 = vmatprep.subr.mxu0 0.0
        %1210 = vmatpush1.msra.mxu0 0.0
        %1211 = vmatprep.subr.mxu0 0.0
        %1212 = vmatpush1.msra.mxu0 0.0
        %1213 = vmatprep.subr.mxu0 0.0
        %1214 = vmatpush1.msra.mxu0 0.0
        %1215 = vmatprep.subr.mxu0 0.0
        %1216 = vmatpush1.msra.mxu0 0.0
        %1217 = vmatprep.subr.mxu0 0.0
        %1218 = vmatpush1.msra.mxu0 0.0
        %1219 = vmatprep.subr.mxu0 0.0
        %1220 = vmatpush1.msra.mxu0 0.0
        %1221 = vmatprep.subr.mxu0 0.0
        %1222 = vmatpush1.msra.mxu0 0.0
        %1223 = vmatprep.subr.mxu0 0.0
        %1224 = vmatpush1.msra.mxu0 0.0
        %1225 = vmatprep.subr.mxu0 0.0
        %1226 = vmatpush1.msra.mxu0 0.0
        %1227 = vmatprep.subr.mxu0 0.0
        %1228 = vmatpush1.msra.mxu0 0.0
        %1229 = vmatprep.subr.mxu0 0.0
        %1230 = vmatpush1.msra.mxu0 0.0
        %1231 = vmatprep.subr.mxu0 0.0
        %1232 = vmatpush1.msra.mxu0 0.0
        %1233 = vmatprep.subr.mxu0 0.0
        %1234 = vmatpush1.msra.mxu0 0.0
        %1235 = vmatprep.subr.mxu0 0.0
        %1236 = vmatpush1.msra.mxu0 0.0
        %1237 = vmatprep.subr.mxu0 0.0
        %1238 = vmatpush1.msra.mxu0 0.0
        %1239 = vmatprep.subr.mxu0 0.0
        %1240 = vmatpush1.msra.mxu0 0.0
        %1241 = vmatprep.subr.mxu0 0.0
        %1242 = vmatpush1.msra.mxu0 0.0
        %1243 = vmatprep.subr.mxu0 0.0
        %1244 = vmatpush1.msra.mxu0 0.0
        %1245 = vmatprep.subr.mxu0 0.0
        %1246 = vmatpush1.msra.mxu0 0.0
        %1247 = vmatprep.subr.mxu0 0.0
        %1248 = vmatpush1.msra.mxu0 0.0
        %1249 = vmatprep.subr.mxu0 0.0
        %1250 = vmatpush1.msra.mxu0 0.0
        %1251 = vmatprep.subr.mxu0 0.0
        %1252 = vmatpush1.msra.mxu0 0.0
        %1253 = vmatprep.subr.mxu0 0.0
        %1254 = vmatpush1.msra.mxu0 0.0
        %1255 = vmatprep.subr.mxu0 0.0
        %1256 = vmatpush1.msra.mxu0 0.0
        %1257 = vmatprep.subr.mxu0 0.0
        %1258 = vmatpush1.msra.mxu0 0.0
        %1259 = vmatprep.subr.mxu0 0.0
        %1260 = vmatpush1.msra.mxu0 0.0
        %1261 = vmatprep.subr.mxu0 0.0
        %1262 = vmatpush1.msra.mxu0 0.0
        %1263 = vmatprep.mubr.f32.mxu0 0.0
        %1264 = vmatmul.mubr.f32.gmra.mrb[0].mxu0 %v874
        %v1265 = vpop.f32.mrb[0].mxu0
        %v1266 = vadd.f32 0.0, %v1265
        %v1267 = vpop.f32.mrb[0].mxu0
        %1268 = vmatprep.mubr.f32.mxu0 0.0
        %1269 = vmatmul.mubr.f32.gmra.mrb[0].mxu0 %v877
        %v1270 = vpop.f32.mrb[0].mxu0
        %v1271 = vadd.f32 0.0, %v1270
        %v1272 = vpop.f32.mrb[0].mxu0
        %1273 = vdwg.mxu0
        %v1274 = vld [vmem:[%s4 + $0x3] sm:$0x1]
        %v1275 = vsel %vm955, %v1266, 0.0
        %v1276 = vsel %vm955, %v1271, 0.0
        %v1277 = vadd.f32 %v1275, %v1276
        %v1278 = vrot.slane %v1277, 4
        %v1279 = vadd.f32 %v1277, %v1278
        %v1280 = vrot.slane %v1279, 2
        %v1281 = vadd.f32 %v1279, %v1280
        %v1282 = vrot.slane %v1281, 1
        %v1283 = vadd.f32 %v1281, %v1282
        %v1284 = vadd.f32 %v1274, %v1283
        %1285 = vst.msk [vmem:[%s4 + $0x3] sm:$0x1] %vm966, %v1284
        %v1286 = vld [vmem:[%s4 + $0x7] sm:$0x1]
        %v1287 = vmul.f32 %v1266, %v1266
        %v1288 = vmul.f32 %v1271, %v1271
        %v1289 = vsel %vm955, %v1287, 0.0
        %v1290 = vsel %vm955, %v1288, 0.0
        %v1291 = vadd.f32 %v1289, %v1290
        %v1292 = vrot.slane %v1291, 4
        %v1293 = vadd.f32 %v1291, %v1292
        %v1294 = vrot.slane %v1293, 2
        %v1295 = vadd.f32 %v1293, %v1294
        %v1296 = vrot.slane %v1295, 1
        %v1297 = vadd.f32 %v1295, %v1296
        %v1298 = vadd.f32 %v1286, %v1297
        %1299 = vst.msk [vmem:[%s4 + $0x7] sm:$0x1] %vm966, %v1298
        // Predicated region
        $region49: #{double_factorized_increase.6} parent=35 // pred_check
          %p1300 = pneg %p135
        $region50: #{double_factorized_increase.6} parent=35 // pred_check_branch
          %1302 = sbr.rel (%p1300) target = $region52
        $region51: #{double_factorized_increase.6} parent=35 // pred_region
          _
        $region52: #{double_factorized_increase.6} parent=35 // pred_fallthru
          _
        // Predicated region
        $region53: #{double_factorized_increase.6} parent=35 // pred_check
          %p1303 = pneg %p135
        $region54: #{double_factorized_increase.6} parent=35 // pred_check_branch
          %1305 = sbr.rel (%p1303) target = $region56
        $region55: #{double_factorized_increase.6} parent=35 // pred_region
          _
        $region56: #{double_factorized_increase.6} parent=35 // pred_fallthru
          _
      $region36: #{double_factorized_increase.6} parent=5 // pred_fallthru
        _
      %p1306 = scmp.le.s32.totalorder 2, %s11
      // Predicated region
      $region57: #{double_factorized_increase.6} parent=5 // pred_check
        %p1307 = pneg %p1306
      $region58: #{double_factorized_increase.6} parent=5 // pred_check_branch
        %1309 = sbr.rel (%p1307) target = $region60
      $region59: #{double_factorized_increase.6} parent=5 // pred_region
        %s1310 = ssub.s32 %s11, 2
      $region60: #{double_factorized_increase.6} parent=5 // pred_fallthru
        _
    $region6: #{double_factorized_increase.6} parent=1 // loop_footer
      %s15 = sadd.s32 1, %s11
    $region7: #{double_factorized_increase.6} parent=1 // loop_footer_branch
      %10 = sbr.rel target = $region3
    $region8: #{double_factorized_increase.6} parent=1 // loop_exit
      _
    %1311 = vsyncpa [#allocation4], 1
    %s1312 = scalar_lea.sflag [#allocation4], 1
    %1313 = vsyncpa %s1312, 1

// kernel: double_factorized_increase.7
$region0: #{double_factorized_increase.7}
  #allocation0 [shape = 'u32[]', space=smem, size = 0x4, offset = 0x4, fixed_abs, tag = 'smem constant byte address 0x4 - core index']
  #allocation1 [shape = 'u32[144,128]{1,0:T(1,128)}', space=vmem, size = 0x12000, scoped, tag = 'internal scratch']
  #allocation2 [shape = 'f32[4,32,64]{2,1,0:T(8,128)}', space=vmem, size = 0x10000, scoped, tag = 'scratch operand']
  #allocation10 [shape = 's32[]', space=sflag, size = 0x4, offset = 0, fixed_abs, tag = 'sflag constant byte address 0x0 - dummy sync flag']
  %s0 = inlined_call_operand.vmem [shape: f32[2,4,32,32], index: 0, kind: input, shape index: {}]
  %s1 = inlined_call_operand.vmem [shape: f32[4,4], index: 1, kind: input, shape index: {}]
  %s2 = inlined_call_operand.vmem [shape: f32[32,64], index: 2, kind: input, shape index: {}]
  %s3 = inlined_call_operand.vmem [shape: f32[64,32], index: 3, kind: input, shape index: {}]
  %s4 = inlined_call_operand.vmem [shape: f32[4], index: 4, kind: input, shape index: {}]
  %s5 = inlined_call_operand.vmem [shape: f32[4], index: 5, kind: input, shape index: {}]
  %s6 = inlined_call_operand.hbm [shape: f32[2,4,64,64], index: 6, kind: output, shape index: {}]
  %s7 = sld [smem:[#allocation0]]
  $region73: #{double_factorized_increase.7} parent=0
    _
  %s9 = ssub.s32 1, %s7
  %s10 = scalar_select 0, %s9, %s7
  $region1: #{double_factorized_increase.7} parent=0
    #allocation3 [shape = 'u8[2048]{0}', space=smem, size = 0x800, scoped, tag = 'input window, operand 1, single buffered']
    #allocation4 [shape = 's32[2]{0}', space=sflag, size = 0x8, scoped, tag = 'scoped memory for double_factorized_increase.7']
    #allocation5 [shape = 's32[2]{0}', space=sflag, size = 0x8, scoped, tag = 'scoped memory for double_factorized_increase.7']
    #allocation6 [shape = 'u8[512]{0}', space=smem, size = 0x200, scoped, tag = 'input window, operand 4, single buffered']
    #allocation7 [shape = 's32[1]{0}', space=sflag, size = 0x4, scoped, tag = 'scoped memory for double_factorized_increase.7']
    #allocation8 [shape = 'u8[512]{0}', space=smem, size = 0x200, scoped, tag = 'input window, operand 5, single buffered']
    #allocation9 [shape = 'u8[65536]{0}', space=vmem, size = 0x10000, scoped, tag = 'output window, operand 0']
    %11 = vsyncpa [#allocation5], 0
    %12 = vsyncpa [#allocation7], 0
    %13 = vsyncpa [#allocation4], 0
    %s14 = scalar_lea.sflag [#allocation4], 1
    %15 = vsyncpa %s14, 0
    loop: start=0, step=1, limit=10
    $region2: #{double_factorized_increase.7} parent=1 // loop_pre_header
      _
    $region3: #{double_factorized_increase.7} parent=1 // loop_header
      %s17 = sphi 0, %s21
      %p18 = scmp.ge.s32.totalorder %s17, 10
      %s24 = sphi 0, %s36
      %s25 = sphi 0, %s32
      %s26 = sphi 0, %s24
      %s27 = sphi 0, %s25
      %s28 = sphi 0, %s26
      %s29 = sphi 0, %s27
      %s39 = sphi 0, %s41
      %s42 = sphi 0, %s39
      %s43 = sphi 0, %s42
      %s59 = sphi 0, %s43
      %s63 = sphi 0, %s63
      %s65 = sphi 0, %s63
      %s66 = sphi 0, %s65
      %s80 = sphi 0, %s66
      %s84 = sphi 0, %s84
      %s86 = sphi 0, %s84
      %s87 = sphi 0, %s86
      %s101 = sphi 0, %s87
      %s107 = sphi 0, %s109
      %s110 = sphi 0, %s107
      %s111 = sphi 0, %s110
      %s127 = sphi 0, %s111
      %s131 = sphi 0, %s131
      %s133 = sphi 0, %s131
      %s134 = sphi 0, %s133
      %s148 = sphi 0, %s134
      %s152 = sphi 0, %s152
      %s154 = sphi 0, %s152
      %s155 = sphi 0, %s154
      %s169 = sphi 0, %s155
      %s177 = sphi 0, %s179
      %s180 = sphi 0, %s177
      %s181 = sphi 0, %s180
      %s197 = sphi 0, %s181
    $region4: #{double_factorized_increase.7} parent=1 // loop_header_branch
      %20 = sbr.rel (%p18) target = $region8
    $region5: #{double_factorized_increase.7} parent=1 // loop_body
      %s22 = ssub.s32 %s17, 1
      %s23 = ssub.s32 %s17, 2
      %s30 = sadd.s32 1, %s25
      %p31 = scmp.ge.s32.totalorder %s30, 4
      %s32 = scalar_select %p31, 0, %s30
      %s33 = sadd.s32 1, %s24
      %s34 = scalar_select %p31, %s33, %s24
      %p35 = scmp.ge.s32.totalorder %s34, 2
      %s36 = scalar_select %p35, 0, %s34
      %s37 = ssub.s32 %s24, %s36
      %p38 = scmp.eq.s32.totalorder %s37, 0
      %s40 = sadd.s32 %s39, 1
      %s41 = scalar_select %p38, %s39, %s40
      %p44 = pneg %p38
      %p45 = scmp.eq.s32.totalorder %s17, 7
      %p46 = por %p44, %p45
      %p47 = scmp.ne.s32.totalorder %s39, %s42
      %p48 = scmp.eq.s32.totalorder %s17, 0
      %p49 = por %p47, %p48
      %p50 = scmp.ne.s32.totalorder %s39, %s42
      %p51 = scmp.eq.s32.totalorder %s22, 7
      %p52 = por %p50, %p51
      %p53 = scmp.ne.s32.totalorder %s42, %s43
      %p54 = scmp.eq.s32.totalorder %s22, 0
      %p55 = por %p53, %p54
      %p56 = scmp.ne.s32.totalorder %s42, %s43
      %p57 = scmp.eq.s32.totalorder %s23, 7
      %p58 = por %p56, %p57
      %p60 = scmp.ne.s32.totalorder %s43, %s59
      %p61 = scmp.eq.s32.totalorder %s23, 0
      %p62 = por %p60, %p61
      %s64 = sadd.s32 %s63, 1
      %p67 = scmp.eq.s32.totalorder %s17, 7
      %p68 = scmp.ne.s32.totalorder %s63, %s65
      %p69 = scmp.eq.s32.totalorder %s17, 0
      %p70 = por %p68, %p69
      %p71 = scmp.ne.s32.totalorder %s63, %s65
      %p72 = scmp.eq.s32.totalorder %s22, 7
      %p73 = por %p71, %p72
      %p74 = scmp.ne.s32.totalorder %s65, %s66
      %p75 = scmp.eq.s32.totalorder %s22, 0
      %p76 = por %p74, %p75
      %p77 = scmp.ne.s32.totalorder %s65, %s66
      %p78 = scmp.eq.s32.totalorder %s23, 7
      %p79 = por %p77, %p78
      %p81 = scmp.ne.s32.totalorder %s66, %s80
      %p82 = scmp.eq.s32.totalorder %s23, 0
      %p83 = por %p81, %p82
      %s85 = sadd.s32 %s84, 1
      %p88 = scmp.eq.s32.totalorder %s17, 7
      %p89 = scmp.ne.s32.totalorder %s84, %s86
      %p90 = scmp.eq.s32.totalorder %s17, 0
      %p91 = por %p89, %p90
      %p92 = scmp.ne.s32.totalorder %s84, %s86
      %p93 = scmp.eq.s32.totalorder %s22, 7
      %p94 = por %p92, %p93
      %p95 = scmp.ne.s32.totalorder %s86, %s87
      %p96 = scmp.eq.s32.totalorder %s22, 0
      %p97 = por %p95, %p96
      %p98 = scmp.ne.s32.totalorder %s86, %s87
      %p99 = scmp.eq.s32.totalorder %s23, 7
      %p100 = por %p98, %p99
      %p102 = scmp.ne.s32.totalorder %s87, %s101
      %p103 = scmp.eq.s32.totalorder %s23, 0
      %p104 = por %p102, %p103
      %s105 = ssub.s32 %s25, %s32
      %p106 = scmp.eq.s32.totalorder %s105, 0
      %s108 = sadd.s32 %s107, 1
      %s109 = scalar_select %p106, %s107, %s108
      %p112 = pneg %p106
      %p113 = scmp.eq.s32.totalorder %s17, 7
      %p114 = por %p112, %p113
      %p115 = scmp.ne.s32.totalorder %s107, %s110
      %p116 = scmp.eq.s32.totalorder %s17, 0
      %p117 = por %p115, %p116
      %p118 = scmp.ne.s32.totalorder %s107, %s110
      %p119 = scmp.eq.s32.totalorder %s22, 7
      %p120 = por %p118, %p119
      %p121 = scmp.ne.s32.totalorder %s110, %s111
      %p122 = scmp.eq.s32.totalorder %s22, 0
      %p123 = por %p121, %p122
      %p124 = scmp.ne.s32.totalorder %s110, %s111
      %p125 = scmp.eq.s32.totalorder %s23, 7
      %p126 = por %p124, %p125
      %p128 = scmp.ne.s32.totalorder %s111, %s127
      %p129 = scmp.eq.s32.totalorder %s23, 0
      %p130 = por %p128, %p129
      %s132 = sadd.s32 %s131, 1
      %p135 = scmp.eq.s32.totalorder %s17, 7
      %p136 = scmp.ne.s32.totalorder %s131, %s133
      %p137 = scmp.eq.s32.totalorder %s17, 0
      %p138 = por %p136, %p137
      %p139 = scmp.ne.s32.totalorder %s131, %s133
      %p140 = scmp.eq.s32.totalorder %s22, 7
      %p141 = por %p139, %p140
      %p142 = scmp.ne.s32.totalorder %s133, %s134
      %p143 = scmp.eq.s32.totalorder %s22, 0
      %p144 = por %p142, %p143
      %p145 = scmp.ne.s32.totalorder %s133, %s134
      %p146 = scmp.eq.s32.totalorder %s23, 7
      %p147 = por %p145, %p146
      %p149 = scmp.ne.s32.totalorder %s134, %s148
      %p150 = scmp.eq.s32.totalorder %s23, 0
      %p151 = por %p149, %p150
      %s153 = sadd.s32 %s152, 1
      %p156 = scmp.eq.s32.totalorder %s17, 7
      %p157 = scmp.ne.s32.totalorder %s152, %s154
      %p158 = scmp.eq.s32.totalorder %s17, 0
      %p159 = por %p157, %p158
      %p160 = scmp.ne.s32.totalorder %s152, %s154
      %p161 = scmp.eq.s32.totalorder %s22, 7
      %p162 = por %p160, %p161
      %p163 = scmp.ne.s32.totalorder %s154, %s155
      %p164 = scmp.eq.s32.totalorder %s22, 0
      %p165 = por %p163, %p164
      %p166 = scmp.ne.s32.totalorder %s154, %s155
      %p167 = scmp.eq.s32.totalorder %s23, 7
      %p168 = por %p166, %p167
      %p170 = scmp.ne.s32.totalorder %s155, %s169
      %p171 = scmp.eq.s32.totalorder %s23, 0
      %p172 = por %p170, %p171
      %s173 = ssub.s32 %s24, %s36
      %s174 = ssub.s32 %s25, %s32
      %s175 = sor.u32 %s173, %s174
      %p176 = scmp.eq.s32.totalorder %s175, 0
      %s178 = sadd.s32 %s177, 1
      %s179 = scalar_select %p176, %s177, %s178
      %p182 = pneg %p176
      %p183 = scmp.eq.s32.totalorder %s17, 7
      %p184 = por %p182, %p183
      %p185 = scmp.ne.s32.totalorder %s177, %s180
      %p186 = scmp.eq.s32.totalorder %s17, 0
      %p187 = por %p185, %p186
      %p188 = scmp.ne.s32.totalorder %s177, %s180
      %p189 = scmp.eq.s32.totalorder %s22, 7
      %p190 = por %p188, %p189
      %p191 = scmp.ne.s32.totalorder %s180, %s181
      %p192 = scmp.eq.s32.totalorder %s22, 0
      %p193 = por %p191, %p192
      %p194 = scmp.ne.s32.totalorder %s180, %s181
      %p195 = scmp.eq.s32.totalorder %s23, 7
      %p196 = por %p194, %p195
      %p198 = scmp.ne.s32.totalorder %s181, %s197
      %p199 = scmp.eq.s32.totalorder %s23, 0
      %p200 = por %p198, %p199
      %p201 = scmp.le.s32.totalorder 1, %s17
      %p202 = scmp.lt.s32.totalorder %s17, 9
      %p203 = pnand %p201, %p202
      %p204 = pneg %p203
      // Predicated region
      $region9: #{double_factorized_increase.7} parent=5 // pred_check
        _
      $region10: #{double_factorized_increase.7} parent=5 // pred_check_branch
        %206 = sbr.rel (%p203) target = $region12
      $region11: #{double_factorized_increase.7} parent=5 // pred_region
        %s207 = ssub.s32 %s17, 1
        // Predicated region
        $region13: #{double_factorized_increase.7} parent=11 // pred_check
          %p208 = pneg %p76
        $region14: #{double_factorized_increase.7} parent=11 // pred_check_branch
          %210 = sbr.rel (%p208) target = $region16
        $region15: #{double_factorized_increase.7} parent=11 // pred_region
          %s212 = ssub.s32 64, 64
          %213 = vsyncadd [#allocation5], %s212
          %s215 = sshll.u32 %s1, 4
          %s216 = int_to_ptr.vmem [resolvable:$true] %s215
          %218 = dma.vmem_to_smem %s216, 64, [#allocation3], [#allocation5]
        $region16: #{double_factorized_increase.7} parent=11 // pred_fallthru
          _
        // Predicated region
        $region17: #{double_factorized_increase.7} parent=11 // pred_check
          %p219 = pneg %p97
        $region18: #{double_factorized_increase.7} parent=11 // pred_check_branch
          %221 = sbr.rel (%p219) target = $region20
        $region19: #{double_factorized_increase.7} parent=11 // pred_region
          _
        $region20: #{double_factorized_increase.7} parent=11 // pred_fallthru
          _
        // Predicated region
        $region21: #{double_factorized_increase.7} parent=11 // pred_check
          %p222 = pneg %p144
        $region22: #{double_factorized_increase.7} parent=11 // pred_check_branch
          %224 = sbr.rel (%p222) target = $region24
        $region23: #{double_factorized_increase.7} parent=11 // pred_region
          %s226 = ssub.s32 16, 16
          %227 = vsyncadd [#allocation7], %s226
          %s229 = sshll.u32 %s4, 4
          %s230 = int_to_ptr.vmem [resolvable:$true] %s229
          %232 = dma.vmem_to_smem %s230, 16, [#allocation6], [#allocation7]
        $region24: #{double_factorized_increase.7} parent=11 // pred_fallthru
          _
        // Predicated region
        $region25: #{double_factorized_increase.7} parent=11 // pred_check
          %p233 = pneg %p165
        $region26: #{double_factorized_increase.7} parent=11 // pred_check_branch
          %235 = sbr.rel (%p233) target = $region28
        $region27: #{double_factorized_increase.7} parent=11 // pred_region
          %s237 = ssub.s32 16, 16
          %238 = vsyncadd [#allocation7], %s237
          %s240 = sshll.u32 %s5, 4
          %s241 = int_to_ptr.vmem [resolvable:$true] %s240
          %243 = dma.vmem_to_smem %s241, 16, [#allocation8], [#allocation7]
        $region28: #{double_factorized_increase.7} parent=11 // pred_fallthru
          _
      $region12: #{double_factorized_increase.7} parent=5 // pred_fallthru
        _
      %p244 = scmp.lt.s32.totalorder %s17, 8
      // Predicated region
      $region29: #{double_factorized_increase.7} parent=5 // pred_check
        %p245 = pneg %p244
      $region30: #{double_factorized_increase.7} parent=5 // pred_check_branch
        %247 = sbr.rel (%p245) target = $region32
      $region31: #{double_factorized_increase.7} parent=5 // pred_region
        // Predicated region
        $region33: #{double_factorized_increase.7} parent=31 // pred_check
          %p248 = pneg %p49
        $region34: #{double_factorized_increase.7} parent=31 // pred_check_branch
          %250 = sbr.rel (%p248) target = $region36
        $region35: #{double_factorized_increase.7} parent=31 // pred_region
          %p251 = scmp.lt.s32.totalorder %s24, 1
          %s252 = scalar_select %p251, %s24, 1
          %s253 = smul.addr %s252, 16
          %s254 = smul.addr %s253, 8
          %s255 = scalar_lea.vmem %s0, %s254
        $region36: #{double_factorized_increase.7} parent=31 // pred_fallthru
          _
        // Predicated region
        $region37: #{double_factorized_increase.7} parent=31 // pred_check
          %p256 = pneg %p117
        $region38: #{double_factorized_increase.7} parent=31 // pred_check_branch
          %258 = sbr.rel (%p256) target = $region40
        $region39: #{double_factorized_increase.7} parent=31 // pred_region
          %s259 = smul.u32 2, %s25
          %p260 = scmp.lt.s32.totalorder %s259, 7
          %s261 = scalar_select %p260, %s259, 7
          %s262 = smul.addr %s261, 8
          %s263 = scalar_lea.vmem %s3, %s262
          %s264 = smul.u32 2, %s25
        $region40: #{double_factorized_increase.7} parent=31 // pred_fallthru
          _
      $region32: #{double_factorized_increase.7} parent=5 // pred_fallthru
        _
      %p265 = scmp.le.s32.totalorder 1, %s17
      %p266 = scmp.lt.s32.totalorder %s17, 9
      %p267 = pnand %p265, %p266
      %p268 = pneg %p267
      // Predicated region
      $region41: #{double_factorized_increase.7} parent=5 // pred_check
        _
      $region42: #{double_factorized_increase.7} parent=5 // pred_check_branch
        %270 = sbr.rel (%p267) target = $region44
      $region43: #{double_factorized_increase.7} parent=5 // pred_region
        %s271 = ssub.s32 %s17, 1
        // Predicated region
        $region45: #{double_factorized_increase.7} parent=43 // pred_check
          %p272 = pneg %p76
        $region46: #{double_factorized_increase.7} parent=43 // pred_check_branch
          %274 = sbr.rel (%p272) target = $region48
        $region47: #{double_factorized_increase.7} parent=43 // pred_region
          %275 = dma.done [#allocation5], 64
        $region48: #{double_factorized_increase.7} parent=43 // pred_fallthru
          _
        // Predicated region
        $region49: #{double_factorized_increase.7} parent=43 // pred_check
          %p276 = pneg %p144
        $region50: #{double_factorized_increase.7} parent=43 // pred_check_branch
          %278 = sbr.rel (%p276) target = $region52
        $region51: #{double_factorized_increase.7} parent=43 // pred_region
          %279 = dma.done [#allocation7], 16
        $region52: #{double_factorized_increase.7} parent=43 // pred_fallthru
          _
        // Predicated region
        $region53: #{double_factorized_increase.7} parent=43 // pred_check
          %p280 = pneg %p165
        $region54: #{double_factorized_increase.7} parent=43 // pred_check_branch
          %282 = sbr.rel (%p280) target = $region56
        $region55: #{double_factorized_increase.7} parent=43 // pred_region
          %283 = dma.done [#allocation7], 16
        $region56: #{double_factorized_increase.7} parent=43 // pred_fallthru
          _
        %284 = sfence
        %p285 = scmp.lt.s32.totalorder %s26, 1
        %s286 = scalar_select %p285, %s26, 1
        %s287 = smul.addr %s286, 16
        %s288 = smul.addr %s287, 8
        %s289 = scalar_lea.vmem %s0, %s288
        %p290 = pneg %p55
        %p291 = pneg %p52
        %p292 = pneg %p76
        %p293 = pneg %p73
        %p294 = pneg %p97
        %p295 = pneg %p94
        %s296 = smul.u32 2, %s27
        %p297 = scmp.lt.s32.totalorder %s296, 7
        %s298 = scalar_select %p297, %s296, 7
        %s299 = smul.addr %s298, 8
        %s300 = scalar_lea.vmem %s3, %s299
        %p301 = pneg %p123
        %p302 = pneg %p120
        %p303 = pneg %p144
        %p304 = pneg %p141
        %p305 = pneg %p165
        %p306 = pneg %p162
        %p307 = pneg %p193
        %p308 = pneg %p190
        %s309 = sand.u32 %s180, 1
        %s310 = scalar_lea.sflag [#allocation4], %s309
        %s311 = sand.u32 %s180, 1
        %s312 = smul.addr %s311, 64
        %s313 = scalar_lea.vmem [#allocation9], %s312
        %p314 = scmp.lt.s32.totalorder %s26, 1
        %s315 = scalar_select %p314, %s26, 1
        %s316 = smul.addr %s315, 16
        %s317 = smul.addr %s316, 8
        %s318 = scalar_lea.vmem %s0, %s317
        %s319 = smul.u32 2, %s27
        %p320 = scmp.lt.s32.totalorder %s319, 7
        %s321 = scalar_select %p320, %s319, 7
        %s322 = smul.addr %s321, 8
        %s323 = scalar_lea.vmem %s3, %s322
        %s324 = smul.u32 2, %s27
        %s325 = smul.u32 2, %s27
        %p326 = scmp.eq.s32.totalorder %s27, 0
        // Predicated region
        $region57: #{double_factorized_increase.7} parent=43 // pred_check
          %p327 = pneg %p326
        $region58: #{double_factorized_increase.7} parent=43 // pred_check_branch
          %329 = sbr.rel (%p327) target = $region60
        $region59: #{double_factorized_increase.7} parent=43 // pred_region
          %v330 = vld [vmem:[%s2] sm:$0xff]
          %v331 = vld [vmem:[%s2 + $0x8] sm:$0xff]
          %v332 = vld [vmem:[%s2 + $0x10] sm:$0xff]
          %v333 = vld [vmem:[%s2 + $0x18] sm:$0xff]
          %s334 = sld [smem:[#allocation3]]
          %v335 = vld [vmem:[%s318] sm:$0xff]
          %v336 = vld [vmem:[%s318 + $0x8] sm:$0xff]
          %v337 = vld [vmem:[%s318 + $0x10] sm:$0xff]
          %v338 = vld [vmem:[%s318 + $0x18] sm:$0xff]
          %v339 = vstv %s334
          %v340 = vmul.f32 %v339, %v335
          %v341 = vmul.f32 %v339, %v336
          %v342 = vmul.f32 %v339, %v337
          %v343 = vmul.f32 %v339, %v338
          %s344 = sld [smem:[#allocation3 + $0x1]]
          %s345 = scalar_lea.vmem %s318, 32
          %v346 = vld [vmem:[%s345] sm:$0xff]
          %v347 = vld [vmem:[%s345 + $0x8] sm:$0xff]
          %v348 = vld [vmem:[%s345 + $0x10] sm:$0xff]
          %v349 = vld [vmem:[%s345 + $0x18] sm:$0xff]
          %v350 = vstv %s344
          %v351 = vmul.f32 %v350, %v346
          %v352 = vmul.f32 %v350, %v347
          %v353 = vmul.f32 %v350, %v348
          %v354 = vmul.f32 %v350, %v349
          %v355 = vadd.f32 %v340, %v351
          %v356 = vadd.f32 %v341, %v352
          %v357 = vadd.f32 %v342, %v353
          %v358 = vadd.f32 %v343, %v354
          %s359 = sld [smem:[#allocation3 + $0x2]]
          %s360 = scalar_lea.vmem %s318, 64
          %v361 = vld [vmem:[%s360] sm:$0xff]
          %v362 = vld [vmem:[%s360 + $0x8] sm:$0xff]
          %v363 = vld [vmem:[%s360 + $0x10] sm:$0xff]
          %v364 = vld [vmem:[%s360 + $0x18] sm:$0xff]
          %v365 = vstv %s359
          %v366 = vmul.f32 %v365, %v361
          %v367 = vmul.f32 %v365, %v362
          %v368 = vmul.f32 %v365, %v363
          %v369 = vmul.f32 %v365, %v364
          %v370 = vadd.f32 %v355, %v366
          %v371 = vadd.f32 %v356, %v367
          %v372 = vadd.f32 %v357, %v368
          %v373 = vadd.f32 %v358, %v369
          %s374 = sld [smem:[#allocation3 + $0x3]]
          %s375 = scalar_lea.vmem %s318, 96
          %v376 = vld [vmem:[%s375] sm:$0xff]
          %v377 = vld [vmem:[%s375 + $0x8] sm:$0xff]
          %v378 = vld [vmem:[%s375 + $0x10] sm:$0xff]
          %v379 = vld [vmem:[%s375 + $0x18] sm:$0xff]
          %v380 = vstv %s374
          %v381 = vmul.f32 %v380, %v376
          %v382 = vmul.f32 %v380, %v377
          %v383 = vmul.f32 %v380, %v378
          %v384 = vmul.f32 %v380, %v379
          %v385 = vadd.f32 %v370, %v381
          %v386 = vadd.f32 %v371, %v382
          %v387 = vadd.f32 %v372, %v383
          %v388 = vadd.f32 %v373, %v384
          %vm389 = vcmask 261120
          %v391 = vsel %vm389, %v385, 0
          %v394 = vsel %vm389, %v386, 0
          %v397 = vsel %vm389, %v387, 0
          %v400 = vsel %vm389, %v388, 0
          %402 = vmatprep.subr.mxu0 0.0
          %403 = vmatpush1.msra.mxu0 %v330
          %404 = vmatprep.subr.mxu0 0.0
          %405 = vmatpush1.msra.mxu0 %v331
          %406 = vmatprep.subr.mxu0 0.0
          %407 = vmatpush1.msra.mxu0 %v332
          %408 = vmatprep.subr.mxu0 0.0
          %409 = vmatpush1.msra.mxu0 %v333
          %410 = vmatprep.subr.mxu0 0.0
          %411 = vmatpush1.msra.mxu0 0.0
          %412 = vmatprep.subr.mxu0 0.0
          %413 = vmatpush1.msra.mxu0 0.0
          %414 = vmatprep.subr.mxu0 0.0
          %415 = vmatpush1.msra.mxu0 0.0
          %416 = vmatprep.subr.mxu0 0.0
          %417 = vmatpush1.msra.mxu0 0.0
          %418 = vmatprep.subr.mxu0 0.0
          %419 = vmatpush1.msra.mxu0 0.0
          %420 = vmatprep.subr.mxu0 0.0
          %421 = vmatpush1.msra.mxu0 0.0
          %422 = vmatprep.subr.mxu0 0.0
          %423 = vmatpush1.msra.mxu0 0.0
          %424 = vmatprep.subr.mxu0 0.0
          %425 = vmatpush1.msra.mxu0 0.0
          %426 = vmatprep.subr.mxu0 0.0
          %427 = vmatpush1.msra.mxu0 0.0
          %428 = vmatprep.subr.mxu0 0.0
          %429 = vmatpush1.msra.mxu0 0.0
          %430 = vmatprep.subr.mxu0 0.0
          %431 = vmatpush1.msra.mxu0 0.0
          %432 = vmatprep.subr.mxu0 0.0
          %433 = vmatpush1.msra.mxu0 0.0
          %434 = vmatprep.subr.mxu0 0.0
          %435 = vmatpush1.msra.mxu0 0.0
          %436 = vmatprep.subr.mxu0 0.0
          %437 = vmatpush1.msra.mxu0 0.0
          %438 = vmatprep.subr.mxu0 0.0
          %439 = vmatpush1.msra.mxu0 0.0
          %440 = vmatprep.subr.mxu0 0.0
          %441 = vmatpush1.msra.mxu0 0.0
          %442 = vmatprep.subr.mxu0 0.0
          %443 = vmatpush1.msra.mxu0 0.0
          %444 = vmatprep.subr.mxu0 0.0
          %445 = vmatpush1.msra.mxu0 0.0
          %446 = vmatprep.subr.mxu0 0.0
          %447 = vmatpush1.msra.mxu0 0.0
          %448 = vmatprep.subr.mxu0 0.0
          %449 = vmatpush1.msra.mxu0 0.0
          %450 = vmatprep.subr.mxu0 0.0
          %451 = vmatpush1.msra.mxu0 0.0
          %452 = vmatprep.subr.mxu0 0.0
          %453 = vmatpush1.msra.mxu0 0.0
          %454 = vmatprep.subr.mxu0 0.0
          %455 = vmatpush1.msra.mxu0 0.0
          %456 = vmatprep.subr.mxu0 0.0
          %457 = vmatpush1.msra.mxu0 0.0
          %458 = vmatprep.subr.mxu0 0.0
          %459 = vmatpush1.msra.mxu0 0.0
          %460 = vmatprep.subr.mxu0 0.0
          %461 = vmatpush1.msra.mxu0 0.0
          %462 = vmatprep.subr.mxu0 0.0
          %463 = vmatpush1.msra.mxu0 0.0
          %464 = vmatprep.subr.mxu0 0.0
          %465 = vmatpush1.msra.mxu0 0.0
          %466 = vmatprep.mubr.f32.mxu0 0.0
          %467 = vmatmul.mubr.f32.gmra.mrb[0].mxu0 %v391
          %v468 = vpop.f32.mrb[0].mxu0
          %v469 = vadd.f32 0.0, %v468
          %v470 = vpop.f32.mrb[0].mxu0
          %471 = vmatprep.mubr.f32.mxu0 0.0
          %472 = vmatmul.mubr.f32.gmra.mrb[0].mxu0 %v394
          %v473 = vpop.f32.mrb[0].mxu0
          %v474 = vadd.f32 0.0, %v473
          %v475 = vpop.f32.mrb[0].mxu0
          %476 = vmatprep.mubr.f32.mxu0 0.0
          %477 = vmatmul.mubr.f32.gmra.mrb[0].mxu0 %v397
          %v478 = vpop.f32.mrb[0].mxu0
          %v479 = vadd.f32 0.0, %v478
          %v480 = vpop.f32.mrb[0].mxu0
          %481 = vmatprep.mubr.f32.mxu0 0.0
          %482 = vmatmul.mubr.f32.gmra.mrb[0].mxu0 %v400
          %v483 = vpop.f32.mrb[0].mxu0
          %v484 = vadd.f32 0.0, %v483
          %v485 = vpop.f32.mrb[0].mxu0
          %486 = vdwg.mxu0
          %vm487 = vcmask 523264
          %488 = vst.msk [vmem:[#allocation2] sm:$0xff] %vm487, %v469
          %489 = vst.msk [vmem:[#allocation2 + $0x8] sm:$0xff] %vm487, %v474
          %490 = vst.msk [vmem:[#allocation2 + $0x10] sm:$0xff] %vm487, %v479
          %491 = vst.msk [vmem:[#allocation2 + $0x18] sm:$0xff] %vm487, %v484
          %s492 = sld [smem:[#allocation3 + $0x80]]
          %v493 = vld [vmem:[%s318] sm:$0xff]
          %v494 = vld [vmem:[%s318 + $0x8] sm:$0xff]
          %v495 = vld [vmem:[%s318 + $0x10] sm:$0xff]
          %v496 = vld [vmem:[%s318 + $0x18] sm:$0xff]
          %v497 = vstv %s492
          %v498 = vmul.f32 %v497, %v493
          %v499 = vmul.f32 %v497, %v494
          %v500 = vmul.f32 %v497, %v495
          %v501 = vmul.f32 %v497, %v496
          %s502 = sld [smem:[#allocation3 + $0x81]]
          %v503 = vld [vmem:[%s345] sm:$0xff]
          %v504 = vld [vmem:[%s345 + $0x8] sm:$0xff]
          %v505 = vld [vmem:[%s345 + $0x10] sm:$0xff]
          %v506 = vld [vmem:[%s345 + $0x18] sm:$0xff]
          %v507 = vstv %s502
          %v508 = vmul.f32 %v507, %v503
          %v509 = vmul.f32 %v507, %v504
          %v510 = vmul.f32 %v507, %v505
          %v511 = vmul.f32 %v507, %v506
          %v512 = vadd.f32 %v498, %v508
          %v513 = vadd.f32 %v499, %v509
          %v514 = vadd.f32 %v500, %v510
          %v515 = vadd.f32 %v501, %v511
          %s516 = sld [smem:[#allocation3 + $0x82]]
          %v517 = vld [vmem:[%s360] sm:$0xff]
          %v518 = vld [vmem:[%s360 + $0x8] sm:$0xff]
          %v519 = vld [vmem:[%s360 + $0x10] sm:$0xff]
          %v520 = vld [vmem:[%s360 + $0x18] sm:$0xff]
          %v521 = vstv %s516
          %v522 = vmul.f32 %v521, %v517
          %v523 = vmul.f32 %v521, %v518
          %v524 = vmul.f32 %v521, %v519
          %v525 = vmul.f32 %v521, %v520
          %v526 = vadd.f32 %v512, %v522
          %v527 = vadd.f32 %v513, %v523
          %v528 = vadd.f32 %v514, %v524
          %v529 = vadd.f32 %v515, %v525
          %s530 = sld [smem:[#allocation3 + $0x83]]
          %v531 = vld [vmem:[%s375] sm:$0xff]
          %v532 = vld [vmem:[%s375 + $0x8] sm:$0xff]
          %v533 = vld [vmem:[%s375 + $0x10] sm:$0xff]
          %v534 = vld [vmem:[%s375 + $0x18] sm:$0xff]
          %v535 = vstv %s530
          %v536 = vmul.f32 %v535, %v531
          %v537 = vmul.f32 %v535, %v532
          %v538 = vmul.f32 %v535, %v533
          %v539 = vmul.f32 %v535, %v534
          %v540 = vadd.f32 %v526, %v536
          %v541 = vadd.f32 %v527, %v537
          %v542 = vadd.f32 %v528, %v538
          %v543 = vadd.f32 %v529, %v539
          %v545 = vsel %vm389, %v540, 0
          %v548 = vsel %vm389, %v541, 0
          %v551 = vsel %vm389, %v542, 0
          %v554 = vsel %vm389, %v543, 0
          %556 = vmatprep.subr.mxu0 0.0
          %557 = vmatpush1.msra.mxu0 %v330
          %558 = vmatprep.subr.mxu0 0.0
          %559 = vmatpush1.msra.mxu0 %v331
          %560 = vmatprep.subr.mxu0 0.0
          %561 = vmatpush1.msra.mxu0 %v332
          %562 = vmatprep.subr.mxu0 0.0
          %563 = vmatpush1.msra.mxu0 %v333
          %564 = vmatprep.subr.mxu0 0.0
          %565 = vmatpush1.msra.mxu0 0.0
          %566 = vmatprep.subr.mxu0 0.0
          %567 = vmatpush1.msra.mxu0 0.0
          %568 = vmatprep.subr.mxu0 0.0
          %569 = vmatpush1.msra.mxu0 0.0
          %570 = vmatprep.subr.mxu0 0.0
          %571 = vmatpush1.msra.mxu0 0.0
          %572 = vmatprep.subr.mxu0 0.0
          %573 = vmatpush1.msra.mxu0 0.0
          %574 = vmatprep.subr.mxu0 0.0
          %575 = vmatpush1.msra.mxu0 0.0
          %576 = vmatprep.subr.mxu0 0.0
          %577 = vmatpush1.msra.mxu0 0.0
          %578 = vmatprep.subr.mxu0 0.0
          %579 = vmatpush1.msra.mxu0 0.0
          %580 = vmatprep.subr.mxu0 0.0
          %581 = vmatpush1.msra.mxu0 0.0
          %582 = vmatprep.subr.mxu0 0.0
          %583 = vmatpush1.msra.mxu0 0.0
          %584 = vmatprep.subr.mxu0 0.0
          %585 = vmatpush1.msra.mxu0 0.0
          %586 = vmatprep.subr.mxu0 0.0
          %587 = vmatpush1.msra.mxu0 0.0
          %588 = vmatprep.subr.mxu0 0.0
          %589 = vmatpush1.msra.mxu0 0.0
          %590 = vmatprep.subr.mxu0 0.0
          %591 = vmatpush1.msra.mxu0 0.0
          %592 = vmatprep.subr.mxu0 0.0
          %593 = vmatpush1.msra.mxu0 0.0
          %594 = vmatprep.subr.mxu0 0.0
          %595 = vmatpush1.msra.mxu0 0.0
          %596 = vmatprep.subr.mxu0 0.0
          %597 = vmatpush1.msra.mxu0 0.0
          %598 = vmatprep.subr.mxu0 0.0
          %599 = vmatpush1.msra.mxu0 0.0
          %600 = vmatprep.subr.mxu0 0.0
          %601 = vmatpush1.msra.mxu0 0.0
          %602 = vmatprep.subr.mxu0 0.0
          %603 = vmatpush1.msra.mxu0 0.0
          %604 = vmatprep.subr.mxu0 0.0
          %605 = vmatpush1.msra.mxu0 0.0
          %606 = vmatprep.subr.mxu0 0.0
          %607 = vmatpush1.msra.mxu0 0.0
          %608 = vmatprep.subr.mxu0 0.0
          %609 = vmatpush1.msra.mxu0 0.0
          %610 = vmatprep.subr.mxu0 0.0
          %611 = vmatpush1.msra.mxu0 0.0
          %612 = vmatprep.subr.mxu0 0.0
          %613 = vmatpush1.msra.mxu0 0.0
          %614 = vmatprep.subr.mxu0 0.0
          %615 = vmatpush1.msra.mxu0 0.0
          %616 = vmatprep.subr.mxu0 0.0
          %617 = vmatpush1.msra.mxu0 0.0
          %618 = vmatprep.subr.mxu0 0.0
          %619 = vmatpush1.msra.mxu0 0.0
          %620 = vmatprep.mubr.f32.mxu0 0.0
          %621 = vmatmul.mubr.f32.gmra.mrb[0].mxu0 %v545
          %v622 = vpop.f32.mrb[0].mxu0
          %v623 = vadd.f32 0.0, %v622
          %v624 = vpop.f32.mrb[0].mxu0
          %625 = vmatprep.mubr.f32.mxu0 0.0
          %626 = vmatmul.mubr.f32.gmra.mrb[0].mxu0 %v548
          %v627 = vpop.f32.mrb[0].mxu0
          %v628 = vadd.f32 0.0, %v627
          %v629 = vpop.f32.mrb[0].mxu0
          %630 = vmatprep.mubr.f32.mxu0 0.0
          %631 = vmatmul.mubr.f32.gmra.mrb[0].mxu0 %v551
          %v632 = vpop.f32.mrb[0].mxu0
          %v633 = vadd.f32 0.0, %v632
          %v634 = vpop.f32.mrb[0].mxu0
          %635 = vmatprep.mubr.f32.mxu0 0.0
          %636 = vmatmul.mubr.f32.gmra.mrb[0].mxu0 %v554
          %v637 = vpop.f32.mrb[0].mxu0
          %v638 = vadd.f32 0.0, %v637
          %v639 = vpop.f32.mrb[0].mxu0
          %640 = vdwg.mxu0
          %s641 = scalar_lea.vmem [#allocation2], 32
          %642 = vst.msk [vmem:[%s641] sm:$0xff] %vm487, %v623
          %643 = vst.msk [vmem:[%s641 + $0x8] sm:$0xff] %vm487, %v628
          %644 = vst.msk [vmem:[%s641 + $0x10] sm:$0xff] %vm487, %v633
          %645 = vst.msk [vmem:[%s641 + $0x18] sm:$0xff] %vm487, %v638
          %s646 = sld [smem:[#allocation3 + $0x100]]
          %v647 = vld [vmem:[%s318] sm:$0xff]
          %v648 = vld [vmem:[%s318 + $0x8] sm:$0xff]
          %v649 = vld [vmem:[%s318 + $0x10] sm:$0xff]
          %v650 = vld [vmem:[%s318 + $0x18] sm:$0xff]
          %v651 = vstv %s646
          %v652 = vmul.f32 %v651, %v647
          %v653 = vmul.f32 %v651, %v648
          %v654 = vmul.f32 %v651, %v649
          %v655 = vmul.f32 %v651, %v650
          %s656 = sld [smem:[#allocation3 + $0x101]]
          %v657 = vld [vmem:[%s345] sm:$0xff]
          %v658 = vld [vmem:[%s345 + $0x8] sm:$0xff]
          %v659 = vld [vmem:[%s345 + $0x10] sm:$0xff]
          %v660 = vld [vmem:[%s345 + $0x18] sm:$0xff]
          %v661 = vstv %s656
          %v662 = vmul.f32 %v661, %v657
          %v663 = vmul.f32 %v661, %v658
          %v664 = vmul.f32 %v661, %v659
          %v665 = vmul.f32 %v661, %v660
          %v666 = vadd.f32 %v652, %v662
          %v667 = vadd.f32 %v653, %v663
          %v668 = vadd.f32 %v654, %v664
          %v669 = vadd.f32 %v655, %v665
          %s670 = sld [smem:[#allocation3 + $0x102]]
          %v671 = vld [vmem:[%s360] sm:$0xff]
          %v672 = vld [vmem:[%s360 + $0x8] sm:$0xff]
          %v673 = vld [vmem:[%s360 + $0x10] sm:$0xff]
          %v674 = vld [vmem:[%s360 + $0x18] sm:$0xff]
          %v675 = vstv %s670
          %v676 = vmul.f32 %v675, %v671
          %v677 = vmul.f32 %v675, %v672
          %v678 = vmul.f32 %v675, %v673
          %v679 = vmul.f32 %v675, %v674
          %v680 = vadd.f32 %v666, %v676
          %v681 = vadd.f32 %v667, %v677
          %v682 = vadd.f32 %v668, %v678
          %v683 = vadd.f32 %v669, %v679
          %s684 = sld [smem:[#allocation3 + $0x103]]
          %v685 = vld [vmem:[%s375] sm:$0xff]
          %v686 = vld [vmem:[%s375 + $0x8] sm:$0xff]
          %v687 = vld [vmem:[%s375 + $0x10] sm:$0xff]
          %v688 = vld [vmem:[%s375 + $0x18] sm:$0xff]
          %v689 = vstv %s684
          %v690 = vmul.f32 %v689, %v685
          %v691 = vmul.f32 %v689, %v686
          %v692 = vmul.f32 %v689, %v687
          %v693 = vmul.f32 %v689, %v688
          %v694 = vadd.f32 %v680, %v690
          %v695 = vadd.f32 %v681, %v691
          %v696 = vadd.f32 %v682, %v692
          %v697 = vadd.f32 %v683, %v693
          %v699 = vsel %vm389, %v694, 0
          %v702 = vsel %vm389, %v695, 0
          %v705 = vsel %vm389, %v696, 0
          %v708 = vsel %vm389, %v697, 0
          %710 = vmatprep.subr.mxu0 0.0
          %711 = vmatpush1.msra.mxu0 %v330
          %712 = vmatprep.subr.mxu0 0.0
          %713 = vmatpush1.msra.mxu0 %v331
          %714 = vmatprep.subr.mxu0 0.0
          %715 = vmatpush1.msra.mxu0 %v332
          %716 = vmatprep.subr.mxu0 0.0
          %717 = vmatpush1.msra.mxu0 %v333
          %718 = vmatprep.subr.mxu0 0.0
          %719 = vmatpush1.msra.mxu0 0.0
          %720 = vmatprep.subr.mxu0 0.0
          %721 = vmatpush1.msra.mxu0 0.0
          %722 = vmatprep.subr.mxu0 0.0
          %723 = vmatpush1.msra.mxu0 0.0
          %724 = vmatprep.subr.mxu0 0.0
          %725 = vmatpush1.msra.mxu0 0.0
          %726 = vmatprep.subr.mxu0 0.0
          %727 = vmatpush1.msra.mxu0 0.0
          %728 = vmatprep.subr.mxu0 0.0
          %729 = vmatpush1.msra.mxu0 0.0
          %730 = vmatprep.subr.mxu0 0.0
          %731 = vmatpush1.msra.mxu0 0.0
          %732 = vmatprep.subr.mxu0 0.0
          %733 = vmatpush1.msra.mxu0 0.0
          %734 = vmatprep.subr.mxu0 0.0
          %735 = vmatpush1.msra.mxu0 0.0
          %736 = vmatprep.subr.mxu0 0.0
          %737 = vmatpush1.msra.mxu0 0.0
          %738 = vmatprep.subr.mxu0 0.0
          %739 = vmatpush1.msra.mxu0 0.0
          %740 = vmatprep.subr.mxu0 0.0
          %741 = vmatpush1.msra.mxu0 0.0
          %742 = vmatprep.subr.mxu0 0.0
          %743 = vmatpush1.msra.mxu0 0.0
          %744 = vmatprep.subr.mxu0 0.0
          %745 = vmatpush1.msra.mxu0 0.0
          %746 = vmatprep.subr.mxu0 0.0
          %747 = vmatpush1.msra.mxu0 0.0
          %748 = vmatprep.subr.mxu0 0.0
          %749 = vmatpush1.msra.mxu0 0.0
          %750 = vmatprep.subr.mxu0 0.0
          %751 = vmatpush1.msra.mxu0 0.0
          %752 = vmatprep.subr.mxu0 0.0
          %753 = vmatpush1.msra.mxu0 0.0
          %754 = vmatprep.subr.mxu0 0.0
          %755 = vmatpush1.msra.mxu0 0.0
          %756 = vmatprep.subr.mxu0 0.0
          %757 = vmatpush1.msra.mxu0 0.0
          %758 = vmatprep.subr.mxu0 0.0
          %759 = vmatpush1.msra.mxu0 0.0
          %760 = vmatprep.subr.mxu0 0.0
          %761 = vmatpush1.msra.mxu0 0.0
          %762 = vmatprep.subr.mxu0 0.0
          %763 = vmatpush1.msra.mxu0 0.0
          %764 = vmatprep.subr.mxu0 0.0
          %765 = vmatpush1.msra.mxu0 0.0
          %766 = vmatprep.subr.mxu0 0.0
          %767 = vmatpush1.msra.mxu0 0.0
          %768 = vmatprep.subr.mxu0 0.0
          %769 = vmatpush1.msra.mxu0 0.0
          %770 = vmatprep.subr.mxu0 0.0
          %771 = vmatpush1.msra.mxu0 0.0
          %772 = vmatprep.subr.mxu0 0.0
          %773 = vmatpush1.msra.mxu0 0.0
          %774 = vmatprep.mubr.f32.mxu0 0.0
          %775 = vmatmul.mubr.f32.gmra.mrb[0].mxu0 %v699
          %v776 = vpop.f32.mrb[0].mxu0
          %v777 = vadd.f32 0.0, %v776
          %v778 = vpop.f32.mrb[0].mxu0
          %779 = vmatprep.mubr.f32.mxu0 0.0
          %780 = vmatmul.mubr.f32.gmra.mrb[0].mxu0 %v702
          %v781 = vpop.f32.mrb[0].mxu0
          %v782 = vadd.f32 0.0, %v781
          %v783 = vpop.f32.mrb[0].mxu0
          %784 = vmatprep.mubr.f32.mxu0 0.0
          %785 = vmatmul.mubr.f32.gmra.mrb[0].mxu0 %v705
          %v786 = vpop.f32.mrb[0].mxu0
          %v787 = vadd.f32 0.0, %v786
          %v788 = vpop.f32.mrb[0].mxu0
          %789 = vmatprep.mubr.f32.mxu0 0.0
          %790 = vmatmul.mubr.f32.gmra.mrb[0].mxu0 %v708
          %v791 = vpop.f32.mrb[0].mxu0
          %v792 = vadd.f32 0.0, %v791
          %v793 = vpop.f32.mrb[0].mxu0
          %794 = vdwg.mxu0
          %s795 = scalar_lea.vmem [#allocation2], 64
          %796 = vst.msk [vmem:[%s795] sm:$0xff] %vm487, %v777
          %797 = vst.msk [vmem:[%s795 + $0x8] sm:$0xff] %vm487, %v782
          %798 = vst.msk [vmem:[%s795 + $0x10] sm:$0xff] %vm487, %v787
          %799 = vst.msk [vmem:[%s795 + $0x18] sm:$0xff] %vm487, %v792
          %s800 = sld [smem:[#allocation3 + $0x180]]
          %v801 = vld [vmem:[%s318] sm:$0xff]
          %v802 = vld [vmem:[%s318 + $0x8] sm:$0xff]
          %v803 = vld [vmem:[%s318 + $0x10] sm:$0xff]
          %v804 = vld [vmem:[%s318 + $0x18] sm:$0xff]
          %v805 = vstv %s800
          %v806 = vmul.f32 %v805, %v801
          %v807 = vmul.f32 %v805, %v802
          %v808 = vmul.f32 %v805, %v803
          %v809 = vmul.f32 %v805, %v804
          %s810 = sld [smem:[#allocation3 + $0x181]]
          %v811 = vld [vmem:[%s345] sm:$0xff]
          %v812 = vld [vmem:[%s345 + $0x8] sm:$0xff]
          %v813 = vld [vmem:[%s345 + $0x10] sm:$0xff]
          %v814 = vld [vmem:[%s345 + $0x18] sm:$0xff]
          %v815 = vstv %s810
          %v816 = vmul.f32 %v815, %v811
          %v817 = vmul.f32 %v815, %v812
          %v818 = vmul.f32 %v815, %v813
          %v819 = vmul.f32 %v815, %v814
          %v820 = vadd.f32 %v806, %v816
          %v821 = vadd.f32 %v807, %v817
          %v822 = vadd.f32 %v808, %v818
          %v823 = vadd.f32 %v809, %v819
          %s824 = sld [smem:[#allocation3 + $0x182]]
          %v825 = vld [vmem:[%s360] sm:$0xff]
          %v826 = vld [vmem:[%s360 + $0x8] sm:$0xff]
          %v827 = vld [vmem:[%s360 + $0x10] sm:$0xff]
          %v828 = vld [vmem:[%s360 + $0x18] sm:$0xff]
          %v829 = vstv %s824
          %v830 = vmul.f32 %v829, %v825
          %v831 = vmul.f32 %v829, %v826
          %v832 = vmul.f32 %v829, %v827
          %v833 = vmul.f32 %v829, %v828
          %v834 = vadd.f32 %v820, %v830
          %v835 = vadd.f32 %v821, %v831
          %v836 = vadd.f32 %v822, %v832
          %v837 = vadd.f32 %v823, %v833
          %s838 = sld [smem:[#allocation3 + $0x183]]
          %v839 = vld [vmem:[%s375] sm:$0xff]
          %v840 = vld [vmem:[%s375 + $0x8] sm:$0xff]
          %v841 = vld [vmem:[%s375 + $0x10] sm:$0xff]
          %v842 = vld [vmem:[%s375 + $0x18] sm:$0xff]
          %v843 = vstv %s838
          %v844 = vmul.f32 %v843, %v839
          %v845 = vmul.f32 %v843, %v840
          %v846 = vmul.f32 %v843, %v841
          %v847 = vmul.f32 %v843, %v842
          %v848 = vadd.f32 %v834, %v844
          %v849 = vadd.f32 %v835, %v845
          %v850 = vadd.f32 %v836, %v846
          %v851 = vadd.f32 %v837, %v847
          %v853 = vsel %vm389, %v848, 0
          %v856 = vsel %vm389, %v849, 0
          %v859 = vsel %vm389, %v850, 0
          %v862 = vsel %vm389, %v851, 0
          %864 = vmatprep.subr.mxu0 0.0
          %865 = vmatpush1.msra.mxu0 %v330
          %866 = vmatprep.subr.mxu0 0.0
          %867 = vmatpush1.msra.mxu0 %v331
          %868 = vmatprep.subr.mxu0 0.0
          %869 = vmatpush1.msra.mxu0 %v332
          %870 = vmatprep.subr.mxu0 0.0
          %871 = vmatpush1.msra.mxu0 %v333
          %872 = vmatprep.subr.mxu0 0.0
          %873 = vmatpush1.msra.mxu0 0.0
          %874 = vmatprep.subr.mxu0 0.0
          %875 = vmatpush1.msra.mxu0 0.0
          %876 = vmatprep.subr.mxu0 0.0
          %877 = vmatpush1.msra.mxu0 0.0
          %878 = vmatprep.subr.mxu0 0.0
          %879 = vmatpush1.msra.mxu0 0.0
          %880 = vmatprep.subr.mxu0 0.0
          %881 = vmatpush1.msra.mxu0 0.0
          %882 = vmatprep.subr.mxu0 0.0
          %883 = vmatpush1.msra.mxu0 0.0
          %884 = vmatprep.subr.mxu0 0.0
          %885 = vmatpush1.msra.mxu0 0.0
          %886 = vmatprep.subr.mxu0 0.0
          %887 = vmatpush1.msra.mxu0 0.0
          %888 = vmatprep.subr.mxu0 0.0
          %889 = vmatpush1.msra.mxu0 0.0
          %890 = vmatprep.subr.mxu0 0.0
          %891 = vmatpush1.msra.mxu0 0.0
          %892 = vmatprep.subr.mxu0 0.0
          %893 = vmatpush1.msra.mxu0 0.0
          %894 = vmatprep.subr.mxu0 0.0
          %895 = vmatpush1.msra.mxu0 0.0
          %896 = vmatprep.subr.mxu0 0.0
          %897 = vmatpush1.msra.mxu0 0.0
          %898 = vmatprep.subr.mxu0 0.0
          %899 = vmatpush1.msra.mxu0 0.0
          %900 = vmatprep.subr.mxu0 0.0
          %901 = vmatpush1.msra.mxu0 0.0
          %902 = vmatprep.subr.mxu0 0.0
          %903 = vmatpush1.msra.mxu0 0.0
          %904 = vmatprep.subr.mxu0 0.0
          %905 = vmatpush1.msra.mxu0 0.0
          %906 = vmatprep.subr.mxu0 0.0
          %907 = vmatpush1.msra.mxu0 0.0
          %908 = vmatprep.subr.mxu0 0.0
          %909 = vmatpush1.msra.mxu0 0.0
          %910 = vmatprep.subr.mxu0 0.0
          %911 = vmatpush1.msra.mxu0 0.0
          %912 = vmatprep.subr.mxu0 0.0
          %913 = vmatpush1.msra.mxu0 0.0
          %914 = vmatprep.subr.mxu0 0.0
          %915 = vmatpush1.msra.mxu0 0.0
          %916 = vmatprep.subr.mxu0 0.0
          %917 = vmatpush1.msra.mxu0 0.0
          %918 = vmatprep.subr.mxu0 0.0
          %919 = vmatpush1.msra.mxu0 0.0
          %920 = vmatprep.subr.mxu0 0.0
          %921 = vmatpush1.msra.mxu0 0.0
          %922 = vmatprep.subr.mxu0 0.0
          %923 = vmatpush1.msra.mxu0 0.0
          %924 = vmatprep.subr.mxu0 0.0
          %925 = vmatpush1.msra.mxu0 0.0
          %926 = vmatprep.subr.mxu0 0.0
          %927 = vmatpush1.msra.mxu0 0.0
          %928 = vmatprep.mubr.f32.mxu0 0.0
          %929 = vmatmul.mubr.f32.gmra.mrb[0].mxu0 %v853
          %v930 = vpop.f32.mrb[0].mxu0
          %v931 = vadd.f32 0.0, %v930
          %v932 = vpop.f32.mrb[0].mxu0
          %933 = vmatprep.mubr.f32.mxu0 0.0
          %934 = vmatmul.mubr.f32.gmra.mrb[0].mxu0 %v856
          %v935 = vpop.f32.mrb[0].mxu0
          %v936 = vadd.f32 0.0, %v935
          %v937 = vpop.f32.mrb[0].mxu0
          %938 = vmatprep.mubr.f32.mxu0 0.0
          %939 = vmatmul.mubr.f32.gmra.mrb[0].mxu0 %v859
          %v940 = vpop.f32.mrb[0].mxu0
          %v941 = vadd.f32 0.0, %v940
          %v942 = vpop.f32.mrb[0].mxu0
          %943 = vmatprep.mubr.f32.mxu0 0.0
          %944 = vmatmul.mubr.f32.gmra.mrb[0].mxu0 %v862
          %v945 = vpop.f32.mrb[0].mxu0
          %v946 = vadd.f32 0.0, %v945
          %v947 = vpop.f32.mrb[0].mxu0
          %948 = vdwg.mxu0
          %s949 = scalar_lea.vmem [#allocation2], 96
          %950 = vst.msk [vmem:[%s949] sm:$0xff] %vm487, %v931
          %951 = vst.msk [vmem:[%s949 + $0x8] sm:$0xff] %vm487, %v936
          %952 = vst.msk [vmem:[%s949 + $0x10] sm:$0xff] %vm487, %v941
          %953 = vst.msk [vmem:[%s949 + $0x18] sm:$0xff] %vm487, %v946
        $region60: #{double_factorized_increase.7} parent=43 // pred_fallthru
          _
        %v954 = vld [vmem:[%s323] sm:$0xff]
        %v955 = vld [vmem:[%s323 + $0x8] sm:$0xff]
        %v956 = vld [vmem:[#allocation2] sm:$0xff]
        %v957 = vld [vmem:[#allocation2 + $0x8] sm:$0xff]
        %v958 = vld [vmem:[#allocation2 + $0x10] sm:$0xff]
        %v959 = vld [vmem:[#allocation2 + $0x18] sm:$0xff]
        %vm960 = vcmask 261120
        %v962 = vsel %vm960, %v954, 0
        %v965 = vsel %vm960, %v955, 0
        %967 = vmatprep.subr.mxu0 0.0
        %968 = vmatpush1.msra.mxu0 %v956
        %969 = vmatprep.subr.mxu0 0.0
        %970 = vmatpush1.msra.mxu0 %v957
        %971 = vmatprep.subr.mxu0 0.0
        %972 = vmatpush1.msra.mxu0 %v958
        %973 = vmatprep.subr.mxu0 0.0
        %974 = vmatpush1.msra.mxu0 %v959
        %975 = vmatprep.subr.mxu0 0.0
        %976 = vmatpush1.msra.mxu0 0.0
        %977 = vmatprep.subr.mxu0 0.0
        %978 = vmatpush1.msra.mxu0 0.0
        %979 = vmatprep.subr.mxu0 0.0
        %980 = vmatpush1.msra.mxu0 0.0
        %981 = vmatprep.subr.mxu0 0.0
        %982 = vmatpush1.msra.mxu0 0.0
        %983 = vmatprep.subr.mxu0 0.0
        %984 = vmatpush1.msra.mxu0 0.0
        %985 = vmatprep.subr.mxu0 0.0
        %986 = vmatpush1.msra.mxu0 0.0
        %987 = vmatprep.subr.mxu0 0.0
        %988 = vmatpush1.msra.mxu0 0.0
        %989 = vmatprep.subr.mxu0 0.0
        %990 = vmatpush1.msra.mxu0 0.0
        %991 = vmatprep.subr.mxu0 0.0
        %992 = vmatpush1.msra.mxu0 0.0
        %993 = vmatprep.subr.mxu0 0.0
        %994 = vmatpush1.msra.mxu0 0.0
        %995 = vmatprep.subr.mxu0 0.0
        %996 = vmatpush1.msra.mxu0 0.0
        %997 = vmatprep.subr.mxu0 0.0
        %998 = vmatpush1.msra.mxu0 0.0
        %999 = vmatprep.subr.mxu0 0.0
        %1000 = vmatpush1.msra.mxu0 0.0
        %1001 = vmatprep.subr.mxu0 0.0
        %1002 = vmatpush1.msra.mxu0 0.0
        %1003 = vmatprep.subr.mxu0 0.0
        %1004 = vmatpush1.msra.mxu0 0.0
        %1005 = vmatprep.subr.mxu0 0.0
        %1006 = vmatpush1.msra.mxu0 0.0
        %1007 = vmatprep.subr.mxu0 0.0
        %1008 = vmatpush1.msra.mxu0 0.0
        %1009 = vmatprep.subr.mxu0 0.0
        %1010 = vmatpush1.msra.mxu0 0.0
        %1011 = vmatprep.subr.mxu0 0.0
        %1012 = vmatpush1.msra.mxu0 0.0
        %1013 = vmatprep.subr.mxu0 0.0
        %1014 = vmatpush1.msra.mxu0 0.0
        %1015 = vmatprep.subr.mxu0 0.0
        %1016 = vmatpush1.msra.mxu0 0.0
        %1017 = vmatprep.subr.mxu0 0.0
        %1018 = vmatpush1.msra.mxu0 0.0
        %1019 = vmatprep.subr.mxu0 0.0
        %1020 = vmatpush1.msra.mxu0 0.0
        %1021 = vmatprep.subr.mxu0 0.0
        %1022 = vmatpush1.msra.mxu0 0.0
        %1023 = vmatprep.subr.mxu0 0.0
        %1024 = vmatpush1.msra.mxu0 0.0
        %1025 = vmatprep.subr.mxu0 0.0
        %1026 = vmatpush1.msra.mxu0 0.0
        %1027 = vmatprep.subr.mxu0 0.0
        %1028 = vmatpush1.msra.mxu0 0.0
        %1029 = vmatprep.subr.mxu0 0.0
        %1030 = vmatpush1.msra.mxu0 0.0
        %1031 = vmatprep.mubr.f32.mxu0 0.0
        %1032 = vmatmul.mubr.f32.gmra.mrb[0].mxu0 %v962
        %v1033 = vpop.f32.mrb[0].mxu0
        %v1034 = vadd.f32 0.0, %v1033
        %v1035 = vpop.f32.mrb[0].mxu0
        %1036 = vmatprep.mubr.f32.mxu0 0.0
        %1037 = vmatmul.mubr.f32.gmra.mrb[0].mxu0 %v965
        %v1038 = vpop.f32.mrb[0].mxu0
        %v1039 = vadd.f32 0.0, %v1038
        %v1040 = vpop.f32.mrb[0].mxu0
        %1041 = vdwg.mxu0
        %s1042 = sld [smem:[#allocation6]]
        %v1043 = vstv %s1042
        %v1044 = vmul.f32 %v1034, %v1043
        %v1045 = vmul.f32 %v1039, %v1043
        %s1046 = sld [smem:[#allocation8]]
        %v1047 = vstv %s1046
        %v1048 = vadd.f32 %v1044, %v1047
        %v1049 = vadd.f32 %v1045, %v1047
        %v1050 = vmax.f32 %v1048, 0.0
        %v1051 = vmax.f32 %v1049, 0.0
        %vm1052 = vcmask 523264
        %1053 = vst.msk [vmem:[%s313] sm:$0xff] %vm1052, %v1050
        %1054 = vst.msk [vmem:[%s313 + $0x8] sm:$0xff] %vm1052, %v1051
        %s1055 = scalar_lea.vmem [#allocation2], 32
        %v1056 = vld [vmem:[%s1055] sm:$0xff]
        %v1057 = vld [vmem:[%s1055 + $0x8] sm:$0xff]
        %v1058 = vld [vmem:[%s1055 + $0x10] sm:$0xff]
        %v1059 = vld [vmem:[%s1055 + $0x18] sm:$0xff]
        %1060 = vmatprep.subr.mxu0 0.0
        %1061 = vmatpush1.msra.mxu0 %v1056
        %1062 = vmatprep.subr.mxu0 0.0
        %1063 = vmatpush1.msra.mxu0 %v1057
        %1064 = vmatprep.subr.mxu0 0.0
        %1065 = vmatpush1.msra.mxu0 %v1058
        %1066 = vmatprep.subr.mxu0 0.0
        %1067 = vmatpush1.msra.mxu0 %v1059
        %1068 = vmatprep.subr.mxu0 0.0
        %1069 = vmatpush1.msra.mxu0 0.0
        %1070 = vmatprep.subr.mxu0 0.0
        %1071 = vmatpush1.msra.mxu0 0.0
        %1072 = vmatprep.subr.mxu0 0.0
        %1073 = vmatpush1.msra.mxu0 0.0
        %1074 = vmatprep.subr.mxu0 0.0
        %1075 = vmatpush1.msra.mxu0 0.0
        %1076 = vmatprep.subr.mxu0 0.0
        %1077 = vmatpush1.msra.mxu0 0.0
        %1078 = vmatprep.subr.mxu0 0.0
        %1079 = vmatpush1.msra.mxu0 0.0
        %1080 = vmatprep.subr.mxu0 0.0
        %1081 = vmatpush1.msra.mxu0 0.0
        %1082 = vmatprep.subr.mxu0 0.0
        %1083 = vmatpush1.msra.mxu0 0.0
        %1084 = vmatprep.subr.mxu0 0.0
        %1085 = vmatpush1.msra.mxu0 0.0
        %1086 = vmatprep.subr.mxu0 0.0
        %1087 = vmatpush1.msra.mxu0 0.0
        %1088 = vmatprep.subr.mxu0 0.0
        %1089 = vmatpush1.msra.mxu0 0.0
        %1090 = vmatprep.subr.mxu0 0.0
        %1091 = vmatpush1.msra.mxu0 0.0
        %1092 = vmatprep.subr.mxu0 0.0
        %1093 = vmatpush1.msra.mxu0 0.0
        %1094 = vmatprep.subr.mxu0 0.0
        %1095 = vmatpush1.msra.mxu0 0.0
        %1096 = vmatprep.subr.mxu0 0.0
        %1097 = vmatpush1.msra.mxu0 0.0
        %1098 = vmatprep.subr.mxu0 0.0
        %1099 = vmatpush1.msra.mxu0 0.0
        %1100 = vmatprep.subr.mxu0 0.0
        %1101 = vmatpush1.msra.mxu0 0.0
        %1102 = vmatprep.subr.mxu0 0.0
        %1103 = vmatpush1.msra.mxu0 0.0
        %1104 = vmatprep.subr.mxu0 0.0
        %1105 = vmatpush1.msra.mxu0 0.0
        %1106 = vmatprep.subr.mxu0 0.0
        %1107 = vmatpush1.msra.mxu0 0.0
        %1108 = vmatprep.subr.mxu0 0.0
        %1109 = vmatpush1.msra.mxu0 0.0
        %1110 = vmatprep.subr.mxu0 0.0
        %1111 = vmatpush1.msra.mxu0 0.0
        %1112 = vmatprep.subr.mxu0 0.0
        %1113 = vmatpush1.msra.mxu0 0.0
        %1114 = vmatprep.subr.mxu0 0.0
        %1115 = vmatpush1.msra.mxu0 0.0
        %1116 = vmatprep.subr.mxu0 0.0
        %1117 = vmatpush1.msra.mxu0 0.0
        %1118 = vmatprep.subr.mxu0 0.0
        %1119 = vmatpush1.msra.mxu0 0.0
        %1120 = vmatprep.subr.mxu0 0.0
        %1121 = vmatpush1.msra.mxu0 0.0
        %1122 = vmatprep.subr.mxu0 0.0
        %1123 = vmatpush1.msra.mxu0 0.0
        %1124 = vmatprep.mubr.f32.mxu0 0.0
        %1125 = vmatmul.mubr.f32.gmra.mrb[0].mxu0 %v962
        %v1126 = vpop.f32.mrb[0].mxu0
        %v1127 = vadd.f32 0.0, %v1126
        %v1128 = vpop.f32.mrb[0].mxu0
        %1129 = vmatprep.mubr.f32.mxu0 0.0
        %1130 = vmatmul.mubr.f32.gmra.mrb[0].mxu0 %v965
        %v1131 = vpop.f32.mrb[0].mxu0
        %v1132 = vadd.f32 0.0, %v1131
        %v1133 = vpop.f32.mrb[0].mxu0
        %1134 = vdwg.mxu0
        %s1135 = sld [smem:[#allocation6 + $0x1]]
        %v1136 = vstv %s1135
        %v1137 = vmul.f32 %v1127, %v1136
        %v1138 = vmul.f32 %v1132, %v1136
        %s1139 = sld [smem:[#allocation8 + $0x1]]
        %v1140 = vstv %s1139
        %v1141 = vadd.f32 %v1137, %v1140
        %v1142 = vadd.f32 %v1138, %v1140
        %v1143 = vmax.f32 %v1141, 0.0
        %v1144 = vmax.f32 %v1142, 0.0
        %s1145 = scalar_lea.vmem %s313, 16 [#allocation9]
        %1146 = vst.msk [vmem:[%s1145] sm:$0xff] %vm1052, %v1143
        %1147 = vst.msk [vmem:[%s1145 + $0x8] sm:$0xff] %vm1052, %v1144
        %s1148 = scalar_lea.vmem [#allocation2], 64
        %v1149 = vld [vmem:[%s1148] sm:$0xff]
        %v1150 = vld [vmem:[%s1148 + $0x8] sm:$0xff]
        %v1151 = vld [vmem:[%s1148 + $0x10] sm:$0xff]
        %v1152 = vld [vmem:[%s1148 + $0x18] sm:$0xff]
        %1153 = vmatprep.subr.mxu0 0.0
        %1154 = vmatpush1.msra.mxu0 %v1149
        %1155 = vmatprep.subr.mxu0 0.0
        %1156 = vmatpush1.msra.mxu0 %v1150
        %1157 = vmatprep.subr.mxu0 0.0
        %1158 = vmatpush1.msra.mxu0 %v1151
        %1159 = vmatprep.subr.mxu0 0.0
        %1160 = vmatpush1.msra.mxu0 %v1152
        %1161 = vmatprep.subr.mxu0 0.0
        %1162 = vmatpush1.msra.mxu0 0.0
        %1163 = vmatprep.subr.mxu0 0.0
        %1164 = vmatpush1.msra.mxu0 0.0
        %1165 = vmatprep.subr.mxu0 0.0
        %1166 = vmatpush1.msra.mxu0 0.0
        %1167 = vmatprep.subr.mxu0 0.0
        %1168 = vmatpush1.msra.mxu0 0.0
        %1169 = vmatprep.subr.mxu0 0.0
        %1170 = vmatpush1.msra.mxu0 0.0
        %1171 = vmatprep.subr.mxu0 0.0
        %1172 = vmatpush1.msra.mxu0 0.0
        %1173 = vmatprep.subr.mxu0 0.0
        %1174 = vmatpush1.msra.mxu0 0.0
        %1175 = vmatprep.subr.mxu0 0.0
        %1176 = vmatpush1.msra.mxu0 0.0
        %1177 = vmatprep.subr.mxu0 0.0
        %1178 = vmatpush1.msra.mxu0 0.0
        %1179 = vmatprep.subr.mxu0 0.0
        %1180 = vmatpush1.msra.mxu0 0.0
        %1181 = vmatprep.subr.mxu0 0.0
        %1182 = vmatpush1.msra.mxu0 0.0
        %1183 = vmatprep.subr.mxu0 0.0
        %1184 = vmatpush1.msra.mxu0 0.0
        %1185 = vmatprep.subr.mxu0 0.0
        %1186 = vmatpush1.msra.mxu0 0.0
        %1187 = vmatprep.subr.mxu0 0.0
        %1188 = vmatpush1.msra.mxu0 0.0
        %1189 = vmatprep.subr.mxu0 0.0
        %1190 = vmatpush1.msra.mxu0 0.0
        %1191 = vmatprep.subr.mxu0 0.0
        %1192 = vmatpush1.msra.mxu0 0.0
        %1193 = vmatprep.subr.mxu0 0.0
        %1194 = vmatpush1.msra.mxu0 0.0
        %1195 = vmatprep.subr.mxu0 0.0
        %1196 = vmatpush1.msra.mxu0 0.0
        %1197 = vmatprep.subr.mxu0 0.0
        %1198 = vmatpush1.msra.mxu0 0.0
        %1199 = vmatprep.subr.mxu0 0.0
        %1200 = vmatpush1.msra.mxu0 0.0
        %1201 = vmatprep.subr.mxu0 0.0
        %1202 = vmatpush1.msra.mxu0 0.0
        %1203 = vmatprep.subr.mxu0 0.0
        %1204 = vmatpush1.msra.mxu0 0.0
        %1205 = vmatprep.subr.mxu0 0.0
        %1206 = vmatpush1.msra.mxu0 0.0
        %1207 = vmatprep.subr.mxu0 0.0
        %1208 = vmatpush1.msra.mxu0 0.0
        %1209 = vmatprep.subr.mxu0 0.0
        %1210 = vmatpush1.msra.mxu0 0.0
        %1211 = vmatprep.subr.mxu0 0.0
        %1212 = vmatpush1.msra.mxu0 0.0
        %1213 = vmatprep.subr.mxu0 0.0
        %1214 = vmatpush1.msra.mxu0 0.0
        %1215 = vmatprep.subr.mxu0 0.0
        %1216 = vmatpush1.msra.mxu0 0.0
        %1217 = vmatprep.mubr.f32.mxu0 0.0
        %1218 = vmatmul.mubr.f32.gmra.mrb[0].mxu0 %v962
        %v1219 = vpop.f32.mrb[0].mxu0
        %v1220 = vadd.f32 0.0, %v1219
        %v1221 = vpop.f32.mrb[0].mxu0
        %1222 = vmatprep.mubr.f32.mxu0 0.0
        %1223 = vmatmul.mubr.f32.gmra.mrb[0].mxu0 %v965
        %v1224 = vpop.f32.mrb[0].mxu0
        %v1225 = vadd.f32 0.0, %v1224
        %v1226 = vpop.f32.mrb[0].mxu0
        %1227 = vdwg.mxu0
        %s1228 = sld [smem:[#allocation6 + $0x2]]
        %v1229 = vstv %s1228
        %v1230 = vmul.f32 %v1220, %v1229
        %v1231 = vmul.f32 %v1225, %v1229
        %s1232 = sld [smem:[#allocation8 + $0x2]]
        %v1233 = vstv %s1232
        %v1234 = vadd.f32 %v1230, %v1233
        %v1235 = vadd.f32 %v1231, %v1233
        %v1236 = vmax.f32 %v1234, 0.0
        %v1237 = vmax.f32 %v1235, 0.0
        %s1238 = scalar_lea.vmem %s313, 32 [#allocation9]
        %1239 = vst.msk [vmem:[%s1238] sm:$0xff] %vm1052, %v1236
        %1240 = vst.msk [vmem:[%s1238 + $0x8] sm:$0xff] %vm1052, %v1237
        %s1241 = scalar_lea.vmem [#allocation2], 96
        %v1242 = vld [vmem:[%s1241] sm:$0xff]
        %v1243 = vld [vmem:[%s1241 + $0x8] sm:$0xff]
        %v1244 = vld [vmem:[%s1241 + $0x10] sm:$0xff]
        %v1245 = vld [vmem:[%s1241 + $0x18] sm:$0xff]
        %1246 = vmatprep.subr.mxu0 0.0
        %1247 = vmatpush1.msra.mxu0 %v1242
        %1248 = vmatprep.subr.mxu0 0.0
        %1249 = vmatpush1.msra.mxu0 %v1243
        %1250 = vmatprep.subr.mxu0 0.0
        %1251 = vmatpush1.msra.mxu0 %v1244
        %1252 = vmatprep.subr.mxu0 0.0
        %1253 = vmatpush1.msra.mxu0 %v1245
        %1254 = vmatprep.subr.mxu0 0.0
        %1255 = vmatpush1.msra.mxu0 0.0
        %1256 = vmatprep.subr.mxu0 0.0
        %1257 = vmatpush1.msra.mxu0 0.0
        %1258 = vmatprep.subr.mxu0 0.0
        %1259 = vmatpush1.msra.mxu0 0.0
        %1260 = vmatprep.subr.mxu0 0.0
        %1261 = vmatpush1.msra.mxu0 0.0
        %1262 = vmatprep.subr.mxu0 0.0
        %1263 = vmatpush1.msra.mxu0 0.0
        %1264 = vmatprep.subr.mxu0 0.0
        %1265 = vmatpush1.msra.mxu0 0.0
        %1266 = vmatprep.subr.mxu0 0.0
        %1267 = vmatpush1.msra.mxu0 0.0
        %1268 = vmatprep.subr.mxu0 0.0
        %1269 = vmatpush1.msra.mxu0 0.0
        %1270 = vmatprep.subr.mxu0 0.0
        %1271 = vmatpush1.msra.mxu0 0.0
        %1272 = vmatprep.subr.mxu0 0.0
        %1273 = vmatpush1.msra.mxu0 0.0
        %1274 = vmatprep.subr.mxu0 0.0
        %1275 = vmatpush1.msra.mxu0 0.0
        %1276 = vmatprep.subr.mxu0 0.0
        %1277 = vmatpush1.msra.mxu0 0.0
        %1278 = vmatprep.subr.mxu0 0.0
        %1279 = vmatpush1.msra.mxu0 0.0
        %1280 = vmatprep.subr.mxu0 0.0
        %1281 = vmatpush1.msra.mxu0 0.0
        %1282 = vmatprep.subr.mxu0 0.0
        %1283 = vmatpush1.msra.mxu0 0.0
        %1284 = vmatprep.subr.mxu0 0.0
        %1285 = vmatpush1.msra.mxu0 0.0
        %1286 = vmatprep.subr.mxu0 0.0
        %1287 = vmatpush1.msra.mxu0 0.0
        %1288 = vmatprep.subr.mxu0 0.0
        %1289 = vmatpush1.msra.mxu0 0.0
        %1290 = vmatprep.subr.mxu0 0.0
        %1291 = vmatpush1.msra.mxu0 0.0
        %1292 = vmatprep.subr.mxu0 0.0
        %1293 = vmatpush1.msra.mxu0 0.0
        %1294 = vmatprep.subr.mxu0 0.0
        %1295 = vmatpush1.msra.mxu0 0.0
        %1296 = vmatprep.subr.mxu0 0.0
        %1297 = vmatpush1.msra.mxu0 0.0
        %1298 = vmatprep.subr.mxu0 0.0
        %1299 = vmatpush1.msra.mxu0 0.0
        %1300 = vmatprep.subr.mxu0 0.0
        %1301 = vmatpush1.msra.mxu0 0.0
        %1302 = vmatprep.subr.mxu0 0.0
        %1303 = vmatpush1.msra.mxu0 0.0
        %1304 = vmatprep.subr.mxu0 0.0
        %1305 = vmatpush1.msra.mxu0 0.0
        %1306 = vmatprep.subr.mxu0 0.0
        %1307 = vmatpush1.msra.mxu0 0.0
        %1308 = vmatprep.subr.mxu0 0.0
        %1309 = vmatpush1.msra.mxu0 0.0
        %1310 = vmatprep.mubr.f32.mxu0 0.0
        %1311 = vmatmul.mubr.f32.gmra.mrb[0].mxu0 %v962
        %v1312 = vpop.f32.mrb[0].mxu0
        %v1313 = vadd.f32 0.0, %v1312
        %v1314 = vpop.f32.mrb[0].mxu0
        %1315 = vmatprep.mubr.f32.mxu0 0.0
        %1316 = vmatmul.mubr.f32.gmra.mrb[0].mxu0 %v965
        %v1317 = vpop.f32.mrb[0].mxu0
        %v1318 = vadd.f32 0.0, %v1317
        %v1319 = vpop.f32.mrb[0].mxu0
        %1320 = vdwg.mxu0
        %s1321 = sld [smem:[#allocation6 + $0x3]]
        %v1322 = vstv %s1321
        %v1323 = vmul.f32 %v1313, %v1322
        %v1324 = vmul.f32 %v1318, %v1322
        %s1325 = sld [smem:[#allocation8 + $0x3]]
        %v1326 = vstv %s1325
        %v1327 = vadd.f32 %v1323, %v1326
        %v1328 = vadd.f32 %v1324, %v1326
        %v1329 = vmax.f32 %v1327, 0.0
        %v1330 = vmax.f32 %v1328, 0.0
        %s1331 = scalar_lea.vmem %s313, 48 [#allocation9]
        %1332 = vst.msk [vmem:[%s1331] sm:$0xff] %vm1052, %v1329
        %1333 = vst.msk [vmem:[%s1331 + $0x8] sm:$0xff] %vm1052, %v1330
        %s1334 = sand.u32 %s180, 1
        %s1335 = scalar_lea.sflag [#allocation4], %s1334
        %s1336 = sand.u32 %s180, 1
        %s1337 = smul.addr %s1336, 64
        %s1338 = scalar_lea.vmem [#allocation9], %s1337
        // Predicated region
        $region61: #{double_factorized_increase.7} parent=43 // pred_check
          %p1339 = pneg %p190
        $region62: #{double_factorized_increase.7} parent=43 // pred_check_branch
          %1341 = sbr.rel (%p1339) target = $region64
        $region63: #{double_factorized_increase.7} parent=43 // pred_region
          #allocation11 [shape = 'u32[6]{0}', space=smem, size = 0x18, scoped, tag = 'DMA stride descriptor']
          %s1342 = smul.u32 2, %s27
          %s1344 = ssub.s32 1024, 1024
          %1345 = vsyncadd %s1335, %s1344
          %s1346 = smul.addr %s26, 32
          %s1347 = sadd.s32 %s1342, %s1346
          %s1348 = smul.addr %s1347, 128
          %s1349 = scalar_lea.hbm %s6, %s1348
          %s1351 = sshll.u32 1, 14
          %s1352 = sxor.u32 4294967295, %s1351
          %s1355 = sshll.u32 7, 18
          %s1356 = sxor.u32 4294967295, %s1355
          %s1357 = sand.u32 0, %s1356
          %s1359 = sor.u32 %s1357, 0
          %s1361 = sshll.u32 3, 24
          %s1362 = sxor.u32 4294967295, %s1361
          %s1363 = sand.u32 %s1359, %s1362
          %s1365 = sor.u32 %s1363, 0
          %s1366 = sshll.u32 %s1338, 4
          %s1367 = int_to_ptr.vmem [resolvable:$true] %s1366
          %1373 = sst [smem:[#allocation11]] 256
          %s1374 = scalar_lea.smem [#allocation11], 1
          %1375 = sst [smem:[%s1374]] 1024
          %s1376 = scalar_lea.smem [#allocation11], 2
          %1377 = sst [smem:[%s1376]] 2
          %s1378 = scalar_lea.smem [#allocation11], 3
          %1379 = sst [smem:[%s1378]] 128
          %s1380 = scalar_lea.smem [#allocation11], 4
          %1381 = sst [smem:[%s1380]] 128
          %s1382 = scalar_lea.smem [#allocation11], 5
          %1383 = sst [smem:[%s1382]] 8
          %1385 = dma.general %s1367, 1024, %s1349, %s1335, [#allocation10], [#allocation11], %s1365, 0
        $region64: #{double_factorized_increase.7} parent=43 // pred_fallthru
          _
      $region44: #{double_factorized_increase.7} parent=5 // pred_fallthru
        _
      %p1386 = scmp.le.s32.totalorder 2, %s17
      // Predicated region
      $region65: #{double_factorized_increase.7} parent=5 // pred_check
        %p1387 = pneg %p1386
      $region66: #{double_factorized_increase.7} parent=5 // pred_check_branch
        %1389 = sbr.rel (%p1387) target = $region68
      $region67: #{double_factorized_increase.7} parent=5 // pred_region
        %s1390 = ssub.s32 %s17, 2
        // Predicated region
        $region69: #{double_factorized_increase.7} parent=67 // pred_check
          %p1391 = pneg %p196
        $region70: #{double_factorized_increase.7} parent=67 // pred_check_branch
          %1393 = sbr.rel (%p1391) target = $region72
        $region71: #{double_factorized_increase.7} parent=67 // pred_region
          %s1394 = sand.u32 %s181, 1
          %s1395 = scalar_lea.sflag [#allocation4], %s1394
          %s1396 = sand.u32 %s181, 1
          %s1397 = smul.addr %s1396, 64
          %s1398 = scalar_lea.vmem [#allocation9], %s1397
          %1399 = dma.done %s1395, 1024
        $region72: #{double_factorized_increase.7} parent=67 // pred_fallthru
          _
      $region68: #{double_factorized_increase.7} parent=5 // pred_fallthru
        _
    $region6: #{double_factorized_increase.7} parent=1 // loop_footer
      %s21 = sadd.s32 1, %s17
    $region7: #{double_factorized_increase.7} parent=1 // loop_footer_branch
      %16 = sbr.rel target = $region3
    $region8: #{double_factorized_increase.7} parent=1 // loop_exit
      _
    %1400 = vsyncpa [#allocation4], 1
    %s1401 = scalar_lea.sflag [#allocation4], 1
    %1402 = vsyncpa %s1401, 1
    %1403 = vsyncpa [#allocation5], 1
    %s1404 = scalar_lea.sflag [#allocation5], 1
    %1405 = vsyncpa %s1404, 1
    %1406 = vsyncpa [#allocation7], 1

</llo_original>
